<compile_context>
chip_gen: v6e
topology: v6e:2x2x1
jax: 0.10.0
libtpu: 0.0.40
codegen_flags: <defaults>
</compile_context>

<pallas_src>
import jax
import jax.numpy as jnp
from jax.experimental import pallas as pl
from jax.experimental.pallas import tpu as pltpu

IN_CH = 16     # in_channels
OUT_CH = 32    # out_channels
HID = 64       # hidden width of pos_nn / attn_nn MLPs
N = 32         # number of points (nodes) per graph
B = 4          # graphs per batched launch


def _tblock_kernel(x_ref, pos_ref, mblk_ref, negb_ref,
                   w_in_ref, b_in_ref, w_nsd_ref,
                   wp1_ref, bp1_ref, wp2_ref, bp2_ref,
                   wa1_ref, ba1_ref, wa2_ref, ba2_ref,
                   w_out_ref, b_out_ref, y_ref):
  f32 = jnp.float32
  bf16 = jnp.bfloat16
  n = x_ref.shape[0]        # nodes (sources == destinations)
  c = y_ref.shape[1]        # out_channels

  def mm(a, w, bf=False):
    # bf=True: cast MXU operands to bf16, accumulate in f32 (elementwise chain stays f32).
    if bf:
      a = a.astype(bf16)
      w = w.astype(bf16)
    return jnp.dot(a, w, preferred_element_type=f32)

  def relu(v):
    return jnp.maximum(v, 0.0)

  # ---- shared node projections (weights resident across the whole batch) -------------------
  h = relu(mm(x_ref[...], w_in_ref[...]) + b_in_ref[...])            # relu(lin_in(x)), [N, Cin]
  nsd = mm(h, w_nsd_ref[...])                                        # fused lin|lin_src|lin_dst, [N, 3C]
  v_all = nsd[:, :c]                                                 # value projection (lin)
  a_src = nsd[:, c:2 * c]                                            # alpha_j (lin_src)
  a_dst = nsd[:, 2 * c:]                                             # alpha_i (lin_dst)

  # ---- pairwise pos_nn / attn_nn, batched over all (dst, src) pairs ------------------------
  # pos_nn layer 1 via linearity: (pos_i - pos_j) @ Wp1 == P_i - P_j with P = pos @ Wp1.
  p1 = mm(pos_ref[...], wp1_ref[...])                                # [N, HID]
  diff1 = (p1[:, None, :] - p1[None, :, :]).reshape(n * n, -1)       # [N*N, HID]
  t1 = relu(diff1 + bp1_ref[...])                                    # [N*N, HID]
  delta = relu(mm(t1, wp2_ref[...], bf=True) + bp2_ref[...])         # [N*N, C]
  delta3 = delta.reshape(n, n, c)

  # attn_nn(alpha_i - alpha_j + delta)
  g = ((a_dst[:, None, :] - a_src[None, :, :]) + delta3).reshape(n * n, c)
  z = relu(mm(g, wa1_ref[...], bf=True) + ba1_ref[...])              # [N*N, HID]
  gamma = relu(mm(z, wa2_ref[...], bf=True) + ba2_ref[...])          # [N*N, C]

  # ---- masked, channel-wise softmax over incoming edges + aggregation ----------------------
  # negb[i*N + j] = 0 if adj[i, j] else -1e30  =>  gm holds the masked logits; the per-row
  # max is the exact masked per-destination max and exp() of non-edges is exactly 0.
  gm3 = (gamma + negb_ref[...]).reshape(n, n, c)                     # [N, N, C]
  row_max = jnp.max(gm3, axis=1, keepdims=True)                      # [N, 1, C] masked row max
  e3 = jnp.exp(gm3 - row_max)                                        # [N, N, C], non-edges == 0
  msg3 = e3 * (v_all[None, :, :] + delta3)                           # [N, N, C]

  # Fused masked reductions: Mblk[i, i*N + j] = adj[i, j], so one lane-dense K=N*N matmul
  # yields both the denominator and the numerator.
  cat = jnp.concatenate([e3, msg3], axis=-1).reshape(n * n, 2 * c)   # [N*N, 2C]
  dn = mm(mblk_ref[...], cat, bf=True)                               # [N, 2C]
  den = dn[:, :c]
  num = dn[:, c:]
  agg = num * pl.reciprocal(den, approx=True)                        # [N, C] (EUP slot)

  # ---- x = relu(lin_out(x)); single lane-dense full-tile store -----------------------------
  y_ref[...] = relu(mm(agg, w_out_ref[...]) + b_out_ref[...]).astype(y_ref.dtype)


def _mask_operands(adj):
  # adj: [N, N] 0/1, adj[dst, src].  Returns:
  #   mblk[i, i*N + j] = adj[i, j]           (lane-dense MXU mask for the fused reduction)
  #   negb[i*N + j, 0] = 0 / -1e30           (additive pair bias for the masked softmax max)
  n = adj.shape[0]
  mblk = (jnp.eye(n, dtype=adj.dtype)[:, :, None] * adj[:, None, :]).reshape(n, n * n)
  negb = jnp.where(adj.reshape(n * n, 1) > 0, 0.0, -1e30).astype(jnp.float32)
  return mblk, negb


def transformer_block(x, pos, adj, params):
  # x: [B, N, Cin], pos: [B, N, 3], adj: [B, N, N] (adj[b, dst, src] in {0, 1}).
  b, n, in_ch = x.shape
  c = params["w_lin"].shape[1]

  mblk, negb = jax.vmap(_mask_operands)(adj)
  # Fused node-projection weight (lin | lin_src | lin_dst): one MXU op, three lane slices.
  w_nsd = jnp.concatenate([params["w_lin"], params["w_src"], params["w_dst"]], axis=1)

  weights = [params["w_in"], params["b_in"], w_nsd,
             params["wp1"], params["bp1"], params["wp2"], params["bp2"],
             params["wa1"], params["ba1"], params["wa2"], params["ba2"],
             params["w_out"], params["b_out"]]

  batched_specs = [
      pl.BlockSpec((None, n, in_ch), lambda i: (i, 0, 0)),           # x
      pl.BlockSpec((None, n, pos.shape[-1]), lambda i: (i, 0, 0)),   # pos
      pl.BlockSpec((None, n, n * n), lambda i: (i, 0, 0)),           # mblk
      pl.BlockSpec((None, n * n, 1), lambda i: (i, 0, 0)),           # negb
  ]
  # Constant index_map => weights stay resident; only per-graph operands are pipelined.
  weight_specs = [pl.BlockSpec(w.shape, lambda i: (0, 0)) for w in weights]

  return pl.pallas_call(
      _tblock_kernel,
      out_shape=jax.ShapeDtypeStruct((b, n, c), jnp.float32),
      grid=(b,),
      in_specs=batched_specs + weight_specs,
      out_specs=pl.BlockSpec((None, n, c), lambda i: (i, 0, 0)),
      compiler_params=pltpu.CompilerParams(dimension_semantics=("parallel",)),
  )(x, pos, mblk, negb, *weights)


def init_params(key, in_ch, out_ch, hid):
  ks = jax.random.split(key, 15)

  def w(k, fi, fo):
    return jax.random.uniform(k, (fi, fo), jnp.float32, -1.0, 1.0) / jnp.sqrt(fi)

  def b(k, fi, fo):
    return jax.random.uniform(k, (1, fo), jnp.float32, -1.0, 1.0) / jnp.sqrt(fi)

  return {
      "w_in": w(ks[0], in_ch, in_ch), "b_in": b(ks[1], in_ch, in_ch),
      "w_lin": w(ks[2], in_ch, out_ch),       # PointTransformerConv.lin (no bias)
      "w_src": w(ks[3], in_ch, out_ch),       # lin_src (no bias)
      "w_dst": w(ks[4], in_ch, out_ch),       # lin_dst (no bias)
      "wp1": w(ks[5], 3, hid), "bp1": b(ks[6], 3, hid),
      "wp2": w(ks[7], hid, out_ch), "bp2": b(ks[8], hid, out_ch),
      "wa1": w(ks[9], out_ch, hid), "ba1": b(ks[10], out_ch, hid),
      "wa2": w(ks[11], hid, out_ch), "ba2": b(ks[12], hid, out_ch),
      "w_out": w(ks[13], out_ch, out_ch), "b_out": b(ks[14], out_ch, out_ch),
  }


def edges_to_adj(edge_index, n):
  # adj[dst, src] = 1 for each edge; remove self loops then add self loops (PyG default).
  # The self-loops guarantee every destination has >= 1 incoming edge (softmax invariant).
  # TODO(synk): duplicate edges (multigraph) are not representable in a dense 0/1 mask.
  src, dst = edge_index[0], edge_index[1]
  adj = jnp.zeros((n, n), jnp.float32).at[dst, src].set(1.0)
  idx = jnp.arange(n)
  adj = adj.at[idx, idx].set(1.0)
  return adj


def reference(x, pos, adj, p):
  # Pure-JAX (f32) dense reference of the same forward pass, single graph.
  relu = jax.nn.relu
  h = relu(x @ p["w_in"] + p["b_in"])
  v = h @ p["w_lin"]
  a_src = h @ p["w_src"]
  a_dst = h @ p["w_dst"]
  diff = pos[:, None, :] - pos[None, :, :]
  delta = relu(relu(diff @ p["wp1"] + p["bp1"]) @ p["wp2"] + p["bp2"])
  g = a_dst[:, None, :] - a_src[None, :, :] + delta
  gamma = relu(relu(g @ p["wa1"] + p["ba1"]) @ p["wa2"] + p["ba2"])
  mask = adj[:, :, None]
  neg = jnp.where(mask > 0, gamma, -1e30)
  e = jnp.exp(neg - neg.max(axis=1, keepdims=True)) * mask
  alpha = e / e.sum(axis=1, keepdims=True)
  out = (alpha * (v[None, :, :] + delta)).sum(axis=1)
  return relu(out @ p["w_out"] + p["b_out"])


if __name__ == "__main__":
  key = jax.random.PRNGKey(0)
  k_x, k_pos, k_p = jax.random.split(key, 3)

  x = jax.random.normal(k_x, (B, N, IN_CH), jnp.float32)
  pos = jax.random.normal(k_pos, (B, N, 3), jnp.float32)
  params = init_params(k_p, IN_CH, OUT_CH, HID)

  # Deterministic per-graph directed graphs: each node receives 4 distinct incoming edges.
  adjs = []
  for g in range(B):
    offsets = jnp.array([1 + g, 6 + g, 13, 21 + g], dtype=jnp.int32)
    dst = jnp.repeat(jnp.arange(N, dtype=jnp.int32), offsets.shape[0])
    src = (dst + jnp.tile(offsets, N)) % N
    edge_index = jnp.stack([src, dst])        # [2, E], row0 = src, row1 = dst (PyG convention)
    adjs.append(edges_to_adj(edge_index, N))
  adj = jnp.stack(adjs)                       # [B, N_dst, N_src]

  y = jax.block_until_ready(transformer_block(x, pos, adj, params))

  y_ref = jax.vmap(lambda xg, pg, ag: reference(xg, pg, ag, params))(x, pos, adj)
  assert y.shape == (B, N, OUT_CH)
  max_err = float(jnp.max(jnp.abs(y - y_ref)))
  # Tolerance accounts for bf16 MXU operands (f32 accumulation) vs the pure-f32 reference.
  assert jnp.allclose(y, y_ref, atol=2e-2, rtol=2e-2), max_err
  print("KERNEL_OK")
</pallas_src>

<mosaic_0001>
module attributes {stable_mosaic.version = 11 : i64} {
  func.func @_tblock_kernel(%arg0: i32, %arg1: memref<1x32x16xf32, #tpu.memory_space<vmem>>, %arg2: memref<1x32x3xf32, #tpu.memory_space<vmem>>, %arg3: memref<1x32x1024xf32, #tpu.memory_space<vmem>>, %arg4: memref<1x1024x1xf32, #tpu.memory_space<vmem>>, %arg5: memref<16x16xf32, #tpu.memory_space<vmem>>, %arg6: memref<1x16xf32, #tpu.memory_space<vmem>>, %arg7: memref<16x96xf32, #tpu.memory_space<vmem>>, %arg8: memref<3x64xf32, #tpu.memory_space<vmem>>, %arg9: memref<1x64xf32, #tpu.memory_space<vmem>>, %arg10: memref<64x32xf32, #tpu.memory_space<vmem>>, %arg11: memref<1x32xf32, #tpu.memory_space<vmem>>, %arg12: memref<32x64xf32, #tpu.memory_space<vmem>>, %arg13: memref<1x64xf32, #tpu.memory_space<vmem>>, %arg14: memref<64x32xf32, #tpu.memory_space<vmem>>, %arg15: memref<1x32xf32, #tpu.memory_space<vmem>>, %arg16: memref<32x32xf32, #tpu.memory_space<vmem>>, %arg17: memref<1x32xf32, #tpu.memory_space<vmem>>, %arg18: memref<1x32x32xf32, #tpu.memory_space<vmem>>) attributes {dimension_semantics = [#tpu.dimension_semantics<parallel>], iteration_bounds = array<i64: 4>, scalar_prefetch = 0 : i64, scratch_operands = 0 : i64, tpu.core_type = #tpu.core_type<tc>, window_params = [{transform_indices = @transform_0, window_bounds = array<i64: 1, 32, 16>}, {transform_indices = @transform_1, window_bounds = array<i64: 1, 32, 3>}, {transform_indices = @transform_2, window_bounds = array<i64: 1, 32, 1024>}, {transform_indices = @transform_3, window_bounds = array<i64: 1, 1024, 1>}, {pipeline_mode = #tpu.pipeline_mode<synchronous>, transform_indices = @transform_4, window_bounds = array<i64: 16, 16>}, {pipeline_mode = #tpu.pipeline_mode<synchronous>, transform_indices = @transform_5, window_bounds = array<i64: 1, 16>}, {pipeline_mode = #tpu.pipeline_mode<synchronous>, transform_indices = @transform_6, window_bounds = array<i64: 16, 96>}, {pipeline_mode = #tpu.pipeline_mode<synchronous>, transform_indices = @transform_7, window_bounds = array<i64: 3, 64>}, {pipeline_mode = #tpu.pipeline_mode<synchronous>, transform_indices = @transform_8, window_bounds = array<i64: 1, 64>}, {pipeline_mode = #tpu.pipeline_mode<synchronous>, transform_indices = @transform_9, window_bounds = array<i64: 64, 32>}, {pipeline_mode = #tpu.pipeline_mode<synchronous>, transform_indices = @transform_10, window_bounds = array<i64: 1, 32>}, {pipeline_mode = #tpu.pipeline_mode<synchronous>, transform_indices = @transform_11, window_bounds = array<i64: 32, 64>}, {pipeline_mode = #tpu.pipeline_mode<synchronous>, transform_indices = @transform_12, window_bounds = array<i64: 1, 64>}, {pipeline_mode = #tpu.pipeline_mode<synchronous>, transform_indices = @transform_13, window_bounds = array<i64: 64, 32>}, {pipeline_mode = #tpu.pipeline_mode<synchronous>, transform_indices = @transform_14, window_bounds = array<i64: 1, 32>}, {pipeline_mode = #tpu.pipeline_mode<synchronous>, transform_indices = @transform_15, window_bounds = array<i64: 32, 32>}, {pipeline_mode = #tpu.pipeline_mode<synchronous>, transform_indices = @transform_16, window_bounds = array<i64: 1, 32>}, {transform_indices = @transform_17, window_bounds = array<i64: 1, 32, 32>}]} {
    %c0 = arith.constant 0 : index
    %c0_0 = arith.constant 0 : index
    %c0_1 = arith.constant 0 : index
    %0 = vector.load %arg1[%c0, %c0_0, %c0_1] : memref<1x32x16xf32, #tpu.memory_space<vmem>>, vector<1x32x16xf32>
    %1 = vector.shape_cast %0 : vector<1x32x16xf32> to vector<32x16xf32>
    %c0_2 = arith.constant 0 : index
    %c0_3 = arith.constant 0 : index
    %2 = vector.load %arg5[%c0_2, %c0_3] : memref<16x16xf32, #tpu.memory_space<vmem>>, vector<16x16xf32>
    %cst = arith.constant dense<0.000000e+00> : vector<32x16xf32>
    %3 = tpu.matmul %1, %2, %cst {dimension_numbers = #tpu.dot_dimension_numbers<[1], [0], [0], [1], [0, 0, 1, 1], [], []>} : vector<32x16xf32>, vector<16x16xf32>, vector<32x16xf32> -> vector<32x16xf32>
    %c0_4 = arith.constant 0 : index
    %c0_5 = arith.constant 0 : index
    %4 = vector.load %arg6[%c0_4, %c0_5] : memref<1x16xf32, #tpu.memory_space<vmem>>, vector<1x16xf32>
    %5 = vector.broadcast %4 : vector<1x16xf32> to vector<32x16xf32>
    %6 = arith.addf %3, %5 : vector<32x16xf32>
    %cst_6 = arith.constant 0.000000e+00 : f32
    %7 = vector.broadcast %cst_6 : f32 to vector<32x16xf32>
    %8 = arith.maximumf %6, %7 : vector<32x16xf32>
    %c0_7 = arith.constant 0 : index
    %c0_8 = arith.constant 0 : index
    %9 = vector.load %arg7[%c0_7, %c0_8] : memref<16x96xf32, #tpu.memory_space<vmem>>, vector<16x96xf32>
    %cst_9 = arith.constant dense<0.000000e+00> : vector<32x96xf32>
    %10 = tpu.matmul %8, %9, %cst_9 {dimension_numbers = #tpu.dot_dimension_numbers<[1], [0], [0], [1], [0, 0, 1, 1], [], []>} : vector<32x16xf32>, vector<16x96xf32>, vector<32x96xf32> -> vector<32x96xf32>
    %11 = vector.extract_strided_slice %10 {offsets = [0, 0], sizes = [32, 32], strides = [1, 1]} : vector<32x96xf32> to vector<32x32xf32>
    %12 = vector.extract_strided_slice %10 {offsets = [0, 32], sizes = [32, 32], strides = [1, 1]} : vector<32x96xf32> to vector<32x32xf32>
    %13 = vector.extract_strided_slice %10 {offsets = [0, 64], sizes = [32, 32], strides = [1, 1]} : vector<32x96xf32> to vector<32x32xf32>
    %c0_10 = arith.constant 0 : index
    %c0_11 = arith.constant 0 : index
    %c0_12 = arith.constant 0 : index
    %14 = vector.load %arg2[%c0_10, %c0_11, %c0_12] : memref<1x32x3xf32, #tpu.memory_space<vmem>>, vector<1x32x3xf32>
    %15 = vector.shape_cast %14 : vector<1x32x3xf32> to vector<32x3xf32>
    %c0_13 = arith.constant 0 : index
    %c0_14 = arith.constant 0 : index
    %16 = vector.load %arg8[%c0_13, %c0_14] : memref<3x64xf32, #tpu.memory_space<vmem>>, vector<3x64xf32>
    %cst_15 = arith.constant dense<0.000000e+00> : vector<32x64xf32>
    %17 = tpu.matmul %15, %16, %cst_15 {dimension_numbers = #tpu.dot_dimension_numbers<[1], [0], [0], [1], [0, 0, 1, 1], [], []>} : vector<32x3xf32>, vector<3x64xf32>, vector<32x64xf32> -> vector<32x64xf32>
    %18 = vector.shape_cast %17 : vector<32x64xf32> to vector<32x1x64xf32>
    %19 = vector.shape_cast %17 : vector<32x64xf32> to vector<1x32x64xf32>
    %20 = vector.broadcast %18 : vector<32x1x64xf32> to vector<32x32x64xf32>
    %21 = vector.broadcast %19 : vector<1x32x64xf32> to vector<32x32x64xf32>
    %22 = arith.subf %20, %21 : vector<32x32x64xf32>
    %23 = vector.shape_cast %22 : vector<32x32x64xf32> to vector<1024x64xf32>
    %c0_16 = arith.constant 0 : index
    %c0_17 = arith.constant 0 : index
    %24 = vector.load %arg9[%c0_16, %c0_17] : memref<1x64xf32, #tpu.memory_space<vmem>>, vector<1x64xf32>
    %25 = vector.broadcast %24 : vector<1x64xf32> to vector<1024x64xf32>
    %26 = arith.addf %23, %25 : vector<1024x64xf32>
    %cst_18 = arith.constant 0.000000e+00 : f32
    %27 = vector.broadcast %cst_18 : f32 to vector<1024x64xf32>
    %28 = arith.maximumf %26, %27 : vector<1024x64xf32>
    %c0_19 = arith.constant 0 : index
    %c0_20 = arith.constant 0 : index
    %29 = vector.load %arg10[%c0_19, %c0_20] : memref<64x32xf32, #tpu.memory_space<vmem>>, vector<64x32xf32>
    %30 = arith.truncf %28 : vector<1024x64xf32> to vector<1024x64xbf16>
    %31 = arith.truncf %29 : vector<64x32xf32> to vector<64x32xbf16>
    %cst_21 = arith.constant dense<0.000000e+00> : vector<1024x32xf32>
    %32 = tpu.matmul %30, %31, %cst_21 {dimension_numbers = #tpu.dot_dimension_numbers<[1], [0], [0], [1], [0, 0, 1, 1], [], []>} : vector<1024x64xbf16>, vector<64x32xbf16>, vector<1024x32xf32> -> vector<1024x32xf32>
    %c0_22 = arith.constant 0 : index
    %c0_23 = arith.constant 0 : index
    %33 = vector.load %arg11[%c0_22, %c0_23] : memref<1x32xf32, #tpu.memory_space<vmem>>, vector<1x32xf32>
    %34 = vector.broadcast %33 : vector<1x32xf32> to vector<1024x32xf32>
    %35 = arith.addf %32, %34 : vector<1024x32xf32>
    %cst_24 = arith.constant 0.000000e+00 : f32
    %36 = vector.broadcast %cst_24 : f32 to vector<1024x32xf32>
    %37 = arith.maximumf %35, %36 : vector<1024x32xf32>
    %38 = vector.shape_cast %37 : vector<1024x32xf32> to vector<32x32x32xf32>
    %39 = vector.shape_cast %13 : vector<32x32xf32> to vector<32x1x32xf32>
    %40 = vector.shape_cast %12 : vector<32x32xf32> to vector<1x32x32xf32>
    %41 = vector.broadcast %39 : vector<32x1x32xf32> to vector<32x32x32xf32>
    %42 = vector.broadcast %40 : vector<1x32x32xf32> to vector<32x32x32xf32>
    %43 = arith.subf %41, %42 : vector<32x32x32xf32>
    %44 = arith.addf %43, %38 : vector<32x32x32xf32>
    %45 = vector.shape_cast %44 : vector<32x32x32xf32> to vector<1024x32xf32>
    %c0_25 = arith.constant 0 : index
    %c0_26 = arith.constant 0 : index
    %46 = vector.load %arg12[%c0_25, %c0_26] : memref<32x64xf32, #tpu.memory_space<vmem>>, vector<32x64xf32>
    %47 = arith.truncf %45 : vector<1024x32xf32> to vector<1024x32xbf16>
    %48 = arith.truncf %46 : vector<32x64xf32> to vector<32x64xbf16>
    %cst_27 = arith.constant dense<0.000000e+00> : vector<1024x64xf32>
    %49 = tpu.matmul %47, %48, %cst_27 {dimension_numbers = #tpu.dot_dimension_numbers<[1], [0], [0], [1], [0, 0, 1, 1], [], []>} : vector<1024x32xbf16>, vector<32x64xbf16>, vector<1024x64xf32> -> vector<1024x64xf32>
    %c0_28 = arith.constant 0 : index
    %c0_29 = arith.constant 0 : index
    %50 = vector.load %arg13[%c0_28, %c0_29] : memref<1x64xf32, #tpu.memory_space<vmem>>, vector<1x64xf32>
    %51 = vector.broadcast %50 : vector<1x64xf32> to vector<1024x64xf32>
    %52 = arith.addf %49, %51 : vector<1024x64xf32>
    %cst_30 = arith.constant 0.000000e+00 : f32
    %53 = vector.broadcast %cst_30 : f32 to vector<1024x64xf32>
    %54 = arith.maximumf %52, %53 : vector<1024x64xf32>
    %c0_31 = arith.constant 0 : index
    %c0_32 = arith.constant 0 : index
    %55 = vector.load %arg14[%c0_31, %c0_32] : memref<64x32xf32, #tpu.memory_space<vmem>>, vector<64x32xf32>
    %56 = arith.truncf %54 : vector<1024x64xf32> to vector<1024x64xbf16>
    %57 = arith.truncf %55 : vector<64x32xf32> to vector<64x32xbf16>
    %cst_33 = arith.constant dense<0.000000e+00> : vector<1024x32xf32>
    %58 = tpu.matmul %56, %57, %cst_33 {dimension_numbers = #tpu.dot_dimension_numbers<[1], [0], [0], [1], [0, 0, 1, 1], [], []>} : vector<1024x64xbf16>, vector<64x32xbf16>, vector<1024x32xf32> -> vector<1024x32xf32>
    %c0_34 = arith.constant 0 : index
    %c0_35 = arith.constant 0 : index
    %59 = vector.load %arg15[%c0_34, %c0_35] : memref<1x32xf32, #tpu.memory_space<vmem>>, vector<1x32xf32>
    %60 = vector.broadcast %59 : vector<1x32xf32> to vector<1024x32xf32>
    %61 = arith.addf %58, %60 : vector<1024x32xf32>
    %cst_36 = arith.constant 0.000000e+00 : f32
    %62 = vector.broadcast %cst_36 : f32 to vector<1024x32xf32>
    %63 = arith.maximumf %61, %62 : vector<1024x32xf32>
    %c0_37 = arith.constant 0 : index
    %c0_38 = arith.constant 0 : index
    %c0_39 = arith.constant 0 : index
    %64 = vector.load %arg4[%c0_37, %c0_38, %c0_39] : memref<1x1024x1xf32, #tpu.memory_space<vmem>>, vector<1x1024x1xf32>
    %65 = vector.shape_cast %64 : vector<1x1024x1xf32> to vector<1024x1xf32>
    %66 = vector.broadcast %65 : vector<1024x1xf32> to vector<1024x32xf32>
    %67 = arith.addf %63, %66 : vector<1024x32xf32>
    %68 = vector.shape_cast %67 : vector<1024x32xf32> to vector<32x32x32xf32>
    %cst_40 = arith.constant dense<0xFF800000> : vector<32x32xf32>
    %69 = vector.multi_reduction <maximumf>, %68, %cst_40 [1] : vector<32x32x32xf32> to vector<32x32xf32>
    %70 = vector.shape_cast %69 : vector<32x32xf32> to vector<32x1x32xf32>
    %71 = vector.broadcast %70 : vector<32x1x32xf32> to vector<32x32x32xf32>
    %72 = arith.subf %68, %71 : vector<32x32x32xf32>
    %73 = math.exp %72 : vector<32x32x32xf32>
    %74 = vector.shape_cast %11 : vector<32x32xf32> to vector<1x32x32xf32>
    %75 = vector.broadcast %74 : vector<1x32x32xf32> to vector<32x32x32xf32>
    %76 = arith.addf %75, %38 : vector<32x32x32xf32>
    %77 = arith.mulf %73, %76 : vector<32x32x32xf32>
    %78 = tpu.concatenate %73, %77 in 2 : vector<32x32x32xf32>, vector<32x32x32xf32> -> vector<32x32x64xf32>
    %79 = vector.shape_cast %78 : vector<32x32x64xf32> to vector<1024x64xf32>
    %c0_41 = arith.constant 0 : index
    %c0_42 = arith.constant 0 : index
    %c0_43 = arith.constant 0 : index
    %80 = vector.load %arg3[%c0_41, %c0_42, %c0_43] : memref<1x32x1024xf32, #tpu.memory_space<vmem>>, vector<1x32x1024xf32>
    %81 = vector.shape_cast %80 : vector<1x32x1024xf32> to vector<32x1024xf32>
    %82 = arith.truncf %81 : vector<32x1024xf32> to vector<32x1024xbf16>
    %83 = arith.truncf %79 : vector<1024x64xf32> to vector<1024x64xbf16>
    %cst_44 = arith.constant dense<0.000000e+00> : vector<32x64xf32>
    %84 = tpu.matmul %82, %83, %cst_44 {dimension_numbers = #tpu.dot_dimension_numbers<[1], [0], [0], [1], [0, 0, 1, 1], [], []>} : vector<32x1024xbf16>, vector<1024x64xbf16>, vector<32x64xf32> -> vector<32x64xf32>
    %85 = vector.extract_strided_slice %84 {offsets = [0, 0], sizes = [32, 32], strides = [1, 1]} : vector<32x64xf32> to vector<32x32xf32>
    %86 = vector.extract_strided_slice %84 {offsets = [0, 32], sizes = [32, 32], strides = [1, 1]} : vector<32x64xf32> to vector<32x32xf32>
    %87 = tpu.reciprocal %85 {approx = true} : vector<32x32xf32> -> vector<32x32xf32>
    %88 = arith.mulf %86, %87 : vector<32x32xf32>
    %c0_45 = arith.constant 0 : index
    %c0_46 = arith.constant 0 : index
    %89 = vector.load %arg16[%c0_45, %c0_46] : memref<32x32xf32, #tpu.memory_space<vmem>>, vector<32x32xf32>
    %cst_47 = arith.constant dense<0.000000e+00> : vector<32x32xf32>
    %90 = tpu.matmul %88, %89, %cst_47 {dimension_numbers = #tpu.dot_dimension_numbers<[1], [0], [0], [1], [0, 0, 1, 1], [], []>} : vector<32x32xf32>, vector<32x32xf32>, vector<32x32xf32> -> vector<32x32xf32>
    %c0_48 = arith.constant 0 : index
    %c0_49 = arith.constant 0 : index
    %91 = vector.load %arg17[%c0_48, %c0_49] : memref<1x32xf32, #tpu.memory_space<vmem>>, vector<1x32xf32>
    %92 = vector.broadcast %91 : vector<1x32xf32> to vector<32x32xf32>
    %93 = arith.addf %90, %92 : vector<32x32xf32>
    %cst_50 = arith.constant 0.000000e+00 : f32
    %94 = vector.broadcast %cst_50 : f32 to vector<32x32xf32>
    %95 = arith.maximumf %93, %94 : vector<32x32xf32>
    %c0_51 = arith.constant 0 : index
    %c0_52 = arith.constant 0 : index
    %c0_53 = arith.constant 0 : index
    %96 = vector.load %arg18[%c0_51, %c0_52, %c0_53] : memref<1x32x32xf32, #tpu.memory_space<vmem>>, vector<1x32x32xf32>
    %97 = vector.shape_cast %96 : vector<1x32x32xf32> to vector<32x32xf32>
    %98 = vector.shape_cast %95 : vector<32x32xf32> to vector<1x32x32xf32>
    tpu.vector_store %arg18[%c0_51, %c0_52, %c0_53], %98 {strides = array<i32>} : memref<1x32x32xf32, #tpu.memory_space<vmem>>, vector<1x32x32xf32>,
    return
  }
  func.func @transform_0(%arg0: i32) -> (i32, i32, i32) {
    %c0_i32 = arith.constant 0 : i32
    %c0_i32_0 = arith.constant 0 : i32
    %c0_i32_1 = arith.constant 0 : i32
    return %arg0, %c0_i32, %c0_i32_0 : i32, i32, i32
  }
  func.func @transform_1(%arg0: i32) -> (i32, i32, i32) {
    %c0_i32 = arith.constant 0 : i32
    %c0_i32_0 = arith.constant 0 : i32
    %c0_i32_1 = arith.constant 0 : i32
    return %arg0, %c0_i32, %c0_i32_0 : i32, i32, i32
  }
  func.func @transform_2(%arg0: i32) -> (i32, i32, i32) {
    %c0_i32 = arith.constant 0 : i32
    %c0_i32_0 = arith.constant 0 : i32
    %c0_i32_1 = arith.constant 0 : i32
    return %arg0, %c0_i32, %c0_i32_0 : i32, i32, i32
  }
  func.func @transform_3(%arg0: i32) -> (i32, i32, i32) {
    %c0_i32 = arith.constant 0 : i32
    %c0_i32_0 = arith.constant 0 : i32
    %c0_i32_1 = arith.constant 0 : i32
    return %arg0, %c0_i32, %c0_i32_0 : i32, i32, i32
  }
  func.func @transform_4(%arg0: i32) -> (i32, i32) {
    %c0_i32 = arith.constant 0 : i32
    %c0_i32_0 = arith.constant 0 : i32
    %c0_i32_1 = arith.constant 0 : i32
    return %c0_i32, %c0_i32_0 : i32, i32
  }
  func.func @transform_5(%arg0: i32) -> (i32, i32) {
    %c0_i32 = arith.constant 0 : i32
    %c0_i32_0 = arith.constant 0 : i32
    %c0_i32_1 = arith.constant 0 : i32
    return %c0_i32, %c0_i32_0 : i32, i32
  }
  func.func @transform_6(%arg0: i32) -> (i32, i32) {
    %c0_i32 = arith.constant 0 : i32
    %c0_i32_0 = arith.constant 0 : i32
    %c0_i32_1 = arith.constant 0 : i32
    return %c0_i32, %c0_i32_0 : i32, i32
  }
  func.func @transform_7(%arg0: i32) -> (i32, i32) {
    %c0_i32 = arith.constant 0 : i32
    %c0_i32_0 = arith.constant 0 : i32
    %c0_i32_1 = arith.constant 0 : i32
    return %c0_i32, %c0_i32_0 : i32, i32
  }
  func.func @transform_8(%arg0: i32) -> (i32, i32) {
    %c0_i32 = arith.constant 0 : i32
    %c0_i32_0 = arith.constant 0 : i32
    %c0_i32_1 = arith.constant 0 : i32
    return %c0_i32, %c0_i32_0 : i32, i32
  }
  func.func @transform_9(%arg0: i32) -> (i32, i32) {
    %c0_i32 = arith.constant 0 : i32
    %c0_i32_0 = arith.constant 0 : i32
    %c0_i32_1 = arith.constant 0 : i32
    return %c0_i32, %c0_i32_0 : i32, i32
  }
  func.func @transform_10(%arg0: i32) -> (i32, i32) {
    %c0_i32 = arith.constant 0 : i32
    %c0_i32_0 = arith.constant 0 : i32
    %c0_i32_1 = arith.constant 0 : i32
    return %c0_i32, %c0_i32_0 : i32, i32
  }
  func.func @transform_11(%arg0: i32) -> (i32, i32) {
    %c0_i32 = arith.constant 0 : i32
    %c0_i32_0 = arith.constant 0 : i32
    %c0_i32_1 = arith.constant 0 : i32
    return %c0_i32, %c0_i32_0 : i32, i32
  }
  func.func @transform_12(%arg0: i32) -> (i32, i32) {
    %c0_i32 = arith.constant 0 : i32
    %c0_i32_0 = arith.constant 0 : i32
    %c0_i32_1 = arith.constant 0 : i32
    return %c0_i32, %c0_i32_0 : i32, i32
  }
  func.func @transform_13(%arg0: i32) -> (i32, i32) {
    %c0_i32 = arith.constant 0 : i32
    %c0_i32_0 = arith.constant 0 : i32
    %c0_i32_1 = arith.constant 0 : i32
    return %c0_i32, %c0_i32_0 : i32, i32
  }
  func.func @transform_14(%arg0: i32) -> (i32, i32) {
    %c0_i32 = arith.constant 0 : i32
    %c0_i32_0 = arith.constant 0 : i32
    %c0_i32_1 = arith.constant 0 : i32
    return %c0_i32, %c0_i32_0 : i32, i32
  }
  func.func @transform_15(%arg0: i32) -> (i32, i32) {
    %c0_i32 = arith.constant 0 : i32
    %c0_i32_0 = arith.constant 0 : i32
    %c0_i32_1 = arith.constant 0 : i32
    return %c0_i32, %c0_i32_0 : i32, i32
  }
  func.func @transform_16(%arg0: i32) -> (i32, i32) {
    %c0_i32 = arith.constant 0 : i32
    %c0_i32_0 = arith.constant 0 : i32
    %c0_i32_1 = arith.constant 0 : i32
    return %c0_i32, %c0_i32_0 : i32, i32
  }
  func.func @transform_17(%arg0: i32) -> (i32, i32, i32) {
    %c0_i32 = arith.constant 0 : i32
    %c0_i32_0 = arith.constant 0 : i32
    %c0_i32_1 = arith.constant 0 : i32
    return %arg0, %c0_i32, %c0_i32_0 : i32, i32, i32
  }
}

</mosaic_0001>

<llo_original>
// kernel: tpu_custom_call.1
$region0: #{tpu_custom_call.1}
  #allocation0 [shape = 'u32[]', space=smem, size = 0x4, offset = 0x4, fixed_abs, tag = 'smem constant byte address 0x4 - core index']
  #allocation1 [shape = 'u32[144,128]{1,0:T(1,128)}', space=vmem, size = 0x12000, scoped, tag = 'internal scratch']
  %s0 = inlined_call_operand.vmem [shape: f32[4,32,16], index: 0, kind: input, shape index: {}]
  %s1 = inlined_call_operand.vmem [shape: f32[4,32,3], index: 1, kind: input, shape index: {}]
  %s2 = inlined_call_operand.vmem [shape: f32[4,32,1024], index: 2, kind: input, shape index: {}]
  %s3 = inlined_call_operand.vmem [shape: f32[4,1024,1], index: 3, kind: input, shape index: {}]
  %s4 = inlined_call_operand.vmem [shape: f32[16,16], index: 4, kind: input, shape index: {}]
  %s5 = inlined_call_operand.vmem [shape: f32[1,16], index: 5, kind: input, shape index: {}]
  %s6 = inlined_call_operand.vmem [shape: f32[16,96], index: 6, kind: input, shape index: {}]
  %s7 = inlined_call_operand.vmem [shape: f32[3,64], index: 7, kind: input, shape index: {}]
  %s8 = inlined_call_operand.vmem [shape: f32[1,64], index: 8, kind: input, shape index: {}]
  %s9 = inlined_call_operand.vmem [shape: f32[64,32], index: 9, kind: input, shape index: {}]
  %s10 = inlined_call_operand.vmem [shape: f32[1,32], index: 10, kind: input, shape index: {}]
  %s11 = inlined_call_operand.vmem [shape: f32[32,64], index: 11, kind: input, shape index: {}]
  %s12 = inlined_call_operand.vmem [shape: f32[1,64], index: 12, kind: input, shape index: {}]
  %s13 = inlined_call_operand.vmem [shape: f32[64,32], index: 13, kind: input, shape index: {}]
  %s14 = inlined_call_operand.vmem [shape: f32[1,32], index: 14, kind: input, shape index: {}]
  %s15 = inlined_call_operand.vmem [shape: f32[32,32], index: 15, kind: input, shape index: {}]
  %s16 = inlined_call_operand.vmem [shape: f32[1,32], index: 16, kind: input, shape index: {}]
  %s17 = inlined_call_operand.hbm [shape: f32[4,32,32], index: 17, kind: output, shape index: {}]
  %s18 = sld [smem:[#allocation0]]
  $region101: #{tpu_custom_call.1} parent=0
    _
  %s20 = ssub.s32 1, %s18
  %s21 = scalar_select 0, %s20, %s18
  $region1: #{tpu_custom_call.1} parent=0
    #allocation2 [shape = 'u8[32768]{0}', space=vmem, size = 0x8000, scoped, tag = 'output window, operand 0']
    #allocation3 [shape = 's32[2]{0}', space=sflag, size = 0x8, scoped, tag = 'scoped memory for tpu_custom_call.1']
    %22 = vsyncpa [#allocation3], 0
    %s23 = scalar_lea.sflag [#allocation3], 1
    %24 = vsyncpa %s23, 0
    loop: start=0, step=1, limit=6
    $region2: #{tpu_custom_call.1} parent=1 // loop_pre_header
      _
    $region3: #{tpu_custom_call.1} parent=1 // loop_header
      %s26 = sphi 0, %s30
      %p27 = scmp.ge.s32.totalorder %s26, 6
      %s36 = sphi 0, %s38
      %s39 = sphi 0, %s36
      %s40 = sphi 0, %s39
      %s56 = sphi 0, %s40
      %s62 = sphi 0, %s64
      %s65 = sphi 0, %s62
      %s66 = sphi 0, %s65
      %s82 = sphi 0, %s66
      %s88 = sphi 0, %s90
      %s91 = sphi 0, %s88
      %s92 = sphi 0, %s91
      %s108 = sphi 0, %s92
      %s114 = sphi 0, %s116
      %s117 = sphi 0, %s114
      %s118 = sphi 0, %s117
      %s134 = sphi 0, %s118
      %s138 = sphi 0, %s138
      %s140 = sphi 0, %s138
      %s141 = sphi 0, %s140
      %s155 = sphi 0, %s141
      %s159 = sphi 0, %s159
      %s161 = sphi 0, %s159
      %s162 = sphi 0, %s161
      %s176 = sphi 0, %s162
      %s180 = sphi 0, %s180
      %s182 = sphi 0, %s180
      %s183 = sphi 0, %s182
      %s197 = sphi 0, %s183
      %s201 = sphi 0, %s201
      %s203 = sphi 0, %s201
      %s204 = sphi 0, %s203
      %s218 = sphi 0, %s204
      %s222 = sphi 0, %s222
      %s224 = sphi 0, %s222
      %s225 = sphi 0, %s224
      %s239 = sphi 0, %s225
      %s243 = sphi 0, %s243
      %s245 = sphi 0, %s243
      %s246 = sphi 0, %s245
      %s260 = sphi 0, %s246
      %s264 = sphi 0, %s264
      %s266 = sphi 0, %s264
      %s267 = sphi 0, %s266
      %s281 = sphi 0, %s267
      %s285 = sphi 0, %s285
      %s287 = sphi 0, %s285
      %s288 = sphi 0, %s287
      %s302 = sphi 0, %s288
      %s306 = sphi 0, %s306
      %s308 = sphi 0, %s306
      %s309 = sphi 0, %s308
      %s323 = sphi 0, %s309
      %s327 = sphi 0, %s327
      %s329 = sphi 0, %s327
      %s330 = sphi 0, %s329
      %s344 = sphi 0, %s330
      %s348 = sphi 0, %s348
      %s350 = sphi 0, %s348
      %s351 = sphi 0, %s350
      %s365 = sphi 0, %s351
      %s369 = sphi 0, %s369
      %s371 = sphi 0, %s369
      %s372 = sphi 0, %s371
      %s386 = sphi 0, %s372
      %s390 = sphi 0, %s390
      %s392 = sphi 0, %s390
      %s393 = sphi 0, %s392
      %s407 = sphi 0, %s393
      %s413 = sphi 0, %s415
      %s416 = sphi 0, %s413
      %s417 = sphi 0, %s416
      %s433 = sphi 0, %s417
    $region4: #{tpu_custom_call.1} parent=1 // loop_header_branch
      %29 = sbr.rel (%p27) target = $region8
    $region5: #{tpu_custom_call.1} parent=1 // loop_body
      %s31 = ssub.s32 %s26, 1
      %s32 = ssub.s32 %s26, 2
      %s33 = sadd.s32 %s26, 1
      %s34 = ssub.s32 %s26, %s33
      %p35 = scmp.eq.s32.totalorder %s34, 0
      %s37 = sadd.s32 %s36, 1
      %s38 = scalar_select %p35, %s36, %s37
      %p41 = pneg %p35
      %p42 = scmp.eq.s32.totalorder %s26, 3
      %p43 = por %p41, %p42
      %p44 = scmp.ne.s32.totalorder %s36, %s39
      %p45 = scmp.eq.s32.totalorder %s26, 0
      %p46 = por %p44, %p45
      %p47 = scmp.ne.s32.totalorder %s36, %s39
      %p48 = scmp.eq.s32.totalorder %s31, 3
      %p49 = por %p47, %p48
      %p50 = scmp.ne.s32.totalorder %s39, %s40
      %p51 = scmp.eq.s32.totalorder %s31, 0
      %p52 = por %p50, %p51
      %p53 = scmp.ne.s32.totalorder %s39, %s40
      %p54 = scmp.eq.s32.totalorder %s32, 3
      %p55 = por %p53, %p54
      %p57 = scmp.ne.s32.totalorder %s40, %s56
      %p58 = scmp.eq.s32.totalorder %s32, 0
      %p59 = por %p57, %p58
      %s60 = ssub.s32 %s26, %s33
      %p61 = scmp.eq.s32.totalorder %s60, 0
      %s63 = sadd.s32 %s62, 1
      %s64 = scalar_select %p61, %s62, %s63
      %p67 = pneg %p61
      %p68 = scmp.eq.s32.totalorder %s26, 3
      %p69 = por %p67, %p68
      %p70 = scmp.ne.s32.totalorder %s62, %s65
      %p71 = scmp.eq.s32.totalorder %s26, 0
      %p72 = por %p70, %p71
      %p73 = scmp.ne.s32.totalorder %s62, %s65
      %p74 = scmp.eq.s32.totalorder %s31, 3
      %p75 = por %p73, %p74
      %p76 = scmp.ne.s32.totalorder %s65, %s66
      %p77 = scmp.eq.s32.totalorder %s31, 0
      %p78 = por %p76, %p77
      %p79 = scmp.ne.s32.totalorder %s65, %s66
      %p80 = scmp.eq.s32.totalorder %s32, 3
      %p81 = por %p79, %p80
      %p83 = scmp.ne.s32.totalorder %s66, %s82
      %p84 = scmp.eq.s32.totalorder %s32, 0
      %p85 = por %p83, %p84
      %s86 = ssub.s32 %s26, %s33
      %p87 = scmp.eq.s32.totalorder %s86, 0
      %s89 = sadd.s32 %s88, 1
      %s90 = scalar_select %p87, %s88, %s89
      %p93 = pneg %p87
      %p94 = scmp.eq.s32.totalorder %s26, 3
      %p95 = por %p93, %p94
      %p96 = scmp.ne.s32.totalorder %s88, %s91
      %p97 = scmp.eq.s32.totalorder %s26, 0
      %p98 = por %p96, %p97
      %p99 = scmp.ne.s32.totalorder %s88, %s91
      %p100 = scmp.eq.s32.totalorder %s31, 3
      %p101 = por %p99, %p100
      %p102 = scmp.ne.s32.totalorder %s91, %s92
      %p103 = scmp.eq.s32.totalorder %s31, 0
      %p104 = por %p102, %p103
      %p105 = scmp.ne.s32.totalorder %s91, %s92
      %p106 = scmp.eq.s32.totalorder %s32, 3
      %p107 = por %p105, %p106
      %p109 = scmp.ne.s32.totalorder %s92, %s108
      %p110 = scmp.eq.s32.totalorder %s32, 0
      %p111 = por %p109, %p110
      %s112 = ssub.s32 %s26, %s33
      %p113 = scmp.eq.s32.totalorder %s112, 0
      %s115 = sadd.s32 %s114, 1
      %s116 = scalar_select %p113, %s114, %s115
      %p119 = pneg %p113
      %p120 = scmp.eq.s32.totalorder %s26, 3
      %p121 = por %p119, %p120
      %p122 = scmp.ne.s32.totalorder %s114, %s117
      %p123 = scmp.eq.s32.totalorder %s26, 0
      %p124 = por %p122, %p123
      %p125 = scmp.ne.s32.totalorder %s114, %s117
      %p126 = scmp.eq.s32.totalorder %s31, 3
      %p127 = por %p125, %p126
      %p128 = scmp.ne.s32.totalorder %s117, %s118
      %p129 = scmp.eq.s32.totalorder %s31, 0
      %p130 = por %p128, %p129
      %p131 = scmp.ne.s32.totalorder %s117, %s118
      %p132 = scmp.eq.s32.totalorder %s32, 3
      %p133 = por %p131, %p132
      %p135 = scmp.ne.s32.totalorder %s118, %s134
      %p136 = scmp.eq.s32.totalorder %s32, 0
      %p137 = por %p135, %p136
      %s139 = sadd.s32 %s138, 1
      %p142 = scmp.eq.s32.totalorder %s26, 3
      %p143 = scmp.ne.s32.totalorder %s138, %s140
      %p144 = scmp.eq.s32.totalorder %s26, 0
      %p145 = por %p143, %p144
      %p146 = scmp.ne.s32.totalorder %s138, %s140
      %p147 = scmp.eq.s32.totalorder %s31, 3
      %p148 = por %p146, %p147
      %p149 = scmp.ne.s32.totalorder %s140, %s141
      %p150 = scmp.eq.s32.totalorder %s31, 0
      %p151 = por %p149, %p150
      %p152 = scmp.ne.s32.totalorder %s140, %s141
      %p153 = scmp.eq.s32.totalorder %s32, 3
      %p154 = por %p152, %p153
      %p156 = scmp.ne.s32.totalorder %s141, %s155
      %p157 = scmp.eq.s32.totalorder %s32, 0
      %p158 = por %p156, %p157
      %s160 = sadd.s32 %s159, 1
      %p163 = scmp.eq.s32.totalorder %s26, 3
      %p164 = scmp.ne.s32.totalorder %s159, %s161
      %p165 = scmp.eq.s32.totalorder %s26, 0
      %p166 = por %p164, %p165
      %p167 = scmp.ne.s32.totalorder %s159, %s161
      %p168 = scmp.eq.s32.totalorder %s31, 3
      %p169 = por %p167, %p168
      %p170 = scmp.ne.s32.totalorder %s161, %s162
      %p171 = scmp.eq.s32.totalorder %s31, 0
      %p172 = por %p170, %p171
      %p173 = scmp.ne.s32.totalorder %s161, %s162
      %p174 = scmp.eq.s32.totalorder %s32, 3
      %p175 = por %p173, %p174
      %p177 = scmp.ne.s32.totalorder %s162, %s176
      %p178 = scmp.eq.s32.totalorder %s32, 0
      %p179 = por %p177, %p178
      %s181 = sadd.s32 %s180, 1
      %p184 = scmp.eq.s32.totalorder %s26, 3
      %p185 = scmp.ne.s32.totalorder %s180, %s182
      %p186 = scmp.eq.s32.totalorder %s26, 0
      %p187 = por %p185, %p186
      %p188 = scmp.ne.s32.totalorder %s180, %s182
      %p189 = scmp.eq.s32.totalorder %s31, 3
      %p190 = por %p188, %p189
      %p191 = scmp.ne.s32.totalorder %s182, %s183
      %p192 = scmp.eq.s32.totalorder %s31, 0
      %p193 = por %p191, %p192
      %p194 = scmp.ne.s32.totalorder %s182, %s183
      %p195 = scmp.eq.s32.totalorder %s32, 3
      %p196 = por %p194, %p195
      %p198 = scmp.ne.s32.totalorder %s183, %s197
      %p199 = scmp.eq.s32.totalorder %s32, 0
      %p200 = por %p198, %p199
      %s202 = sadd.s32 %s201, 1
      %p205 = scmp.eq.s32.totalorder %s26, 3
      %p206 = scmp.ne.s32.totalorder %s201, %s203
      %p207 = scmp.eq.s32.totalorder %s26, 0
      %p208 = por %p206, %p207
      %p209 = scmp.ne.s32.totalorder %s201, %s203
      %p210 = scmp.eq.s32.totalorder %s31, 3
      %p211 = por %p209, %p210
      %p212 = scmp.ne.s32.totalorder %s203, %s204
      %p213 = scmp.eq.s32.totalorder %s31, 0
      %p214 = por %p212, %p213
      %p215 = scmp.ne.s32.totalorder %s203, %s204
      %p216 = scmp.eq.s32.totalorder %s32, 3
      %p217 = por %p215, %p216
      %p219 = scmp.ne.s32.totalorder %s204, %s218
      %p220 = scmp.eq.s32.totalorder %s32, 0
      %p221 = por %p219, %p220
      %s223 = sadd.s32 %s222, 1
      %p226 = scmp.eq.s32.totalorder %s26, 3
      %p227 = scmp.ne.s32.totalorder %s222, %s224
      %p228 = scmp.eq.s32.totalorder %s26, 0
      %p229 = por %p227, %p228
      %p230 = scmp.ne.s32.totalorder %s222, %s224
      %p231 = scmp.eq.s32.totalorder %s31, 3
      %p232 = por %p230, %p231
      %p233 = scmp.ne.s32.totalorder %s224, %s225
      %p234 = scmp.eq.s32.totalorder %s31, 0
      %p235 = por %p233, %p234
      %p236 = scmp.ne.s32.totalorder %s224, %s225
      %p237 = scmp.eq.s32.totalorder %s32, 3
      %p238 = por %p236, %p237
      %p240 = scmp.ne.s32.totalorder %s225, %s239
      %p241 = scmp.eq.s32.totalorder %s32, 0
      %p242 = por %p240, %p241
      %s244 = sadd.s32 %s243, 1
      %p247 = scmp.eq.s32.totalorder %s26, 3
      %p248 = scmp.ne.s32.totalorder %s243, %s245
      %p249 = scmp.eq.s32.totalorder %s26, 0
      %p250 = por %p248, %p249
      %p251 = scmp.ne.s32.totalorder %s243, %s245
      %p252 = scmp.eq.s32.totalorder %s31, 3
      %p253 = por %p251, %p252
      %p254 = scmp.ne.s32.totalorder %s245, %s246
      %p255 = scmp.eq.s32.totalorder %s31, 0
      %p256 = por %p254, %p255
      %p257 = scmp.ne.s32.totalorder %s245, %s246
      %p258 = scmp.eq.s32.totalorder %s32, 3
      %p259 = por %p257, %p258
      %p261 = scmp.ne.s32.totalorder %s246, %s260
      %p262 = scmp.eq.s32.totalorder %s32, 0
      %p263 = por %p261, %p262
      %s265 = sadd.s32 %s264, 1
      %p268 = scmp.eq.s32.totalorder %s26, 3
      %p269 = scmp.ne.s32.totalorder %s264, %s266
      %p270 = scmp.eq.s32.totalorder %s26, 0
      %p271 = por %p269, %p270
      %p272 = scmp.ne.s32.totalorder %s264, %s266
      %p273 = scmp.eq.s32.totalorder %s31, 3
      %p274 = por %p272, %p273
      %p275 = scmp.ne.s32.totalorder %s266, %s267
      %p276 = scmp.eq.s32.totalorder %s31, 0
      %p277 = por %p275, %p276
      %p278 = scmp.ne.s32.totalorder %s266, %s267
      %p279 = scmp.eq.s32.totalorder %s32, 3
      %p280 = por %p278, %p279
      %p282 = scmp.ne.s32.totalorder %s267, %s281
      %p283 = scmp.eq.s32.totalorder %s32, 0
      %p284 = por %p282, %p283
      %s286 = sadd.s32 %s285, 1
      %p289 = scmp.eq.s32.totalorder %s26, 3
      %p290 = scmp.ne.s32.totalorder %s285, %s287
      %p291 = scmp.eq.s32.totalorder %s26, 0
      %p292 = por %p290, %p291
      %p293 = scmp.ne.s32.totalorder %s285, %s287
      %p294 = scmp.eq.s32.totalorder %s31, 3
      %p295 = por %p293, %p294
      %p296 = scmp.ne.s32.totalorder %s287, %s288
      %p297 = scmp.eq.s32.totalorder %s31, 0
      %p298 = por %p296, %p297
      %p299 = scmp.ne.s32.totalorder %s287, %s288
      %p300 = scmp.eq.s32.totalorder %s32, 3
      %p301 = por %p299, %p300
      %p303 = scmp.ne.s32.totalorder %s288, %s302
      %p304 = scmp.eq.s32.totalorder %s32, 0
      %p305 = por %p303, %p304
      %s307 = sadd.s32 %s306, 1
      %p310 = scmp.eq.s32.totalorder %s26, 3
      %p311 = scmp.ne.s32.totalorder %s306, %s308
      %p312 = scmp.eq.s32.totalorder %s26, 0
      %p313 = por %p311, %p312
      %p314 = scmp.ne.s32.totalorder %s306, %s308
      %p315 = scmp.eq.s32.totalorder %s31, 3
      %p316 = por %p314, %p315
      %p317 = scmp.ne.s32.totalorder %s308, %s309
      %p318 = scmp.eq.s32.totalorder %s31, 0
      %p319 = por %p317, %p318
      %p320 = scmp.ne.s32.totalorder %s308, %s309
      %p321 = scmp.eq.s32.totalorder %s32, 3
      %p322 = por %p320, %p321
      %p324 = scmp.ne.s32.totalorder %s309, %s323
      %p325 = scmp.eq.s32.totalorder %s32, 0
      %p326 = por %p324, %p325
      %s328 = sadd.s32 %s327, 1
      %p331 = scmp.eq.s32.totalorder %s26, 3
      %p332 = scmp.ne.s32.totalorder %s327, %s329
      %p333 = scmp.eq.s32.totalorder %s26, 0
      %p334 = por %p332, %p333
      %p335 = scmp.ne.s32.totalorder %s327, %s329
      %p336 = scmp.eq.s32.totalorder %s31, 3
      %p337 = por %p335, %p336
      %p338 = scmp.ne.s32.totalorder %s329, %s330
      %p339 = scmp.eq.s32.totalorder %s31, 0
      %p340 = por %p338, %p339
      %p341 = scmp.ne.s32.totalorder %s329, %s330
      %p342 = scmp.eq.s32.totalorder %s32, 3
      %p343 = por %p341, %p342
      %p345 = scmp.ne.s32.totalorder %s330, %s344
      %p346 = scmp.eq.s32.totalorder %s32, 0
      %p347 = por %p345, %p346
      %s349 = sadd.s32 %s348, 1
      %p352 = scmp.eq.s32.totalorder %s26, 3
      %p353 = scmp.ne.s32.totalorder %s348, %s350
      %p354 = scmp.eq.s32.totalorder %s26, 0
      %p355 = por %p353, %p354
      %p356 = scmp.ne.s32.totalorder %s348, %s350
      %p357 = scmp.eq.s32.totalorder %s31, 3
      %p358 = por %p356, %p357
      %p359 = scmp.ne.s32.totalorder %s350, %s351
      %p360 = scmp.eq.s32.totalorder %s31, 0
      %p361 = por %p359, %p360
      %p362 = scmp.ne.s32.totalorder %s350, %s351
      %p363 = scmp.eq.s32.totalorder %s32, 3
      %p364 = por %p362, %p363
      %p366 = scmp.ne.s32.totalorder %s351, %s365
      %p367 = scmp.eq.s32.totalorder %s32, 0
      %p368 = por %p366, %p367
      %s370 = sadd.s32 %s369, 1
      %p373 = scmp.eq.s32.totalorder %s26, 3
      %p374 = scmp.ne.s32.totalorder %s369, %s371
      %p375 = scmp.eq.s32.totalorder %s26, 0
      %p376 = por %p374, %p375
      %p377 = scmp.ne.s32.totalorder %s369, %s371
      %p378 = scmp.eq.s32.totalorder %s31, 3
      %p379 = por %p377, %p378
      %p380 = scmp.ne.s32.totalorder %s371, %s372
      %p381 = scmp.eq.s32.totalorder %s31, 0
      %p382 = por %p380, %p381
      %p383 = scmp.ne.s32.totalorder %s371, %s372
      %p384 = scmp.eq.s32.totalorder %s32, 3
      %p385 = por %p383, %p384
      %p387 = scmp.ne.s32.totalorder %s372, %s386
      %p388 = scmp.eq.s32.totalorder %s32, 0
      %p389 = por %p387, %p388
      %s391 = sadd.s32 %s390, 1
      %p394 = scmp.eq.s32.totalorder %s26, 3
      %p395 = scmp.ne.s32.totalorder %s390, %s392
      %p396 = scmp.eq.s32.totalorder %s26, 0
      %p397 = por %p395, %p396
      %p398 = scmp.ne.s32.totalorder %s390, %s392
      %p399 = scmp.eq.s32.totalorder %s31, 3
      %p400 = por %p398, %p399
      %p401 = scmp.ne.s32.totalorder %s392, %s393
      %p402 = scmp.eq.s32.totalorder %s31, 0
      %p403 = por %p401, %p402
      %p404 = scmp.ne.s32.totalorder %s392, %s393
      %p405 = scmp.eq.s32.totalorder %s32, 3
      %p406 = por %p404, %p405
      %p408 = scmp.ne.s32.totalorder %s393, %s407
      %p409 = scmp.eq.s32.totalorder %s32, 0
      %p410 = por %p408, %p409
      %s411 = ssub.s32 %s26, %s33
      %p412 = scmp.eq.s32.totalorder %s411, 0
      %s414 = sadd.s32 %s413, 1
      %s415 = scalar_select %p412, %s413, %s414
      %p418 = pneg %p412
      %p419 = scmp.eq.s32.totalorder %s26, 3
      %p420 = por %p418, %p419
      %p421 = scmp.ne.s32.totalorder %s413, %s416
      %p422 = scmp.eq.s32.totalorder %s26, 0
      %p423 = por %p421, %p422
      %p424 = scmp.ne.s32.totalorder %s413, %s416
      %p425 = scmp.eq.s32.totalorder %s31, 3
      %p426 = por %p424, %p425
      %p427 = scmp.ne.s32.totalorder %s416, %s417
      %p428 = scmp.eq.s32.totalorder %s31, 0
      %p429 = por %p427, %p428
      %p430 = scmp.ne.s32.totalorder %s416, %s417
      %p431 = scmp.eq.s32.totalorder %s32, 3
      %p432 = por %p430, %p431
      %p434 = scmp.ne.s32.totalorder %s417, %s433
      %p435 = scmp.eq.s32.totalorder %s32, 0
      %p436 = por %p434, %p435
      %p437 = scmp.le.s32.totalorder 1, %s26
      %p438 = scmp.lt.s32.totalorder %s26, 5
      %p439 = pnand %p437, %p438
      %p440 = pneg %p439
      // Predicated region
      $region9: #{tpu_custom_call.1} parent=5 // pred_check
        _
      $region10: #{tpu_custom_call.1} parent=5 // pred_check_branch
        %442 = sbr.rel (%p439) target = $region12
      $region11: #{tpu_custom_call.1} parent=5 // pred_region
        %s443 = ssub.s32 %s26, 1
        // Predicated region
        $region13: #{tpu_custom_call.1} parent=11 // pred_check
          %p444 = pneg %p151
        $region14: #{tpu_custom_call.1} parent=11 // pred_check_branch
          %446 = sbr.rel (%p444) target = $region16
        $region15: #{tpu_custom_call.1} parent=11 // pred_region
          _
        $region16: #{tpu_custom_call.1} parent=11 // pred_fallthru
          _
        // Predicated region
        $region17: #{tpu_custom_call.1} parent=11 // pred_check
          %p447 = pneg %p172
        $region18: #{tpu_custom_call.1} parent=11 // pred_check_branch
          %449 = sbr.rel (%p447) target = $region20
        $region19: #{tpu_custom_call.1} parent=11 // pred_region
          _
        $region20: #{tpu_custom_call.1} parent=11 // pred_fallthru
          _
        // Predicated region
        $region21: #{tpu_custom_call.1} parent=11 // pred_check
          %p450 = pneg %p193
        $region22: #{tpu_custom_call.1} parent=11 // pred_check_branch
          %452 = sbr.rel (%p450) target = $region24
        $region23: #{tpu_custom_call.1} parent=11 // pred_region
          _
        $region24: #{tpu_custom_call.1} parent=11 // pred_fallthru
          _
        // Predicated region
        $region25: #{tpu_custom_call.1} parent=11 // pred_check
          %p453 = pneg %p214
        $region26: #{tpu_custom_call.1} parent=11 // pred_check_branch
          %455 = sbr.rel (%p453) target = $region28
        $region27: #{tpu_custom_call.1} parent=11 // pred_region
          _
        $region28: #{tpu_custom_call.1} parent=11 // pred_fallthru
          _
        // Predicated region
        $region29: #{tpu_custom_call.1} parent=11 // pred_check
          %p456 = pneg %p235
        $region30: #{tpu_custom_call.1} parent=11 // pred_check_branch
          %458 = sbr.rel (%p456) target = $region32
        $region31: #{tpu_custom_call.1} parent=11 // pred_region
          _
        $region32: #{tpu_custom_call.1} parent=11 // pred_fallthru
          _
        // Predicated region
        $region33: #{tpu_custom_call.1} parent=11 // pred_check
          %p459 = pneg %p256
        $region34: #{tpu_custom_call.1} parent=11 // pred_check_branch
          %461 = sbr.rel (%p459) target = $region36
        $region35: #{tpu_custom_call.1} parent=11 // pred_region
          _
        $region36: #{tpu_custom_call.1} parent=11 // pred_fallthru
          _
        // Predicated region
        $region37: #{tpu_custom_call.1} parent=11 // pred_check
          %p462 = pneg %p277
        $region38: #{tpu_custom_call.1} parent=11 // pred_check_branch
          %464 = sbr.rel (%p462) target = $region40
        $region39: #{tpu_custom_call.1} parent=11 // pred_region
          _
        $region40: #{tpu_custom_call.1} parent=11 // pred_fallthru
          _
        // Predicated region
        $region41: #{tpu_custom_call.1} parent=11 // pred_check
          %p465 = pneg %p298
        $region42: #{tpu_custom_call.1} parent=11 // pred_check_branch
          %467 = sbr.rel (%p465) target = $region44
        $region43: #{tpu_custom_call.1} parent=11 // pred_region
          _
        $region44: #{tpu_custom_call.1} parent=11 // pred_fallthru
          _
        // Predicated region
        $region45: #{tpu_custom_call.1} parent=11 // pred_check
          %p468 = pneg %p319
        $region46: #{tpu_custom_call.1} parent=11 // pred_check_branch
          %470 = sbr.rel (%p468) target = $region48
        $region47: #{tpu_custom_call.1} parent=11 // pred_region
          _
        $region48: #{tpu_custom_call.1} parent=11 // pred_fallthru
          _
        // Predicated region
        $region49: #{tpu_custom_call.1} parent=11 // pred_check
          %p471 = pneg %p340
        $region50: #{tpu_custom_call.1} parent=11 // pred_check_branch
          %473 = sbr.rel (%p471) target = $region52
        $region51: #{tpu_custom_call.1} parent=11 // pred_region
          _
        $region52: #{tpu_custom_call.1} parent=11 // pred_fallthru
          _
        // Predicated region
        $region53: #{tpu_custom_call.1} parent=11 // pred_check
          %p474 = pneg %p361
        $region54: #{tpu_custom_call.1} parent=11 // pred_check_branch
          %476 = sbr.rel (%p474) target = $region56
        $region55: #{tpu_custom_call.1} parent=11 // pred_region
          _
        $region56: #{tpu_custom_call.1} parent=11 // pred_fallthru
          _
        // Predicated region
        $region57: #{tpu_custom_call.1} parent=11 // pred_check
          %p477 = pneg %p382
        $region58: #{tpu_custom_call.1} parent=11 // pred_check_branch
          %479 = sbr.rel (%p477) target = $region60
        $region59: #{tpu_custom_call.1} parent=11 // pred_region
          _
        $region60: #{tpu_custom_call.1} parent=11 // pred_fallthru
          _
        // Predicated region
        $region61: #{tpu_custom_call.1} parent=11 // pred_check
          %p480 = pneg %p403
        $region62: #{tpu_custom_call.1} parent=11 // pred_check_branch
          %482 = sbr.rel (%p480) target = $region64
        $region63: #{tpu_custom_call.1} parent=11 // pred_region
          _
        $region64: #{tpu_custom_call.1} parent=11 // pred_fallthru
          _
      $region12: #{tpu_custom_call.1} parent=5 // pred_fallthru
        _
      %p483 = scmp.lt.s32.totalorder %s26, 4
      // Predicated region
      $region65: #{tpu_custom_call.1} parent=5 // pred_check
        %p484 = pneg %p483
      $region66: #{tpu_custom_call.1} parent=5 // pred_check_branch
        %486 = sbr.rel (%p484) target = $region68
      $region67: #{tpu_custom_call.1} parent=5 // pred_region
        // Predicated region
        $region69: #{tpu_custom_call.1} parent=67 // pred_check
          %p487 = pneg %p46
        $region70: #{tpu_custom_call.1} parent=67 // pred_check_branch
          %489 = sbr.rel (%p487) target = $region72
        $region71: #{tpu_custom_call.1} parent=67 // pred_region
          %p490 = scmp.lt.s32.totalorder %s26, 3
          %s491 = scalar_select %p490, %s26, 3
          %s492 = smul.addr %s491, 4
          %s493 = smul.addr %s492, 8
          %s494 = scalar_lea.vmem %s0, %s493
        $region72: #{tpu_custom_call.1} parent=67 // pred_fallthru
          _
        // Predicated region
        $region73: #{tpu_custom_call.1} parent=67 // pred_check
          %p495 = pneg %p72
        $region74: #{tpu_custom_call.1} parent=67 // pred_check_branch
          %497 = sbr.rel (%p495) target = $region76
        $region75: #{tpu_custom_call.1} parent=67 // pred_region
          %p498 = scmp.lt.s32.totalorder %s26, 3
          %s499 = scalar_select %p498, %s26, 3
          %s500 = smul.addr %s499, 4
          %s501 = smul.addr %s500, 8
          %s502 = scalar_lea.vmem %s1, %s501
        $region76: #{tpu_custom_call.1} parent=67 // pred_fallthru
          _
        // Predicated region
        $region77: #{tpu_custom_call.1} parent=67 // pred_check
          %p503 = pneg %p98
        $region78: #{tpu_custom_call.1} parent=67 // pred_check_branch
          %505 = sbr.rel (%p503) target = $region80
        $region79: #{tpu_custom_call.1} parent=67 // pred_region
          %p506 = scmp.lt.s32.totalorder %s26, 3
          %s507 = scalar_select %p506, %s26, 3
          %s508 = smul.addr %s507, 32
          %s509 = smul.addr %s508, 8
          %s510 = scalar_lea.vmem %s2, %s509
        $region80: #{tpu_custom_call.1} parent=67 // pred_fallthru
          _
        // Predicated region
        $region81: #{tpu_custom_call.1} parent=67 // pred_check
          %p511 = pneg %p124
        $region82: #{tpu_custom_call.1} parent=67 // pred_check_branch
          %513 = sbr.rel (%p511) target = $region84
        $region83: #{tpu_custom_call.1} parent=67 // pred_region
          %p514 = scmp.lt.s32.totalorder %s26, 3
          %s515 = scalar_select %p514, %s26, 3
          %s516 = smul.addr %s515, 128
          %s517 = smul.addr %s516, 8
          %s518 = scalar_lea.vmem %s3, %s517
        $region84: #{tpu_custom_call.1} parent=67 // pred_fallthru
          _
      $region68: #{tpu_custom_call.1} parent=5 // pred_fallthru
        _
      %p519 = scmp.le.s32.totalorder 1, %s26
      %p520 = scmp.lt.s32.totalorder %s26, 5
      %p521 = pnand %p519, %p520
      %p522 = pneg %p521
      // Predicated region
      $region85: #{tpu_custom_call.1} parent=5 // pred_check
        _
      $region86: #{tpu_custom_call.1} parent=5 // pred_check_branch
        %524 = sbr.rel (%p521) target = $region88
      $region87: #{tpu_custom_call.1} parent=5 // pred_region
        %s525 = ssub.s32 %s26, 1
        %p526 = scmp.lt.s32.totalorder %s31, 3
        %s527 = scalar_select %p526, %s31, 3
        %s528 = smul.addr %s527, 4
        %s529 = smul.addr %s528, 8
        %s530 = scalar_lea.vmem %s0, %s529
        %p531 = pneg %p52
        %p532 = pneg %p49
        %p533 = scmp.lt.s32.totalorder %s31, 3
        %s534 = scalar_select %p533, %s31, 3
        %s535 = smul.addr %s534, 4
        %s536 = smul.addr %s535, 8
        %s537 = scalar_lea.vmem %s1, %s536
        %p538 = pneg %p78
        %p539 = pneg %p75
        %p540 = scmp.lt.s32.totalorder %s31, 3
        %s541 = scalar_select %p540, %s31, 3
        %s542 = smul.addr %s541, 32
        %s543 = smul.addr %s542, 8
        %s544 = scalar_lea.vmem %s2, %s543
        %p545 = pneg %p104
        %p546 = pneg %p101
        %p547 = scmp.lt.s32.totalorder %s31, 3
        %s548 = scalar_select %p547, %s31, 3
        %s549 = smul.addr %s548, 128
        %s550 = smul.addr %s549, 8
        %s551 = scalar_lea.vmem %s3, %s550
        %p552 = pneg %p130
        %p553 = pneg %p127
        %p554 = pneg %p151
        %p555 = pneg %p148
        %p556 = pneg %p172
        %p557 = pneg %p169
        %p558 = pneg %p193
        %p559 = pneg %p190
        %p560 = pneg %p214
        %p561 = pneg %p211
        %p562 = pneg %p235
        %p563 = pneg %p232
        %p564 = pneg %p256
        %p565 = pneg %p253
        %p566 = pneg %p277
        %p567 = pneg %p274
        %p568 = pneg %p298
        %p569 = pneg %p295
        %p570 = pneg %p319
        %p571 = pneg %p316
        %p572 = pneg %p340
        %p573 = pneg %p337
        %p574 = pneg %p361
        %p575 = pneg %p358
        %p576 = pneg %p382
        %p577 = pneg %p379
        %p578 = pneg %p403
        %p579 = pneg %p400
        %p580 = pneg %p429
        %p581 = pneg %p426
        %s582 = sand.u32 %s416, 1
        %s583 = scalar_lea.sflag [#allocation3], %s582
        %s584 = sand.u32 %s416, 1
        %s585 = smul.addr %s584, 32
        %s586 = scalar_lea.vmem [#allocation2], %s585
        %p587 = scmp.lt.s32.totalorder %s31, 3
        %s588 = scalar_select %p587, %s31, 3
        %s589 = smul.addr %s588, 4
        %s590 = smul.addr %s589, 8
        %s591 = scalar_lea.vmem %s0, %s590
        %p592 = scmp.lt.s32.totalorder %s31, 3
        %s593 = scalar_select %p592, %s31, 3
        %s594 = smul.addr %s593, 4
        %s595 = smul.addr %s594, 8
        %s596 = scalar_lea.vmem %s1, %s595
        %p597 = scmp.lt.s32.totalorder %s31, 3
        %s598 = scalar_select %p597, %s31, 3
        %s599 = smul.addr %s598, 32
        %s600 = smul.addr %s599, 8
        %s601 = scalar_lea.vmem %s2, %s600
        %p602 = scmp.lt.s32.totalorder %s31, 3
        %s603 = scalar_select %p602, %s31, 3
        %s604 = smul.addr %s603, 128
        %s605 = smul.addr %s604, 8
        %s606 = scalar_lea.vmem %s3, %s605
        %v608 = vld [vmem:[%s591] sm:$0xff]
        %v609 = vld [vmem:[%s591 + $0x8] sm:$0xff]
        %v610 = vld [vmem:[%s591 + $0x10] sm:$0xff]
        %v611 = vld [vmem:[%s591 + $0x18] sm:$0xff]
        %v612 = vld [vmem:[%s4] sm:$0xff]
        %v613 = vld [vmem:[%s4 + $0x8] sm:$0xff]
        %v614 = vld [vmem:[%s5] sm:$0x1]
        %v616 = vlaneseq
        %v617 = vshrl.u32 %v616, 7
        %v618 = vsub.s32 0, %v617
        %v619 = vrot.slane %v614, %v618
        %vm621 = vcmask 130048
        %v623 = vsel %vm621, %v608, 0
        %v626 = vsel %vm621, %v609, 0
        %v629 = vsel %vm621, %v610, 0
        %v632 = vsel %vm621, %v611, 0
        %634 = vmatprep.subr.mxu0 0.0
        %635 = vmatpush1.msra.mxu0 0.0
        %636 = vmatprep.subr.mxu0 0.0
        %637 = vmatpush1.msra.mxu0 0.0
        %638 = vmatprep.subr.mxu0 0.0
        %639 = vmatpush1.msra.mxu0 0.0
        %640 = vmatprep.subr.mxu0 0.0
        %641 = vmatpush1.msra.mxu0 0.0
        %642 = vmatprep.subr.mxu0 0.0
        %643 = vmatpush1.msra.mxu0 0.0
        %644 = vmatprep.subr.mxu0 0.0
        %645 = vmatpush1.msra.mxu0 0.0
        %646 = vmatprep.subr.mxu0 0.0
        %647 = vmatpush1.msra.mxu0 0.0
        %648 = vmatprep.subr.mxu0 0.0
        %649 = vmatpush1.msra.mxu0 0.0
        %650 = vmatprep.subr.mxu0 0.0
        %651 = vmatpush1.msra.mxu0 0.0
        %652 = vmatprep.subr.mxu0 0.0
        %653 = vmatpush1.msra.mxu0 0.0
        %654 = vmatprep.subr.mxu0 0.0
        %655 = vmatpush1.msra.mxu0 0.0
        %656 = vmatprep.subr.mxu0 0.0
        %657 = vmatpush1.msra.mxu0 0.0
        %658 = vmatprep.subr.mxu0 0.0
        %659 = vmatpush1.msra.mxu0 0.0
        %660 = vmatprep.subr.mxu0 0.0
        %661 = vmatpush1.msra.mxu0 0.0
        %662 = vmatprep.subr.mxu0 0.0
        %663 = vmatpush1.msra.mxu0 %v613
        %664 = vmatprep.subr.mxu0 0.0
        %665 = vmatpush1.msra.mxu0 %v612
        %666 = vmatprep.subr.mxu0 0.0
        %667 = vmatpush2.msra.mxu0 0.0
        %668 = vmatprep.subr.mxu0 0.0
        %669 = vmatpush2.msra.mxu0 0.0
        %670 = vmatprep.subr.mxu0 0.0
        %671 = vmatpush2.msra.mxu0 0.0
        %672 = vmatprep.subr.mxu0 0.0
        %673 = vmatpush2.msra.mxu0 0.0
        %674 = vmatprep.subr.mxu0 0.0
        %675 = vmatpush2.msra.mxu0 0.0
        %676 = vmatprep.subr.mxu0 0.0
        %677 = vmatpush2.msra.mxu0 0.0
        %678 = vmatprep.subr.mxu0 0.0
        %679 = vmatpush2.msra.mxu0 0.0
        %680 = vmatprep.subr.mxu0 0.0
        %681 = vmatpush2.msra.mxu0 0.0
        %682 = vmatprep.subr.mxu0 0.0
        %683 = vmatpush2.msra.mxu0 0.0
        %684 = vmatprep.subr.mxu0 0.0
        %685 = vmatpush2.msra.mxu0 0.0
        %686 = vmatprep.subr.mxu0 0.0
        %687 = vmatpush2.msra.mxu0 0.0
        %688 = vmatprep.subr.mxu0 0.0
        %689 = vmatpush2.msra.mxu0 0.0
        %690 = vmatprep.subr.mxu0 0.0
        %691 = vmatpush2.msra.mxu0 0.0
        %692 = vmatprep.subr.mxu0 0.0
        %693 = vmatpush2.msra.mxu0 0.0
        %694 = vmatprep.subr.mxu0 0.0
        %695 = vmatpush2.msra.mxu0 0.0
        %696 = vmatprep.subr.mxu0 0.0
        %697 = vmatpush2.msra.mxu0 0.0
        %698 = vmatprep.mubr.f32.mxu0 0.0
        %699 = vmatmul.mubr.f32.gmra.mxu0 %v623
        %v700 = vpop.f32.mrf.mxu0
        %v701 = vadd.f32 %v619, %v700
        %v702 = vpop.f32.mrf.mxu0
        %703 = vmatprep.mubr.f32.mxu0 0.0
        %704 = vmatmul.mubr.f32.gmra.mxu0 %v626
        %v705 = vpop.f32.mrf.mxu0
        %v706 = vadd.f32 %v619, %v705
        %v707 = vpop.f32.mrf.mxu0
        %708 = vmatprep.mubr.f32.mxu0 0.0
        %709 = vmatmul.mubr.f32.gmra.mxu0 %v629
        %v710 = vpop.f32.mrf.mxu0
        %v711 = vadd.f32 %v619, %v710
        %v712 = vpop.f32.mrf.mxu0
        %713 = vmatprep.mubr.f32.mxu0 0.0
        %714 = vmatmul.mubr.f32.gmra.mxu0 %v632
        %v715 = vpop.f32.mrf.mxu0
        %v716 = vadd.f32 %v619, %v715
        %v717 = vpop.f32.mrf.mxu0
        %718 = vdwg.mxu0
        %v719 = vmax.f32 %v701, 0.0
        %v720 = vmax.f32 %v706, 0.0
        %v721 = vmax.f32 %v711, 0.0
        %v722 = vmax.f32 %v716, 0.0
        %v723 = vld [vmem:[%s6] sm:$0xff]
        %v724 = vld [vmem:[%s6 + $0x8] sm:$0xff]
        %v726 = vsel %vm621, %v719, 0
        %v729 = vsel %vm621, %v720, 0
        %v732 = vsel %vm621, %v721, 0
        %v735 = vsel %vm621, %v722, 0
        %737 = vmatprep.subr.mxu0 0.0
        %738 = vmatpush1.msra.mxu0 0.0
        %739 = vmatprep.subr.mxu0 0.0
        %740 = vmatpush1.msra.mxu0 0.0
        %741 = vmatprep.subr.mxu0 0.0
        %742 = vmatpush1.msra.mxu0 0.0
        %743 = vmatprep.subr.mxu0 0.0
        %744 = vmatpush1.msra.mxu0 0.0
        %745 = vmatprep.subr.mxu0 0.0
        %746 = vmatpush1.msra.mxu0 0.0
        %747 = vmatprep.subr.mxu0 0.0
        %748 = vmatpush1.msra.mxu0 0.0
        %749 = vmatprep.subr.mxu0 0.0
        %750 = vmatpush1.msra.mxu0 0.0
        %751 = vmatprep.subr.mxu0 0.0
        %752 = vmatpush1.msra.mxu0 0.0
        %753 = vmatprep.subr.mxu0 0.0
        %754 = vmatpush1.msra.mxu0 0.0
        %755 = vmatprep.subr.mxu0 0.0
        %756 = vmatpush1.msra.mxu0 0.0
        %757 = vmatprep.subr.mxu0 0.0
        %758 = vmatpush1.msra.mxu0 0.0
        %759 = vmatprep.subr.mxu0 0.0
        %760 = vmatpush1.msra.mxu0 0.0
        %761 = vmatprep.subr.mxu0 0.0
        %762 = vmatpush1.msra.mxu0 0.0
        %763 = vmatprep.subr.mxu0 0.0
        %764 = vmatpush1.msra.mxu0 0.0
        %765 = vmatprep.subr.mxu0 0.0
        %766 = vmatpush1.msra.mxu0 %v724
        %767 = vmatprep.subr.mxu0 0.0
        %768 = vmatpush1.msra.mxu0 %v723
        %769 = vmatprep.subr.mxu0 0.0
        %770 = vmatpush2.msra.mxu0 0.0
        %771 = vmatprep.subr.mxu0 0.0
        %772 = vmatpush2.msra.mxu0 0.0
        %773 = vmatprep.subr.mxu0 0.0
        %774 = vmatpush2.msra.mxu0 0.0
        %775 = vmatprep.subr.mxu0 0.0
        %776 = vmatpush2.msra.mxu0 0.0
        %777 = vmatprep.subr.mxu0 0.0
        %778 = vmatpush2.msra.mxu0 0.0
        %779 = vmatprep.subr.mxu0 0.0
        %780 = vmatpush2.msra.mxu0 0.0
        %781 = vmatprep.subr.mxu0 0.0
        %782 = vmatpush2.msra.mxu0 0.0
        %783 = vmatprep.subr.mxu0 0.0
        %784 = vmatpush2.msra.mxu0 0.0
        %785 = vmatprep.subr.mxu0 0.0
        %786 = vmatpush2.msra.mxu0 0.0
        %787 = vmatprep.subr.mxu0 0.0
        %788 = vmatpush2.msra.mxu0 0.0
        %789 = vmatprep.subr.mxu0 0.0
        %790 = vmatpush2.msra.mxu0 0.0
        %791 = vmatprep.subr.mxu0 0.0
        %792 = vmatpush2.msra.mxu0 0.0
        %793 = vmatprep.subr.mxu0 0.0
        %794 = vmatpush2.msra.mxu0 0.0
        %795 = vmatprep.subr.mxu0 0.0
        %796 = vmatpush2.msra.mxu0 0.0
        %797 = vmatprep.subr.mxu0 0.0
        %798 = vmatpush2.msra.mxu0 0.0
        %799 = vmatprep.subr.mxu0 0.0
        %800 = vmatpush2.msra.mxu0 0.0
        %801 = vmatprep.mubr.f32.mxu0 0.0
        %802 = vmatmul.mubr.f32.gmra.mxu0 %v726
        %v803 = vpop.f32.mrf.mxu0
        %v804 = vadd.f32 0.0, %v803
        %v805 = vpop.f32.mrf.mxu0
        %806 = vmatprep.mubr.f32.mxu0 0.0
        %807 = vmatmul.mubr.f32.gmra.mxu0 %v729
        %v808 = vpop.f32.mrf.mxu0
        %v809 = vadd.f32 0.0, %v808
        %v810 = vpop.f32.mrf.mxu0
        %811 = vmatprep.mubr.f32.mxu0 0.0
        %812 = vmatmul.mubr.f32.gmra.mxu0 %v732
        %v813 = vpop.f32.mrf.mxu0
        %v814 = vadd.f32 0.0, %v813
        %v815 = vpop.f32.mrf.mxu0
        %816 = vmatprep.mubr.f32.mxu0 0.0
        %817 = vmatmul.mubr.f32.gmra.mxu0 %v735
        %v818 = vpop.f32.mrf.mxu0
        %v819 = vadd.f32 0.0, %v818
        %v820 = vpop.f32.mrf.mxu0
        %821 = vdwg.mxu0
        %v822 = vld [vmem:[%s596] sm:$0xff]
        %v823 = vld [vmem:[%s596 + $0x8] sm:$0xff]
        %v824 = vld [vmem:[%s596 + $0x10] sm:$0xff]
        %v825 = vld [vmem:[%s596 + $0x18] sm:$0xff]
        %v826 = vld [vmem:[%s7] sm:$0x7]
        %vm827 = vcmask 23552
        %v829 = vsel %vm827, %v822, 0
        %v832 = vsel %vm827, %v823, 0
        %v835 = vsel %vm827, %v824, 0
        %v838 = vsel %vm827, %v825, 0
        %vm840 = vcmask 1042432
        %v842 = vsel %vm840, %v826, 0
        %844 = vmatprep.subr.mxu0 0.0
        %845 = vmatpush1.msra.mxu0 0.0
        %846 = vmatprep.subr.mxu0 0.0
        %847 = vmatpush1.msra.mxu0 0.0
        %848 = vmatprep.subr.mxu0 0.0
        %849 = vmatpush1.msra.mxu0 0.0
        %850 = vmatprep.subr.mxu0 0.0
        %851 = vmatpush1.msra.mxu0 0.0
        %852 = vmatprep.subr.mxu0 0.0
        %853 = vmatpush1.msra.mxu0 0.0
        %854 = vmatprep.subr.mxu0 0.0
        %855 = vmatpush1.msra.mxu0 0.0
        %856 = vmatprep.subr.mxu0 0.0
        %857 = vmatpush1.msra.mxu0 0.0
        %858 = vmatprep.subr.mxu0 0.0
        %859 = vmatpush1.msra.mxu0 0.0
        %860 = vmatprep.subr.mxu0 0.0
        %861 = vmatpush1.msra.mxu0 0.0
        %862 = vmatprep.subr.mxu0 0.0
        %863 = vmatpush1.msra.mxu0 0.0
        %864 = vmatprep.subr.mxu0 0.0
        %865 = vmatpush1.msra.mxu0 0.0
        %866 = vmatprep.subr.mxu0 0.0
        %867 = vmatpush1.msra.mxu0 0.0
        %868 = vmatprep.subr.mxu0 0.0
        %869 = vmatpush1.msra.mxu0 0.0
        %870 = vmatprep.subr.mxu0 0.0
        %871 = vmatpush1.msra.mxu0 0.0
        %872 = vmatprep.subr.mxu0 0.0
        %873 = vmatpush1.msra.mxu0 0.0
        %874 = vmatprep.subr.mxu0 0.0
        %875 = vmatpush1.msra.mxu0 %v842
        %876 = vmatprep.subr.mxu0 0.0
        %877 = vmatpush2.msra.mxu0 0.0
        %878 = vmatprep.subr.mxu0 0.0
        %879 = vmatpush2.msra.mxu0 0.0
        %880 = vmatprep.subr.mxu0 0.0
        %881 = vmatpush2.msra.mxu0 0.0
        %882 = vmatprep.subr.mxu0 0.0
        %883 = vmatpush2.msra.mxu0 0.0
        %884 = vmatprep.subr.mxu0 0.0
        %885 = vmatpush2.msra.mxu0 0.0
        %886 = vmatprep.subr.mxu0 0.0
        %887 = vmatpush2.msra.mxu0 0.0
        %888 = vmatprep.subr.mxu0 0.0
        %889 = vmatpush2.msra.mxu0 0.0
        %890 = vmatprep.subr.mxu0 0.0
        %891 = vmatpush2.msra.mxu0 0.0
        %892 = vmatprep.subr.mxu0 0.0
        %893 = vmatpush2.msra.mxu0 0.0
        %894 = vmatprep.subr.mxu0 0.0
        %895 = vmatpush2.msra.mxu0 0.0
        %896 = vmatprep.subr.mxu0 0.0
        %897 = vmatpush2.msra.mxu0 0.0
        %898 = vmatprep.subr.mxu0 0.0
        %899 = vmatpush2.msra.mxu0 0.0
        %900 = vmatprep.subr.mxu0 0.0
        %901 = vmatpush2.msra.mxu0 0.0
        %902 = vmatprep.subr.mxu0 0.0
        %903 = vmatpush2.msra.mxu0 0.0
        %904 = vmatprep.subr.mxu0 0.0
        %905 = vmatpush2.msra.mxu0 0.0
        %906 = vmatprep.subr.mxu0 0.0
        %907 = vmatpush2.msra.mxu0 0.0
        %908 = vmatprep.mubr.f32.mxu0 0.0
        %909 = vmatmul.mubr.f32.gmra.mxu0 %v829
        %v910 = vpop.f32.mrf.mxu0
        %v911 = vadd.f32 0.0, %v910
        %v912 = vpop.f32.mrf.mxu0
        %913 = vmatprep.mubr.f32.mxu0 0.0
        %914 = vmatmul.mubr.f32.gmra.mxu0 %v832
        %v915 = vpop.f32.mrf.mxu0
        %v916 = vadd.f32 0.0, %v915
        %v917 = vpop.f32.mrf.mxu0
        %918 = vmatprep.mubr.f32.mxu0 0.0
        %919 = vmatmul.mubr.f32.gmra.mxu0 %v835
        %v920 = vpop.f32.mrf.mxu0
        %v921 = vadd.f32 0.0, %v920
        %v922 = vpop.f32.mrf.mxu0
        %923 = vmatprep.mubr.f32.mxu0 0.0
        %924 = vmatmul.mubr.f32.gmra.mxu0 %v838
        %v925 = vpop.f32.mrf.mxu0
        %v926 = vadd.f32 0.0, %v925
        %v927 = vpop.f32.mrf.mxu0
        %928 = vdwg.mxu0
        %v933 = vcombine.high %v911, %v911
        %v935 = vunpack.c.l.s4 1966171168
        %v936 = vunpack.c.0.s8 %v935
        %v937 = vlaneseq
        %v938 = vshrl.u32 %v937, 7
        %v939 = vsub.s32 %v936, %v938
        %v940 = vrot.slane %v911, %v939
        %v942 = vunpack.c.l.s4 1966171168
        %v943 = vunpack.c.0.s8 %v942
        %v944 = vlaneseq
        %v945 = vshrl.u32 %v944, 7
        %v946 = vsub.s32 %v943, %v945
        %v947 = vrot.slane %v933, %v946
        %v948 = vcombine.high %v940, %v940
        %v949 = vcombine.high %v947, %v947
        %v951 = vunpack.c.l.s4 1966171168
        %v952 = vunpack.c.0.s8 %v951
        %v953 = vlaneseq
        %v954 = vshrl.u32 %v953, 7
        %v955 = vsub.s32 %v952, %v954
        %v956 = vrot.slane %v940, %v955
        %v958 = vunpack.c.l.s4 1966171168
        %v959 = vunpack.c.0.s8 %v958
        %v960 = vlaneseq
        %v961 = vshrl.u32 %v960, 7
        %v962 = vsub.s32 %v959, %v961
        %v963 = vrot.slane %v947, %v962
        %v965 = vunpack.c.l.s4 1966171168
        %v966 = vunpack.c.0.s8 %v965
        %v967 = vlaneseq
        %v968 = vshrl.u32 %v967, 7
        %v969 = vsub.s32 %v966, %v968
        %v970 = vrot.slane %v948, %v969
        %v972 = vunpack.c.l.s4 1966171168
        %v973 = vunpack.c.0.s8 %v972
        %v974 = vlaneseq
        %v975 = vshrl.u32 %v974, 7
        %v976 = vsub.s32 %v973, %v975
        %v977 = vrot.slane %v949, %v976
        %v978 = vcombine.high %v956, %v956
        %v979 = vcombine.high %v963, %v963
        %v980 = vcombine.high %v970, %v970
        %v981 = vcombine.high %v977, %v977
        %v982 = vcombine.high %v916, %v916
        %v984 = vunpack.c.l.s4 1966171168
        %v985 = vunpack.c.0.s8 %v984
        %v986 = vlaneseq
        %v987 = vshrl.u32 %v986, 7
        %v988 = vsub.s32 %v985, %v987
        %v989 = vrot.slane %v916, %v988
        %v991 = vunpack.c.l.s4 1966171168
        %v992 = vunpack.c.0.s8 %v991
        %v993 = vlaneseq
        %v994 = vshrl.u32 %v993, 7
        %v995 = vsub.s32 %v992, %v994
        %v996 = vrot.slane %v982, %v995
        %v997 = vcombine.high %v989, %v989
        %v998 = vcombine.high %v996, %v996
        %v1000 = vunpack.c.l.s4 1966171168
        %v1001 = vunpack.c.0.s8 %v1000
        %v1002 = vlaneseq
        %v1003 = vshrl.u32 %v1002, 7
        %v1004 = vsub.s32 %v1001, %v1003
        %v1005 = vrot.slane %v989, %v1004
        %v1007 = vunpack.c.l.s4 1966171168
        %v1008 = vunpack.c.0.s8 %v1007
        %v1009 = vlaneseq
        %v1010 = vshrl.u32 %v1009, 7
        %v1011 = vsub.s32 %v1008, %v1010
        %v1012 = vrot.slane %v996, %v1011
        %v1014 = vunpack.c.l.s4 1966171168
        %v1015 = vunpack.c.0.s8 %v1014
        %v1016 = vlaneseq
        %v1017 = vshrl.u32 %v1016, 7
        %v1018 = vsub.s32 %v1015, %v1017
        %v1019 = vrot.slane %v997, %v1018
        %v1021 = vunpack.c.l.s4 1966171168
        %v1022 = vunpack.c.0.s8 %v1021
        %v1023 = vlaneseq
        %v1024 = vshrl.u32 %v1023, 7
        %v1025 = vsub.s32 %v1022, %v1024
        %v1026 = vrot.slane %v998, %v1025
        %v1027 = vcombine.high %v1005, %v1005
        %v1028 = vcombine.high %v1012, %v1012
        %v1029 = vcombine.high %v1019, %v1019
        %v1030 = vcombine.high %v1026, %v1026
        %v1031 = vcombine.high %v921, %v921
        %v1033 = vunpack.c.l.s4 1966171168
        %v1034 = vunpack.c.0.s8 %v1033
        %v1035 = vlaneseq
        %v1036 = vshrl.u32 %v1035, 7
        %v1037 = vsub.s32 %v1034, %v1036
        %v1038 = vrot.slane %v921, %v1037
        %v1040 = vunpack.c.l.s4 1966171168
        %v1041 = vunpack.c.0.s8 %v1040
        %v1042 = vlaneseq
        %v1043 = vshrl.u32 %v1042, 7
        %v1044 = vsub.s32 %v1041, %v1043
        %v1045 = vrot.slane %v1031, %v1044
        %v1046 = vcombine.high %v1038, %v1038
        %v1047 = vcombine.high %v1045, %v1045
        %v1049 = vunpack.c.l.s4 1966171168
        %v1050 = vunpack.c.0.s8 %v1049
        %v1051 = vlaneseq
        %v1052 = vshrl.u32 %v1051, 7
        %v1053 = vsub.s32 %v1050, %v1052
        %v1054 = vrot.slane %v1038, %v1053
        %v1056 = vunpack.c.l.s4 1966171168
        %v1057 = vunpack.c.0.s8 %v1056
        %v1058 = vlaneseq
        %v1059 = vshrl.u32 %v1058, 7
        %v1060 = vsub.s32 %v1057, %v1059
        %v1061 = vrot.slane %v1045, %v1060
        %v1063 = vunpack.c.l.s4 1966171168
        %v1064 = vunpack.c.0.s8 %v1063
        %v1065 = vlaneseq
        %v1066 = vshrl.u32 %v1065, 7
        %v1067 = vsub.s32 %v1064, %v1066
        %v1068 = vrot.slane %v1046, %v1067
        %v1070 = vunpack.c.l.s4 1966171168
        %v1071 = vunpack.c.0.s8 %v1070
        %v1072 = vlaneseq
        %v1073 = vshrl.u32 %v1072, 7
        %v1074 = vsub.s32 %v1071, %v1073
        %v1075 = vrot.slane %v1047, %v1074
        %v1076 = vcombine.high %v1054, %v1054
        %v1077 = vcombine.high %v1061, %v1061
        %v1078 = vcombine.high %v1068, %v1068
        %v1079 = vcombine.high %v1075, %v1075
        %v1080 = vcombine.high %v926, %v926
        %v1082 = vunpack.c.l.s4 1966171168
        %v1083 = vunpack.c.0.s8 %v1082
        %v1084 = vlaneseq
        %v1085 = vshrl.u32 %v1084, 7
        %v1086 = vsub.s32 %v1083, %v1085
        %v1087 = vrot.slane %v926, %v1086
        %v1089 = vunpack.c.l.s4 1966171168
        %v1090 = vunpack.c.0.s8 %v1089
        %v1091 = vlaneseq
        %v1092 = vshrl.u32 %v1091, 7
        %v1093 = vsub.s32 %v1090, %v1092
        %v1094 = vrot.slane %v1080, %v1093
        %v1095 = vcombine.high %v1087, %v1087
        %v1096 = vcombine.high %v1094, %v1094
        %v1098 = vunpack.c.l.s4 1966171168
        %v1099 = vunpack.c.0.s8 %v1098
        %v1100 = vlaneseq
        %v1101 = vshrl.u32 %v1100, 7
        %v1102 = vsub.s32 %v1099, %v1101
        %v1103 = vrot.slane %v1087, %v1102
        %v1105 = vunpack.c.l.s4 1966171168
        %v1106 = vunpack.c.0.s8 %v1105
        %v1107 = vlaneseq
        %v1108 = vshrl.u32 %v1107, 7
        %v1109 = vsub.s32 %v1106, %v1108
        %v1110 = vrot.slane %v1094, %v1109
        %v1112 = vunpack.c.l.s4 1966171168
        %v1113 = vunpack.c.0.s8 %v1112
        %v1114 = vlaneseq
        %v1115 = vshrl.u32 %v1114, 7
        %v1116 = vsub.s32 %v1113, %v1115
        %v1117 = vrot.slane %v1095, %v1116
        %v1119 = vunpack.c.l.s4 1966171168
        %v1120 = vunpack.c.0.s8 %v1119
        %v1121 = vlaneseq
        %v1122 = vshrl.u32 %v1121, 7
        %v1123 = vsub.s32 %v1120, %v1122
        %v1124 = vrot.slane %v1096, %v1123
        %v1125 = vcombine.high %v1103, %v1103
        %v1126 = vcombine.high %v1110, %v1110
        %v1127 = vcombine.high %v1117, %v1117
        %v1128 = vcombine.high %v1124, %v1124
        %v1129 = vlaneseq
        %v1130 = vshrl.u32 %v1129, 7
        %v1131 = vsub.s32 0, %v1130
        %v1132 = vrot.slane %v956, %v1131
        %v1133 = vlaneseq
        %v1134 = vshrl.u32 %v1133, 7
        %v1135 = vsub.s32 0, %v1134
        %v1136 = vrot.slane %v970, %v1135
        %v1137 = vlaneseq
        %v1138 = vshrl.u32 %v1137, 7
        %v1139 = vsub.s32 0, %v1138
        %v1140 = vrot.slane %v978, %v1139
        %v1141 = vlaneseq
        %v1142 = vshrl.u32 %v1141, 7
        %v1143 = vsub.s32 0, %v1142
        %v1144 = vrot.slane %v980, %v1143
        %v1145 = vlaneseq
        %v1146 = vshrl.u32 %v1145, 7
        %v1147 = vsub.s32 0, %v1146
        %v1148 = vrot.slane %v963, %v1147
        %v1149 = vlaneseq
        %v1150 = vshrl.u32 %v1149, 7
        %v1151 = vsub.s32 0, %v1150
        %v1152 = vrot.slane %v977, %v1151
        %v1153 = vlaneseq
        %v1154 = vshrl.u32 %v1153, 7
        %v1155 = vsub.s32 0, %v1154
        %v1156 = vrot.slane %v979, %v1155
        %v1157 = vlaneseq
        %v1158 = vshrl.u32 %v1157, 7
        %v1159 = vsub.s32 0, %v1158
        %v1160 = vrot.slane %v981, %v1159
        %v1161 = vlaneseq
        %v1162 = vshrl.u32 %v1161, 7
        %v1163 = vsub.s32 0, %v1162
        %v1164 = vrot.slane %v1005, %v1163
        %v1165 = vlaneseq
        %v1166 = vshrl.u32 %v1165, 7
        %v1167 = vsub.s32 0, %v1166
        %v1168 = vrot.slane %v1019, %v1167
        %v1169 = vlaneseq
        %v1170 = vshrl.u32 %v1169, 7
        %v1171 = vsub.s32 0, %v1170
        %v1172 = vrot.slane %v1027, %v1171
        %v1173 = vlaneseq
        %v1174 = vshrl.u32 %v1173, 7
        %v1175 = vsub.s32 0, %v1174
        %v1176 = vrot.slane %v1029, %v1175
        %v1177 = vlaneseq
        %v1178 = vshrl.u32 %v1177, 7
        %v1179 = vsub.s32 0, %v1178
        %v1180 = vrot.slane %v1012, %v1179
        %v1181 = vlaneseq
        %v1182 = vshrl.u32 %v1181, 7
        %v1183 = vsub.s32 0, %v1182
        %v1184 = vrot.slane %v1026, %v1183
        %v1185 = vlaneseq
        %v1186 = vshrl.u32 %v1185, 7
        %v1187 = vsub.s32 0, %v1186
        %v1188 = vrot.slane %v1028, %v1187
        %v1189 = vlaneseq
        %v1190 = vshrl.u32 %v1189, 7
        %v1191 = vsub.s32 0, %v1190
        %v1192 = vrot.slane %v1030, %v1191
        %v1193 = vlaneseq
        %v1194 = vshrl.u32 %v1193, 7
        %v1195 = vsub.s32 0, %v1194
        %v1196 = vrot.slane %v1054, %v1195
        %v1197 = vlaneseq
        %v1198 = vshrl.u32 %v1197, 7
        %v1199 = vsub.s32 0, %v1198
        %v1200 = vrot.slane %v1068, %v1199
        %v1201 = vlaneseq
        %v1202 = vshrl.u32 %v1201, 7
        %v1203 = vsub.s32 0, %v1202
        %v1204 = vrot.slane %v1076, %v1203
        %v1205 = vlaneseq
        %v1206 = vshrl.u32 %v1205, 7
        %v1207 = vsub.s32 0, %v1206
        %v1208 = vrot.slane %v1078, %v1207
        %v1209 = vlaneseq
        %v1210 = vshrl.u32 %v1209, 7
        %v1211 = vsub.s32 0, %v1210
        %v1212 = vrot.slane %v1061, %v1211
        %v1213 = vlaneseq
        %v1214 = vshrl.u32 %v1213, 7
        %v1215 = vsub.s32 0, %v1214
        %v1216 = vrot.slane %v1075, %v1215
        %v1217 = vlaneseq
        %v1218 = vshrl.u32 %v1217, 7
        %v1219 = vsub.s32 0, %v1218
        %v1220 = vrot.slane %v1077, %v1219
        %v1221 = vlaneseq
        %v1222 = vshrl.u32 %v1221, 7
        %v1223 = vsub.s32 0, %v1222
        %v1224 = vrot.slane %v1079, %v1223
        %v1225 = vlaneseq
        %v1226 = vshrl.u32 %v1225, 7
        %v1227 = vsub.s32 0, %v1226
        %v1228 = vrot.slane %v1103, %v1227
        %v1229 = vlaneseq
        %v1230 = vshrl.u32 %v1229, 7
        %v1231 = vsub.s32 0, %v1230
        %v1232 = vrot.slane %v1117, %v1231
        %v1233 = vlaneseq
        %v1234 = vshrl.u32 %v1233, 7
        %v1235 = vsub.s32 0, %v1234
        %v1236 = vrot.slane %v1125, %v1235
        %v1237 = vlaneseq
        %v1238 = vshrl.u32 %v1237, 7
        %v1239 = vsub.s32 0, %v1238
        %v1240 = vrot.slane %v1127, %v1239
        %v1241 = vlaneseq
        %v1242 = vshrl.u32 %v1241, 7
        %v1243 = vsub.s32 0, %v1242
        %v1244 = vrot.slane %v1110, %v1243
        %v1245 = vlaneseq
        %v1246 = vshrl.u32 %v1245, 7
        %v1247 = vsub.s32 0, %v1246
        %v1248 = vrot.slane %v1124, %v1247
        %v1249 = vlaneseq
        %v1250 = vshrl.u32 %v1249, 7
        %v1251 = vsub.s32 0, %v1250
        %v1252 = vrot.slane %v1126, %v1251
        %v1253 = vlaneseq
        %v1254 = vshrl.u32 %v1253, 7
        %v1255 = vsub.s32 0, %v1254
        %v1256 = vrot.slane %v1128, %v1255
        %v1289 = vsub.f32 %v1132, %v911
        %v1290 = vsub.f32 %v1132, %v916
        %v1291 = vsub.f32 %v1132, %v921
        %v1292 = vsub.f32 %v1132, %v926
        %v1293 = vsub.f32 %v1136, %v911
        %v1294 = vsub.f32 %v1136, %v916
        %v1295 = vsub.f32 %v1136, %v921
        %v1296 = vsub.f32 %v1136, %v926
        %v1297 = vsub.f32 %v1140, %v911
        %v1298 = vsub.f32 %v1140, %v916
        %v1299 = vsub.f32 %v1140, %v921
        %v1300 = vsub.f32 %v1140, %v926
        %v1301 = vsub.f32 %v1144, %v911
        %v1302 = vsub.f32 %v1144, %v916
        %v1303 = vsub.f32 %v1144, %v921
        %v1304 = vsub.f32 %v1144, %v926
        %v1305 = vsub.f32 %v1148, %v911
        %v1306 = vsub.f32 %v1148, %v916
        %v1307 = vsub.f32 %v1148, %v921
        %v1308 = vsub.f32 %v1148, %v926
        %v1309 = vsub.f32 %v1152, %v911
        %v1310 = vsub.f32 %v1152, %v916
        %v1311 = vsub.f32 %v1152, %v921
        %v1312 = vsub.f32 %v1152, %v926
        %v1313 = vsub.f32 %v1156, %v911
        %v1314 = vsub.f32 %v1156, %v916
        %v1315 = vsub.f32 %v1156, %v921
        %v1316 = vsub.f32 %v1156, %v926
        %v1317 = vsub.f32 %v1160, %v911
        %v1318 = vsub.f32 %v1160, %v916
        %v1319 = vsub.f32 %v1160, %v921
        %v1320 = vsub.f32 %v1160, %v926
        %v1321 = vsub.f32 %v1164, %v911
        %v1322 = vsub.f32 %v1164, %v916
        %v1323 = vsub.f32 %v1164, %v921
        %v1324 = vsub.f32 %v1164, %v926
        %v1325 = vsub.f32 %v1168, %v911
        %v1326 = vsub.f32 %v1168, %v916
        %v1327 = vsub.f32 %v1168, %v921
        %v1328 = vsub.f32 %v1168, %v926
        %v1329 = vsub.f32 %v1172, %v911
        %v1330 = vsub.f32 %v1172, %v916
        %v1331 = vsub.f32 %v1172, %v921
        %v1332 = vsub.f32 %v1172, %v926
        %v1333 = vsub.f32 %v1176, %v911
        %v1334 = vsub.f32 %v1176, %v916
        %v1335 = vsub.f32 %v1176, %v921
        %v1336 = vsub.f32 %v1176, %v926
        %v1337 = vsub.f32 %v1180, %v911
        %v1338 = vsub.f32 %v1180, %v916
        %v1339 = vsub.f32 %v1180, %v921
        %v1340 = vsub.f32 %v1180, %v926
        %v1341 = vsub.f32 %v1184, %v911
        %v1342 = vsub.f32 %v1184, %v916
        %v1343 = vsub.f32 %v1184, %v921
        %v1344 = vsub.f32 %v1184, %v926
        %v1345 = vsub.f32 %v1188, %v911
        %v1346 = vsub.f32 %v1188, %v916
        %v1347 = vsub.f32 %v1188, %v921
        %v1348 = vsub.f32 %v1188, %v926
        %v1349 = vsub.f32 %v1192, %v911
        %v1350 = vsub.f32 %v1192, %v916
        %v1351 = vsub.f32 %v1192, %v921
        %v1352 = vsub.f32 %v1192, %v926
        %v1353 = vsub.f32 %v1196, %v911
        %v1354 = vsub.f32 %v1196, %v916
        %v1355 = vsub.f32 %v1196, %v921
        %v1356 = vsub.f32 %v1196, %v926
        %v1357 = vsub.f32 %v1200, %v911
        %v1358 = vsub.f32 %v1200, %v916
        %v1359 = vsub.f32 %v1200, %v921
        %v1360 = vsub.f32 %v1200, %v926
        %v1361 = vsub.f32 %v1204, %v911
        %v1362 = vsub.f32 %v1204, %v916
        %v1363 = vsub.f32 %v1204, %v921
        %v1364 = vsub.f32 %v1204, %v926
        %v1365 = vsub.f32 %v1208, %v911
        %v1366 = vsub.f32 %v1208, %v916
        %v1367 = vsub.f32 %v1208, %v921
        %v1368 = vsub.f32 %v1208, %v926
        %v1369 = vsub.f32 %v1212, %v911
        %v1370 = vsub.f32 %v1212, %v916
        %v1371 = vsub.f32 %v1212, %v921
        %v1372 = vsub.f32 %v1212, %v926
        %v1373 = vsub.f32 %v1216, %v911
        %v1374 = vsub.f32 %v1216, %v916
        %v1375 = vsub.f32 %v1216, %v921
        %v1376 = vsub.f32 %v1216, %v926
        %v1377 = vsub.f32 %v1220, %v911
        %v1378 = vsub.f32 %v1220, %v916
        %v1379 = vsub.f32 %v1220, %v921
        %v1380 = vsub.f32 %v1220, %v926
        %v1381 = vsub.f32 %v1224, %v911
        %v1382 = vsub.f32 %v1224, %v916
        %v1383 = vsub.f32 %v1224, %v921
        %v1384 = vsub.f32 %v1224, %v926
        %v1385 = vsub.f32 %v1228, %v911
        %v1386 = vsub.f32 %v1228, %v916
        %v1387 = vsub.f32 %v1228, %v921
        %v1388 = vsub.f32 %v1228, %v926
        %v1389 = vsub.f32 %v1232, %v911
        %v1390 = vsub.f32 %v1232, %v916
        %v1391 = vsub.f32 %v1232, %v921
        %v1392 = vsub.f32 %v1232, %v926
        %v1393 = vsub.f32 %v1236, %v911
        %v1394 = vsub.f32 %v1236, %v916
        %v1395 = vsub.f32 %v1236, %v921
        %v1396 = vsub.f32 %v1236, %v926
        %v1397 = vsub.f32 %v1240, %v911
        %v1398 = vsub.f32 %v1240, %v916
        %v1399 = vsub.f32 %v1240, %v921
        %v1400 = vsub.f32 %v1240, %v926
        %v1401 = vsub.f32 %v1244, %v911
        %v1402 = vsub.f32 %v1244, %v916
        %v1403 = vsub.f32 %v1244, %v921
        %v1404 = vsub.f32 %v1244, %v926
        %v1405 = vsub.f32 %v1248, %v911
        %v1406 = vsub.f32 %v1248, %v916
        %v1407 = vsub.f32 %v1248, %v921
        %v1408 = vsub.f32 %v1248, %v926
        %v1409 = vsub.f32 %v1252, %v911
        %v1410 = vsub.f32 %v1252, %v916
        %v1411 = vsub.f32 %v1252, %v921
        %v1412 = vsub.f32 %v1252, %v926
        %v1413 = vsub.f32 %v1256, %v911
        %v1414 = vsub.f32 %v1256, %v916
        %v1415 = vsub.f32 %v1256, %v921
        %v1416 = vsub.f32 %v1256, %v926
        %v1417 = vld [vmem:[%s8] sm:$0x1]
        %v1419 = vlaneseq
        %v1420 = vshrl.u32 %v1419, 7
        %v1421 = vsub.s32 0, %v1420
        %v1422 = vrot.slane %v1417, %v1421
        %v1424 = vadd.f32 %v1289, %v1422
        %v1425 = vadd.f32 %v1290, %v1422
        %v1426 = vadd.f32 %v1291, %v1422
        %v1427 = vadd.f32 %v1292, %v1422
        %v1428 = vadd.f32 %v1293, %v1422
        %v1429 = vadd.f32 %v1294, %v1422
        %v1430 = vadd.f32 %v1295, %v1422
        %v1431 = vadd.f32 %v1296, %v1422
        %v1432 = vadd.f32 %v1297, %v1422
        %v1433 = vadd.f32 %v1298, %v1422
        %v1434 = vadd.f32 %v1299, %v1422
        %v1435 = vadd.f32 %v1300, %v1422
        %v1436 = vadd.f32 %v1301, %v1422
        %v1437 = vadd.f32 %v1302, %v1422
        %v1438 = vadd.f32 %v1303, %v1422
        %v1439 = vadd.f32 %v1304, %v1422
        %v1440 = vadd.f32 %v1305, %v1422
        %v1441 = vadd.f32 %v1306, %v1422
        %v1442 = vadd.f32 %v1307, %v1422
        %v1443 = vadd.f32 %v1308, %v1422
        %v1444 = vadd.f32 %v1309, %v1422
        %v1445 = vadd.f32 %v1310, %v1422
        %v1446 = vadd.f32 %v1311, %v1422
        %v1447 = vadd.f32 %v1312, %v1422
        %v1448 = vadd.f32 %v1313, %v1422
        %v1449 = vadd.f32 %v1314, %v1422
        %v1450 = vadd.f32 %v1315, %v1422
        %v1451 = vadd.f32 %v1316, %v1422
        %v1452 = vadd.f32 %v1317, %v1422
        %v1453 = vadd.f32 %v1318, %v1422
        %v1454 = vadd.f32 %v1319, %v1422
        %v1455 = vadd.f32 %v1320, %v1422
        %v1456 = vadd.f32 %v1321, %v1422
        %v1457 = vadd.f32 %v1322, %v1422
        %v1458 = vadd.f32 %v1323, %v1422
        %v1459 = vadd.f32 %v1324, %v1422
        %v1460 = vadd.f32 %v1325, %v1422
        %v1461 = vadd.f32 %v1326, %v1422
        %v1462 = vadd.f32 %v1327, %v1422
        %v1463 = vadd.f32 %v1328, %v1422
        %v1464 = vadd.f32 %v1329, %v1422
        %v1465 = vadd.f32 %v1330, %v1422
        %v1466 = vadd.f32 %v1331, %v1422
        %v1467 = vadd.f32 %v1332, %v1422
        %v1468 = vadd.f32 %v1333, %v1422
        %v1469 = vadd.f32 %v1334, %v1422
        %v1470 = vadd.f32 %v1335, %v1422
        %v1471 = vadd.f32 %v1336, %v1422
        %v1472 = vadd.f32 %v1337, %v1422
        %v1473 = vadd.f32 %v1338, %v1422
        %v1474 = vadd.f32 %v1339, %v1422
        %v1475 = vadd.f32 %v1340, %v1422
        %v1476 = vadd.f32 %v1341, %v1422
        %v1477 = vadd.f32 %v1342, %v1422
        %v1478 = vadd.f32 %v1343, %v1422
        %v1479 = vadd.f32 %v1344, %v1422
        %v1480 = vadd.f32 %v1345, %v1422
        %v1481 = vadd.f32 %v1346, %v1422
        %v1482 = vadd.f32 %v1347, %v1422
        %v1483 = vadd.f32 %v1348, %v1422
        %v1484 = vadd.f32 %v1349, %v1422
        %v1485 = vadd.f32 %v1350, %v1422
        %v1486 = vadd.f32 %v1351, %v1422
        %v1487 = vadd.f32 %v1352, %v1422
        %v1488 = vadd.f32 %v1353, %v1422
        %v1489 = vadd.f32 %v1354, %v1422
        %v1490 = vadd.f32 %v1355, %v1422
        %v1491 = vadd.f32 %v1356, %v1422
        %v1492 = vadd.f32 %v1357, %v1422
        %v1493 = vadd.f32 %v1358, %v1422
        %v1494 = vadd.f32 %v1359, %v1422
        %v1495 = vadd.f32 %v1360, %v1422
        %v1496 = vadd.f32 %v1361, %v1422
        %v1497 = vadd.f32 %v1362, %v1422
        %v1498 = vadd.f32 %v1363, %v1422
        %v1499 = vadd.f32 %v1364, %v1422
        %v1500 = vadd.f32 %v1365, %v1422
        %v1501 = vadd.f32 %v1366, %v1422
        %v1502 = vadd.f32 %v1367, %v1422
        %v1503 = vadd.f32 %v1368, %v1422
        %v1504 = vadd.f32 %v1369, %v1422
        %v1505 = vadd.f32 %v1370, %v1422
        %v1506 = vadd.f32 %v1371, %v1422
        %v1507 = vadd.f32 %v1372, %v1422
        %v1508 = vadd.f32 %v1373, %v1422
        %v1509 = vadd.f32 %v1374, %v1422
        %v1510 = vadd.f32 %v1375, %v1422
        %v1511 = vadd.f32 %v1376, %v1422
        %v1512 = vadd.f32 %v1377, %v1422
        %v1513 = vadd.f32 %v1378, %v1422
        %v1514 = vadd.f32 %v1379, %v1422
        %v1515 = vadd.f32 %v1380, %v1422
        %v1516 = vadd.f32 %v1381, %v1422
        %v1517 = vadd.f32 %v1382, %v1422
        %v1518 = vadd.f32 %v1383, %v1422
        %v1519 = vadd.f32 %v1384, %v1422
        %v1520 = vadd.f32 %v1385, %v1422
        %v1521 = vadd.f32 %v1386, %v1422
        %v1522 = vadd.f32 %v1387, %v1422
        %v1523 = vadd.f32 %v1388, %v1422
        %v1524 = vadd.f32 %v1389, %v1422
        %v1525 = vadd.f32 %v1390, %v1422
        %v1526 = vadd.f32 %v1391, %v1422
        %v1527 = vadd.f32 %v1392, %v1422
        %v1528 = vadd.f32 %v1393, %v1422
        %v1529 = vadd.f32 %v1394, %v1422
        %v1530 = vadd.f32 %v1395, %v1422
        %v1531 = vadd.f32 %v1396, %v1422
        %v1532 = vadd.f32 %v1397, %v1422
        %v1533 = vadd.f32 %v1398, %v1422
        %v1534 = vadd.f32 %v1399, %v1422
        %v1535 = vadd.f32 %v1400, %v1422
        %v1536 = vadd.f32 %v1401, %v1422
        %v1537 = vadd.f32 %v1402, %v1422
        %v1538 = vadd.f32 %v1403, %v1422
        %v1539 = vadd.f32 %v1404, %v1422
        %v1540 = vadd.f32 %v1405, %v1422
        %v1541 = vadd.f32 %v1406, %v1422
        %v1542 = vadd.f32 %v1407, %v1422
        %v1543 = vadd.f32 %v1408, %v1422
        %v1544 = vadd.f32 %v1409, %v1422
        %v1545 = vadd.f32 %v1410, %v1422
        %v1546 = vadd.f32 %v1411, %v1422
        %v1547 = vadd.f32 %v1412, %v1422
        %v1548 = vadd.f32 %v1413, %v1422
        %v1549 = vadd.f32 %v1414, %v1422
        %v1550 = vadd.f32 %v1415, %v1422
        %v1551 = vadd.f32 %v1416, %v1422
        %v1552 = vmax.f32 %v1424, 0.0
        %v1553 = vmax.f32 %v1425, 0.0
        %v1554 = vmax.f32 %v1426, 0.0
        %v1555 = vmax.f32 %v1427, 0.0
        %v1556 = vmax.f32 %v1428, 0.0
        %v1557 = vmax.f32 %v1429, 0.0
        %v1558 = vmax.f32 %v1430, 0.0
        %v1559 = vmax.f32 %v1431, 0.0
        %v1560 = vmax.f32 %v1432, 0.0
        %v1561 = vmax.f32 %v1433, 0.0
        %v1562 = vmax.f32 %v1434, 0.0
        %v1563 = vmax.f32 %v1435, 0.0
        %v1564 = vmax.f32 %v1436, 0.0
        %v1565 = vmax.f32 %v1437, 0.0
        %v1566 = vmax.f32 %v1438, 0.0
        %v1567 = vmax.f32 %v1439, 0.0
        %v1568 = vmax.f32 %v1440, 0.0
        %v1569 = vmax.f32 %v1441, 0.0
        %v1570 = vmax.f32 %v1442, 0.0
        %v1571 = vmax.f32 %v1443, 0.0
        %v1572 = vmax.f32 %v1444, 0.0
        %v1573 = vmax.f32 %v1445, 0.0
        %v1574 = vmax.f32 %v1446, 0.0
        %v1575 = vmax.f32 %v1447, 0.0
        %v1576 = vmax.f32 %v1448, 0.0
        %v1577 = vmax.f32 %v1449, 0.0
        %v1578 = vmax.f32 %v1450, 0.0
        %v1579 = vmax.f32 %v1451, 0.0
        %v1580 = vmax.f32 %v1452, 0.0
        %v1581 = vmax.f32 %v1453, 0.0
        %v1582 = vmax.f32 %v1454, 0.0
        %v1583 = vmax.f32 %v1455, 0.0
        %v1584 = vmax.f32 %v1456, 0.0
        %v1585 = vmax.f32 %v1457, 0.0
        %v1586 = vmax.f32 %v1458, 0.0
        %v1587 = vmax.f32 %v1459, 0.0
        %v1588 = vmax.f32 %v1460, 0.0
        %v1589 = vmax.f32 %v1461, 0.0
        %v1590 = vmax.f32 %v1462, 0.0
        %v1591 = vmax.f32 %v1463, 0.0
        %v1592 = vmax.f32 %v1464, 0.0
        %v1593 = vmax.f32 %v1465, 0.0
        %v1594 = vmax.f32 %v1466, 0.0
        %v1595 = vmax.f32 %v1467, 0.0
        %v1596 = vmax.f32 %v1468, 0.0
        %v1597 = vmax.f32 %v1469, 0.0
        %v1598 = vmax.f32 %v1470, 0.0
        %v1599 = vmax.f32 %v1471, 0.0
        %v1600 = vmax.f32 %v1472, 0.0
        %v1601 = vmax.f32 %v1473, 0.0
        %v1602 = vmax.f32 %v1474, 0.0
        %v1603 = vmax.f32 %v1475, 0.0
        %v1604 = vmax.f32 %v1476, 0.0
        %v1605 = vmax.f32 %v1477, 0.0
        %v1606 = vmax.f32 %v1478, 0.0
        %v1607 = vmax.f32 %v1479, 0.0
        %v1608 = vmax.f32 %v1480, 0.0
        %v1609 = vmax.f32 %v1481, 0.0
        %v1610 = vmax.f32 %v1482, 0.0
        %v1611 = vmax.f32 %v1483, 0.0
        %v1612 = vmax.f32 %v1484, 0.0
        %v1613 = vmax.f32 %v1485, 0.0
        %v1614 = vmax.f32 %v1486, 0.0
        %v1615 = vmax.f32 %v1487, 0.0
        %v1616 = vmax.f32 %v1488, 0.0
        %v1617 = vmax.f32 %v1489, 0.0
        %v1618 = vmax.f32 %v1490, 0.0
        %v1619 = vmax.f32 %v1491, 0.0
        %v1620 = vmax.f32 %v1492, 0.0
        %v1621 = vmax.f32 %v1493, 0.0
        %v1622 = vmax.f32 %v1494, 0.0
        %v1623 = vmax.f32 %v1495, 0.0
        %v1624 = vmax.f32 %v1496, 0.0
        %v1625 = vmax.f32 %v1497, 0.0
        %v1626 = vmax.f32 %v1498, 0.0
        %v1627 = vmax.f32 %v1499, 0.0
        %v1628 = vmax.f32 %v1500, 0.0
        %v1629 = vmax.f32 %v1501, 0.0
        %v1630 = vmax.f32 %v1502, 0.0
        %v1631 = vmax.f32 %v1503, 0.0
        %v1632 = vmax.f32 %v1504, 0.0
        %v1633 = vmax.f32 %v1505, 0.0
        %v1634 = vmax.f32 %v1506, 0.0
        %v1635 = vmax.f32 %v1507, 0.0
        %v1636 = vmax.f32 %v1508, 0.0
        %v1637 = vmax.f32 %v1509, 0.0
        %v1638 = vmax.f32 %v1510, 0.0
        %v1639 = vmax.f32 %v1511, 0.0
        %v1640 = vmax.f32 %v1512, 0.0
        %v1641 = vmax.f32 %v1513, 0.0
        %v1642 = vmax.f32 %v1514, 0.0
        %v1643 = vmax.f32 %v1515, 0.0
        %v1644 = vmax.f32 %v1516, 0.0
        %v1645 = vmax.f32 %v1517, 0.0
        %v1646 = vmax.f32 %v1518, 0.0
        %v1647 = vmax.f32 %v1519, 0.0
        %v1648 = vmax.f32 %v1520, 0.0
        %v1649 = vmax.f32 %v1521, 0.0
        %v1650 = vmax.f32 %v1522, 0.0
        %v1651 = vmax.f32 %v1523, 0.0
        %v1652 = vmax.f32 %v1524, 0.0
        %v1653 = vmax.f32 %v1525, 0.0
        %v1654 = vmax.f32 %v1526, 0.0
        %v1655 = vmax.f32 %v1527, 0.0
        %v1656 = vmax.f32 %v1528, 0.0
        %v1657 = vmax.f32 %v1529, 0.0
        %v1658 = vmax.f32 %v1530, 0.0
        %v1659 = vmax.f32 %v1531, 0.0
        %v1660 = vmax.f32 %v1532, 0.0
        %v1661 = vmax.f32 %v1533, 0.0
        %v1662 = vmax.f32 %v1534, 0.0
        %v1663 = vmax.f32 %v1535, 0.0
        %v1664 = vmax.f32 %v1536, 0.0
        %v1665 = vmax.f32 %v1537, 0.0
        %v1666 = vmax.f32 %v1538, 0.0
        %v1667 = vmax.f32 %v1539, 0.0
        %v1668 = vmax.f32 %v1540, 0.0
        %v1669 = vmax.f32 %v1541, 0.0
        %v1670 = vmax.f32 %v1542, 0.0
        %v1671 = vmax.f32 %v1543, 0.0
        %v1672 = vmax.f32 %v1544, 0.0
        %v1673 = vmax.f32 %v1545, 0.0
        %v1674 = vmax.f32 %v1546, 0.0
        %v1675 = vmax.f32 %v1547, 0.0
        %v1676 = vmax.f32 %v1548, 0.0
        %v1677 = vmax.f32 %v1549, 0.0
        %v1678 = vmax.f32 %v1550, 0.0
        %v1679 = vmax.f32 %v1551, 0.0
        %v1680 = vld [vmem:[%s9] sm:$0xff]
        %v1681 = vld [vmem:[%s9 + $0x8] sm:$0xff]
        %v1682 = vld [vmem:[%s9 + $0x10] sm:$0xff]
        %v1683 = vld [vmem:[%s9 + $0x18] sm:$0xff]
        %v1684 = vld [vmem:[%s9 + $0x20] sm:$0xff]
        %v1685 = vld [vmem:[%s9 + $0x28] sm:$0xff]
        %v1686 = vld [vmem:[%s9 + $0x30] sm:$0xff]
        %v1687 = vld [vmem:[%s9 + $0x38] sm:$0xff]
        %v1688 = vpack.c.bf16 %v1553, %v1552
        %v1689 = vpack.c.bf16 %v1555, %v1554
        %v1690 = vpack.c.bf16 %v1557, %v1556
        %v1691 = vpack.c.bf16 %v1559, %v1558
        %v1692 = vpack.c.bf16 %v1561, %v1560
        %v1693 = vpack.c.bf16 %v1563, %v1562
        %v1694 = vpack.c.bf16 %v1565, %v1564
        %v1695 = vpack.c.bf16 %v1567, %v1566
        %v1696 = vpack.c.bf16 %v1569, %v1568
        %v1697 = vpack.c.bf16 %v1571, %v1570
        %v1698 = vpack.c.bf16 %v1573, %v1572
        %v1699 = vpack.c.bf16 %v1575, %v1574
        %v1700 = vpack.c.bf16 %v1577, %v1576
        %v1701 = vpack.c.bf16 %v1579, %v1578
        %v1702 = vpack.c.bf16 %v1581, %v1580
        %v1703 = vpack.c.bf16 %v1583, %v1582
        %v1704 = vpack.c.bf16 %v1585, %v1584
        %v1705 = vpack.c.bf16 %v1587, %v1586
        %v1706 = vpack.c.bf16 %v1589, %v1588
        %v1707 = vpack.c.bf16 %v1591, %v1590
        %v1708 = vpack.c.bf16 %v1593, %v1592
        %v1709 = vpack.c.bf16 %v1595, %v1594
        %v1710 = vpack.c.bf16 %v1597, %v1596
        %v1711 = vpack.c.bf16 %v1599, %v1598
        %v1712 = vpack.c.bf16 %v1601, %v1600
        %v1713 = vpack.c.bf16 %v1603, %v1602
        %v1714 = vpack.c.bf16 %v1605, %v1604
        %v1715 = vpack.c.bf16 %v1607, %v1606
        %v1716 = vpack.c.bf16 %v1609, %v1608
        %v1717 = vpack.c.bf16 %v1611, %v1610
        %v1718 = vpack.c.bf16 %v1613, %v1612
        %v1719 = vpack.c.bf16 %v1615, %v1614
        %v1720 = vpack.c.bf16 %v1617, %v1616
        %v1721 = vpack.c.bf16 %v1619, %v1618
        %v1722 = vpack.c.bf16 %v1621, %v1620
        %v1723 = vpack.c.bf16 %v1623, %v1622
        %v1724 = vpack.c.bf16 %v1625, %v1624
        %v1725 = vpack.c.bf16 %v1627, %v1626
        %v1726 = vpack.c.bf16 %v1629, %v1628
        %v1727 = vpack.c.bf16 %v1631, %v1630
        %v1728 = vpack.c.bf16 %v1633, %v1632
        %v1729 = vpack.c.bf16 %v1635, %v1634
        %v1730 = vpack.c.bf16 %v1637, %v1636
        %v1731 = vpack.c.bf16 %v1639, %v1638
        %v1732 = vpack.c.bf16 %v1641, %v1640
        %v1733 = vpack.c.bf16 %v1643, %v1642
        %v1734 = vpack.c.bf16 %v1645, %v1644
        %v1735 = vpack.c.bf16 %v1647, %v1646
        %v1736 = vpack.c.bf16 %v1649, %v1648
        %v1737 = vpack.c.bf16 %v1651, %v1650
        %v1738 = vpack.c.bf16 %v1653, %v1652
        %v1739 = vpack.c.bf16 %v1655, %v1654
        %v1740 = vpack.c.bf16 %v1657, %v1656
        %v1741 = vpack.c.bf16 %v1659, %v1658
        %v1742 = vpack.c.bf16 %v1661, %v1660
        %v1743 = vpack.c.bf16 %v1663, %v1662
        %v1744 = vpack.c.bf16 %v1665, %v1664
        %v1745 = vpack.c.bf16 %v1667, %v1666
        %v1746 = vpack.c.bf16 %v1669, %v1668
        %v1747 = vpack.c.bf16 %v1671, %v1670
        %v1748 = vpack.c.bf16 %v1673, %v1672
        %v1749 = vpack.c.bf16 %v1675, %v1674
        %v1750 = vpack.c.bf16 %v1677, %v1676
        %v1751 = vpack.c.bf16 %v1679, %v1678
        %v1752 = vpack.c.bf16 %v1681, %v1680
        %v1753 = vpack.c.bf16 %v1683, %v1682
        %v1754 = vpack.c.bf16 %v1685, %v1684
        %v1755 = vpack.c.bf16 %v1687, %v1686
        %v1756 = vld [vmem:[%s10] sm:$0x1]
        %v1758 = vlaneseq
        %v1759 = vshrl.u32 %v1758, 7
        %v1760 = vsub.s32 0, %v1759
        %v1761 = vrot.slane %v1756, %v1760
        %vm1763 = vcmask 523264
        %v1765 = vsel %vm1763, %v1688, 0
        %v1768 = vsel %vm1763, %v1689, 0
        %v1771 = vsel %vm1763, %v1690, 0
        %v1774 = vsel %vm1763, %v1691, 0
        %v1777 = vsel %vm1763, %v1692, 0
        %v1780 = vsel %vm1763, %v1693, 0
        %v1783 = vsel %vm1763, %v1694, 0
        %v1786 = vsel %vm1763, %v1695, 0
        %v1789 = vsel %vm1763, %v1696, 0
        %v1792 = vsel %vm1763, %v1697, 0
        %v1795 = vsel %vm1763, %v1698, 0
        %v1798 = vsel %vm1763, %v1699, 0
        %v1801 = vsel %vm1763, %v1700, 0
        %v1804 = vsel %vm1763, %v1701, 0
        %v1807 = vsel %vm1763, %v1702, 0
        %v1810 = vsel %vm1763, %v1703, 0
        %v1813 = vsel %vm1763, %v1704, 0
        %v1816 = vsel %vm1763, %v1705, 0
        %v1819 = vsel %vm1763, %v1706, 0
        %v1822 = vsel %vm1763, %v1707, 0
        %v1825 = vsel %vm1763, %v1708, 0
        %v1828 = vsel %vm1763, %v1709, 0
        %v1831 = vsel %vm1763, %v1710, 0
        %v1834 = vsel %vm1763, %v1711, 0
        %v1837 = vsel %vm1763, %v1712, 0
        %v1840 = vsel %vm1763, %v1713, 0
        %v1843 = vsel %vm1763, %v1714, 0
        %v1846 = vsel %vm1763, %v1715, 0
        %v1849 = vsel %vm1763, %v1716, 0
        %v1852 = vsel %vm1763, %v1717, 0
        %v1855 = vsel %vm1763, %v1718, 0
        %v1858 = vsel %vm1763, %v1719, 0
        %v1861 = vsel %vm1763, %v1720, 0
        %v1864 = vsel %vm1763, %v1721, 0
        %v1867 = vsel %vm1763, %v1722, 0
        %v1870 = vsel %vm1763, %v1723, 0
        %v1873 = vsel %vm1763, %v1724, 0
        %v1876 = vsel %vm1763, %v1725, 0
        %v1879 = vsel %vm1763, %v1726, 0
        %v1882 = vsel %vm1763, %v1727, 0
        %v1885 = vsel %vm1763, %v1728, 0
        %v1888 = vsel %vm1763, %v1729, 0
        %v1891 = vsel %vm1763, %v1730, 0
        %v1894 = vsel %vm1763, %v1731, 0
        %v1897 = vsel %vm1763, %v1732, 0
        %v1900 = vsel %vm1763, %v1733, 0
        %v1903 = vsel %vm1763, %v1734, 0
        %v1906 = vsel %vm1763, %v1735, 0
        %v1909 = vsel %vm1763, %v1736, 0
        %v1912 = vsel %vm1763, %v1737, 0
        %v1915 = vsel %vm1763, %v1738, 0
        %v1918 = vsel %vm1763, %v1739, 0
        %v1921 = vsel %vm1763, %v1740, 0
        %v1924 = vsel %vm1763, %v1741, 0
        %v1927 = vsel %vm1763, %v1742, 0
        %v1930 = vsel %vm1763, %v1743, 0
        %v1933 = vsel %vm1763, %v1744, 0
        %v1936 = vsel %vm1763, %v1745, 0
        %v1939 = vsel %vm1763, %v1746, 0
        %v1942 = vsel %vm1763, %v1747, 0
        %v1945 = vsel %vm1763, %v1748, 0
        %v1948 = vsel %vm1763, %v1749, 0
        %v1951 = vsel %vm1763, %v1750, 0
        %v1954 = vsel %vm1763, %v1751, 0
        %1956 = vmatprep.subr.bf16.mxu0 0
        %1957 = vmatpush1.bf16.msra.mxu0 0
        %1958 = vmatprep.subr.bf16.mxu0 0
        %1959 = vmatpush1.bf16.msra.mxu0 0
        %1960 = vmatprep.subr.bf16.mxu0 0
        %1961 = vmatpush1.bf16.msra.mxu0 0
        %1962 = vmatprep.subr.bf16.mxu0 0
        %1963 = vmatpush1.bf16.msra.mxu0 0
        %1964 = vmatprep.subr.bf16.mxu0 0
        %1965 = vmatpush1.bf16.msra.mxu0 %v1755
        %1966 = vmatprep.subr.bf16.mxu0 0
        %1967 = vmatpush1.bf16.msra.mxu0 %v1754
        %1968 = vmatprep.subr.bf16.mxu0 0
        %1969 = vmatpush1.bf16.msra.mxu0 %v1753
        %1970 = vmatprep.subr.bf16.mxu0 0
        %1971 = vmatpush1.bf16.msra.mxu0 %v1752
        %1972 = vmatprep.subr.bf16.mxu0 0
        %1973 = vmatpush2.bf16.msra.mxu0 0
        %1974 = vmatprep.subr.bf16.mxu0 0
        %1975 = vmatpush2.bf16.msra.mxu0 0
        %1976 = vmatprep.subr.bf16.mxu0 0
        %1977 = vmatpush2.bf16.msra.mxu0 0
        %1978 = vmatprep.subr.bf16.mxu0 0
        %1979 = vmatpush2.bf16.msra.mxu0 0
        %1980 = vmatprep.subr.bf16.mxu0 0
        %1981 = vmatpush2.bf16.msra.mxu0 0
        %1982 = vmatprep.subr.bf16.mxu0 0
        %1983 = vmatpush2.bf16.msra.mxu0 0
        %1984 = vmatprep.subr.bf16.mxu0 0
        %1985 = vmatpush2.bf16.msra.mxu0 0
        %1986 = vmatprep.subr.bf16.mxu0 0
        %1987 = vmatpush2.bf16.msra.mxu0 0
        %1988 = vmatprep.mubr.bf16.mxu0 0
        %1989 = vmatmul.mubr.bf16.gmra.mxu0 %v1765
        %v1990 = vpop.f32.mrf.mxu0
        %v1991 = vadd.f32 %v1761, %v1990
        %v1992 = vpop.f32.mrf.mxu0
        %v1993 = vpop.f32.mrf.mxu0
        %v1994 = vadd.f32 %v1761, %v1993
        %v1995 = vpop.f32.mrf.mxu0
        %1996 = vmatprep.mubr.bf16.mxu0 0
        %1997 = vmatmul.mubr.bf16.gmra.mxu0 %v1768
        %v1998 = vpop.f32.mrf.mxu0
        %v1999 = vadd.f32 %v1761, %v1998
        %v2000 = vpop.f32.mrf.mxu0
        %v2001 = vpop.f32.mrf.mxu0
        %v2002 = vadd.f32 %v1761, %v2001
        %v2003 = vpop.f32.mrf.mxu0
        %2004 = vmatprep.mubr.bf16.mxu0 0
        %2005 = vmatmul.mubr.bf16.gmra.mxu0 %v1771
        %v2006 = vpop.f32.mrf.mxu0
        %v2007 = vadd.f32 %v1761, %v2006
        %v2008 = vpop.f32.mrf.mxu0
        %v2009 = vpop.f32.mrf.mxu0
        %v2010 = vadd.f32 %v1761, %v2009
        %v2011 = vpop.f32.mrf.mxu0
        %2012 = vmatprep.mubr.bf16.mxu0 0
        %2013 = vmatmul.mubr.bf16.gmra.mxu0 %v1774
        %v2014 = vpop.f32.mrf.mxu0
        %v2015 = vadd.f32 %v1761, %v2014
        %v2016 = vpop.f32.mrf.mxu0
        %v2017 = vpop.f32.mrf.mxu0
        %v2018 = vadd.f32 %v1761, %v2017
        %v2019 = vpop.f32.mrf.mxu0
        %2020 = vmatprep.mubr.bf16.mxu0 0
        %2021 = vmatmul.mubr.bf16.gmra.mxu0 %v1777
        %v2022 = vpop.f32.mrf.mxu0
        %v2023 = vadd.f32 %v1761, %v2022
        %v2024 = vpop.f32.mrf.mxu0
        %v2025 = vpop.f32.mrf.mxu0
        %v2026 = vadd.f32 %v1761, %v2025
        %v2027 = vpop.f32.mrf.mxu0
        %2028 = vmatprep.mubr.bf16.mxu0 0
        %2029 = vmatmul.mubr.bf16.gmra.mxu0 %v1780
        %v2030 = vpop.f32.mrf.mxu0
        %v2031 = vadd.f32 %v1761, %v2030
        %v2032 = vpop.f32.mrf.mxu0
        %v2033 = vpop.f32.mrf.mxu0
        %v2034 = vadd.f32 %v1761, %v2033
        %v2035 = vpop.f32.mrf.mxu0
        %2036 = vmatprep.mubr.bf16.mxu0 0
        %2037 = vmatmul.mubr.bf16.gmra.mxu0 %v1783
        %v2038 = vpop.f32.mrf.mxu0
        %v2039 = vadd.f32 %v1761, %v2038
        %v2040 = vpop.f32.mrf.mxu0
        %v2041 = vpop.f32.mrf.mxu0
        %v2042 = vadd.f32 %v1761, %v2041
        %v2043 = vpop.f32.mrf.mxu0
        %2044 = vmatprep.mubr.bf16.mxu0 0
        %2045 = vmatmul.mubr.bf16.gmra.mxu0 %v1786
        %v2046 = vpop.f32.mrf.mxu0
        %v2047 = vadd.f32 %v1761, %v2046
        %v2048 = vpop.f32.mrf.mxu0
        %v2049 = vpop.f32.mrf.mxu0
        %v2050 = vadd.f32 %v1761, %v2049
        %v2051 = vpop.f32.mrf.mxu0
        %2052 = vmatprep.mubr.bf16.mxu0 0
        %2053 = vmatmul.mubr.bf16.gmra.mxu0 %v1789
        %v2054 = vpop.f32.mrf.mxu0
        %v2055 = vadd.f32 %v1761, %v2054
        %v2056 = vpop.f32.mrf.mxu0
        %v2057 = vpop.f32.mrf.mxu0
        %v2058 = vadd.f32 %v1761, %v2057
        %v2059 = vpop.f32.mrf.mxu0
        %2060 = vmatprep.mubr.bf16.mxu0 0
        %2061 = vmatmul.mubr.bf16.gmra.mxu0 %v1792
        %v2062 = vpop.f32.mrf.mxu0
        %v2063 = vadd.f32 %v1761, %v2062
        %v2064 = vpop.f32.mrf.mxu0
        %v2065 = vpop.f32.mrf.mxu0
        %v2066 = vadd.f32 %v1761, %v2065
        %v2067 = vpop.f32.mrf.mxu0
        %2068 = vmatprep.mubr.bf16.mxu0 0
        %2069 = vmatmul.mubr.bf16.gmra.mxu0 %v1795
        %v2070 = vpop.f32.mrf.mxu0
        %v2071 = vadd.f32 %v1761, %v2070
        %v2072 = vpop.f32.mrf.mxu0
        %v2073 = vpop.f32.mrf.mxu0
        %v2074 = vadd.f32 %v1761, %v2073
        %v2075 = vpop.f32.mrf.mxu0
        %2076 = vmatprep.mubr.bf16.mxu0 0
        %2077 = vmatmul.mubr.bf16.gmra.mxu0 %v1798
        %v2078 = vpop.f32.mrf.mxu0
        %v2079 = vadd.f32 %v1761, %v2078
        %v2080 = vpop.f32.mrf.mxu0
        %v2081 = vpop.f32.mrf.mxu0
        %v2082 = vadd.f32 %v1761, %v2081
        %v2083 = vpop.f32.mrf.mxu0
        %2084 = vmatprep.mubr.bf16.mxu0 0
        %2085 = vmatmul.mubr.bf16.gmra.mxu0 %v1801
        %v2086 = vpop.f32.mrf.mxu0
        %v2087 = vadd.f32 %v1761, %v2086
        %v2088 = vpop.f32.mrf.mxu0
        %v2089 = vpop.f32.mrf.mxu0
        %v2090 = vadd.f32 %v1761, %v2089
        %v2091 = vpop.f32.mrf.mxu0
        %2092 = vmatprep.mubr.bf16.mxu0 0
        %2093 = vmatmul.mubr.bf16.gmra.mxu0 %v1804
        %v2094 = vpop.f32.mrf.mxu0
        %v2095 = vadd.f32 %v1761, %v2094
        %v2096 = vpop.f32.mrf.mxu0
        %v2097 = vpop.f32.mrf.mxu0
        %v2098 = vadd.f32 %v1761, %v2097
        %v2099 = vpop.f32.mrf.mxu0
        %2100 = vmatprep.mubr.bf16.mxu0 0
        %2101 = vmatmul.mubr.bf16.gmra.mxu0 %v1807
        %v2102 = vpop.f32.mrf.mxu0
        %v2103 = vadd.f32 %v1761, %v2102
        %v2104 = vpop.f32.mrf.mxu0
        %v2105 = vpop.f32.mrf.mxu0
        %v2106 = vadd.f32 %v1761, %v2105
        %v2107 = vpop.f32.mrf.mxu0
        %2108 = vmatprep.mubr.bf16.mxu0 0
        %2109 = vmatmul.mubr.bf16.gmra.mxu0 %v1810
        %v2110 = vpop.f32.mrf.mxu0
        %v2111 = vadd.f32 %v1761, %v2110
        %v2112 = vpop.f32.mrf.mxu0
        %v2113 = vpop.f32.mrf.mxu0
        %v2114 = vadd.f32 %v1761, %v2113
        %v2115 = vpop.f32.mrf.mxu0
        %2116 = vmatprep.mubr.bf16.mxu0 0
        %2117 = vmatmul.mubr.bf16.gmra.mxu0 %v1813
        %v2118 = vpop.f32.mrf.mxu0
        %v2119 = vadd.f32 %v1761, %v2118
        %v2120 = vpop.f32.mrf.mxu0
        %v2121 = vpop.f32.mrf.mxu0
        %v2122 = vadd.f32 %v1761, %v2121
        %v2123 = vpop.f32.mrf.mxu0
        %2124 = vmatprep.mubr.bf16.mxu0 0
        %2125 = vmatmul.mubr.bf16.gmra.mxu0 %v1816
        %v2126 = vpop.f32.mrf.mxu0
        %v2127 = vadd.f32 %v1761, %v2126
        %v2128 = vpop.f32.mrf.mxu0
        %v2129 = vpop.f32.mrf.mxu0
        %v2130 = vadd.f32 %v1761, %v2129
        %v2131 = vpop.f32.mrf.mxu0
        %2132 = vmatprep.mubr.bf16.mxu0 0
        %2133 = vmatmul.mubr.bf16.gmra.mxu0 %v1819
        %v2134 = vpop.f32.mrf.mxu0
        %v2135 = vadd.f32 %v1761, %v2134
        %v2136 = vpop.f32.mrf.mxu0
        %v2137 = vpop.f32.mrf.mxu0
        %v2138 = vadd.f32 %v1761, %v2137
        %v2139 = vpop.f32.mrf.mxu0
        %2140 = vmatprep.mubr.bf16.mxu0 0
        %2141 = vmatmul.mubr.bf16.gmra.mxu0 %v1822
        %v2142 = vpop.f32.mrf.mxu0
        %v2143 = vadd.f32 %v1761, %v2142
        %v2144 = vpop.f32.mrf.mxu0
        %v2145 = vpop.f32.mrf.mxu0
        %v2146 = vadd.f32 %v1761, %v2145
        %v2147 = vpop.f32.mrf.mxu0
        %2148 = vmatprep.mubr.bf16.mxu0 0
        %2149 = vmatmul.mubr.bf16.gmra.mxu0 %v1825
        %v2150 = vpop.f32.mrf.mxu0
        %v2151 = vadd.f32 %v1761, %v2150
        %v2152 = vpop.f32.mrf.mxu0
        %v2153 = vpop.f32.mrf.mxu0
        %v2154 = vadd.f32 %v1761, %v2153
        %v2155 = vpop.f32.mrf.mxu0
        %2156 = vmatprep.mubr.bf16.mxu0 0
        %2157 = vmatmul.mubr.bf16.gmra.mxu0 %v1828
        %v2158 = vpop.f32.mrf.mxu0
        %v2159 = vadd.f32 %v1761, %v2158
        %v2160 = vpop.f32.mrf.mxu0
        %v2161 = vpop.f32.mrf.mxu0
        %v2162 = vadd.f32 %v1761, %v2161
        %v2163 = vpop.f32.mrf.mxu0
        %2164 = vmatprep.mubr.bf16.mxu0 0
        %2165 = vmatmul.mubr.bf16.gmra.mxu0 %v1831
        %v2166 = vpop.f32.mrf.mxu0
        %v2167 = vadd.f32 %v1761, %v2166
        %v2168 = vpop.f32.mrf.mxu0
        %v2169 = vpop.f32.mrf.mxu0
        %v2170 = vadd.f32 %v1761, %v2169
        %v2171 = vpop.f32.mrf.mxu0
        %2172 = vmatprep.mubr.bf16.mxu0 0
        %2173 = vmatmul.mubr.bf16.gmra.mxu0 %v1834
        %v2174 = vpop.f32.mrf.mxu0
        %v2175 = vadd.f32 %v1761, %v2174
        %v2176 = vpop.f32.mrf.mxu0
        %v2177 = vpop.f32.mrf.mxu0
        %v2178 = vadd.f32 %v1761, %v2177
        %v2179 = vpop.f32.mrf.mxu0
        %2180 = vmatprep.mubr.bf16.mxu0 0
        %2181 = vmatmul.mubr.bf16.gmra.mxu0 %v1837
        %v2182 = vpop.f32.mrf.mxu0
        %v2183 = vadd.f32 %v1761, %v2182
        %v2184 = vpop.f32.mrf.mxu0
        %v2185 = vpop.f32.mrf.mxu0
        %v2186 = vadd.f32 %v1761, %v2185
        %v2187 = vpop.f32.mrf.mxu0
        %2188 = vmatprep.mubr.bf16.mxu0 0
        %2189 = vmatmul.mubr.bf16.gmra.mxu0 %v1840
        %v2190 = vpop.f32.mrf.mxu0
        %v2191 = vadd.f32 %v1761, %v2190
        %v2192 = vpop.f32.mrf.mxu0
        %v2193 = vpop.f32.mrf.mxu0
        %v2194 = vadd.f32 %v1761, %v2193
        %v2195 = vpop.f32.mrf.mxu0
        %2196 = vmatprep.mubr.bf16.mxu0 0
        %2197 = vmatmul.mubr.bf16.gmra.mxu0 %v1843
        %v2198 = vpop.f32.mrf.mxu0
        %v2199 = vadd.f32 %v1761, %v2198
        %v2200 = vpop.f32.mrf.mxu0
        %v2201 = vpop.f32.mrf.mxu0
        %v2202 = vadd.f32 %v1761, %v2201
        %v2203 = vpop.f32.mrf.mxu0
        %2204 = vmatprep.mubr.bf16.mxu0 0
        %2205 = vmatmul.mubr.bf16.gmra.mxu0 %v1846
        %v2206 = vpop.f32.mrf.mxu0
        %v2207 = vadd.f32 %v1761, %v2206
        %v2208 = vpop.f32.mrf.mxu0
        %v2209 = vpop.f32.mrf.mxu0
        %v2210 = vadd.f32 %v1761, %v2209
        %v2211 = vpop.f32.mrf.mxu0
        %2212 = vmatprep.mubr.bf16.mxu0 0
        %2213 = vmatmul.mubr.bf16.gmra.mxu0 %v1849
        %v2214 = vpop.f32.mrf.mxu0
        %v2215 = vadd.f32 %v1761, %v2214
        %v2216 = vpop.f32.mrf.mxu0
        %v2217 = vpop.f32.mrf.mxu0
        %v2218 = vadd.f32 %v1761, %v2217
        %v2219 = vpop.f32.mrf.mxu0
        %2220 = vmatprep.mubr.bf16.mxu0 0
        %2221 = vmatmul.mubr.bf16.gmra.mxu0 %v1852
        %v2222 = vpop.f32.mrf.mxu0
        %v2223 = vadd.f32 %v1761, %v2222
        %v2224 = vpop.f32.mrf.mxu0
        %v2225 = vpop.f32.mrf.mxu0
        %v2226 = vadd.f32 %v1761, %v2225
        %v2227 = vpop.f32.mrf.mxu0
        %2228 = vmatprep.mubr.bf16.mxu0 0
        %2229 = vmatmul.mubr.bf16.gmra.mxu0 %v1855
        %v2230 = vpop.f32.mrf.mxu0
        %v2231 = vadd.f32 %v1761, %v2230
        %v2232 = vpop.f32.mrf.mxu0
        %v2233 = vpop.f32.mrf.mxu0
        %v2234 = vadd.f32 %v1761, %v2233
        %v2235 = vpop.f32.mrf.mxu0
        %2236 = vmatprep.mubr.bf16.mxu0 0
        %2237 = vmatmul.mubr.bf16.gmra.mxu0 %v1858
        %v2238 = vpop.f32.mrf.mxu0
        %v2239 = vadd.f32 %v1761, %v2238
        %v2240 = vpop.f32.mrf.mxu0
        %v2241 = vpop.f32.mrf.mxu0
        %v2242 = vadd.f32 %v1761, %v2241
        %v2243 = vpop.f32.mrf.mxu0
        %2244 = vmatprep.mubr.bf16.mxu0 0
        %2245 = vmatmul.mubr.bf16.gmra.mxu0 %v1861
        %v2246 = vpop.f32.mrf.mxu0
        %v2247 = vadd.f32 %v1761, %v2246
        %v2248 = vpop.f32.mrf.mxu0
        %v2249 = vpop.f32.mrf.mxu0
        %v2250 = vadd.f32 %v1761, %v2249
        %v2251 = vpop.f32.mrf.mxu0
        %2252 = vmatprep.mubr.bf16.mxu0 0
        %2253 = vmatmul.mubr.bf16.gmra.mxu0 %v1864
        %v2254 = vpop.f32.mrf.mxu0
        %v2255 = vadd.f32 %v1761, %v2254
        %v2256 = vpop.f32.mrf.mxu0
        %v2257 = vpop.f32.mrf.mxu0
        %v2258 = vadd.f32 %v1761, %v2257
        %v2259 = vpop.f32.mrf.mxu0
        %2260 = vmatprep.mubr.bf16.mxu0 0
        %2261 = vmatmul.mubr.bf16.gmra.mxu0 %v1867
        %v2262 = vpop.f32.mrf.mxu0
        %v2263 = vadd.f32 %v1761, %v2262
        %v2264 = vpop.f32.mrf.mxu0
        %v2265 = vpop.f32.mrf.mxu0
        %v2266 = vadd.f32 %v1761, %v2265
        %v2267 = vpop.f32.mrf.mxu0
        %2268 = vmatprep.mubr.bf16.mxu0 0
        %2269 = vmatmul.mubr.bf16.gmra.mxu0 %v1870
        %v2270 = vpop.f32.mrf.mxu0
        %v2271 = vadd.f32 %v1761, %v2270
        %v2272 = vpop.f32.mrf.mxu0
        %v2273 = vpop.f32.mrf.mxu0
        %v2274 = vadd.f32 %v1761, %v2273
        %v2275 = vpop.f32.mrf.mxu0
        %2276 = vmatprep.mubr.bf16.mxu0 0
        %2277 = vmatmul.mubr.bf16.gmra.mxu0 %v1873
        %v2278 = vpop.f32.mrf.mxu0
        %v2279 = vadd.f32 %v1761, %v2278
        %v2280 = vpop.f32.mrf.mxu0
        %v2281 = vpop.f32.mrf.mxu0
        %v2282 = vadd.f32 %v1761, %v2281
        %v2283 = vpop.f32.mrf.mxu0
        %2284 = vmatprep.mubr.bf16.mxu0 0
        %2285 = vmatmul.mubr.bf16.gmra.mxu0 %v1876
        %v2286 = vpop.f32.mrf.mxu0
        %v2287 = vadd.f32 %v1761, %v2286
        %v2288 = vpop.f32.mrf.mxu0
        %v2289 = vpop.f32.mrf.mxu0
        %v2290 = vadd.f32 %v1761, %v2289
        %v2291 = vpop.f32.mrf.mxu0
        %2292 = vmatprep.mubr.bf16.mxu0 0
        %2293 = vmatmul.mubr.bf16.gmra.mxu0 %v1879
        %v2294 = vpop.f32.mrf.mxu0
        %v2295 = vadd.f32 %v1761, %v2294
        %v2296 = vpop.f32.mrf.mxu0
        %v2297 = vpop.f32.mrf.mxu0
        %v2298 = vadd.f32 %v1761, %v2297
        %v2299 = vpop.f32.mrf.mxu0
        %2300 = vmatprep.mubr.bf16.mxu0 0
        %2301 = vmatmul.mubr.bf16.gmra.mxu0 %v1882
        %v2302 = vpop.f32.mrf.mxu0
        %v2303 = vadd.f32 %v1761, %v2302
        %v2304 = vpop.f32.mrf.mxu0
        %v2305 = vpop.f32.mrf.mxu0
        %v2306 = vadd.f32 %v1761, %v2305
        %v2307 = vpop.f32.mrf.mxu0
        %2308 = vmatprep.mubr.bf16.mxu0 0
        %2309 = vmatmul.mubr.bf16.gmra.mxu0 %v1885
        %v2310 = vpop.f32.mrf.mxu0
        %v2311 = vadd.f32 %v1761, %v2310
        %v2312 = vpop.f32.mrf.mxu0
        %v2313 = vpop.f32.mrf.mxu0
        %v2314 = vadd.f32 %v1761, %v2313
        %v2315 = vpop.f32.mrf.mxu0
        %2316 = vmatprep.mubr.bf16.mxu0 0
        %2317 = vmatmul.mubr.bf16.gmra.mxu0 %v1888
        %v2318 = vpop.f32.mrf.mxu0
        %v2319 = vadd.f32 %v1761, %v2318
        %v2320 = vpop.f32.mrf.mxu0
        %v2321 = vpop.f32.mrf.mxu0
        %v2322 = vadd.f32 %v1761, %v2321
        %v2323 = vpop.f32.mrf.mxu0
        %2324 = vmatprep.mubr.bf16.mxu0 0
        %2325 = vmatmul.mubr.bf16.gmra.mxu0 %v1891
        %v2326 = vpop.f32.mrf.mxu0
        %v2327 = vadd.f32 %v1761, %v2326
        %v2328 = vpop.f32.mrf.mxu0
        %v2329 = vpop.f32.mrf.mxu0
        %v2330 = vadd.f32 %v1761, %v2329
        %v2331 = vpop.f32.mrf.mxu0
        %2332 = vmatprep.mubr.bf16.mxu0 0
        %2333 = vmatmul.mubr.bf16.gmra.mxu0 %v1894
        %v2334 = vpop.f32.mrf.mxu0
        %v2335 = vadd.f32 %v1761, %v2334
        %v2336 = vpop.f32.mrf.mxu0
        %v2337 = vpop.f32.mrf.mxu0
        %v2338 = vadd.f32 %v1761, %v2337
        %v2339 = vpop.f32.mrf.mxu0
        %2340 = vmatprep.mubr.bf16.mxu0 0
        %2341 = vmatmul.mubr.bf16.gmra.mxu0 %v1897
        %v2342 = vpop.f32.mrf.mxu0
        %v2343 = vadd.f32 %v1761, %v2342
        %v2344 = vpop.f32.mrf.mxu0
        %v2345 = vpop.f32.mrf.mxu0
        %v2346 = vadd.f32 %v1761, %v2345
        %v2347 = vpop.f32.mrf.mxu0
        %2348 = vmatprep.mubr.bf16.mxu0 0
        %2349 = vmatmul.mubr.bf16.gmra.mxu0 %v1900
        %v2350 = vpop.f32.mrf.mxu0
        %v2351 = vadd.f32 %v1761, %v2350
        %v2352 = vpop.f32.mrf.mxu0
        %v2353 = vpop.f32.mrf.mxu0
        %v2354 = vadd.f32 %v1761, %v2353
        %v2355 = vpop.f32.mrf.mxu0
        %2356 = vmatprep.mubr.bf16.mxu0 0
        %2357 = vmatmul.mubr.bf16.gmra.mxu0 %v1903
        %v2358 = vpop.f32.mrf.mxu0
        %v2359 = vadd.f32 %v1761, %v2358
        %v2360 = vpop.f32.mrf.mxu0
        %v2361 = vpop.f32.mrf.mxu0
        %v2362 = vadd.f32 %v1761, %v2361
        %v2363 = vpop.f32.mrf.mxu0
        %2364 = vmatprep.mubr.bf16.mxu0 0
        %2365 = vmatmul.mubr.bf16.gmra.mxu0 %v1906
        %v2366 = vpop.f32.mrf.mxu0
        %v2367 = vadd.f32 %v1761, %v2366
        %v2368 = vpop.f32.mrf.mxu0
        %v2369 = vpop.f32.mrf.mxu0
        %v2370 = vadd.f32 %v1761, %v2369
        %v2371 = vpop.f32.mrf.mxu0
        %2372 = vmatprep.mubr.bf16.mxu0 0
        %2373 = vmatmul.mubr.bf16.gmra.mxu0 %v1909
        %v2374 = vpop.f32.mrf.mxu0
        %v2375 = vadd.f32 %v1761, %v2374
        %v2376 = vpop.f32.mrf.mxu0
        %v2377 = vpop.f32.mrf.mxu0
        %v2378 = vadd.f32 %v1761, %v2377
        %v2379 = vpop.f32.mrf.mxu0
        %2380 = vmatprep.mubr.bf16.mxu0 0
        %2381 = vmatmul.mubr.bf16.gmra.mxu0 %v1912
        %v2382 = vpop.f32.mrf.mxu0
        %v2383 = vadd.f32 %v1761, %v2382
        %v2384 = vpop.f32.mrf.mxu0
        %v2385 = vpop.f32.mrf.mxu0
        %v2386 = vadd.f32 %v1761, %v2385
        %v2387 = vpop.f32.mrf.mxu0
        %2388 = vmatprep.mubr.bf16.mxu0 0
        %2389 = vmatmul.mubr.bf16.gmra.mxu0 %v1915
        %v2390 = vpop.f32.mrf.mxu0
        %v2391 = vadd.f32 %v1761, %v2390
        %v2392 = vpop.f32.mrf.mxu0
        %v2393 = vpop.f32.mrf.mxu0
        %v2394 = vadd.f32 %v1761, %v2393
        %v2395 = vpop.f32.mrf.mxu0
        %2396 = vmatprep.mubr.bf16.mxu0 0
        %2397 = vmatmul.mubr.bf16.gmra.mxu0 %v1918
        %v2398 = vpop.f32.mrf.mxu0
        %v2399 = vadd.f32 %v1761, %v2398
        %v2400 = vpop.f32.mrf.mxu0
        %v2401 = vpop.f32.mrf.mxu0
        %v2402 = vadd.f32 %v1761, %v2401
        %v2403 = vpop.f32.mrf.mxu0
        %2404 = vmatprep.mubr.bf16.mxu0 0
        %2405 = vmatmul.mubr.bf16.gmra.mxu0 %v1921
        %v2406 = vpop.f32.mrf.mxu0
        %v2407 = vadd.f32 %v1761, %v2406
        %v2408 = vpop.f32.mrf.mxu0
        %v2409 = vpop.f32.mrf.mxu0
        %v2410 = vadd.f32 %v1761, %v2409
        %v2411 = vpop.f32.mrf.mxu0
        %2412 = vmatprep.mubr.bf16.mxu0 0
        %2413 = vmatmul.mubr.bf16.gmra.mxu0 %v1924
        %v2414 = vpop.f32.mrf.mxu0
        %v2415 = vadd.f32 %v1761, %v2414
        %v2416 = vpop.f32.mrf.mxu0
        %v2417 = vpop.f32.mrf.mxu0
        %v2418 = vadd.f32 %v1761, %v2417
        %v2419 = vpop.f32.mrf.mxu0
        %2420 = vmatprep.mubr.bf16.mxu0 0
        %2421 = vmatmul.mubr.bf16.gmra.mxu0 %v1927
        %v2422 = vpop.f32.mrf.mxu0
        %v2423 = vadd.f32 %v1761, %v2422
        %v2424 = vpop.f32.mrf.mxu0
        %v2425 = vpop.f32.mrf.mxu0
        %v2426 = vadd.f32 %v1761, %v2425
        %v2427 = vpop.f32.mrf.mxu0
        %2428 = vmatprep.mubr.bf16.mxu0 0
        %2429 = vmatmul.mubr.bf16.gmra.mxu0 %v1930
        %v2430 = vpop.f32.mrf.mxu0
        %v2431 = vadd.f32 %v1761, %v2430
        %v2432 = vpop.f32.mrf.mxu0
        %v2433 = vpop.f32.mrf.mxu0
        %v2434 = vadd.f32 %v1761, %v2433
        %v2435 = vpop.f32.mrf.mxu0
        %2436 = vmatprep.mubr.bf16.mxu0 0
        %2437 = vmatmul.mubr.bf16.gmra.mxu0 %v1933
        %v2438 = vpop.f32.mrf.mxu0
        %v2439 = vadd.f32 %v1761, %v2438
        %v2440 = vpop.f32.mrf.mxu0
        %v2441 = vpop.f32.mrf.mxu0
        %v2442 = vadd.f32 %v1761, %v2441
        %v2443 = vpop.f32.mrf.mxu0
        %2444 = vmatprep.mubr.bf16.mxu0 0
        %2445 = vmatmul.mubr.bf16.gmra.mxu0 %v1936
        %v2446 = vpop.f32.mrf.mxu0
        %v2447 = vadd.f32 %v1761, %v2446
        %v2448 = vpop.f32.mrf.mxu0
        %v2449 = vpop.f32.mrf.mxu0
        %v2450 = vadd.f32 %v1761, %v2449
        %v2451 = vpop.f32.mrf.mxu0
        %2452 = vmatprep.mubr.bf16.mxu0 0
        %2453 = vmatmul.mubr.bf16.gmra.mxu0 %v1939
        %v2454 = vpop.f32.mrf.mxu0
        %v2455 = vadd.f32 %v1761, %v2454
        %v2456 = vpop.f32.mrf.mxu0
        %v2457 = vpop.f32.mrf.mxu0
        %v2458 = vadd.f32 %v1761, %v2457
        %v2459 = vpop.f32.mrf.mxu0
        %2460 = vmatprep.mubr.bf16.mxu0 0
        %2461 = vmatmul.mubr.bf16.gmra.mxu0 %v1942
        %v2462 = vpop.f32.mrf.mxu0
        %v2463 = vadd.f32 %v1761, %v2462
        %v2464 = vpop.f32.mrf.mxu0
        %v2465 = vpop.f32.mrf.mxu0
        %v2466 = vadd.f32 %v1761, %v2465
        %v2467 = vpop.f32.mrf.mxu0
        %2468 = vmatprep.mubr.bf16.mxu0 0
        %2469 = vmatmul.mubr.bf16.gmra.mxu0 %v1945
        %v2470 = vpop.f32.mrf.mxu0
        %v2471 = vadd.f32 %v1761, %v2470
        %v2472 = vpop.f32.mrf.mxu0
        %v2473 = vpop.f32.mrf.mxu0
        %v2474 = vadd.f32 %v1761, %v2473
        %v2475 = vpop.f32.mrf.mxu0
        %2476 = vmatprep.mubr.bf16.mxu0 0
        %2477 = vmatmul.mubr.bf16.gmra.mxu0 %v1948
        %v2478 = vpop.f32.mrf.mxu0
        %v2479 = vadd.f32 %v1761, %v2478
        %v2480 = vpop.f32.mrf.mxu0
        %v2481 = vpop.f32.mrf.mxu0
        %v2482 = vadd.f32 %v1761, %v2481
        %v2483 = vpop.f32.mrf.mxu0
        %2484 = vmatprep.mubr.bf16.mxu0 0
        %2485 = vmatmul.mubr.bf16.gmra.mxu0 %v1951
        %v2486 = vpop.f32.mrf.mxu0
        %v2487 = vadd.f32 %v1761, %v2486
        %v2488 = vpop.f32.mrf.mxu0
        %v2489 = vpop.f32.mrf.mxu0
        %v2490 = vadd.f32 %v1761, %v2489
        %v2491 = vpop.f32.mrf.mxu0
        %2492 = vmatprep.mubr.bf16.mxu0 0
        %2493 = vmatmul.mubr.bf16.gmra.mxu0 %v1954
        %v2494 = vpop.f32.mrf.mxu0
        %v2495 = vadd.f32 %v1761, %v2494
        %v2496 = vpop.f32.mrf.mxu0
        %v2497 = vpop.f32.mrf.mxu0
        %v2498 = vadd.f32 %v1761, %v2497
        %v2499 = vpop.f32.mrf.mxu0
        %2500 = vdwg.mxu0
        %v2501 = vmax.f32 %v1991, 0.0
        %v2502 = vmax.f32 %v1994, 0.0
        %v2503 = vmax.f32 %v1999, 0.0
        %v2504 = vmax.f32 %v2002, 0.0
        %v2505 = vmax.f32 %v2007, 0.0
        %v2506 = vmax.f32 %v2010, 0.0
        %v2507 = vmax.f32 %v2015, 0.0
        %v2508 = vmax.f32 %v2018, 0.0
        %v2509 = vmax.f32 %v2023, 0.0
        %v2510 = vmax.f32 %v2026, 0.0
        %v2511 = vmax.f32 %v2031, 0.0
        %v2512 = vmax.f32 %v2034, 0.0
        %v2513 = vmax.f32 %v2039, 0.0
        %v2514 = vmax.f32 %v2042, 0.0
        %v2515 = vmax.f32 %v2047, 0.0
        %v2516 = vmax.f32 %v2050, 0.0
        %v2517 = vmax.f32 %v2055, 0.0
        %v2518 = vmax.f32 %v2058, 0.0
        %v2519 = vmax.f32 %v2063, 0.0
        %v2520 = vmax.f32 %v2066, 0.0
        %v2521 = vmax.f32 %v2071, 0.0
        %v2522 = vmax.f32 %v2074, 0.0
        %v2523 = vmax.f32 %v2079, 0.0
        %v2524 = vmax.f32 %v2082, 0.0
        %v2525 = vmax.f32 %v2087, 0.0
        %v2526 = vmax.f32 %v2090, 0.0
        %v2527 = vmax.f32 %v2095, 0.0
        %v2528 = vmax.f32 %v2098, 0.0
        %v2529 = vmax.f32 %v2103, 0.0
        %v2530 = vmax.f32 %v2106, 0.0
        %v2531 = vmax.f32 %v2111, 0.0
        %v2532 = vmax.f32 %v2114, 0.0
        %v2533 = vmax.f32 %v2119, 0.0
        %v2534 = vmax.f32 %v2122, 0.0
        %v2535 = vmax.f32 %v2127, 0.0
        %v2536 = vmax.f32 %v2130, 0.0
        %v2537 = vmax.f32 %v2135, 0.0
        %v2538 = vmax.f32 %v2138, 0.0
        %v2539 = vmax.f32 %v2143, 0.0
        %v2540 = vmax.f32 %v2146, 0.0
        %v2541 = vmax.f32 %v2151, 0.0
        %v2542 = vmax.f32 %v2154, 0.0
        %v2543 = vmax.f32 %v2159, 0.0
        %v2544 = vmax.f32 %v2162, 0.0
        %v2545 = vmax.f32 %v2167, 0.0
        %v2546 = vmax.f32 %v2170, 0.0
        %v2547 = vmax.f32 %v2175, 0.0
        %v2548 = vmax.f32 %v2178, 0.0
        %v2549 = vmax.f32 %v2183, 0.0
        %v2550 = vmax.f32 %v2186, 0.0
        %v2551 = vmax.f32 %v2191, 0.0
        %v2552 = vmax.f32 %v2194, 0.0
        %v2553 = vmax.f32 %v2199, 0.0
        %v2554 = vmax.f32 %v2202, 0.0
        %v2555 = vmax.f32 %v2207, 0.0
        %v2556 = vmax.f32 %v2210, 0.0
        %v2557 = vmax.f32 %v2215, 0.0
        %v2558 = vmax.f32 %v2218, 0.0
        %v2559 = vmax.f32 %v2223, 0.0
        %v2560 = vmax.f32 %v2226, 0.0
        %v2561 = vmax.f32 %v2231, 0.0
        %v2562 = vmax.f32 %v2234, 0.0
        %v2563 = vmax.f32 %v2239, 0.0
        %v2564 = vmax.f32 %v2242, 0.0
        %v2565 = vmax.f32 %v2247, 0.0
        %v2566 = vmax.f32 %v2250, 0.0
        %v2567 = vmax.f32 %v2255, 0.0
        %v2568 = vmax.f32 %v2258, 0.0
        %v2569 = vmax.f32 %v2263, 0.0
        %v2570 = vmax.f32 %v2266, 0.0
        %v2571 = vmax.f32 %v2271, 0.0
        %v2572 = vmax.f32 %v2274, 0.0
        %v2573 = vmax.f32 %v2279, 0.0
        %v2574 = vmax.f32 %v2282, 0.0
        %v2575 = vmax.f32 %v2287, 0.0
        %v2576 = vmax.f32 %v2290, 0.0
        %v2577 = vmax.f32 %v2295, 0.0
        %v2578 = vmax.f32 %v2298, 0.0
        %v2579 = vmax.f32 %v2303, 0.0
        %v2580 = vmax.f32 %v2306, 0.0
        %v2581 = vmax.f32 %v2311, 0.0
        %v2582 = vmax.f32 %v2314, 0.0
        %v2583 = vmax.f32 %v2319, 0.0
        %v2584 = vmax.f32 %v2322, 0.0
        %v2585 = vmax.f32 %v2327, 0.0
        %v2586 = vmax.f32 %v2330, 0.0
        %v2587 = vmax.f32 %v2335, 0.0
        %v2588 = vmax.f32 %v2338, 0.0
        %v2589 = vmax.f32 %v2343, 0.0
        %v2590 = vmax.f32 %v2346, 0.0
        %v2591 = vmax.f32 %v2351, 0.0
        %v2592 = vmax.f32 %v2354, 0.0
        %v2593 = vmax.f32 %v2359, 0.0
        %v2594 = vmax.f32 %v2362, 0.0
        %v2595 = vmax.f32 %v2367, 0.0
        %v2596 = vmax.f32 %v2370, 0.0
        %v2597 = vmax.f32 %v2375, 0.0
        %v2598 = vmax.f32 %v2378, 0.0
        %v2599 = vmax.f32 %v2383, 0.0
        %v2600 = vmax.f32 %v2386, 0.0
        %v2601 = vmax.f32 %v2391, 0.0
        %v2602 = vmax.f32 %v2394, 0.0
        %v2603 = vmax.f32 %v2399, 0.0
        %v2604 = vmax.f32 %v2402, 0.0
        %v2605 = vmax.f32 %v2407, 0.0
        %v2606 = vmax.f32 %v2410, 0.0
        %v2607 = vmax.f32 %v2415, 0.0
        %v2608 = vmax.f32 %v2418, 0.0
        %v2609 = vmax.f32 %v2423, 0.0
        %v2610 = vmax.f32 %v2426, 0.0
        %v2611 = vmax.f32 %v2431, 0.0
        %v2612 = vmax.f32 %v2434, 0.0
        %v2613 = vmax.f32 %v2439, 0.0
        %v2614 = vmax.f32 %v2442, 0.0
        %v2615 = vmax.f32 %v2447, 0.0
        %v2616 = vmax.f32 %v2450, 0.0
        %v2617 = vmax.f32 %v2455, 0.0
        %v2618 = vmax.f32 %v2458, 0.0
        %v2619 = vmax.f32 %v2463, 0.0
        %v2620 = vmax.f32 %v2466, 0.0
        %v2621 = vmax.f32 %v2471, 0.0
        %v2622 = vmax.f32 %v2474, 0.0
        %v2623 = vmax.f32 %v2479, 0.0
        %v2624 = vmax.f32 %v2482, 0.0
        %v2625 = vmax.f32 %v2487, 0.0
        %v2626 = vmax.f32 %v2490, 0.0
        %v2627 = vmax.f32 %v2495, 0.0
        %v2628 = vmax.f32 %v2498, 0.0
        %v2633 = vcombine.high %v804, %v804
        %v2635 = vunpack.c.l.s4 1966171168
        %v2636 = vunpack.c.0.s8 %v2635
        %v2637 = vlaneseq
        %v2638 = vshrl.u32 %v2637, 7
        %v2639 = vsub.s32 %v2636, %v2638
        %v2640 = vrot.slane %v804, %v2639
        %v2642 = vunpack.c.l.s4 1966171168
        %v2643 = vunpack.c.0.s8 %v2642
        %v2644 = vlaneseq
        %v2645 = vshrl.u32 %v2644, 7
        %v2646 = vsub.s32 %v2643, %v2645
        %v2647 = vrot.slane %v2633, %v2646
        %v2648 = vcombine.high %v2640, %v2640
        %v2649 = vcombine.high %v2647, %v2647
        %v2651 = vunpack.c.l.s4 1966171168
        %v2652 = vunpack.c.0.s8 %v2651
        %v2653 = vlaneseq
        %v2654 = vshrl.u32 %v2653, 7
        %v2655 = vsub.s32 %v2652, %v2654
        %v2656 = vrot.slane %v2640, %v2655
        %v2658 = vunpack.c.l.s4 1966171168
        %v2659 = vunpack.c.0.s8 %v2658
        %v2660 = vlaneseq
        %v2661 = vshrl.u32 %v2660, 7
        %v2662 = vsub.s32 %v2659, %v2661
        %v2663 = vrot.slane %v2647, %v2662
        %v2665 = vunpack.c.l.s4 1966171168
        %v2666 = vunpack.c.0.s8 %v2665
        %v2667 = vlaneseq
        %v2668 = vshrl.u32 %v2667, 7
        %v2669 = vsub.s32 %v2666, %v2668
        %v2670 = vrot.slane %v2648, %v2669
        %v2672 = vunpack.c.l.s4 1966171168
        %v2673 = vunpack.c.0.s8 %v2672
        %v2674 = vlaneseq
        %v2675 = vshrl.u32 %v2674, 7
        %v2676 = vsub.s32 %v2673, %v2675
        %v2677 = vrot.slane %v2649, %v2676
        %v2678 = vcombine.high %v2656, %v2656
        %v2679 = vcombine.high %v2663, %v2663
        %v2680 = vcombine.high %v2670, %v2670
        %v2681 = vcombine.high %v2677, %v2677
        %v2682 = vcombine.high %v809, %v809
        %v2684 = vunpack.c.l.s4 1966171168
        %v2685 = vunpack.c.0.s8 %v2684
        %v2686 = vlaneseq
        %v2687 = vshrl.u32 %v2686, 7
        %v2688 = vsub.s32 %v2685, %v2687
        %v2689 = vrot.slane %v809, %v2688
        %v2691 = vunpack.c.l.s4 1966171168
        %v2692 = vunpack.c.0.s8 %v2691
        %v2693 = vlaneseq
        %v2694 = vshrl.u32 %v2693, 7
        %v2695 = vsub.s32 %v2692, %v2694
        %v2696 = vrot.slane %v2682, %v2695
        %v2697 = vcombine.high %v2689, %v2689
        %v2698 = vcombine.high %v2696, %v2696
        %v2700 = vunpack.c.l.s4 1966171168
        %v2701 = vunpack.c.0.s8 %v2700
        %v2702 = vlaneseq
        %v2703 = vshrl.u32 %v2702, 7
        %v2704 = vsub.s32 %v2701, %v2703
        %v2705 = vrot.slane %v2689, %v2704
        %v2707 = vunpack.c.l.s4 1966171168
        %v2708 = vunpack.c.0.s8 %v2707
        %v2709 = vlaneseq
        %v2710 = vshrl.u32 %v2709, 7
        %v2711 = vsub.s32 %v2708, %v2710
        %v2712 = vrot.slane %v2696, %v2711
        %v2714 = vunpack.c.l.s4 1966171168
        %v2715 = vunpack.c.0.s8 %v2714
        %v2716 = vlaneseq
        %v2717 = vshrl.u32 %v2716, 7
        %v2718 = vsub.s32 %v2715, %v2717
        %v2719 = vrot.slane %v2697, %v2718
        %v2721 = vunpack.c.l.s4 1966171168
        %v2722 = vunpack.c.0.s8 %v2721
        %v2723 = vlaneseq
        %v2724 = vshrl.u32 %v2723, 7
        %v2725 = vsub.s32 %v2722, %v2724
        %v2726 = vrot.slane %v2698, %v2725
        %v2727 = vcombine.high %v2705, %v2705
        %v2728 = vcombine.high %v2712, %v2712
        %v2729 = vcombine.high %v2719, %v2719
        %v2730 = vcombine.high %v2726, %v2726
        %v2731 = vcombine.high %v814, %v814
        %v2733 = vunpack.c.l.s4 1966171168
        %v2734 = vunpack.c.0.s8 %v2733
        %v2735 = vlaneseq
        %v2736 = vshrl.u32 %v2735, 7
        %v2737 = vsub.s32 %v2734, %v2736
        %v2738 = vrot.slane %v814, %v2737
        %v2740 = vunpack.c.l.s4 1966171168
        %v2741 = vunpack.c.0.s8 %v2740
        %v2742 = vlaneseq
        %v2743 = vshrl.u32 %v2742, 7
        %v2744 = vsub.s32 %v2741, %v2743
        %v2745 = vrot.slane %v2731, %v2744
        %v2746 = vcombine.high %v2738, %v2738
        %v2747 = vcombine.high %v2745, %v2745
        %v2749 = vunpack.c.l.s4 1966171168
        %v2750 = vunpack.c.0.s8 %v2749
        %v2751 = vlaneseq
        %v2752 = vshrl.u32 %v2751, 7
        %v2753 = vsub.s32 %v2750, %v2752
        %v2754 = vrot.slane %v2738, %v2753
        %v2756 = vunpack.c.l.s4 1966171168
        %v2757 = vunpack.c.0.s8 %v2756
        %v2758 = vlaneseq
        %v2759 = vshrl.u32 %v2758, 7
        %v2760 = vsub.s32 %v2757, %v2759
        %v2761 = vrot.slane %v2745, %v2760
        %v2763 = vunpack.c.l.s4 1966171168
        %v2764 = vunpack.c.0.s8 %v2763
        %v2765 = vlaneseq
        %v2766 = vshrl.u32 %v2765, 7
        %v2767 = vsub.s32 %v2764, %v2766
        %v2768 = vrot.slane %v2746, %v2767
        %v2770 = vunpack.c.l.s4 1966171168
        %v2771 = vunpack.c.0.s8 %v2770
        %v2772 = vlaneseq
        %v2773 = vshrl.u32 %v2772, 7
        %v2774 = vsub.s32 %v2771, %v2773
        %v2775 = vrot.slane %v2747, %v2774
        %v2776 = vcombine.high %v2754, %v2754
        %v2777 = vcombine.high %v2761, %v2761
        %v2778 = vcombine.high %v2768, %v2768
        %v2779 = vcombine.high %v2775, %v2775
        %v2780 = vcombine.high %v819, %v819
        %v2782 = vunpack.c.l.s4 1966171168
        %v2783 = vunpack.c.0.s8 %v2782
        %v2784 = vlaneseq
        %v2785 = vshrl.u32 %v2784, 7
        %v2786 = vsub.s32 %v2783, %v2785
        %v2787 = vrot.slane %v819, %v2786
        %v2789 = vunpack.c.l.s4 1966171168
        %v2790 = vunpack.c.0.s8 %v2789
        %v2791 = vlaneseq
        %v2792 = vshrl.u32 %v2791, 7
        %v2793 = vsub.s32 %v2790, %v2792
        %v2794 = vrot.slane %v2780, %v2793
        %v2795 = vcombine.high %v2787, %v2787
        %v2796 = vcombine.high %v2794, %v2794
        %v2798 = vunpack.c.l.s4 1966171168
        %v2799 = vunpack.c.0.s8 %v2798
        %v2800 = vlaneseq
        %v2801 = vshrl.u32 %v2800, 7
        %v2802 = vsub.s32 %v2799, %v2801
        %v2803 = vrot.slane %v2787, %v2802
        %v2805 = vunpack.c.l.s4 1966171168
        %v2806 = vunpack.c.0.s8 %v2805
        %v2807 = vlaneseq
        %v2808 = vshrl.u32 %v2807, 7
        %v2809 = vsub.s32 %v2806, %v2808
        %v2810 = vrot.slane %v2794, %v2809
        %v2812 = vunpack.c.l.s4 1966171168
        %v2813 = vunpack.c.0.s8 %v2812
        %v2814 = vlaneseq
        %v2815 = vshrl.u32 %v2814, 7
        %v2816 = vsub.s32 %v2813, %v2815
        %v2817 = vrot.slane %v2795, %v2816
        %v2819 = vunpack.c.l.s4 1966171168
        %v2820 = vunpack.c.0.s8 %v2819
        %v2821 = vlaneseq
        %v2822 = vshrl.u32 %v2821, 7
        %v2823 = vsub.s32 %v2820, %v2822
        %v2824 = vrot.slane %v2796, %v2823
        %v2825 = vcombine.high %v2803, %v2803
        %v2826 = vcombine.high %v2810, %v2810
        %v2827 = vcombine.high %v2817, %v2817
        %v2828 = vcombine.high %v2824, %v2824
        %v2829 = vlaneseq
        %v2830 = vshrl.u32 %v2829, 7
        %v2831 = vsub.s32 0, %v2830
        %v2832 = vrot.slane %v2656, %v2831
        %v2833 = vlaneseq
        %v2834 = vshrl.u32 %v2833, 7
        %v2835 = vsub.s32 0, %v2834
        %v2836 = vrot.slane %v2670, %v2835
        %v2837 = vlaneseq
        %v2838 = vshrl.u32 %v2837, 7
        %v2839 = vsub.s32 0, %v2838
        %v2840 = vrot.slane %v2678, %v2839
        %v2841 = vlaneseq
        %v2842 = vshrl.u32 %v2841, 7
        %v2843 = vsub.s32 0, %v2842
        %v2844 = vrot.slane %v2680, %v2843
        %v2845 = vlaneseq
        %v2846 = vshrl.u32 %v2845, 7
        %v2847 = vsub.s32 0, %v2846
        %v2848 = vrot.slane %v2663, %v2847
        %v2849 = vlaneseq
        %v2850 = vshrl.u32 %v2849, 7
        %v2851 = vsub.s32 0, %v2850
        %v2852 = vrot.slane %v2677, %v2851
        %v2853 = vlaneseq
        %v2854 = vshrl.u32 %v2853, 7
        %v2855 = vsub.s32 0, %v2854
        %v2856 = vrot.slane %v2679, %v2855
        %v2857 = vlaneseq
        %v2858 = vshrl.u32 %v2857, 7
        %v2859 = vsub.s32 0, %v2858
        %v2860 = vrot.slane %v2681, %v2859
        %v2861 = vlaneseq
        %v2862 = vshrl.u32 %v2861, 7
        %v2863 = vsub.s32 0, %v2862
        %v2864 = vrot.slane %v2705, %v2863
        %v2865 = vlaneseq
        %v2866 = vshrl.u32 %v2865, 7
        %v2867 = vsub.s32 0, %v2866
        %v2868 = vrot.slane %v2719, %v2867
        %v2869 = vlaneseq
        %v2870 = vshrl.u32 %v2869, 7
        %v2871 = vsub.s32 0, %v2870
        %v2872 = vrot.slane %v2727, %v2871
        %v2873 = vlaneseq
        %v2874 = vshrl.u32 %v2873, 7
        %v2875 = vsub.s32 0, %v2874
        %v2876 = vrot.slane %v2729, %v2875
        %v2877 = vlaneseq
        %v2878 = vshrl.u32 %v2877, 7
        %v2879 = vsub.s32 0, %v2878
        %v2880 = vrot.slane %v2712, %v2879
        %v2881 = vlaneseq
        %v2882 = vshrl.u32 %v2881, 7
        %v2883 = vsub.s32 0, %v2882
        %v2884 = vrot.slane %v2726, %v2883
        %v2885 = vlaneseq
        %v2886 = vshrl.u32 %v2885, 7
        %v2887 = vsub.s32 0, %v2886
        %v2888 = vrot.slane %v2728, %v2887
        %v2889 = vlaneseq
        %v2890 = vshrl.u32 %v2889, 7
        %v2891 = vsub.s32 0, %v2890
        %v2892 = vrot.slane %v2730, %v2891
        %v2893 = vlaneseq
        %v2894 = vshrl.u32 %v2893, 7
        %v2895 = vsub.s32 0, %v2894
        %v2896 = vrot.slane %v2754, %v2895
        %v2897 = vlaneseq
        %v2898 = vshrl.u32 %v2897, 7
        %v2899 = vsub.s32 0, %v2898
        %v2900 = vrot.slane %v2768, %v2899
        %v2901 = vlaneseq
        %v2902 = vshrl.u32 %v2901, 7
        %v2903 = vsub.s32 0, %v2902
        %v2904 = vrot.slane %v2776, %v2903
        %v2905 = vlaneseq
        %v2906 = vshrl.u32 %v2905, 7
        %v2907 = vsub.s32 0, %v2906
        %v2908 = vrot.slane %v2778, %v2907
        %v2909 = vlaneseq
        %v2910 = vshrl.u32 %v2909, 7
        %v2911 = vsub.s32 0, %v2910
        %v2912 = vrot.slane %v2761, %v2911
        %v2913 = vlaneseq
        %v2914 = vshrl.u32 %v2913, 7
        %v2915 = vsub.s32 0, %v2914
        %v2916 = vrot.slane %v2775, %v2915
        %v2917 = vlaneseq
        %v2918 = vshrl.u32 %v2917, 7
        %v2919 = vsub.s32 0, %v2918
        %v2920 = vrot.slane %v2777, %v2919
        %v2921 = vlaneseq
        %v2922 = vshrl.u32 %v2921, 7
        %v2923 = vsub.s32 0, %v2922
        %v2924 = vrot.slane %v2779, %v2923
        %v2925 = vlaneseq
        %v2926 = vshrl.u32 %v2925, 7
        %v2927 = vsub.s32 0, %v2926
        %v2928 = vrot.slane %v2803, %v2927
        %v2929 = vlaneseq
        %v2930 = vshrl.u32 %v2929, 7
        %v2931 = vsub.s32 0, %v2930
        %v2932 = vrot.slane %v2817, %v2931
        %v2933 = vlaneseq
        %v2934 = vshrl.u32 %v2933, 7
        %v2935 = vsub.s32 0, %v2934
        %v2936 = vrot.slane %v2825, %v2935
        %v2937 = vlaneseq
        %v2938 = vshrl.u32 %v2937, 7
        %v2939 = vsub.s32 0, %v2938
        %v2940 = vrot.slane %v2827, %v2939
        %v2941 = vlaneseq
        %v2942 = vshrl.u32 %v2941, 7
        %v2943 = vsub.s32 0, %v2942
        %v2944 = vrot.slane %v2810, %v2943
        %v2945 = vlaneseq
        %v2946 = vshrl.u32 %v2945, 7
        %v2947 = vsub.s32 0, %v2946
        %v2948 = vrot.slane %v2824, %v2947
        %v2949 = vlaneseq
        %v2950 = vshrl.u32 %v2949, 7
        %v2951 = vsub.s32 0, %v2950
        %v2952 = vrot.slane %v2826, %v2951
        %v2953 = vlaneseq
        %v2954 = vshrl.u32 %v2953, 7
        %v2955 = vsub.s32 0, %v2954
        %v2956 = vrot.slane %v2828, %v2955
        %2989 = vrot.lane.b32.xlu0 %v804, 32
        %v2990 = vpop.permute.xlu0 %2989
        %2991 = vrot.lane.b32.xlu0 %v809, 32
        %v2992 = vpop.permute.xlu0 %2991
        %2993 = vrot.lane.b32.xlu0 %v814, 32
        %v2994 = vpop.permute.xlu0 %2993
        %2995 = vrot.lane.b32.xlu0 %v819, 32
        %v2996 = vpop.permute.xlu0 %2995
        %v3001 = vsub.f32 %v2832, %v2990
        %v3002 = vsub.f32 %v2832, %v2992
        %v3003 = vsub.f32 %v2832, %v2994
        %v3004 = vsub.f32 %v2832, %v2996
        %v3005 = vsub.f32 %v2836, %v2990
        %v3006 = vsub.f32 %v2836, %v2992
        %v3007 = vsub.f32 %v2836, %v2994
        %v3008 = vsub.f32 %v2836, %v2996
        %v3009 = vsub.f32 %v2840, %v2990
        %v3010 = vsub.f32 %v2840, %v2992
        %v3011 = vsub.f32 %v2840, %v2994
        %v3012 = vsub.f32 %v2840, %v2996
        %v3013 = vsub.f32 %v2844, %v2990
        %v3014 = vsub.f32 %v2844, %v2992
        %v3015 = vsub.f32 %v2844, %v2994
        %v3016 = vsub.f32 %v2844, %v2996
        %v3017 = vsub.f32 %v2848, %v2990
        %v3018 = vsub.f32 %v2848, %v2992
        %v3019 = vsub.f32 %v2848, %v2994
        %v3020 = vsub.f32 %v2848, %v2996
        %v3021 = vsub.f32 %v2852, %v2990
        %v3022 = vsub.f32 %v2852, %v2992
        %v3023 = vsub.f32 %v2852, %v2994
        %v3024 = vsub.f32 %v2852, %v2996
        %v3025 = vsub.f32 %v2856, %v2990
        %v3026 = vsub.f32 %v2856, %v2992
        %v3027 = vsub.f32 %v2856, %v2994
        %v3028 = vsub.f32 %v2856, %v2996
        %v3029 = vsub.f32 %v2860, %v2990
        %v3030 = vsub.f32 %v2860, %v2992
        %v3031 = vsub.f32 %v2860, %v2994
        %v3032 = vsub.f32 %v2860, %v2996
        %v3033 = vsub.f32 %v2864, %v2990
        %v3034 = vsub.f32 %v2864, %v2992
        %v3035 = vsub.f32 %v2864, %v2994
        %v3036 = vsub.f32 %v2864, %v2996
        %v3037 = vsub.f32 %v2868, %v2990
        %v3038 = vsub.f32 %v2868, %v2992
        %v3039 = vsub.f32 %v2868, %v2994
        %v3040 = vsub.f32 %v2868, %v2996
        %v3041 = vsub.f32 %v2872, %v2990
        %v3042 = vsub.f32 %v2872, %v2992
        %v3043 = vsub.f32 %v2872, %v2994
        %v3044 = vsub.f32 %v2872, %v2996
        %v3045 = vsub.f32 %v2876, %v2990
        %v3046 = vsub.f32 %v2876, %v2992
        %v3047 = vsub.f32 %v2876, %v2994
        %v3048 = vsub.f32 %v2876, %v2996
        %v3049 = vsub.f32 %v2880, %v2990
        %v3050 = vsub.f32 %v2880, %v2992
        %v3051 = vsub.f32 %v2880, %v2994
        %v3052 = vsub.f32 %v2880, %v2996
        %v3053 = vsub.f32 %v2884, %v2990
        %v3054 = vsub.f32 %v2884, %v2992
        %v3055 = vsub.f32 %v2884, %v2994
        %v3056 = vsub.f32 %v2884, %v2996
        %v3057 = vsub.f32 %v2888, %v2990
        %v3058 = vsub.f32 %v2888, %v2992
        %v3059 = vsub.f32 %v2888, %v2994
        %v3060 = vsub.f32 %v2888, %v2996
        %v3061 = vsub.f32 %v2892, %v2990
        %v3062 = vsub.f32 %v2892, %v2992
        %v3063 = vsub.f32 %v2892, %v2994
        %v3064 = vsub.f32 %v2892, %v2996
        %v3065 = vsub.f32 %v2896, %v2990
        %v3066 = vsub.f32 %v2896, %v2992
        %v3067 = vsub.f32 %v2896, %v2994
        %v3068 = vsub.f32 %v2896, %v2996
        %v3069 = vsub.f32 %v2900, %v2990
        %v3070 = vsub.f32 %v2900, %v2992
        %v3071 = vsub.f32 %v2900, %v2994
        %v3072 = vsub.f32 %v2900, %v2996
        %v3073 = vsub.f32 %v2904, %v2990
        %v3074 = vsub.f32 %v2904, %v2992
        %v3075 = vsub.f32 %v2904, %v2994
        %v3076 = vsub.f32 %v2904, %v2996
        %v3077 = vsub.f32 %v2908, %v2990
        %v3078 = vsub.f32 %v2908, %v2992
        %v3079 = vsub.f32 %v2908, %v2994
        %v3080 = vsub.f32 %v2908, %v2996
        %v3081 = vsub.f32 %v2912, %v2990
        %v3082 = vsub.f32 %v2912, %v2992
        %v3083 = vsub.f32 %v2912, %v2994
        %v3084 = vsub.f32 %v2912, %v2996
        %v3085 = vsub.f32 %v2916, %v2990
        %v3086 = vsub.f32 %v2916, %v2992
        %v3087 = vsub.f32 %v2916, %v2994
        %v3088 = vsub.f32 %v2916, %v2996
        %v3089 = vsub.f32 %v2920, %v2990
        %v3090 = vsub.f32 %v2920, %v2992
        %v3091 = vsub.f32 %v2920, %v2994
        %v3092 = vsub.f32 %v2920, %v2996
        %v3093 = vsub.f32 %v2924, %v2990
        %v3094 = vsub.f32 %v2924, %v2992
        %v3095 = vsub.f32 %v2924, %v2994
        %v3096 = vsub.f32 %v2924, %v2996
        %v3097 = vsub.f32 %v2928, %v2990
        %v3098 = vsub.f32 %v2928, %v2992
        %v3099 = vsub.f32 %v2928, %v2994
        %v3100 = vsub.f32 %v2928, %v2996
        %v3101 = vsub.f32 %v2932, %v2990
        %v3102 = vsub.f32 %v2932, %v2992
        %v3103 = vsub.f32 %v2932, %v2994
        %v3104 = vsub.f32 %v2932, %v2996
        %v3105 = vsub.f32 %v2936, %v2990
        %v3106 = vsub.f32 %v2936, %v2992
        %v3107 = vsub.f32 %v2936, %v2994
        %v3108 = vsub.f32 %v2936, %v2996
        %v3109 = vsub.f32 %v2940, %v2990
        %v3110 = vsub.f32 %v2940, %v2992
        %v3111 = vsub.f32 %v2940, %v2994
        %v3112 = vsub.f32 %v2940, %v2996
        %v3113 = vsub.f32 %v2944, %v2990
        %v3114 = vsub.f32 %v2944, %v2992
        %v3115 = vsub.f32 %v2944, %v2994
        %v3116 = vsub.f32 %v2944, %v2996
        %v3117 = vsub.f32 %v2948, %v2990
        %v3118 = vsub.f32 %v2948, %v2992
        %v3119 = vsub.f32 %v2948, %v2994
        %v3120 = vsub.f32 %v2948, %v2996
        %v3121 = vsub.f32 %v2952, %v2990
        %v3122 = vsub.f32 %v2952, %v2992
        %v3123 = vsub.f32 %v2952, %v2994
        %v3124 = vsub.f32 %v2952, %v2996
        %v3125 = vsub.f32 %v2956, %v2990
        %v3126 = vsub.f32 %v2956, %v2992
        %v3127 = vsub.f32 %v2956, %v2994
        %v3128 = vsub.f32 %v2956, %v2996
        %3257 = vrot.lane.b32.xlu0 %v2501, 64
        %v3258 = vpop.permute.xlu0 %3257
        %3259 = vrot.lane.b32.xlu0 %v2502, 64
        %v3260 = vpop.permute.xlu0 %3259
        %3261 = vrot.lane.b32.xlu0 %v2503, 64
        %v3262 = vpop.permute.xlu0 %3261
        %3263 = vrot.lane.b32.xlu0 %v2504, 64
        %v3264 = vpop.permute.xlu0 %3263
        %3265 = vrot.lane.b32.xlu0 %v2505, 64
        %v3266 = vpop.permute.xlu0 %3265
        %3267 = vrot.lane.b32.xlu0 %v2506, 64
        %v3268 = vpop.permute.xlu0 %3267
        %3269 = vrot.lane.b32.xlu0 %v2507, 64
        %v3270 = vpop.permute.xlu0 %3269
        %3271 = vrot.lane.b32.xlu0 %v2508, 64
        %v3272 = vpop.permute.xlu0 %3271
        %3273 = vrot.lane.b32.xlu0 %v2509, 64
        %v3274 = vpop.permute.xlu0 %3273
        %3275 = vrot.lane.b32.xlu0 %v2510, 64
        %v3276 = vpop.permute.xlu0 %3275
        %3277 = vrot.lane.b32.xlu0 %v2511, 64
        %v3278 = vpop.permute.xlu0 %3277
        %3279 = vrot.lane.b32.xlu0 %v2512, 64
        %v3280 = vpop.permute.xlu0 %3279
        %3281 = vrot.lane.b32.xlu0 %v2513, 64
        %v3282 = vpop.permute.xlu0 %3281
        %3283 = vrot.lane.b32.xlu0 %v2514, 64
        %v3284 = vpop.permute.xlu0 %3283
        %3285 = vrot.lane.b32.xlu0 %v2515, 64
        %v3286 = vpop.permute.xlu0 %3285
        %3287 = vrot.lane.b32.xlu0 %v2516, 64
        %v3288 = vpop.permute.xlu0 %3287
        %3289 = vrot.lane.b32.xlu0 %v2517, 64
        %v3290 = vpop.permute.xlu0 %3289
        %3291 = vrot.lane.b32.xlu0 %v2518, 64
        %v3292 = vpop.permute.xlu0 %3291
        %3293 = vrot.lane.b32.xlu0 %v2519, 64
        %v3294 = vpop.permute.xlu0 %3293
        %3295 = vrot.lane.b32.xlu0 %v2520, 64
        %v3296 = vpop.permute.xlu0 %3295
        %3297 = vrot.lane.b32.xlu0 %v2521, 64
        %v3298 = vpop.permute.xlu0 %3297
        %3299 = vrot.lane.b32.xlu0 %v2522, 64
        %v3300 = vpop.permute.xlu0 %3299
        %3301 = vrot.lane.b32.xlu0 %v2523, 64
        %v3302 = vpop.permute.xlu0 %3301
        %3303 = vrot.lane.b32.xlu0 %v2524, 64
        %v3304 = vpop.permute.xlu0 %3303
        %3305 = vrot.lane.b32.xlu0 %v2525, 64
        %v3306 = vpop.permute.xlu0 %3305
        %3307 = vrot.lane.b32.xlu0 %v2526, 64
        %v3308 = vpop.permute.xlu0 %3307
        %3309 = vrot.lane.b32.xlu0 %v2527, 64
        %v3310 = vpop.permute.xlu0 %3309
        %3311 = vrot.lane.b32.xlu0 %v2528, 64
        %v3312 = vpop.permute.xlu0 %3311
        %3313 = vrot.lane.b32.xlu0 %v2529, 64
        %v3314 = vpop.permute.xlu0 %3313
        %3315 = vrot.lane.b32.xlu0 %v2530, 64
        %v3316 = vpop.permute.xlu0 %3315
        %3317 = vrot.lane.b32.xlu0 %v2531, 64
        %v3318 = vpop.permute.xlu0 %3317
        %3319 = vrot.lane.b32.xlu0 %v2532, 64
        %v3320 = vpop.permute.xlu0 %3319
        %3321 = vrot.lane.b32.xlu0 %v2533, 64
        %v3322 = vpop.permute.xlu0 %3321
        %3323 = vrot.lane.b32.xlu0 %v2534, 64
        %v3324 = vpop.permute.xlu0 %3323
        %3325 = vrot.lane.b32.xlu0 %v2535, 64
        %v3326 = vpop.permute.xlu0 %3325
        %3327 = vrot.lane.b32.xlu0 %v2536, 64
        %v3328 = vpop.permute.xlu0 %3327
        %3329 = vrot.lane.b32.xlu0 %v2537, 64
        %v3330 = vpop.permute.xlu0 %3329
        %3331 = vrot.lane.b32.xlu0 %v2538, 64
        %v3332 = vpop.permute.xlu0 %3331
        %3333 = vrot.lane.b32.xlu0 %v2539, 64
        %v3334 = vpop.permute.xlu0 %3333
        %3335 = vrot.lane.b32.xlu0 %v2540, 64
        %v3336 = vpop.permute.xlu0 %3335
        %3337 = vrot.lane.b32.xlu0 %v2541, 64
        %v3338 = vpop.permute.xlu0 %3337
        %3339 = vrot.lane.b32.xlu0 %v2542, 64
        %v3340 = vpop.permute.xlu0 %3339
        %3341 = vrot.lane.b32.xlu0 %v2543, 64
        %v3342 = vpop.permute.xlu0 %3341
        %3343 = vrot.lane.b32.xlu0 %v2544, 64
        %v3344 = vpop.permute.xlu0 %3343
        %3345 = vrot.lane.b32.xlu0 %v2545, 64
        %v3346 = vpop.permute.xlu0 %3345
        %3347 = vrot.lane.b32.xlu0 %v2546, 64
        %v3348 = vpop.permute.xlu0 %3347
        %3349 = vrot.lane.b32.xlu0 %v2547, 64
        %v3350 = vpop.permute.xlu0 %3349
        %3351 = vrot.lane.b32.xlu0 %v2548, 64
        %v3352 = vpop.permute.xlu0 %3351
        %3353 = vrot.lane.b32.xlu0 %v2549, 64
        %v3354 = vpop.permute.xlu0 %3353
        %3355 = vrot.lane.b32.xlu0 %v2550, 64
        %v3356 = vpop.permute.xlu0 %3355
        %3357 = vrot.lane.b32.xlu0 %v2551, 64
        %v3358 = vpop.permute.xlu0 %3357
        %3359 = vrot.lane.b32.xlu0 %v2552, 64
        %v3360 = vpop.permute.xlu0 %3359
        %3361 = vrot.lane.b32.xlu0 %v2553, 64
        %v3362 = vpop.permute.xlu0 %3361
        %3363 = vrot.lane.b32.xlu0 %v2554, 64
        %v3364 = vpop.permute.xlu0 %3363
        %3365 = vrot.lane.b32.xlu0 %v2555, 64
        %v3366 = vpop.permute.xlu0 %3365
        %3367 = vrot.lane.b32.xlu0 %v2556, 64
        %v3368 = vpop.permute.xlu0 %3367
        %3369 = vrot.lane.b32.xlu0 %v2557, 64
        %v3370 = vpop.permute.xlu0 %3369
        %3371 = vrot.lane.b32.xlu0 %v2558, 64
        %v3372 = vpop.permute.xlu0 %3371
        %3373 = vrot.lane.b32.xlu0 %v2559, 64
        %v3374 = vpop.permute.xlu0 %3373
        %3375 = vrot.lane.b32.xlu0 %v2560, 64
        %v3376 = vpop.permute.xlu0 %3375
        %3377 = vrot.lane.b32.xlu0 %v2561, 64
        %v3378 = vpop.permute.xlu0 %3377
        %3379 = vrot.lane.b32.xlu0 %v2562, 64
        %v3380 = vpop.permute.xlu0 %3379
        %3381 = vrot.lane.b32.xlu0 %v2563, 64
        %v3382 = vpop.permute.xlu0 %3381
        %3383 = vrot.lane.b32.xlu0 %v2564, 64
        %v3384 = vpop.permute.xlu0 %3383
        %3385 = vrot.lane.b32.xlu0 %v2565, 64
        %v3386 = vpop.permute.xlu0 %3385
        %3387 = vrot.lane.b32.xlu0 %v2566, 64
        %v3388 = vpop.permute.xlu0 %3387
        %3389 = vrot.lane.b32.xlu0 %v2567, 64
        %v3390 = vpop.permute.xlu0 %3389
        %3391 = vrot.lane.b32.xlu0 %v2568, 64
        %v3392 = vpop.permute.xlu0 %3391
        %3393 = vrot.lane.b32.xlu0 %v2569, 64
        %v3394 = vpop.permute.xlu0 %3393
        %3395 = vrot.lane.b32.xlu0 %v2570, 64
        %v3396 = vpop.permute.xlu0 %3395
        %3397 = vrot.lane.b32.xlu0 %v2571, 64
        %v3398 = vpop.permute.xlu0 %3397
        %3399 = vrot.lane.b32.xlu0 %v2572, 64
        %v3400 = vpop.permute.xlu0 %3399
        %3401 = vrot.lane.b32.xlu0 %v2573, 64
        %v3402 = vpop.permute.xlu0 %3401
        %3403 = vrot.lane.b32.xlu0 %v2574, 64
        %v3404 = vpop.permute.xlu0 %3403
        %3405 = vrot.lane.b32.xlu0 %v2575, 64
        %v3406 = vpop.permute.xlu0 %3405
        %3407 = vrot.lane.b32.xlu0 %v2576, 64
        %v3408 = vpop.permute.xlu0 %3407
        %3409 = vrot.lane.b32.xlu0 %v2577, 64
        %v3410 = vpop.permute.xlu0 %3409
        %3411 = vrot.lane.b32.xlu0 %v2578, 64
        %v3412 = vpop.permute.xlu0 %3411
        %3413 = vrot.lane.b32.xlu0 %v2579, 64
        %v3414 = vpop.permute.xlu0 %3413
        %3415 = vrot.lane.b32.xlu0 %v2580, 64
        %v3416 = vpop.permute.xlu0 %3415
        %3417 = vrot.lane.b32.xlu0 %v2581, 64
        %v3418 = vpop.permute.xlu0 %3417
        %3419 = vrot.lane.b32.xlu0 %v2582, 64
        %v3420 = vpop.permute.xlu0 %3419
        %3421 = vrot.lane.b32.xlu0 %v2583, 64
        %v3422 = vpop.permute.xlu0 %3421
        %3423 = vrot.lane.b32.xlu0 %v2584, 64
        %v3424 = vpop.permute.xlu0 %3423
        %3425 = vrot.lane.b32.xlu0 %v2585, 64
        %v3426 = vpop.permute.xlu0 %3425
        %3427 = vrot.lane.b32.xlu0 %v2586, 64
        %v3428 = vpop.permute.xlu0 %3427
        %3429 = vrot.lane.b32.xlu0 %v2587, 64
        %v3430 = vpop.permute.xlu0 %3429
        %3431 = vrot.lane.b32.xlu0 %v2588, 64
        %v3432 = vpop.permute.xlu0 %3431
        %3433 = vrot.lane.b32.xlu0 %v2589, 64
        %v3434 = vpop.permute.xlu0 %3433
        %3435 = vrot.lane.b32.xlu0 %v2590, 64
        %v3436 = vpop.permute.xlu0 %3435
        %3437 = vrot.lane.b32.xlu0 %v2591, 64
        %v3438 = vpop.permute.xlu0 %3437
        %3439 = vrot.lane.b32.xlu0 %v2592, 64
        %v3440 = vpop.permute.xlu0 %3439
        %3441 = vrot.lane.b32.xlu0 %v2593, 64
        %v3442 = vpop.permute.xlu0 %3441
        %3443 = vrot.lane.b32.xlu0 %v2594, 64
        %v3444 = vpop.permute.xlu0 %3443
        %3445 = vrot.lane.b32.xlu0 %v2595, 64
        %v3446 = vpop.permute.xlu0 %3445
        %3447 = vrot.lane.b32.xlu0 %v2596, 64
        %v3448 = vpop.permute.xlu0 %3447
        %3449 = vrot.lane.b32.xlu0 %v2597, 64
        %v3450 = vpop.permute.xlu0 %3449
        %3451 = vrot.lane.b32.xlu0 %v2598, 64
        %v3452 = vpop.permute.xlu0 %3451
        %3453 = vrot.lane.b32.xlu0 %v2599, 64
        %v3454 = vpop.permute.xlu0 %3453
        %3455 = vrot.lane.b32.xlu0 %v2600, 64
        %v3456 = vpop.permute.xlu0 %3455
        %3457 = vrot.lane.b32.xlu0 %v2601, 64
        %v3458 = vpop.permute.xlu0 %3457
        %3459 = vrot.lane.b32.xlu0 %v2602, 64
        %v3460 = vpop.permute.xlu0 %3459
        %3461 = vrot.lane.b32.xlu0 %v2603, 64
        %v3462 = vpop.permute.xlu0 %3461
        %3463 = vrot.lane.b32.xlu0 %v2604, 64
        %v3464 = vpop.permute.xlu0 %3463
        %3465 = vrot.lane.b32.xlu0 %v2605, 64
        %v3466 = vpop.permute.xlu0 %3465
        %3467 = vrot.lane.b32.xlu0 %v2606, 64
        %v3468 = vpop.permute.xlu0 %3467
        %3469 = vrot.lane.b32.xlu0 %v2607, 64
        %v3470 = vpop.permute.xlu0 %3469
        %3471 = vrot.lane.b32.xlu0 %v2608, 64
        %v3472 = vpop.permute.xlu0 %3471
        %3473 = vrot.lane.b32.xlu0 %v2609, 64
        %v3474 = vpop.permute.xlu0 %3473
        %3475 = vrot.lane.b32.xlu0 %v2610, 64
        %v3476 = vpop.permute.xlu0 %3475
        %3477 = vrot.lane.b32.xlu0 %v2611, 64
        %v3478 = vpop.permute.xlu0 %3477
        %3479 = vrot.lane.b32.xlu0 %v2612, 64
        %v3480 = vpop.permute.xlu0 %3479
        %3481 = vrot.lane.b32.xlu0 %v2613, 64
        %v3482 = vpop.permute.xlu0 %3481
        %3483 = vrot.lane.b32.xlu0 %v2614, 64
        %v3484 = vpop.permute.xlu0 %3483
        %3485 = vrot.lane.b32.xlu0 %v2615, 64
        %v3486 = vpop.permute.xlu0 %3485
        %3487 = vrot.lane.b32.xlu0 %v2616, 64
        %v3488 = vpop.permute.xlu0 %3487
        %3489 = vrot.lane.b32.xlu0 %v2617, 64
        %v3490 = vpop.permute.xlu0 %3489
        %3491 = vrot.lane.b32.xlu0 %v2618, 64
        %v3492 = vpop.permute.xlu0 %3491
        %3493 = vrot.lane.b32.xlu0 %v2619, 64
        %v3494 = vpop.permute.xlu0 %3493
        %3495 = vrot.lane.b32.xlu0 %v2620, 64
        %v3496 = vpop.permute.xlu0 %3495
        %3497 = vrot.lane.b32.xlu0 %v2621, 64
        %v3498 = vpop.permute.xlu0 %3497
        %3499 = vrot.lane.b32.xlu0 %v2622, 64
        %v3500 = vpop.permute.xlu0 %3499
        %3501 = vrot.lane.b32.xlu0 %v2623, 64
        %v3502 = vpop.permute.xlu0 %3501
        %3503 = vrot.lane.b32.xlu0 %v2624, 64
        %v3504 = vpop.permute.xlu0 %3503
        %3505 = vrot.lane.b32.xlu0 %v2625, 64
        %v3506 = vpop.permute.xlu0 %3505
        %3507 = vrot.lane.b32.xlu0 %v2626, 64
        %v3508 = vpop.permute.xlu0 %3507
        %3509 = vrot.lane.b32.xlu0 %v2627, 64
        %v3510 = vpop.permute.xlu0 %3509
        %3511 = vrot.lane.b32.xlu0 %v2628, 64
        %v3512 = vpop.permute.xlu0 %3511
        %v3641 = vadd.f32 %v3001, %v3258
        %v3642 = vadd.f32 %v3002, %v3260
        %v3643 = vadd.f32 %v3003, %v3262
        %v3644 = vadd.f32 %v3004, %v3264
        %v3645 = vadd.f32 %v3005, %v3266
        %v3646 = vadd.f32 %v3006, %v3268
        %v3647 = vadd.f32 %v3007, %v3270
        %v3648 = vadd.f32 %v3008, %v3272
        %v3649 = vadd.f32 %v3009, %v3274
        %v3650 = vadd.f32 %v3010, %v3276
        %v3651 = vadd.f32 %v3011, %v3278
        %v3652 = vadd.f32 %v3012, %v3280
        %v3653 = vadd.f32 %v3013, %v3282
        %v3654 = vadd.f32 %v3014, %v3284
        %v3655 = vadd.f32 %v3015, %v3286
        %v3656 = vadd.f32 %v3016, %v3288
        %v3657 = vadd.f32 %v3017, %v3290
        %v3658 = vadd.f32 %v3018, %v3292
        %v3659 = vadd.f32 %v3019, %v3294
        %v3660 = vadd.f32 %v3020, %v3296
        %v3661 = vadd.f32 %v3021, %v3298
        %v3662 = vadd.f32 %v3022, %v3300
        %v3663 = vadd.f32 %v3023, %v3302
        %v3664 = vadd.f32 %v3024, %v3304
        %v3665 = vadd.f32 %v3025, %v3306
        %v3666 = vadd.f32 %v3026, %v3308
        %v3667 = vadd.f32 %v3027, %v3310
        %v3668 = vadd.f32 %v3028, %v3312
        %v3669 = vadd.f32 %v3029, %v3314
        %v3670 = vadd.f32 %v3030, %v3316
        %v3671 = vadd.f32 %v3031, %v3318
        %v3672 = vadd.f32 %v3032, %v3320
        %v3673 = vadd.f32 %v3033, %v3322
        %v3674 = vadd.f32 %v3034, %v3324
        %v3675 = vadd.f32 %v3035, %v3326
        %v3676 = vadd.f32 %v3036, %v3328
        %v3677 = vadd.f32 %v3037, %v3330
        %v3678 = vadd.f32 %v3038, %v3332
        %v3679 = vadd.f32 %v3039, %v3334
        %v3680 = vadd.f32 %v3040, %v3336
        %v3681 = vadd.f32 %v3041, %v3338
        %v3682 = vadd.f32 %v3042, %v3340
        %v3683 = vadd.f32 %v3043, %v3342
        %v3684 = vadd.f32 %v3044, %v3344
        %v3685 = vadd.f32 %v3045, %v3346
        %v3686 = vadd.f32 %v3046, %v3348
        %v3687 = vadd.f32 %v3047, %v3350
        %v3688 = vadd.f32 %v3048, %v3352
        %v3689 = vadd.f32 %v3049, %v3354
        %v3690 = vadd.f32 %v3050, %v3356
        %v3691 = vadd.f32 %v3051, %v3358
        %v3692 = vadd.f32 %v3052, %v3360
        %v3693 = vadd.f32 %v3053, %v3362
        %v3694 = vadd.f32 %v3054, %v3364
        %v3695 = vadd.f32 %v3055, %v3366
        %v3696 = vadd.f32 %v3056, %v3368
        %v3697 = vadd.f32 %v3057, %v3370
        %v3698 = vadd.f32 %v3058, %v3372
        %v3699 = vadd.f32 %v3059, %v3374
        %v3700 = vadd.f32 %v3060, %v3376
        %v3701 = vadd.f32 %v3061, %v3378
        %v3702 = vadd.f32 %v3062, %v3380
        %v3703 = vadd.f32 %v3063, %v3382
        %v3704 = vadd.f32 %v3064, %v3384
        %v3705 = vadd.f32 %v3065, %v3386
        %v3706 = vadd.f32 %v3066, %v3388
        %v3707 = vadd.f32 %v3067, %v3390
        %v3708 = vadd.f32 %v3068, %v3392
        %v3709 = vadd.f32 %v3069, %v3394
        %v3710 = vadd.f32 %v3070, %v3396
        %v3711 = vadd.f32 %v3071, %v3398
        %v3712 = vadd.f32 %v3072, %v3400
        %v3713 = vadd.f32 %v3073, %v3402
        %v3714 = vadd.f32 %v3074, %v3404
        %v3715 = vadd.f32 %v3075, %v3406
        %v3716 = vadd.f32 %v3076, %v3408
        %v3717 = vadd.f32 %v3077, %v3410
        %v3718 = vadd.f32 %v3078, %v3412
        %v3719 = vadd.f32 %v3079, %v3414
        %v3720 = vadd.f32 %v3080, %v3416
        %v3721 = vadd.f32 %v3081, %v3418
        %v3722 = vadd.f32 %v3082, %v3420
        %v3723 = vadd.f32 %v3083, %v3422
        %v3724 = vadd.f32 %v3084, %v3424
        %v3725 = vadd.f32 %v3085, %v3426
        %v3726 = vadd.f32 %v3086, %v3428
        %v3727 = vadd.f32 %v3087, %v3430
        %v3728 = vadd.f32 %v3088, %v3432
        %v3729 = vadd.f32 %v3089, %v3434
        %v3730 = vadd.f32 %v3090, %v3436
        %v3731 = vadd.f32 %v3091, %v3438
        %v3732 = vadd.f32 %v3092, %v3440
        %v3733 = vadd.f32 %v3093, %v3442
        %v3734 = vadd.f32 %v3094, %v3444
        %v3735 = vadd.f32 %v3095, %v3446
        %v3736 = vadd.f32 %v3096, %v3448
        %v3737 = vadd.f32 %v3097, %v3450
        %v3738 = vadd.f32 %v3098, %v3452
        %v3739 = vadd.f32 %v3099, %v3454
        %v3740 = vadd.f32 %v3100, %v3456
        %v3741 = vadd.f32 %v3101, %v3458
        %v3742 = vadd.f32 %v3102, %v3460
        %v3743 = vadd.f32 %v3103, %v3462
        %v3744 = vadd.f32 %v3104, %v3464
        %v3745 = vadd.f32 %v3105, %v3466
        %v3746 = vadd.f32 %v3106, %v3468
        %v3747 = vadd.f32 %v3107, %v3470
        %v3748 = vadd.f32 %v3108, %v3472
        %v3749 = vadd.f32 %v3109, %v3474
        %v3750 = vadd.f32 %v3110, %v3476
        %v3751 = vadd.f32 %v3111, %v3478
        %v3752 = vadd.f32 %v3112, %v3480
        %v3753 = vadd.f32 %v3113, %v3482
        %v3754 = vadd.f32 %v3114, %v3484
        %v3755 = vadd.f32 %v3115, %v3486
        %v3756 = vadd.f32 %v3116, %v3488
        %v3757 = vadd.f32 %v3117, %v3490
        %v3758 = vadd.f32 %v3118, %v3492
        %v3759 = vadd.f32 %v3119, %v3494
        %v3760 = vadd.f32 %v3120, %v3496
        %v3761 = vadd.f32 %v3121, %v3498
        %v3762 = vadd.f32 %v3122, %v3500
        %v3763 = vadd.f32 %v3123, %v3502
        %v3764 = vadd.f32 %v3124, %v3504
        %v3765 = vadd.f32 %v3125, %v3506
        %v3766 = vadd.f32 %v3126, %v3508
        %v3767 = vadd.f32 %v3127, %v3510
        %v3768 = vadd.f32 %v3128, %v3512
        %v3769 = vld [vmem:[%s11] sm:$0xff]
        %v3770 = vld [vmem:[%s11 + $0x8] sm:$0xff]
        %v3771 = vld [vmem:[%s11 + $0x10] sm:$0xff]
        %v3772 = vld [vmem:[%s11 + $0x18] sm:$0xff]
        %v3773 = vpack.c.bf16 %v3642, %v3641
        %v3774 = vpack.c.bf16 %v3644, %v3643
        %v3775 = vpack.c.bf16 %v3646, %v3645
        %v3776 = vpack.c.bf16 %v3648, %v3647
        %v3777 = vpack.c.bf16 %v3650, %v3649
        %v3778 = vpack.c.bf16 %v3652, %v3651
        %v3779 = vpack.c.bf16 %v3654, %v3653
        %v3780 = vpack.c.bf16 %v3656, %v3655
        %v3781 = vpack.c.bf16 %v3658, %v3657
        %v3782 = vpack.c.bf16 %v3660, %v3659
        %v3783 = vpack.c.bf16 %v3662, %v3661
        %v3784 = vpack.c.bf16 %v3664, %v3663
        %v3785 = vpack.c.bf16 %v3666, %v3665
        %v3786 = vpack.c.bf16 %v3668, %v3667
        %v3787 = vpack.c.bf16 %v3670, %v3669
        %v3788 = vpack.c.bf16 %v3672, %v3671
        %v3789 = vpack.c.bf16 %v3674, %v3673
        %v3790 = vpack.c.bf16 %v3676, %v3675
        %v3791 = vpack.c.bf16 %v3678, %v3677
        %v3792 = vpack.c.bf16 %v3680, %v3679
        %v3793 = vpack.c.bf16 %v3682, %v3681
        %v3794 = vpack.c.bf16 %v3684, %v3683
        %v3795 = vpack.c.bf16 %v3686, %v3685
        %v3796 = vpack.c.bf16 %v3688, %v3687
        %v3797 = vpack.c.bf16 %v3690, %v3689
        %v3798 = vpack.c.bf16 %v3692, %v3691
        %v3799 = vpack.c.bf16 %v3694, %v3693
        %v3800 = vpack.c.bf16 %v3696, %v3695
        %v3801 = vpack.c.bf16 %v3698, %v3697
        %v3802 = vpack.c.bf16 %v3700, %v3699
        %v3803 = vpack.c.bf16 %v3702, %v3701
        %v3804 = vpack.c.bf16 %v3704, %v3703
        %v3805 = vpack.c.bf16 %v3706, %v3705
        %v3806 = vpack.c.bf16 %v3708, %v3707
        %v3807 = vpack.c.bf16 %v3710, %v3709
        %v3808 = vpack.c.bf16 %v3712, %v3711
        %v3809 = vpack.c.bf16 %v3714, %v3713
        %v3810 = vpack.c.bf16 %v3716, %v3715
        %v3811 = vpack.c.bf16 %v3718, %v3717
        %v3812 = vpack.c.bf16 %v3720, %v3719
        %v3813 = vpack.c.bf16 %v3722, %v3721
        %v3814 = vpack.c.bf16 %v3724, %v3723
        %v3815 = vpack.c.bf16 %v3726, %v3725
        %v3816 = vpack.c.bf16 %v3728, %v3727
        %v3817 = vpack.c.bf16 %v3730, %v3729
        %v3818 = vpack.c.bf16 %v3732, %v3731
        %v3819 = vpack.c.bf16 %v3734, %v3733
        %v3820 = vpack.c.bf16 %v3736, %v3735
        %v3821 = vpack.c.bf16 %v3738, %v3737
        %v3822 = vpack.c.bf16 %v3740, %v3739
        %v3823 = vpack.c.bf16 %v3742, %v3741
        %v3824 = vpack.c.bf16 %v3744, %v3743
        %v3825 = vpack.c.bf16 %v3746, %v3745
        %v3826 = vpack.c.bf16 %v3748, %v3747
        %v3827 = vpack.c.bf16 %v3750, %v3749
        %v3828 = vpack.c.bf16 %v3752, %v3751
        %v3829 = vpack.c.bf16 %v3754, %v3753
        %v3830 = vpack.c.bf16 %v3756, %v3755
        %v3831 = vpack.c.bf16 %v3758, %v3757
        %v3832 = vpack.c.bf16 %v3760, %v3759
        %v3833 = vpack.c.bf16 %v3762, %v3761
        %v3834 = vpack.c.bf16 %v3764, %v3763
        %v3835 = vpack.c.bf16 %v3766, %v3765
        %v3836 = vpack.c.bf16 %v3768, %v3767
        %v3837 = vpack.c.bf16 %v3770, %v3769
        %v3838 = vpack.c.bf16 %v3772, %v3771
        %v3839 = vld [vmem:[%s12] sm:$0x1]
        %v3841 = vlaneseq
        %v3842 = vshrl.u32 %v3841, 7
        %v3843 = vsub.s32 0, %v3842
        %v3844 = vrot.slane %v3839, %v3843
        %3910 = vrot.lane.b32.xlu0 %v3773, 64
        %v3911 = vpop.permute.xlu0 %3910
        %3912 = vrot.lane.b32.xlu0 %v3774, 64
        %v3913 = vpop.permute.xlu0 %3912
        %3914 = vrot.lane.b32.xlu0 %v3775, 64
        %v3915 = vpop.permute.xlu0 %3914
        %3916 = vrot.lane.b32.xlu0 %v3776, 64
        %v3917 = vpop.permute.xlu0 %3916
        %3918 = vrot.lane.b32.xlu0 %v3777, 64
        %v3919 = vpop.permute.xlu0 %3918
        %3920 = vrot.lane.b32.xlu0 %v3778, 64
        %v3921 = vpop.permute.xlu0 %3920
        %3922 = vrot.lane.b32.xlu0 %v3779, 64
        %v3923 = vpop.permute.xlu0 %3922
        %3924 = vrot.lane.b32.xlu0 %v3780, 64
        %v3925 = vpop.permute.xlu0 %3924
        %3926 = vrot.lane.b32.xlu0 %v3781, 64
        %v3927 = vpop.permute.xlu0 %3926
        %3928 = vrot.lane.b32.xlu0 %v3782, 64
        %v3929 = vpop.permute.xlu0 %3928
        %3930 = vrot.lane.b32.xlu0 %v3783, 64
        %v3931 = vpop.permute.xlu0 %3930
        %3932 = vrot.lane.b32.xlu0 %v3784, 64
        %v3933 = vpop.permute.xlu0 %3932
        %3934 = vrot.lane.b32.xlu0 %v3785, 64
        %v3935 = vpop.permute.xlu0 %3934
        %3936 = vrot.lane.b32.xlu0 %v3786, 64
        %v3937 = vpop.permute.xlu0 %3936
        %3938 = vrot.lane.b32.xlu0 %v3787, 64
        %v3939 = vpop.permute.xlu0 %3938
        %3940 = vrot.lane.b32.xlu0 %v3788, 64
        %v3941 = vpop.permute.xlu0 %3940
        %3942 = vrot.lane.b32.xlu0 %v3789, 64
        %v3943 = vpop.permute.xlu0 %3942
        %3944 = vrot.lane.b32.xlu0 %v3790, 64
        %v3945 = vpop.permute.xlu0 %3944
        %3946 = vrot.lane.b32.xlu0 %v3791, 64
        %v3947 = vpop.permute.xlu0 %3946
        %3948 = vrot.lane.b32.xlu0 %v3792, 64
        %v3949 = vpop.permute.xlu0 %3948
        %3950 = vrot.lane.b32.xlu0 %v3793, 64
        %v3951 = vpop.permute.xlu0 %3950
        %3952 = vrot.lane.b32.xlu0 %v3794, 64
        %v3953 = vpop.permute.xlu0 %3952
        %3954 = vrot.lane.b32.xlu0 %v3795, 64
        %v3955 = vpop.permute.xlu0 %3954
        %3956 = vrot.lane.b32.xlu0 %v3796, 64
        %v3957 = vpop.permute.xlu0 %3956
        %3958 = vrot.lane.b32.xlu0 %v3797, 64
        %v3959 = vpop.permute.xlu0 %3958
        %3960 = vrot.lane.b32.xlu0 %v3798, 64
        %v3961 = vpop.permute.xlu0 %3960
        %3962 = vrot.lane.b32.xlu0 %v3799, 64
        %v3963 = vpop.permute.xlu0 %3962
        %3964 = vrot.lane.b32.xlu0 %v3800, 64
        %v3965 = vpop.permute.xlu0 %3964
        %3966 = vrot.lane.b32.xlu0 %v3801, 64
        %v3967 = vpop.permute.xlu0 %3966
        %3968 = vrot.lane.b32.xlu0 %v3802, 64
        %v3969 = vpop.permute.xlu0 %3968
        %3970 = vrot.lane.b32.xlu0 %v3803, 64
        %v3971 = vpop.permute.xlu0 %3970
        %3972 = vrot.lane.b32.xlu0 %v3804, 64
        %v3973 = vpop.permute.xlu0 %3972
        %3974 = vrot.lane.b32.xlu0 %v3805, 64
        %v3975 = vpop.permute.xlu0 %3974
        %3976 = vrot.lane.b32.xlu0 %v3806, 64
        %v3977 = vpop.permute.xlu0 %3976
        %3978 = vrot.lane.b32.xlu0 %v3807, 64
        %v3979 = vpop.permute.xlu0 %3978
        %3980 = vrot.lane.b32.xlu0 %v3808, 64
        %v3981 = vpop.permute.xlu0 %3980
        %3982 = vrot.lane.b32.xlu0 %v3809, 64
        %v3983 = vpop.permute.xlu0 %3982
        %3984 = vrot.lane.b32.xlu0 %v3810, 64
        %v3985 = vpop.permute.xlu0 %3984
        %3986 = vrot.lane.b32.xlu0 %v3811, 64
        %v3987 = vpop.permute.xlu0 %3986
        %3988 = vrot.lane.b32.xlu0 %v3812, 64
        %v3989 = vpop.permute.xlu0 %3988
        %3990 = vrot.lane.b32.xlu0 %v3813, 64
        %v3991 = vpop.permute.xlu0 %3990
        %3992 = vrot.lane.b32.xlu0 %v3814, 64
        %v3993 = vpop.permute.xlu0 %3992
        %3994 = vrot.lane.b32.xlu0 %v3815, 64
        %v3995 = vpop.permute.xlu0 %3994
        %3996 = vrot.lane.b32.xlu0 %v3816, 64
        %v3997 = vpop.permute.xlu0 %3996
        %3998 = vrot.lane.b32.xlu0 %v3817, 64
        %v3999 = vpop.permute.xlu0 %3998
        %4000 = vrot.lane.b32.xlu0 %v3818, 64
        %v4001 = vpop.permute.xlu0 %4000
        %4002 = vrot.lane.b32.xlu0 %v3819, 64
        %v4003 = vpop.permute.xlu0 %4002
        %4004 = vrot.lane.b32.xlu0 %v3820, 64
        %v4005 = vpop.permute.xlu0 %4004
        %4006 = vrot.lane.b32.xlu0 %v3821, 64
        %v4007 = vpop.permute.xlu0 %4006
        %4008 = vrot.lane.b32.xlu0 %v3822, 64
        %v4009 = vpop.permute.xlu0 %4008
        %4010 = vrot.lane.b32.xlu0 %v3823, 64
        %v4011 = vpop.permute.xlu0 %4010
        %4012 = vrot.lane.b32.xlu0 %v3824, 64
        %v4013 = vpop.permute.xlu0 %4012
        %4014 = vrot.lane.b32.xlu0 %v3825, 64
        %v4015 = vpop.permute.xlu0 %4014
        %4016 = vrot.lane.b32.xlu0 %v3826, 64
        %v4017 = vpop.permute.xlu0 %4016
        %4018 = vrot.lane.b32.xlu0 %v3827, 64
        %v4019 = vpop.permute.xlu0 %4018
        %4020 = vrot.lane.b32.xlu0 %v3828, 64
        %v4021 = vpop.permute.xlu0 %4020
        %4022 = vrot.lane.b32.xlu0 %v3829, 64
        %v4023 = vpop.permute.xlu0 %4022
        %4024 = vrot.lane.b32.xlu0 %v3830, 64
        %v4025 = vpop.permute.xlu0 %4024
        %4026 = vrot.lane.b32.xlu0 %v3831, 64
        %v4027 = vpop.permute.xlu0 %4026
        %4028 = vrot.lane.b32.xlu0 %v3832, 64
        %v4029 = vpop.permute.xlu0 %4028
        %4030 = vrot.lane.b32.xlu0 %v3833, 64
        %v4031 = vpop.permute.xlu0 %4030
        %4032 = vrot.lane.b32.xlu0 %v3834, 64
        %v4033 = vpop.permute.xlu0 %4032
        %4034 = vrot.lane.b32.xlu0 %v3835, 64
        %v4035 = vpop.permute.xlu0 %4034
        %4036 = vrot.lane.b32.xlu0 %v3836, 64
        %v4037 = vpop.permute.xlu0 %4036
        %vm4038 = vcmask 261120
        %v4040 = vsel %vm4038, %v3911, 0
        %v4043 = vsel %vm4038, %v3913, 0
        %v4046 = vsel %vm4038, %v3915, 0
        %v4049 = vsel %vm4038, %v3917, 0
        %v4052 = vsel %vm4038, %v3919, 0
        %v4055 = vsel %vm4038, %v3921, 0
        %v4058 = vsel %vm4038, %v3923, 0
        %v4061 = vsel %vm4038, %v3925, 0
        %v4064 = vsel %vm4038, %v3927, 0
        %v4067 = vsel %vm4038, %v3929, 0
        %v4070 = vsel %vm4038, %v3931, 0
        %v4073 = vsel %vm4038, %v3933, 0
        %v4076 = vsel %vm4038, %v3935, 0
        %v4079 = vsel %vm4038, %v3937, 0
        %v4082 = vsel %vm4038, %v3939, 0
        %v4085 = vsel %vm4038, %v3941, 0
        %v4088 = vsel %vm4038, %v3943, 0
        %v4091 = vsel %vm4038, %v3945, 0
        %v4094 = vsel %vm4038, %v3947, 0
        %v4097 = vsel %vm4038, %v3949, 0
        %v4100 = vsel %vm4038, %v3951, 0
        %v4103 = vsel %vm4038, %v3953, 0
        %v4106 = vsel %vm4038, %v3955, 0
        %v4109 = vsel %vm4038, %v3957, 0
        %v4112 = vsel %vm4038, %v3959, 0
        %v4115 = vsel %vm4038, %v3961, 0
        %v4118 = vsel %vm4038, %v3963, 0
        %v4121 = vsel %vm4038, %v3965, 0
        %v4124 = vsel %vm4038, %v3967, 0
        %v4127 = vsel %vm4038, %v3969, 0
        %v4130 = vsel %vm4038, %v3971, 0
        %v4133 = vsel %vm4038, %v3973, 0
        %v4136 = vsel %vm4038, %v3975, 0
        %v4139 = vsel %vm4038, %v3977, 0
        %v4142 = vsel %vm4038, %v3979, 0
        %v4145 = vsel %vm4038, %v3981, 0
        %v4148 = vsel %vm4038, %v3983, 0
        %v4151 = vsel %vm4038, %v3985, 0
        %v4154 = vsel %vm4038, %v3987, 0
        %v4157 = vsel %vm4038, %v3989, 0
        %v4160 = vsel %vm4038, %v3991, 0
        %v4163 = vsel %vm4038, %v3993, 0
        %v4166 = vsel %vm4038, %v3995, 0
        %v4169 = vsel %vm4038, %v3997, 0
        %v4172 = vsel %vm4038, %v3999, 0
        %v4175 = vsel %vm4038, %v4001, 0
        %v4178 = vsel %vm4038, %v4003, 0
        %v4181 = vsel %vm4038, %v4005, 0
        %v4184 = vsel %vm4038, %v4007, 0
        %v4187 = vsel %vm4038, %v4009, 0
        %v4190 = vsel %vm4038, %v4011, 0
        %v4193 = vsel %vm4038, %v4013, 0
        %v4196 = vsel %vm4038, %v4015, 0
        %v4199 = vsel %vm4038, %v4017, 0
        %v4202 = vsel %vm4038, %v4019, 0
        %v4205 = vsel %vm4038, %v4021, 0
        %v4208 = vsel %vm4038, %v4023, 0
        %v4211 = vsel %vm4038, %v4025, 0
        %v4214 = vsel %vm4038, %v4027, 0
        %v4217 = vsel %vm4038, %v4029, 0
        %v4220 = vsel %vm4038, %v4031, 0
        %v4223 = vsel %vm4038, %v4033, 0
        %v4226 = vsel %vm4038, %v4035, 0
        %v4229 = vsel %vm4038, %v4037, 0
        %4231 = vmatprep.subr.bf16.mxu0 0
        %4232 = vmatpush1.bf16.msra.mxu0 0
        %4233 = vmatprep.subr.bf16.mxu0 0
        %4234 = vmatpush1.bf16.msra.mxu0 0
        %4235 = vmatprep.subr.bf16.mxu0 0
        %4236 = vmatpush1.bf16.msra.mxu0 0
        %4237 = vmatprep.subr.bf16.mxu0 0
        %4238 = vmatpush1.bf16.msra.mxu0 0
        %4239 = vmatprep.subr.bf16.mxu0 0
        %4240 = vmatpush1.bf16.msra.mxu0 0
        %4241 = vmatprep.subr.bf16.mxu0 0
        %4242 = vmatpush1.bf16.msra.mxu0 0
        %4243 = vmatprep.subr.bf16.mxu0 0
        %4244 = vmatpush1.bf16.msra.mxu0 %v3838
        %4245 = vmatprep.subr.bf16.mxu0 0
        %4246 = vmatpush1.bf16.msra.mxu0 %v3837
        %4247 = vmatprep.subr.bf16.mxu0 0
        %4248 = vmatpush2.bf16.msra.mxu0 0
        %4249 = vmatprep.subr.bf16.mxu0 0
        %4250 = vmatpush2.bf16.msra.mxu0 0
        %4251 = vmatprep.subr.bf16.mxu0 0
        %4252 = vmatpush2.bf16.msra.mxu0 0
        %4253 = vmatprep.subr.bf16.mxu0 0
        %4254 = vmatpush2.bf16.msra.mxu0 0
        %4255 = vmatprep.subr.bf16.mxu0 0
        %4256 = vmatpush2.bf16.msra.mxu0 0
        %4257 = vmatprep.subr.bf16.mxu0 0
        %4258 = vmatpush2.bf16.msra.mxu0 0
        %4259 = vmatprep.subr.bf16.mxu0 0
        %4260 = vmatpush2.bf16.msra.mxu0 0
        %4261 = vmatprep.subr.bf16.mxu0 0
        %4262 = vmatpush2.bf16.msra.mxu0 0
        %4263 = vmatprep.mubr.bf16.mxu0 0
        %4264 = vmatmul.mubr.bf16.gmra.mxu0 %v4040
        %v4265 = vpop.f32.mrf.mxu0
        %v4266 = vadd.f32 %v3844, %v4265
        %v4267 = vpop.f32.mrf.mxu0
        %v4268 = vpop.f32.mrf.mxu0
        %v4269 = vadd.f32 %v3844, %v4268
        %v4270 = vpop.f32.mrf.mxu0
        %4271 = vmatprep.mubr.bf16.mxu0 0
        %4272 = vmatmul.mubr.bf16.gmra.mxu0 %v4043
        %v4273 = vpop.f32.mrf.mxu0
        %v4274 = vadd.f32 %v3844, %v4273
        %v4275 = vpop.f32.mrf.mxu0
        %v4276 = vpop.f32.mrf.mxu0
        %v4277 = vadd.f32 %v3844, %v4276
        %v4278 = vpop.f32.mrf.mxu0
        %4279 = vmatprep.mubr.bf16.mxu0 0
        %4280 = vmatmul.mubr.bf16.gmra.mxu0 %v4046
        %v4281 = vpop.f32.mrf.mxu0
        %v4282 = vadd.f32 %v3844, %v4281
        %v4283 = vpop.f32.mrf.mxu0
        %v4284 = vpop.f32.mrf.mxu0
        %v4285 = vadd.f32 %v3844, %v4284
        %v4286 = vpop.f32.mrf.mxu0
        %4287 = vmatprep.mubr.bf16.mxu0 0
        %4288 = vmatmul.mubr.bf16.gmra.mxu0 %v4049
        %v4289 = vpop.f32.mrf.mxu0
        %v4290 = vadd.f32 %v3844, %v4289
        %v4291 = vpop.f32.mrf.mxu0
        %v4292 = vpop.f32.mrf.mxu0
        %v4293 = vadd.f32 %v3844, %v4292
        %v4294 = vpop.f32.mrf.mxu0
        %4295 = vmatprep.mubr.bf16.mxu0 0
        %4296 = vmatmul.mubr.bf16.gmra.mxu0 %v4052
        %v4297 = vpop.f32.mrf.mxu0
        %v4298 = vadd.f32 %v3844, %v4297
        %v4299 = vpop.f32.mrf.mxu0
        %v4300 = vpop.f32.mrf.mxu0
        %v4301 = vadd.f32 %v3844, %v4300
        %v4302 = vpop.f32.mrf.mxu0
        %4303 = vmatprep.mubr.bf16.mxu0 0
        %4304 = vmatmul.mubr.bf16.gmra.mxu0 %v4055
        %v4305 = vpop.f32.mrf.mxu0
        %v4306 = vadd.f32 %v3844, %v4305
        %v4307 = vpop.f32.mrf.mxu0
        %v4308 = vpop.f32.mrf.mxu0
        %v4309 = vadd.f32 %v3844, %v4308
        %v4310 = vpop.f32.mrf.mxu0
        %4311 = vmatprep.mubr.bf16.mxu0 0
        %4312 = vmatmul.mubr.bf16.gmra.mxu0 %v4058
        %v4313 = vpop.f32.mrf.mxu0
        %v4314 = vadd.f32 %v3844, %v4313
        %v4315 = vpop.f32.mrf.mxu0
        %v4316 = vpop.f32.mrf.mxu0
        %v4317 = vadd.f32 %v3844, %v4316
        %v4318 = vpop.f32.mrf.mxu0
        %4319 = vmatprep.mubr.bf16.mxu0 0
        %4320 = vmatmul.mubr.bf16.gmra.mxu0 %v4061
        %v4321 = vpop.f32.mrf.mxu0
        %v4322 = vadd.f32 %v3844, %v4321
        %v4323 = vpop.f32.mrf.mxu0
        %v4324 = vpop.f32.mrf.mxu0
        %v4325 = vadd.f32 %v3844, %v4324
        %v4326 = vpop.f32.mrf.mxu0
        %4327 = vmatprep.mubr.bf16.mxu0 0
        %4328 = vmatmul.mubr.bf16.gmra.mxu0 %v4064
        %v4329 = vpop.f32.mrf.mxu0
        %v4330 = vadd.f32 %v3844, %v4329
        %v4331 = vpop.f32.mrf.mxu0
        %v4332 = vpop.f32.mrf.mxu0
        %v4333 = vadd.f32 %v3844, %v4332
        %v4334 = vpop.f32.mrf.mxu0
        %4335 = vmatprep.mubr.bf16.mxu0 0
        %4336 = vmatmul.mubr.bf16.gmra.mxu0 %v4067
        %v4337 = vpop.f32.mrf.mxu0
        %v4338 = vadd.f32 %v3844, %v4337
        %v4339 = vpop.f32.mrf.mxu0
        %v4340 = vpop.f32.mrf.mxu0
        %v4341 = vadd.f32 %v3844, %v4340
        %v4342 = vpop.f32.mrf.mxu0
        %4343 = vmatprep.mubr.bf16.mxu0 0
        %4344 = vmatmul.mubr.bf16.gmra.mxu0 %v4070
        %v4345 = vpop.f32.mrf.mxu0
        %v4346 = vadd.f32 %v3844, %v4345
        %v4347 = vpop.f32.mrf.mxu0
        %v4348 = vpop.f32.mrf.mxu0
        %v4349 = vadd.f32 %v3844, %v4348
        %v4350 = vpop.f32.mrf.mxu0
        %4351 = vmatprep.mubr.bf16.mxu0 0
        %4352 = vmatmul.mubr.bf16.gmra.mxu0 %v4073
        %v4353 = vpop.f32.mrf.mxu0
        %v4354 = vadd.f32 %v3844, %v4353
        %v4355 = vpop.f32.mrf.mxu0
        %v4356 = vpop.f32.mrf.mxu0
        %v4357 = vadd.f32 %v3844, %v4356
        %v4358 = vpop.f32.mrf.mxu0
        %4359 = vmatprep.mubr.bf16.mxu0 0
        %4360 = vmatmul.mubr.bf16.gmra.mxu0 %v4076
        %v4361 = vpop.f32.mrf.mxu0
        %v4362 = vadd.f32 %v3844, %v4361
        %v4363 = vpop.f32.mrf.mxu0
        %v4364 = vpop.f32.mrf.mxu0
        %v4365 = vadd.f32 %v3844, %v4364
        %v4366 = vpop.f32.mrf.mxu0
        %4367 = vmatprep.mubr.bf16.mxu0 0
        %4368 = vmatmul.mubr.bf16.gmra.mxu0 %v4079
        %v4369 = vpop.f32.mrf.mxu0
        %v4370 = vadd.f32 %v3844, %v4369
        %v4371 = vpop.f32.mrf.mxu0
        %v4372 = vpop.f32.mrf.mxu0
        %v4373 = vadd.f32 %v3844, %v4372
        %v4374 = vpop.f32.mrf.mxu0
        %4375 = vmatprep.mubr.bf16.mxu0 0
        %4376 = vmatmul.mubr.bf16.gmra.mxu0 %v4082
        %v4377 = vpop.f32.mrf.mxu0
        %v4378 = vadd.f32 %v3844, %v4377
        %v4379 = vpop.f32.mrf.mxu0
        %v4380 = vpop.f32.mrf.mxu0
        %v4381 = vadd.f32 %v3844, %v4380
        %v4382 = vpop.f32.mrf.mxu0
        %4383 = vmatprep.mubr.bf16.mxu0 0
        %4384 = vmatmul.mubr.bf16.gmra.mxu0 %v4085
        %v4385 = vpop.f32.mrf.mxu0
        %v4386 = vadd.f32 %v3844, %v4385
        %v4387 = vpop.f32.mrf.mxu0
        %v4388 = vpop.f32.mrf.mxu0
        %v4389 = vadd.f32 %v3844, %v4388
        %v4390 = vpop.f32.mrf.mxu0
        %4391 = vmatprep.mubr.bf16.mxu0 0
        %4392 = vmatmul.mubr.bf16.gmra.mxu0 %v4088
        %v4393 = vpop.f32.mrf.mxu0
        %v4394 = vadd.f32 %v3844, %v4393
        %v4395 = vpop.f32.mrf.mxu0
        %v4396 = vpop.f32.mrf.mxu0
        %v4397 = vadd.f32 %v3844, %v4396
        %v4398 = vpop.f32.mrf.mxu0
        %4399 = vmatprep.mubr.bf16.mxu0 0
        %4400 = vmatmul.mubr.bf16.gmra.mxu0 %v4091
        %v4401 = vpop.f32.mrf.mxu0
        %v4402 = vadd.f32 %v3844, %v4401
        %v4403 = vpop.f32.mrf.mxu0
        %v4404 = vpop.f32.mrf.mxu0
        %v4405 = vadd.f32 %v3844, %v4404
        %v4406 = vpop.f32.mrf.mxu0
        %4407 = vmatprep.mubr.bf16.mxu0 0
        %4408 = vmatmul.mubr.bf16.gmra.mxu0 %v4094
        %v4409 = vpop.f32.mrf.mxu0
        %v4410 = vadd.f32 %v3844, %v4409
        %v4411 = vpop.f32.mrf.mxu0
        %v4412 = vpop.f32.mrf.mxu0
        %v4413 = vadd.f32 %v3844, %v4412
        %v4414 = vpop.f32.mrf.mxu0
        %4415 = vmatprep.mubr.bf16.mxu0 0
        %4416 = vmatmul.mubr.bf16.gmra.mxu0 %v4097
        %v4417 = vpop.f32.mrf.mxu0
        %v4418 = vadd.f32 %v3844, %v4417
        %v4419 = vpop.f32.mrf.mxu0
        %v4420 = vpop.f32.mrf.mxu0
        %v4421 = vadd.f32 %v3844, %v4420
        %v4422 = vpop.f32.mrf.mxu0
        %4423 = vmatprep.mubr.bf16.mxu0 0
        %4424 = vmatmul.mubr.bf16.gmra.mxu0 %v4100
        %v4425 = vpop.f32.mrf.mxu0
        %v4426 = vadd.f32 %v3844, %v4425
        %v4427 = vpop.f32.mrf.mxu0
        %v4428 = vpop.f32.mrf.mxu0
        %v4429 = vadd.f32 %v3844, %v4428
        %v4430 = vpop.f32.mrf.mxu0
        %4431 = vmatprep.mubr.bf16.mxu0 0
        %4432 = vmatmul.mubr.bf16.gmra.mxu0 %v4103
        %v4433 = vpop.f32.mrf.mxu0
        %v4434 = vadd.f32 %v3844, %v4433
        %v4435 = vpop.f32.mrf.mxu0
        %v4436 = vpop.f32.mrf.mxu0
        %v4437 = vadd.f32 %v3844, %v4436
        %v4438 = vpop.f32.mrf.mxu0
        %4439 = vmatprep.mubr.bf16.mxu0 0
        %4440 = vmatmul.mubr.bf16.gmra.mxu0 %v4106
        %v4441 = vpop.f32.mrf.mxu0
        %v4442 = vadd.f32 %v3844, %v4441
        %v4443 = vpop.f32.mrf.mxu0
        %v4444 = vpop.f32.mrf.mxu0
        %v4445 = vadd.f32 %v3844, %v4444
        %v4446 = vpop.f32.mrf.mxu0
        %4447 = vmatprep.mubr.bf16.mxu0 0
        %4448 = vmatmul.mubr.bf16.gmra.mxu0 %v4109
        %v4449 = vpop.f32.mrf.mxu0
        %v4450 = vadd.f32 %v3844, %v4449
        %v4451 = vpop.f32.mrf.mxu0
        %v4452 = vpop.f32.mrf.mxu0
        %v4453 = vadd.f32 %v3844, %v4452
        %v4454 = vpop.f32.mrf.mxu0
        %4455 = vmatprep.mubr.bf16.mxu0 0
        %4456 = vmatmul.mubr.bf16.gmra.mxu0 %v4112
        %v4457 = vpop.f32.mrf.mxu0
        %v4458 = vadd.f32 %v3844, %v4457
        %v4459 = vpop.f32.mrf.mxu0
        %v4460 = vpop.f32.mrf.mxu0
        %v4461 = vadd.f32 %v3844, %v4460
        %v4462 = vpop.f32.mrf.mxu0
        %4463 = vmatprep.mubr.bf16.mxu0 0
        %4464 = vmatmul.mubr.bf16.gmra.mxu0 %v4115
        %v4465 = vpop.f32.mrf.mxu0
        %v4466 = vadd.f32 %v3844, %v4465
        %v4467 = vpop.f32.mrf.mxu0
        %v4468 = vpop.f32.mrf.mxu0
        %v4469 = vadd.f32 %v3844, %v4468
        %v4470 = vpop.f32.mrf.mxu0
        %4471 = vmatprep.mubr.bf16.mxu0 0
        %4472 = vmatmul.mubr.bf16.gmra.mxu0 %v4118
        %v4473 = vpop.f32.mrf.mxu0
        %v4474 = vadd.f32 %v3844, %v4473
        %v4475 = vpop.f32.mrf.mxu0
        %v4476 = vpop.f32.mrf.mxu0
        %v4477 = vadd.f32 %v3844, %v4476
        %v4478 = vpop.f32.mrf.mxu0
        %4479 = vmatprep.mubr.bf16.mxu0 0
        %4480 = vmatmul.mubr.bf16.gmra.mxu0 %v4121
        %v4481 = vpop.f32.mrf.mxu0
        %v4482 = vadd.f32 %v3844, %v4481
        %v4483 = vpop.f32.mrf.mxu0
        %v4484 = vpop.f32.mrf.mxu0
        %v4485 = vadd.f32 %v3844, %v4484
        %v4486 = vpop.f32.mrf.mxu0
        %4487 = vmatprep.mubr.bf16.mxu0 0
        %4488 = vmatmul.mubr.bf16.gmra.mxu0 %v4124
        %v4489 = vpop.f32.mrf.mxu0
        %v4490 = vadd.f32 %v3844, %v4489
        %v4491 = vpop.f32.mrf.mxu0
        %v4492 = vpop.f32.mrf.mxu0
        %v4493 = vadd.f32 %v3844, %v4492
        %v4494 = vpop.f32.mrf.mxu0
        %4495 = vmatprep.mubr.bf16.mxu0 0
        %4496 = vmatmul.mubr.bf16.gmra.mxu0 %v4127
        %v4497 = vpop.f32.mrf.mxu0
        %v4498 = vadd.f32 %v3844, %v4497
        %v4499 = vpop.f32.mrf.mxu0
        %v4500 = vpop.f32.mrf.mxu0
        %v4501 = vadd.f32 %v3844, %v4500
        %v4502 = vpop.f32.mrf.mxu0
        %4503 = vmatprep.mubr.bf16.mxu0 0
        %4504 = vmatmul.mubr.bf16.gmra.mxu0 %v4130
        %v4505 = vpop.f32.mrf.mxu0
        %v4506 = vadd.f32 %v3844, %v4505
        %v4507 = vpop.f32.mrf.mxu0
        %v4508 = vpop.f32.mrf.mxu0
        %v4509 = vadd.f32 %v3844, %v4508
        %v4510 = vpop.f32.mrf.mxu0
        %4511 = vmatprep.mubr.bf16.mxu0 0
        %4512 = vmatmul.mubr.bf16.gmra.mxu0 %v4133
        %v4513 = vpop.f32.mrf.mxu0
        %v4514 = vadd.f32 %v3844, %v4513
        %v4515 = vpop.f32.mrf.mxu0
        %v4516 = vpop.f32.mrf.mxu0
        %v4517 = vadd.f32 %v3844, %v4516
        %v4518 = vpop.f32.mrf.mxu0
        %4519 = vmatprep.mubr.bf16.mxu0 0
        %4520 = vmatmul.mubr.bf16.gmra.mxu0 %v4136
        %v4521 = vpop.f32.mrf.mxu0
        %v4522 = vadd.f32 %v3844, %v4521
        %v4523 = vpop.f32.mrf.mxu0
        %v4524 = vpop.f32.mrf.mxu0
        %v4525 = vadd.f32 %v3844, %v4524
        %v4526 = vpop.f32.mrf.mxu0
        %4527 = vmatprep.mubr.bf16.mxu0 0
        %4528 = vmatmul.mubr.bf16.gmra.mxu0 %v4139
        %v4529 = vpop.f32.mrf.mxu0
        %v4530 = vadd.f32 %v3844, %v4529
        %v4531 = vpop.f32.mrf.mxu0
        %v4532 = vpop.f32.mrf.mxu0
        %v4533 = vadd.f32 %v3844, %v4532
        %v4534 = vpop.f32.mrf.mxu0
        %4535 = vmatprep.mubr.bf16.mxu0 0
        %4536 = vmatmul.mubr.bf16.gmra.mxu0 %v4142
        %v4537 = vpop.f32.mrf.mxu0
        %v4538 = vadd.f32 %v3844, %v4537
        %v4539 = vpop.f32.mrf.mxu0
        %v4540 = vpop.f32.mrf.mxu0
        %v4541 = vadd.f32 %v3844, %v4540
        %v4542 = vpop.f32.mrf.mxu0
        %4543 = vmatprep.mubr.bf16.mxu0 0
        %4544 = vmatmul.mubr.bf16.gmra.mxu0 %v4145
        %v4545 = vpop.f32.mrf.mxu0
        %v4546 = vadd.f32 %v3844, %v4545
        %v4547 = vpop.f32.mrf.mxu0
        %v4548 = vpop.f32.mrf.mxu0
        %v4549 = vadd.f32 %v3844, %v4548
        %v4550 = vpop.f32.mrf.mxu0
        %4551 = vmatprep.mubr.bf16.mxu0 0
        %4552 = vmatmul.mubr.bf16.gmra.mxu0 %v4148
        %v4553 = vpop.f32.mrf.mxu0
        %v4554 = vadd.f32 %v3844, %v4553
        %v4555 = vpop.f32.mrf.mxu0
        %v4556 = vpop.f32.mrf.mxu0
        %v4557 = vadd.f32 %v3844, %v4556
        %v4558 = vpop.f32.mrf.mxu0
        %4559 = vmatprep.mubr.bf16.mxu0 0
        %4560 = vmatmul.mubr.bf16.gmra.mxu0 %v4151
        %v4561 = vpop.f32.mrf.mxu0
        %v4562 = vadd.f32 %v3844, %v4561
        %v4563 = vpop.f32.mrf.mxu0
        %v4564 = vpop.f32.mrf.mxu0
        %v4565 = vadd.f32 %v3844, %v4564
        %v4566 = vpop.f32.mrf.mxu0
        %4567 = vmatprep.mubr.bf16.mxu0 0
        %4568 = vmatmul.mubr.bf16.gmra.mxu0 %v4154
        %v4569 = vpop.f32.mrf.mxu0
        %v4570 = vadd.f32 %v3844, %v4569
        %v4571 = vpop.f32.mrf.mxu0
        %v4572 = vpop.f32.mrf.mxu0
        %v4573 = vadd.f32 %v3844, %v4572
        %v4574 = vpop.f32.mrf.mxu0
        %4575 = vmatprep.mubr.bf16.mxu0 0
        %4576 = vmatmul.mubr.bf16.gmra.mxu0 %v4157
        %v4577 = vpop.f32.mrf.mxu0
        %v4578 = vadd.f32 %v3844, %v4577
        %v4579 = vpop.f32.mrf.mxu0
        %v4580 = vpop.f32.mrf.mxu0
        %v4581 = vadd.f32 %v3844, %v4580
        %v4582 = vpop.f32.mrf.mxu0
        %4583 = vmatprep.mubr.bf16.mxu0 0
        %4584 = vmatmul.mubr.bf16.gmra.mxu0 %v4160
        %v4585 = vpop.f32.mrf.mxu0
        %v4586 = vadd.f32 %v3844, %v4585
        %v4587 = vpop.f32.mrf.mxu0
        %v4588 = vpop.f32.mrf.mxu0
        %v4589 = vadd.f32 %v3844, %v4588
        %v4590 = vpop.f32.mrf.mxu0
        %4591 = vmatprep.mubr.bf16.mxu0 0
        %4592 = vmatmul.mubr.bf16.gmra.mxu0 %v4163
        %v4593 = vpop.f32.mrf.mxu0
        %v4594 = vadd.f32 %v3844, %v4593
        %v4595 = vpop.f32.mrf.mxu0
        %v4596 = vpop.f32.mrf.mxu0
        %v4597 = vadd.f32 %v3844, %v4596
        %v4598 = vpop.f32.mrf.mxu0
        %4599 = vmatprep.mubr.bf16.mxu0 0
        %4600 = vmatmul.mubr.bf16.gmra.mxu0 %v4166
        %v4601 = vpop.f32.mrf.mxu0
        %v4602 = vadd.f32 %v3844, %v4601
        %v4603 = vpop.f32.mrf.mxu0
        %v4604 = vpop.f32.mrf.mxu0
        %v4605 = vadd.f32 %v3844, %v4604
        %v4606 = vpop.f32.mrf.mxu0
        %4607 = vmatprep.mubr.bf16.mxu0 0
        %4608 = vmatmul.mubr.bf16.gmra.mxu0 %v4169
        %v4609 = vpop.f32.mrf.mxu0
        %v4610 = vadd.f32 %v3844, %v4609
        %v4611 = vpop.f32.mrf.mxu0
        %v4612 = vpop.f32.mrf.mxu0
        %v4613 = vadd.f32 %v3844, %v4612
        %v4614 = vpop.f32.mrf.mxu0
        %4615 = vmatprep.mubr.bf16.mxu0 0
        %4616 = vmatmul.mubr.bf16.gmra.mxu0 %v4172
        %v4617 = vpop.f32.mrf.mxu0
        %v4618 = vadd.f32 %v3844, %v4617
        %v4619 = vpop.f32.mrf.mxu0
        %v4620 = vpop.f32.mrf.mxu0
        %v4621 = vadd.f32 %v3844, %v4620
        %v4622 = vpop.f32.mrf.mxu0
        %4623 = vmatprep.mubr.bf16.mxu0 0
        %4624 = vmatmul.mubr.bf16.gmra.mxu0 %v4175
        %v4625 = vpop.f32.mrf.mxu0
        %v4626 = vadd.f32 %v3844, %v4625
        %v4627 = vpop.f32.mrf.mxu0
        %v4628 = vpop.f32.mrf.mxu0
        %v4629 = vadd.f32 %v3844, %v4628
        %v4630 = vpop.f32.mrf.mxu0
        %4631 = vmatprep.mubr.bf16.mxu0 0
        %4632 = vmatmul.mubr.bf16.gmra.mxu0 %v4178
        %v4633 = vpop.f32.mrf.mxu0
        %v4634 = vadd.f32 %v3844, %v4633
        %v4635 = vpop.f32.mrf.mxu0
        %v4636 = vpop.f32.mrf.mxu0
        %v4637 = vadd.f32 %v3844, %v4636
        %v4638 = vpop.f32.mrf.mxu0
        %4639 = vmatprep.mubr.bf16.mxu0 0
        %4640 = vmatmul.mubr.bf16.gmra.mxu0 %v4181
        %v4641 = vpop.f32.mrf.mxu0
        %v4642 = vadd.f32 %v3844, %v4641
        %v4643 = vpop.f32.mrf.mxu0
        %v4644 = vpop.f32.mrf.mxu0
        %v4645 = vadd.f32 %v3844, %v4644
        %v4646 = vpop.f32.mrf.mxu0
        %4647 = vmatprep.mubr.bf16.mxu0 0
        %4648 = vmatmul.mubr.bf16.gmra.mxu0 %v4184
        %v4649 = vpop.f32.mrf.mxu0
        %v4650 = vadd.f32 %v3844, %v4649
        %v4651 = vpop.f32.mrf.mxu0
        %v4652 = vpop.f32.mrf.mxu0
        %v4653 = vadd.f32 %v3844, %v4652
        %v4654 = vpop.f32.mrf.mxu0
        %4655 = vmatprep.mubr.bf16.mxu0 0
        %4656 = vmatmul.mubr.bf16.gmra.mxu0 %v4187
        %v4657 = vpop.f32.mrf.mxu0
        %v4658 = vadd.f32 %v3844, %v4657
        %v4659 = vpop.f32.mrf.mxu0
        %v4660 = vpop.f32.mrf.mxu0
        %v4661 = vadd.f32 %v3844, %v4660
        %v4662 = vpop.f32.mrf.mxu0
        %4663 = vmatprep.mubr.bf16.mxu0 0
        %4664 = vmatmul.mubr.bf16.gmra.mxu0 %v4190
        %v4665 = vpop.f32.mrf.mxu0
        %v4666 = vadd.f32 %v3844, %v4665
        %v4667 = vpop.f32.mrf.mxu0
        %v4668 = vpop.f32.mrf.mxu0
        %v4669 = vadd.f32 %v3844, %v4668
        %v4670 = vpop.f32.mrf.mxu0
        %4671 = vmatprep.mubr.bf16.mxu0 0
        %4672 = vmatmul.mubr.bf16.gmra.mxu0 %v4193
        %v4673 = vpop.f32.mrf.mxu0
        %v4674 = vadd.f32 %v3844, %v4673
        %v4675 = vpop.f32.mrf.mxu0
        %v4676 = vpop.f32.mrf.mxu0
        %v4677 = vadd.f32 %v3844, %v4676
        %v4678 = vpop.f32.mrf.mxu0
        %4679 = vmatprep.mubr.bf16.mxu0 0
        %4680 = vmatmul.mubr.bf16.gmra.mxu0 %v4196
        %v4681 = vpop.f32.mrf.mxu0
        %v4682 = vadd.f32 %v3844, %v4681
        %v4683 = vpop.f32.mrf.mxu0
        %v4684 = vpop.f32.mrf.mxu0
        %v4685 = vadd.f32 %v3844, %v4684
        %v4686 = vpop.f32.mrf.mxu0
        %4687 = vmatprep.mubr.bf16.mxu0 0
        %4688 = vmatmul.mubr.bf16.gmra.mxu0 %v4199
        %v4689 = vpop.f32.mrf.mxu0
        %v4690 = vadd.f32 %v3844, %v4689
        %v4691 = vpop.f32.mrf.mxu0
        %v4692 = vpop.f32.mrf.mxu0
        %v4693 = vadd.f32 %v3844, %v4692
        %v4694 = vpop.f32.mrf.mxu0
        %4695 = vmatprep.mubr.bf16.mxu0 0
        %4696 = vmatmul.mubr.bf16.gmra.mxu0 %v4202
        %v4697 = vpop.f32.mrf.mxu0
        %v4698 = vadd.f32 %v3844, %v4697
        %v4699 = vpop.f32.mrf.mxu0
        %v4700 = vpop.f32.mrf.mxu0
        %v4701 = vadd.f32 %v3844, %v4700
        %v4702 = vpop.f32.mrf.mxu0
        %4703 = vmatprep.mubr.bf16.mxu0 0
        %4704 = vmatmul.mubr.bf16.gmra.mxu0 %v4205
        %v4705 = vpop.f32.mrf.mxu0
        %v4706 = vadd.f32 %v3844, %v4705
        %v4707 = vpop.f32.mrf.mxu0
        %v4708 = vpop.f32.mrf.mxu0
        %v4709 = vadd.f32 %v3844, %v4708
        %v4710 = vpop.f32.mrf.mxu0
        %4711 = vmatprep.mubr.bf16.mxu0 0
        %4712 = vmatmul.mubr.bf16.gmra.mxu0 %v4208
        %v4713 = vpop.f32.mrf.mxu0
        %v4714 = vadd.f32 %v3844, %v4713
        %v4715 = vpop.f32.mrf.mxu0
        %v4716 = vpop.f32.mrf.mxu0
        %v4717 = vadd.f32 %v3844, %v4716
        %v4718 = vpop.f32.mrf.mxu0
        %4719 = vmatprep.mubr.bf16.mxu0 0
        %4720 = vmatmul.mubr.bf16.gmra.mxu0 %v4211
        %v4721 = vpop.f32.mrf.mxu0
        %v4722 = vadd.f32 %v3844, %v4721
        %v4723 = vpop.f32.mrf.mxu0
        %v4724 = vpop.f32.mrf.mxu0
        %v4725 = vadd.f32 %v3844, %v4724
        %v4726 = vpop.f32.mrf.mxu0
        %4727 = vmatprep.mubr.bf16.mxu0 0
        %4728 = vmatmul.mubr.bf16.gmra.mxu0 %v4214
        %v4729 = vpop.f32.mrf.mxu0
        %v4730 = vadd.f32 %v3844, %v4729
        %v4731 = vpop.f32.mrf.mxu0
        %v4732 = vpop.f32.mrf.mxu0
        %v4733 = vadd.f32 %v3844, %v4732
        %v4734 = vpop.f32.mrf.mxu0
        %4735 = vmatprep.mubr.bf16.mxu0 0
        %4736 = vmatmul.mubr.bf16.gmra.mxu0 %v4217
        %v4737 = vpop.f32.mrf.mxu0
        %v4738 = vadd.f32 %v3844, %v4737
        %v4739 = vpop.f32.mrf.mxu0
        %v4740 = vpop.f32.mrf.mxu0
        %v4741 = vadd.f32 %v3844, %v4740
        %v4742 = vpop.f32.mrf.mxu0
        %4743 = vmatprep.mubr.bf16.mxu0 0
        %4744 = vmatmul.mubr.bf16.gmra.mxu0 %v4220
        %v4745 = vpop.f32.mrf.mxu0
        %v4746 = vadd.f32 %v3844, %v4745
        %v4747 = vpop.f32.mrf.mxu0
        %v4748 = vpop.f32.mrf.mxu0
        %v4749 = vadd.f32 %v3844, %v4748
        %v4750 = vpop.f32.mrf.mxu0
        %4751 = vmatprep.mubr.bf16.mxu0 0
        %4752 = vmatmul.mubr.bf16.gmra.mxu0 %v4223
        %v4753 = vpop.f32.mrf.mxu0
        %v4754 = vadd.f32 %v3844, %v4753
        %v4755 = vpop.f32.mrf.mxu0
        %v4756 = vpop.f32.mrf.mxu0
        %v4757 = vadd.f32 %v3844, %v4756
        %v4758 = vpop.f32.mrf.mxu0
        %4759 = vmatprep.mubr.bf16.mxu0 0
        %4760 = vmatmul.mubr.bf16.gmra.mxu0 %v4226
        %v4761 = vpop.f32.mrf.mxu0
        %v4762 = vadd.f32 %v3844, %v4761
        %v4763 = vpop.f32.mrf.mxu0
        %v4764 = vpop.f32.mrf.mxu0
        %v4765 = vadd.f32 %v3844, %v4764
        %v4766 = vpop.f32.mrf.mxu0
        %4767 = vmatprep.mubr.bf16.mxu0 0
        %4768 = vmatmul.mubr.bf16.gmra.mxu0 %v4229
        %v4769 = vpop.f32.mrf.mxu0
        %v4770 = vadd.f32 %v3844, %v4769
        %v4771 = vpop.f32.mrf.mxu0
        %v4772 = vpop.f32.mrf.mxu0
        %v4773 = vadd.f32 %v3844, %v4772
        %v4774 = vpop.f32.mrf.mxu0
        %4775 = vdwg.mxu0
        %v4776 = vmax.f32 %v4266, 0.0
        %v4777 = vmax.f32 %v4269, 0.0
        %v4778 = vmax.f32 %v4274, 0.0
        %v4779 = vmax.f32 %v4277, 0.0
        %v4780 = vmax.f32 %v4282, 0.0
        %v4781 = vmax.f32 %v4285, 0.0
        %v4782 = vmax.f32 %v4290, 0.0
        %v4783 = vmax.f32 %v4293, 0.0
        %v4784 = vmax.f32 %v4298, 0.0
        %v4785 = vmax.f32 %v4301, 0.0
        %v4786 = vmax.f32 %v4306, 0.0
        %v4787 = vmax.f32 %v4309, 0.0
        %v4788 = vmax.f32 %v4314, 0.0
        %v4789 = vmax.f32 %v4317, 0.0
        %v4790 = vmax.f32 %v4322, 0.0
        %v4791 = vmax.f32 %v4325, 0.0
        %v4792 = vmax.f32 %v4330, 0.0
        %v4793 = vmax.f32 %v4333, 0.0
        %v4794 = vmax.f32 %v4338, 0.0
        %v4795 = vmax.f32 %v4341, 0.0
        %v4796 = vmax.f32 %v4346, 0.0
        %v4797 = vmax.f32 %v4349, 0.0
        %v4798 = vmax.f32 %v4354, 0.0
        %v4799 = vmax.f32 %v4357, 0.0
        %v4800 = vmax.f32 %v4362, 0.0
        %v4801 = vmax.f32 %v4365, 0.0
        %v4802 = vmax.f32 %v4370, 0.0
        %v4803 = vmax.f32 %v4373, 0.0
        %v4804 = vmax.f32 %v4378, 0.0
        %v4805 = vmax.f32 %v4381, 0.0
        %v4806 = vmax.f32 %v4386, 0.0
        %v4807 = vmax.f32 %v4389, 0.0
        %v4808 = vmax.f32 %v4394, 0.0
        %v4809 = vmax.f32 %v4397, 0.0
        %v4810 = vmax.f32 %v4402, 0.0
        %v4811 = vmax.f32 %v4405, 0.0
        %v4812 = vmax.f32 %v4410, 0.0
        %v4813 = vmax.f32 %v4413, 0.0
        %v4814 = vmax.f32 %v4418, 0.0
        %v4815 = vmax.f32 %v4421, 0.0
        %v4816 = vmax.f32 %v4426, 0.0
        %v4817 = vmax.f32 %v4429, 0.0
        %v4818 = vmax.f32 %v4434, 0.0
        %v4819 = vmax.f32 %v4437, 0.0
        %v4820 = vmax.f32 %v4442, 0.0
        %v4821 = vmax.f32 %v4445, 0.0
        %v4822 = vmax.f32 %v4450, 0.0
        %v4823 = vmax.f32 %v4453, 0.0
        %v4824 = vmax.f32 %v4458, 0.0
        %v4825 = vmax.f32 %v4461, 0.0
        %v4826 = vmax.f32 %v4466, 0.0
        %v4827 = vmax.f32 %v4469, 0.0
        %v4828 = vmax.f32 %v4474, 0.0
        %v4829 = vmax.f32 %v4477, 0.0
        %v4830 = vmax.f32 %v4482, 0.0
        %v4831 = vmax.f32 %v4485, 0.0
        %v4832 = vmax.f32 %v4490, 0.0
        %v4833 = vmax.f32 %v4493, 0.0
        %v4834 = vmax.f32 %v4498, 0.0
        %v4835 = vmax.f32 %v4501, 0.0
        %v4836 = vmax.f32 %v4506, 0.0
        %v4837 = vmax.f32 %v4509, 0.0
        %v4838 = vmax.f32 %v4514, 0.0
        %v4839 = vmax.f32 %v4517, 0.0
        %v4840 = vmax.f32 %v4522, 0.0
        %v4841 = vmax.f32 %v4525, 0.0
        %v4842 = vmax.f32 %v4530, 0.0
        %v4843 = vmax.f32 %v4533, 0.0
        %v4844 = vmax.f32 %v4538, 0.0
        %v4845 = vmax.f32 %v4541, 0.0
        %v4846 = vmax.f32 %v4546, 0.0
        %v4847 = vmax.f32 %v4549, 0.0
        %v4848 = vmax.f32 %v4554, 0.0
        %v4849 = vmax.f32 %v4557, 0.0
        %v4850 = vmax.f32 %v4562, 0.0
        %v4851 = vmax.f32 %v4565, 0.0
        %v4852 = vmax.f32 %v4570, 0.0
        %v4853 = vmax.f32 %v4573, 0.0
        %v4854 = vmax.f32 %v4578, 0.0
        %v4855 = vmax.f32 %v4581, 0.0
        %v4856 = vmax.f32 %v4586, 0.0
        %v4857 = vmax.f32 %v4589, 0.0
        %v4858 = vmax.f32 %v4594, 0.0
        %v4859 = vmax.f32 %v4597, 0.0
        %v4860 = vmax.f32 %v4602, 0.0
        %v4861 = vmax.f32 %v4605, 0.0
        %v4862 = vmax.f32 %v4610, 0.0
        %v4863 = vmax.f32 %v4613, 0.0
        %v4864 = vmax.f32 %v4618, 0.0
        %v4865 = vmax.f32 %v4621, 0.0
        %v4866 = vmax.f32 %v4626, 0.0
        %v4867 = vmax.f32 %v4629, 0.0
        %v4868 = vmax.f32 %v4634, 0.0
        %v4869 = vmax.f32 %v4637, 0.0
        %v4870 = vmax.f32 %v4642, 0.0
        %v4871 = vmax.f32 %v4645, 0.0
        %v4872 = vmax.f32 %v4650, 0.0
        %v4873 = vmax.f32 %v4653, 0.0
        %v4874 = vmax.f32 %v4658, 0.0
        %v4875 = vmax.f32 %v4661, 0.0
        %v4876 = vmax.f32 %v4666, 0.0
        %v4877 = vmax.f32 %v4669, 0.0
        %v4878 = vmax.f32 %v4674, 0.0
        %v4879 = vmax.f32 %v4677, 0.0
        %v4880 = vmax.f32 %v4682, 0.0
        %v4881 = vmax.f32 %v4685, 0.0
        %v4882 = vmax.f32 %v4690, 0.0
        %v4883 = vmax.f32 %v4693, 0.0
        %v4884 = vmax.f32 %v4698, 0.0
        %v4885 = vmax.f32 %v4701, 0.0
        %v4886 = vmax.f32 %v4706, 0.0
        %v4887 = vmax.f32 %v4709, 0.0
        %v4888 = vmax.f32 %v4714, 0.0
        %v4889 = vmax.f32 %v4717, 0.0
        %v4890 = vmax.f32 %v4722, 0.0
        %v4891 = vmax.f32 %v4725, 0.0
        %v4892 = vmax.f32 %v4730, 0.0
        %v4893 = vmax.f32 %v4733, 0.0
        %v4894 = vmax.f32 %v4738, 0.0
        %v4895 = vmax.f32 %v4741, 0.0
        %v4896 = vmax.f32 %v4746, 0.0
        %v4897 = vmax.f32 %v4749, 0.0
        %v4898 = vmax.f32 %v4754, 0.0
        %v4899 = vmax.f32 %v4757, 0.0
        %v4900 = vmax.f32 %v4762, 0.0
        %v4901 = vmax.f32 %v4765, 0.0
        %v4902 = vmax.f32 %v4770, 0.0
        %v4903 = vmax.f32 %v4773, 0.0
        %v4904 = vld [vmem:[%s13] sm:$0xff]
        %v4905 = vld [vmem:[%s13 + $0x8] sm:$0xff]
        %v4906 = vld [vmem:[%s13 + $0x10] sm:$0xff]
        %v4907 = vld [vmem:[%s13 + $0x18] sm:$0xff]
        %v4908 = vld [vmem:[%s13 + $0x20] sm:$0xff]
        %v4909 = vld [vmem:[%s13 + $0x28] sm:$0xff]
        %v4910 = vld [vmem:[%s13 + $0x30] sm:$0xff]
        %v4911 = vld [vmem:[%s13 + $0x38] sm:$0xff]
        %v4912 = vpack.c.bf16 %v4777, %v4776
        %v4913 = vpack.c.bf16 %v4779, %v4778
        %v4914 = vpack.c.bf16 %v4781, %v4780
        %v4915 = vpack.c.bf16 %v4783, %v4782
        %v4916 = vpack.c.bf16 %v4785, %v4784
        %v4917 = vpack.c.bf16 %v4787, %v4786
        %v4918 = vpack.c.bf16 %v4789, %v4788
        %v4919 = vpack.c.bf16 %v4791, %v4790
        %v4920 = vpack.c.bf16 %v4793, %v4792
        %v4921 = vpack.c.bf16 %v4795, %v4794
        %v4922 = vpack.c.bf16 %v4797, %v4796
        %v4923 = vpack.c.bf16 %v4799, %v4798
        %v4924 = vpack.c.bf16 %v4801, %v4800
        %v4925 = vpack.c.bf16 %v4803, %v4802
        %v4926 = vpack.c.bf16 %v4805, %v4804
        %v4927 = vpack.c.bf16 %v4807, %v4806
        %v4928 = vpack.c.bf16 %v4809, %v4808
        %v4929 = vpack.c.bf16 %v4811, %v4810
        %v4930 = vpack.c.bf16 %v4813, %v4812
        %v4931 = vpack.c.bf16 %v4815, %v4814
        %v4932 = vpack.c.bf16 %v4817, %v4816
        %v4933 = vpack.c.bf16 %v4819, %v4818
        %v4934 = vpack.c.bf16 %v4821, %v4820
        %v4935 = vpack.c.bf16 %v4823, %v4822
        %v4936 = vpack.c.bf16 %v4825, %v4824
        %v4937 = vpack.c.bf16 %v4827, %v4826
        %v4938 = vpack.c.bf16 %v4829, %v4828
        %v4939 = vpack.c.bf16 %v4831, %v4830
        %v4940 = vpack.c.bf16 %v4833, %v4832
        %v4941 = vpack.c.bf16 %v4835, %v4834
        %v4942 = vpack.c.bf16 %v4837, %v4836
        %v4943 = vpack.c.bf16 %v4839, %v4838
        %v4944 = vpack.c.bf16 %v4841, %v4840
        %v4945 = vpack.c.bf16 %v4843, %v4842
        %v4946 = vpack.c.bf16 %v4845, %v4844
        %v4947 = vpack.c.bf16 %v4847, %v4846
        %v4948 = vpack.c.bf16 %v4849, %v4848
        %v4949 = vpack.c.bf16 %v4851, %v4850
        %v4950 = vpack.c.bf16 %v4853, %v4852
        %v4951 = vpack.c.bf16 %v4855, %v4854
        %v4952 = vpack.c.bf16 %v4857, %v4856
        %v4953 = vpack.c.bf16 %v4859, %v4858
        %v4954 = vpack.c.bf16 %v4861, %v4860
        %v4955 = vpack.c.bf16 %v4863, %v4862
        %v4956 = vpack.c.bf16 %v4865, %v4864
        %v4957 = vpack.c.bf16 %v4867, %v4866
        %v4958 = vpack.c.bf16 %v4869, %v4868
        %v4959 = vpack.c.bf16 %v4871, %v4870
        %v4960 = vpack.c.bf16 %v4873, %v4872
        %v4961 = vpack.c.bf16 %v4875, %v4874
        %v4962 = vpack.c.bf16 %v4877, %v4876
        %v4963 = vpack.c.bf16 %v4879, %v4878
        %v4964 = vpack.c.bf16 %v4881, %v4880
        %v4965 = vpack.c.bf16 %v4883, %v4882
        %v4966 = vpack.c.bf16 %v4885, %v4884
        %v4967 = vpack.c.bf16 %v4887, %v4886
        %v4968 = vpack.c.bf16 %v4889, %v4888
        %v4969 = vpack.c.bf16 %v4891, %v4890
        %v4970 = vpack.c.bf16 %v4893, %v4892
        %v4971 = vpack.c.bf16 %v4895, %v4894
        %v4972 = vpack.c.bf16 %v4897, %v4896
        %v4973 = vpack.c.bf16 %v4899, %v4898
        %v4974 = vpack.c.bf16 %v4901, %v4900
        %v4975 = vpack.c.bf16 %v4903, %v4902
        %v4976 = vpack.c.bf16 %v4905, %v4904
        %v4977 = vpack.c.bf16 %v4907, %v4906
        %v4978 = vpack.c.bf16 %v4909, %v4908
        %v4979 = vpack.c.bf16 %v4911, %v4910
        %v4980 = vld [vmem:[%s14] sm:$0x1]
        %v4982 = vlaneseq
        %v4983 = vshrl.u32 %v4982, 7
        %v4984 = vsub.s32 0, %v4983
        %v4985 = vrot.slane %v4980, %v4984
        %v4988 = vsel %vm1763, %v4912, 0
        %v4991 = vsel %vm1763, %v4913, 0
        %v4994 = vsel %vm1763, %v4914, 0
        %v4997 = vsel %vm1763, %v4915, 0
        %v5000 = vsel %vm1763, %v4916, 0
        %v5003 = vsel %vm1763, %v4917, 0
        %v5006 = vsel %vm1763, %v4918, 0
        %v5009 = vsel %vm1763, %v4919, 0
        %v5012 = vsel %vm1763, %v4920, 0
        %v5015 = vsel %vm1763, %v4921, 0
        %v5018 = vsel %vm1763, %v4922, 0
        %v5021 = vsel %vm1763, %v4923, 0
        %v5024 = vsel %vm1763, %v4924, 0
        %v5027 = vsel %vm1763, %v4925, 0
        %v5030 = vsel %vm1763, %v4926, 0
        %v5033 = vsel %vm1763, %v4927, 0
        %v5036 = vsel %vm1763, %v4928, 0
        %v5039 = vsel %vm1763, %v4929, 0
        %v5042 = vsel %vm1763, %v4930, 0
        %v5045 = vsel %vm1763, %v4931, 0
        %v5048 = vsel %vm1763, %v4932, 0
        %v5051 = vsel %vm1763, %v4933, 0
        %v5054 = vsel %vm1763, %v4934, 0
        %v5057 = vsel %vm1763, %v4935, 0
        %v5060 = vsel %vm1763, %v4936, 0
        %v5063 = vsel %vm1763, %v4937, 0
        %v5066 = vsel %vm1763, %v4938, 0
        %v5069 = vsel %vm1763, %v4939, 0
        %v5072 = vsel %vm1763, %v4940, 0
        %v5075 = vsel %vm1763, %v4941, 0
        %v5078 = vsel %vm1763, %v4942, 0
        %v5081 = vsel %vm1763, %v4943, 0
        %v5084 = vsel %vm1763, %v4944, 0
        %v5087 = vsel %vm1763, %v4945, 0
        %v5090 = vsel %vm1763, %v4946, 0
        %v5093 = vsel %vm1763, %v4947, 0
        %v5096 = vsel %vm1763, %v4948, 0
        %v5099 = vsel %vm1763, %v4949, 0
        %v5102 = vsel %vm1763, %v4950, 0
        %v5105 = vsel %vm1763, %v4951, 0
        %v5108 = vsel %vm1763, %v4952, 0
        %v5111 = vsel %vm1763, %v4953, 0
        %v5114 = vsel %vm1763, %v4954, 0
        %v5117 = vsel %vm1763, %v4955, 0
        %v5120 = vsel %vm1763, %v4956, 0
        %v5123 = vsel %vm1763, %v4957, 0
        %v5126 = vsel %vm1763, %v4958, 0
        %v5129 = vsel %vm1763, %v4959, 0
        %v5132 = vsel %vm1763, %v4960, 0
        %v5135 = vsel %vm1763, %v4961, 0
        %v5138 = vsel %vm1763, %v4962, 0
        %v5141 = vsel %vm1763, %v4963, 0
        %v5144 = vsel %vm1763, %v4964, 0
        %v5147 = vsel %vm1763, %v4965, 0
        %v5150 = vsel %vm1763, %v4966, 0
        %v5153 = vsel %vm1763, %v4967, 0
        %v5156 = vsel %vm1763, %v4968, 0
        %v5159 = vsel %vm1763, %v4969, 0
        %v5162 = vsel %vm1763, %v4970, 0
        %v5165 = vsel %vm1763, %v4971, 0
        %v5168 = vsel %vm1763, %v4972, 0
        %v5171 = vsel %vm1763, %v4973, 0
        %v5174 = vsel %vm1763, %v4974, 0
        %v5177 = vsel %vm1763, %v4975, 0
        %5179 = vmatprep.subr.bf16.mxu0 0
        %5180 = vmatpush1.bf16.msra.mxu0 0
        %5181 = vmatprep.subr.bf16.mxu0 0
        %5182 = vmatpush1.bf16.msra.mxu0 0
        %5183 = vmatprep.subr.bf16.mxu0 0
        %5184 = vmatpush1.bf16.msra.mxu0 0
        %5185 = vmatprep.subr.bf16.mxu0 0
        %5186 = vmatpush1.bf16.msra.mxu0 0
        %5187 = vmatprep.subr.bf16.mxu0 0
        %5188 = vmatpush1.bf16.msra.mxu0 %v4979
        %5189 = vmatprep.subr.bf16.mxu0 0
        %5190 = vmatpush1.bf16.msra.mxu0 %v4978
        %5191 = vmatprep.subr.bf16.mxu0 0
        %5192 = vmatpush1.bf16.msra.mxu0 %v4977
        %5193 = vmatprep.subr.bf16.mxu0 0
        %5194 = vmatpush1.bf16.msra.mxu0 %v4976
        %5195 = vmatprep.subr.bf16.mxu0 0
        %5196 = vmatpush2.bf16.msra.mxu0 0
        %5197 = vmatprep.subr.bf16.mxu0 0
        %5198 = vmatpush2.bf16.msra.mxu0 0
        %5199 = vmatprep.subr.bf16.mxu0 0
        %5200 = vmatpush2.bf16.msra.mxu0 0
        %5201 = vmatprep.subr.bf16.mxu0 0
        %5202 = vmatpush2.bf16.msra.mxu0 0
        %5203 = vmatprep.subr.bf16.mxu0 0
        %5204 = vmatpush2.bf16.msra.mxu0 0
        %5205 = vmatprep.subr.bf16.mxu0 0
        %5206 = vmatpush2.bf16.msra.mxu0 0
        %5207 = vmatprep.subr.bf16.mxu0 0
        %5208 = vmatpush2.bf16.msra.mxu0 0
        %5209 = vmatprep.subr.bf16.mxu0 0
        %5210 = vmatpush2.bf16.msra.mxu0 0
        %5211 = vmatprep.mubr.bf16.mxu0 0
        %5212 = vmatmul.mubr.bf16.gmra.mxu0 %v4988
        %v5213 = vpop.f32.mrf.mxu0
        %v5214 = vadd.f32 %v4985, %v5213
        %v5215 = vpop.f32.mrf.mxu0
        %v5216 = vpop.f32.mrf.mxu0
        %v5217 = vadd.f32 %v4985, %v5216
        %v5218 = vpop.f32.mrf.mxu0
        %5219 = vmatprep.mubr.bf16.mxu0 0
        %5220 = vmatmul.mubr.bf16.gmra.mxu0 %v4991
        %v5221 = vpop.f32.mrf.mxu0
        %v5222 = vadd.f32 %v4985, %v5221
        %v5223 = vpop.f32.mrf.mxu0
        %v5224 = vpop.f32.mrf.mxu0
        %v5225 = vadd.f32 %v4985, %v5224
        %v5226 = vpop.f32.mrf.mxu0
        %5227 = vmatprep.mubr.bf16.mxu0 0
        %5228 = vmatmul.mubr.bf16.gmra.mxu0 %v4994
        %v5229 = vpop.f32.mrf.mxu0
        %v5230 = vadd.f32 %v4985, %v5229
        %v5231 = vpop.f32.mrf.mxu0
        %v5232 = vpop.f32.mrf.mxu0
        %v5233 = vadd.f32 %v4985, %v5232
        %v5234 = vpop.f32.mrf.mxu0
        %5235 = vmatprep.mubr.bf16.mxu0 0
        %5236 = vmatmul.mubr.bf16.gmra.mxu0 %v4997
        %v5237 = vpop.f32.mrf.mxu0
        %v5238 = vadd.f32 %v4985, %v5237
        %v5239 = vpop.f32.mrf.mxu0
        %v5240 = vpop.f32.mrf.mxu0
        %v5241 = vadd.f32 %v4985, %v5240
        %v5242 = vpop.f32.mrf.mxu0
        %5243 = vmatprep.mubr.bf16.mxu0 0
        %5244 = vmatmul.mubr.bf16.gmra.mxu0 %v5000
        %v5245 = vpop.f32.mrf.mxu0
        %v5246 = vadd.f32 %v4985, %v5245
        %v5247 = vpop.f32.mrf.mxu0
        %v5248 = vpop.f32.mrf.mxu0
        %v5249 = vadd.f32 %v4985, %v5248
        %v5250 = vpop.f32.mrf.mxu0
        %5251 = vmatprep.mubr.bf16.mxu0 0
        %5252 = vmatmul.mubr.bf16.gmra.mxu0 %v5003
        %v5253 = vpop.f32.mrf.mxu0
        %v5254 = vadd.f32 %v4985, %v5253
        %v5255 = vpop.f32.mrf.mxu0
        %v5256 = vpop.f32.mrf.mxu0
        %v5257 = vadd.f32 %v4985, %v5256
        %v5258 = vpop.f32.mrf.mxu0
        %5259 = vmatprep.mubr.bf16.mxu0 0
        %5260 = vmatmul.mubr.bf16.gmra.mxu0 %v5006
        %v5261 = vpop.f32.mrf.mxu0
        %v5262 = vadd.f32 %v4985, %v5261
        %v5263 = vpop.f32.mrf.mxu0
        %v5264 = vpop.f32.mrf.mxu0
        %v5265 = vadd.f32 %v4985, %v5264
        %v5266 = vpop.f32.mrf.mxu0
        %5267 = vmatprep.mubr.bf16.mxu0 0
        %5268 = vmatmul.mubr.bf16.gmra.mxu0 %v5009
        %v5269 = vpop.f32.mrf.mxu0
        %v5270 = vadd.f32 %v4985, %v5269
        %v5271 = vpop.f32.mrf.mxu0
        %v5272 = vpop.f32.mrf.mxu0
        %v5273 = vadd.f32 %v4985, %v5272
        %v5274 = vpop.f32.mrf.mxu0
        %5275 = vmatprep.mubr.bf16.mxu0 0
        %5276 = vmatmul.mubr.bf16.gmra.mxu0 %v5012
        %v5277 = vpop.f32.mrf.mxu0
        %v5278 = vadd.f32 %v4985, %v5277
        %v5279 = vpop.f32.mrf.mxu0
        %v5280 = vpop.f32.mrf.mxu0
        %v5281 = vadd.f32 %v4985, %v5280
        %v5282 = vpop.f32.mrf.mxu0
        %5283 = vmatprep.mubr.bf16.mxu0 0
        %5284 = vmatmul.mubr.bf16.gmra.mxu0 %v5015
        %v5285 = vpop.f32.mrf.mxu0
        %v5286 = vadd.f32 %v4985, %v5285
        %v5287 = vpop.f32.mrf.mxu0
        %v5288 = vpop.f32.mrf.mxu0
        %v5289 = vadd.f32 %v4985, %v5288
        %v5290 = vpop.f32.mrf.mxu0
        %5291 = vmatprep.mubr.bf16.mxu0 0
        %5292 = vmatmul.mubr.bf16.gmra.mxu0 %v5018
        %v5293 = vpop.f32.mrf.mxu0
        %v5294 = vadd.f32 %v4985, %v5293
        %v5295 = vpop.f32.mrf.mxu0
        %v5296 = vpop.f32.mrf.mxu0
        %v5297 = vadd.f32 %v4985, %v5296
        %v5298 = vpop.f32.mrf.mxu0
        %5299 = vmatprep.mubr.bf16.mxu0 0
        %5300 = vmatmul.mubr.bf16.gmra.mxu0 %v5021
        %v5301 = vpop.f32.mrf.mxu0
        %v5302 = vadd.f32 %v4985, %v5301
        %v5303 = vpop.f32.mrf.mxu0
        %v5304 = vpop.f32.mrf.mxu0
        %v5305 = vadd.f32 %v4985, %v5304
        %v5306 = vpop.f32.mrf.mxu0
        %5307 = vmatprep.mubr.bf16.mxu0 0
        %5308 = vmatmul.mubr.bf16.gmra.mxu0 %v5024
        %v5309 = vpop.f32.mrf.mxu0
        %v5310 = vadd.f32 %v4985, %v5309
        %v5311 = vpop.f32.mrf.mxu0
        %v5312 = vpop.f32.mrf.mxu0
        %v5313 = vadd.f32 %v4985, %v5312
        %v5314 = vpop.f32.mrf.mxu0
        %5315 = vmatprep.mubr.bf16.mxu0 0
        %5316 = vmatmul.mubr.bf16.gmra.mxu0 %v5027
        %v5317 = vpop.f32.mrf.mxu0
        %v5318 = vadd.f32 %v4985, %v5317
        %v5319 = vpop.f32.mrf.mxu0
        %v5320 = vpop.f32.mrf.mxu0
        %v5321 = vadd.f32 %v4985, %v5320
        %v5322 = vpop.f32.mrf.mxu0
        %5323 = vmatprep.mubr.bf16.mxu0 0
        %5324 = vmatmul.mubr.bf16.gmra.mxu0 %v5030
        %v5325 = vpop.f32.mrf.mxu0
        %v5326 = vadd.f32 %v4985, %v5325
        %v5327 = vpop.f32.mrf.mxu0
        %v5328 = vpop.f32.mrf.mxu0
        %v5329 = vadd.f32 %v4985, %v5328
        %v5330 = vpop.f32.mrf.mxu0
        %5331 = vmatprep.mubr.bf16.mxu0 0
        %5332 = vmatmul.mubr.bf16.gmra.mxu0 %v5033
        %v5333 = vpop.f32.mrf.mxu0
        %v5334 = vadd.f32 %v4985, %v5333
        %v5335 = vpop.f32.mrf.mxu0
        %v5336 = vpop.f32.mrf.mxu0
        %v5337 = vadd.f32 %v4985, %v5336
        %v5338 = vpop.f32.mrf.mxu0
        %5339 = vmatprep.mubr.bf16.mxu0 0
        %5340 = vmatmul.mubr.bf16.gmra.mxu0 %v5036
        %v5341 = vpop.f32.mrf.mxu0
        %v5342 = vadd.f32 %v4985, %v5341
        %v5343 = vpop.f32.mrf.mxu0
        %v5344 = vpop.f32.mrf.mxu0
        %v5345 = vadd.f32 %v4985, %v5344
        %v5346 = vpop.f32.mrf.mxu0
        %5347 = vmatprep.mubr.bf16.mxu0 0
        %5348 = vmatmul.mubr.bf16.gmra.mxu0 %v5039
        %v5349 = vpop.f32.mrf.mxu0
        %v5350 = vadd.f32 %v4985, %v5349
        %v5351 = vpop.f32.mrf.mxu0
        %v5352 = vpop.f32.mrf.mxu0
        %v5353 = vadd.f32 %v4985, %v5352
        %v5354 = vpop.f32.mrf.mxu0
        %5355 = vmatprep.mubr.bf16.mxu0 0
        %5356 = vmatmul.mubr.bf16.gmra.mxu0 %v5042
        %v5357 = vpop.f32.mrf.mxu0
        %v5358 = vadd.f32 %v4985, %v5357
        %v5359 = vpop.f32.mrf.mxu0
        %v5360 = vpop.f32.mrf.mxu0
        %v5361 = vadd.f32 %v4985, %v5360
        %v5362 = vpop.f32.mrf.mxu0
        %5363 = vmatprep.mubr.bf16.mxu0 0
        %5364 = vmatmul.mubr.bf16.gmra.mxu0 %v5045
        %v5365 = vpop.f32.mrf.mxu0
        %v5366 = vadd.f32 %v4985, %v5365
        %v5367 = vpop.f32.mrf.mxu0
        %v5368 = vpop.f32.mrf.mxu0
        %v5369 = vadd.f32 %v4985, %v5368
        %v5370 = vpop.f32.mrf.mxu0
        %5371 = vmatprep.mubr.bf16.mxu0 0
        %5372 = vmatmul.mubr.bf16.gmra.mxu0 %v5048
        %v5373 = vpop.f32.mrf.mxu0
        %v5374 = vadd.f32 %v4985, %v5373
        %v5375 = vpop.f32.mrf.mxu0
        %v5376 = vpop.f32.mrf.mxu0
        %v5377 = vadd.f32 %v4985, %v5376
        %v5378 = vpop.f32.mrf.mxu0
        %5379 = vmatprep.mubr.bf16.mxu0 0
        %5380 = vmatmul.mubr.bf16.gmra.mxu0 %v5051
        %v5381 = vpop.f32.mrf.mxu0
        %v5382 = vadd.f32 %v4985, %v5381
        %v5383 = vpop.f32.mrf.mxu0
        %v5384 = vpop.f32.mrf.mxu0
        %v5385 = vadd.f32 %v4985, %v5384
        %v5386 = vpop.f32.mrf.mxu0
        %5387 = vmatprep.mubr.bf16.mxu0 0
        %5388 = vmatmul.mubr.bf16.gmra.mxu0 %v5054
        %v5389 = vpop.f32.mrf.mxu0
        %v5390 = vadd.f32 %v4985, %v5389
        %v5391 = vpop.f32.mrf.mxu0
        %v5392 = vpop.f32.mrf.mxu0
        %v5393 = vadd.f32 %v4985, %v5392
        %v5394 = vpop.f32.mrf.mxu0
        %5395 = vmatprep.mubr.bf16.mxu0 0
        %5396 = vmatmul.mubr.bf16.gmra.mxu0 %v5057
        %v5397 = vpop.f32.mrf.mxu0
        %v5398 = vadd.f32 %v4985, %v5397
        %v5399 = vpop.f32.mrf.mxu0
        %v5400 = vpop.f32.mrf.mxu0
        %v5401 = vadd.f32 %v4985, %v5400
        %v5402 = vpop.f32.mrf.mxu0
        %5403 = vmatprep.mubr.bf16.mxu0 0
        %5404 = vmatmul.mubr.bf16.gmra.mxu0 %v5060
        %v5405 = vpop.f32.mrf.mxu0
        %v5406 = vadd.f32 %v4985, %v5405
        %v5407 = vpop.f32.mrf.mxu0
        %v5408 = vpop.f32.mrf.mxu0
        %v5409 = vadd.f32 %v4985, %v5408
        %v5410 = vpop.f32.mrf.mxu0
        %5411 = vmatprep.mubr.bf16.mxu0 0
        %5412 = vmatmul.mubr.bf16.gmra.mxu0 %v5063
        %v5413 = vpop.f32.mrf.mxu0
        %v5414 = vadd.f32 %v4985, %v5413
        %v5415 = vpop.f32.mrf.mxu0
        %v5416 = vpop.f32.mrf.mxu0
        %v5417 = vadd.f32 %v4985, %v5416
        %v5418 = vpop.f32.mrf.mxu0
        %5419 = vmatprep.mubr.bf16.mxu0 0
        %5420 = vmatmul.mubr.bf16.gmra.mxu0 %v5066
        %v5421 = vpop.f32.mrf.mxu0
        %v5422 = vadd.f32 %v4985, %v5421
        %v5423 = vpop.f32.mrf.mxu0
        %v5424 = vpop.f32.mrf.mxu0
        %v5425 = vadd.f32 %v4985, %v5424
        %v5426 = vpop.f32.mrf.mxu0
        %5427 = vmatprep.mubr.bf16.mxu0 0
        %5428 = vmatmul.mubr.bf16.gmra.mxu0 %v5069
        %v5429 = vpop.f32.mrf.mxu0
        %v5430 = vadd.f32 %v4985, %v5429
        %v5431 = vpop.f32.mrf.mxu0
        %v5432 = vpop.f32.mrf.mxu0
        %v5433 = vadd.f32 %v4985, %v5432
        %v5434 = vpop.f32.mrf.mxu0
        %5435 = vmatprep.mubr.bf16.mxu0 0
        %5436 = vmatmul.mubr.bf16.gmra.mxu0 %v5072
        %v5437 = vpop.f32.mrf.mxu0
        %v5438 = vadd.f32 %v4985, %v5437
        %v5439 = vpop.f32.mrf.mxu0
        %v5440 = vpop.f32.mrf.mxu0
        %v5441 = vadd.f32 %v4985, %v5440
        %v5442 = vpop.f32.mrf.mxu0
        %5443 = vmatprep.mubr.bf16.mxu0 0
        %5444 = vmatmul.mubr.bf16.gmra.mxu0 %v5075
        %v5445 = vpop.f32.mrf.mxu0
        %v5446 = vadd.f32 %v4985, %v5445
        %v5447 = vpop.f32.mrf.mxu0
        %v5448 = vpop.f32.mrf.mxu0
        %v5449 = vadd.f32 %v4985, %v5448
        %v5450 = vpop.f32.mrf.mxu0
        %5451 = vmatprep.mubr.bf16.mxu0 0
        %5452 = vmatmul.mubr.bf16.gmra.mxu0 %v5078
        %v5453 = vpop.f32.mrf.mxu0
        %v5454 = vadd.f32 %v4985, %v5453
        %v5455 = vpop.f32.mrf.mxu0
        %v5456 = vpop.f32.mrf.mxu0
        %v5457 = vadd.f32 %v4985, %v5456
        %v5458 = vpop.f32.mrf.mxu0
        %5459 = vmatprep.mubr.bf16.mxu0 0
        %5460 = vmatmul.mubr.bf16.gmra.mxu0 %v5081
        %v5461 = vpop.f32.mrf.mxu0
        %v5462 = vadd.f32 %v4985, %v5461
        %v5463 = vpop.f32.mrf.mxu0
        %v5464 = vpop.f32.mrf.mxu0
        %v5465 = vadd.f32 %v4985, %v5464
        %v5466 = vpop.f32.mrf.mxu0
        %5467 = vmatprep.mubr.bf16.mxu0 0
        %5468 = vmatmul.mubr.bf16.gmra.mxu0 %v5084
        %v5469 = vpop.f32.mrf.mxu0
        %v5470 = vadd.f32 %v4985, %v5469
        %v5471 = vpop.f32.mrf.mxu0
        %v5472 = vpop.f32.mrf.mxu0
        %v5473 = vadd.f32 %v4985, %v5472
        %v5474 = vpop.f32.mrf.mxu0
        %5475 = vmatprep.mubr.bf16.mxu0 0
        %5476 = vmatmul.mubr.bf16.gmra.mxu0 %v5087
        %v5477 = vpop.f32.mrf.mxu0
        %v5478 = vadd.f32 %v4985, %v5477
        %v5479 = vpop.f32.mrf.mxu0
        %v5480 = vpop.f32.mrf.mxu0
        %v5481 = vadd.f32 %v4985, %v5480
        %v5482 = vpop.f32.mrf.mxu0
        %5483 = vmatprep.mubr.bf16.mxu0 0
        %5484 = vmatmul.mubr.bf16.gmra.mxu0 %v5090
        %v5485 = vpop.f32.mrf.mxu0
        %v5486 = vadd.f32 %v4985, %v5485
        %v5487 = vpop.f32.mrf.mxu0
        %v5488 = vpop.f32.mrf.mxu0
        %v5489 = vadd.f32 %v4985, %v5488
        %v5490 = vpop.f32.mrf.mxu0
        %5491 = vmatprep.mubr.bf16.mxu0 0
        %5492 = vmatmul.mubr.bf16.gmra.mxu0 %v5093
        %v5493 = vpop.f32.mrf.mxu0
        %v5494 = vadd.f32 %v4985, %v5493
        %v5495 = vpop.f32.mrf.mxu0
        %v5496 = vpop.f32.mrf.mxu0
        %v5497 = vadd.f32 %v4985, %v5496
        %v5498 = vpop.f32.mrf.mxu0
        %5499 = vmatprep.mubr.bf16.mxu0 0
        %5500 = vmatmul.mubr.bf16.gmra.mxu0 %v5096
        %v5501 = vpop.f32.mrf.mxu0
        %v5502 = vadd.f32 %v4985, %v5501
        %v5503 = vpop.f32.mrf.mxu0
        %v5504 = vpop.f32.mrf.mxu0
        %v5505 = vadd.f32 %v4985, %v5504
        %v5506 = vpop.f32.mrf.mxu0
        %5507 = vmatprep.mubr.bf16.mxu0 0
        %5508 = vmatmul.mubr.bf16.gmra.mxu0 %v5099
        %v5509 = vpop.f32.mrf.mxu0
        %v5510 = vadd.f32 %v4985, %v5509
        %v5511 = vpop.f32.mrf.mxu0
        %v5512 = vpop.f32.mrf.mxu0
        %v5513 = vadd.f32 %v4985, %v5512
        %v5514 = vpop.f32.mrf.mxu0
        %5515 = vmatprep.mubr.bf16.mxu0 0
        %5516 = vmatmul.mubr.bf16.gmra.mxu0 %v5102
        %v5517 = vpop.f32.mrf.mxu0
        %v5518 = vadd.f32 %v4985, %v5517
        %v5519 = vpop.f32.mrf.mxu0
        %v5520 = vpop.f32.mrf.mxu0
        %v5521 = vadd.f32 %v4985, %v5520
        %v5522 = vpop.f32.mrf.mxu0
        %5523 = vmatprep.mubr.bf16.mxu0 0
        %5524 = vmatmul.mubr.bf16.gmra.mxu0 %v5105
        %v5525 = vpop.f32.mrf.mxu0
        %v5526 = vadd.f32 %v4985, %v5525
        %v5527 = vpop.f32.mrf.mxu0
        %v5528 = vpop.f32.mrf.mxu0
        %v5529 = vadd.f32 %v4985, %v5528
        %v5530 = vpop.f32.mrf.mxu0
        %5531 = vmatprep.mubr.bf16.mxu0 0
        %5532 = vmatmul.mubr.bf16.gmra.mxu0 %v5108
        %v5533 = vpop.f32.mrf.mxu0
        %v5534 = vadd.f32 %v4985, %v5533
        %v5535 = vpop.f32.mrf.mxu0
        %v5536 = vpop.f32.mrf.mxu0
        %v5537 = vadd.f32 %v4985, %v5536
        %v5538 = vpop.f32.mrf.mxu0
        %5539 = vmatprep.mubr.bf16.mxu0 0
        %5540 = vmatmul.mubr.bf16.gmra.mxu0 %v5111
        %v5541 = vpop.f32.mrf.mxu0
        %v5542 = vadd.f32 %v4985, %v5541
        %v5543 = vpop.f32.mrf.mxu0
        %v5544 = vpop.f32.mrf.mxu0
        %v5545 = vadd.f32 %v4985, %v5544
        %v5546 = vpop.f32.mrf.mxu0
        %5547 = vmatprep.mubr.bf16.mxu0 0
        %5548 = vmatmul.mubr.bf16.gmra.mxu0 %v5114
        %v5549 = vpop.f32.mrf.mxu0
        %v5550 = vadd.f32 %v4985, %v5549
        %v5551 = vpop.f32.mrf.mxu0
        %v5552 = vpop.f32.mrf.mxu0
        %v5553 = vadd.f32 %v4985, %v5552
        %v5554 = vpop.f32.mrf.mxu0
        %5555 = vmatprep.mubr.bf16.mxu0 0
        %5556 = vmatmul.mubr.bf16.gmra.mxu0 %v5117
        %v5557 = vpop.f32.mrf.mxu0
        %v5558 = vadd.f32 %v4985, %v5557
        %v5559 = vpop.f32.mrf.mxu0
        %v5560 = vpop.f32.mrf.mxu0
        %v5561 = vadd.f32 %v4985, %v5560
        %v5562 = vpop.f32.mrf.mxu0
        %5563 = vmatprep.mubr.bf16.mxu0 0
        %5564 = vmatmul.mubr.bf16.gmra.mxu0 %v5120
        %v5565 = vpop.f32.mrf.mxu0
        %v5566 = vadd.f32 %v4985, %v5565
        %v5567 = vpop.f32.mrf.mxu0
        %v5568 = vpop.f32.mrf.mxu0
        %v5569 = vadd.f32 %v4985, %v5568
        %v5570 = vpop.f32.mrf.mxu0
        %5571 = vmatprep.mubr.bf16.mxu0 0
        %5572 = vmatmul.mubr.bf16.gmra.mxu0 %v5123
        %v5573 = vpop.f32.mrf.mxu0
        %v5574 = vadd.f32 %v4985, %v5573
        %v5575 = vpop.f32.mrf.mxu0
        %v5576 = vpop.f32.mrf.mxu0
        %v5577 = vadd.f32 %v4985, %v5576
        %v5578 = vpop.f32.mrf.mxu0
        %5579 = vmatprep.mubr.bf16.mxu0 0
        %5580 = vmatmul.mubr.bf16.gmra.mxu0 %v5126
        %v5581 = vpop.f32.mrf.mxu0
        %v5582 = vadd.f32 %v4985, %v5581
        %v5583 = vpop.f32.mrf.mxu0
        %v5584 = vpop.f32.mrf.mxu0
        %v5585 = vadd.f32 %v4985, %v5584
        %v5586 = vpop.f32.mrf.mxu0
        %5587 = vmatprep.mubr.bf16.mxu0 0
        %5588 = vmatmul.mubr.bf16.gmra.mxu0 %v5129
        %v5589 = vpop.f32.mrf.mxu0
        %v5590 = vadd.f32 %v4985, %v5589
        %v5591 = vpop.f32.mrf.mxu0
        %v5592 = vpop.f32.mrf.mxu0
        %v5593 = vadd.f32 %v4985, %v5592
        %v5594 = vpop.f32.mrf.mxu0
        %5595 = vmatprep.mubr.bf16.mxu0 0
        %5596 = vmatmul.mubr.bf16.gmra.mxu0 %v5132
        %v5597 = vpop.f32.mrf.mxu0
        %v5598 = vadd.f32 %v4985, %v5597
        %v5599 = vpop.f32.mrf.mxu0
        %v5600 = vpop.f32.mrf.mxu0
        %v5601 = vadd.f32 %v4985, %v5600
        %v5602 = vpop.f32.mrf.mxu0
        %5603 = vmatprep.mubr.bf16.mxu0 0
        %5604 = vmatmul.mubr.bf16.gmra.mxu0 %v5135
        %v5605 = vpop.f32.mrf.mxu0
        %v5606 = vadd.f32 %v4985, %v5605
        %v5607 = vpop.f32.mrf.mxu0
        %v5608 = vpop.f32.mrf.mxu0
        %v5609 = vadd.f32 %v4985, %v5608
        %v5610 = vpop.f32.mrf.mxu0
        %5611 = vmatprep.mubr.bf16.mxu0 0
        %5612 = vmatmul.mubr.bf16.gmra.mxu0 %v5138
        %v5613 = vpop.f32.mrf.mxu0
        %v5614 = vadd.f32 %v4985, %v5613
        %v5615 = vpop.f32.mrf.mxu0
        %v5616 = vpop.f32.mrf.mxu0
        %v5617 = vadd.f32 %v4985, %v5616
        %v5618 = vpop.f32.mrf.mxu0
        %5619 = vmatprep.mubr.bf16.mxu0 0
        %5620 = vmatmul.mubr.bf16.gmra.mxu0 %v5141
        %v5621 = vpop.f32.mrf.mxu0
        %v5622 = vadd.f32 %v4985, %v5621
        %v5623 = vpop.f32.mrf.mxu0
        %v5624 = vpop.f32.mrf.mxu0
        %v5625 = vadd.f32 %v4985, %v5624
        %v5626 = vpop.f32.mrf.mxu0
        %5627 = vmatprep.mubr.bf16.mxu0 0
        %5628 = vmatmul.mubr.bf16.gmra.mxu0 %v5144
        %v5629 = vpop.f32.mrf.mxu0
        %v5630 = vadd.f32 %v4985, %v5629
        %v5631 = vpop.f32.mrf.mxu0
        %v5632 = vpop.f32.mrf.mxu0
        %v5633 = vadd.f32 %v4985, %v5632
        %v5634 = vpop.f32.mrf.mxu0
        %5635 = vmatprep.mubr.bf16.mxu0 0
        %5636 = vmatmul.mubr.bf16.gmra.mxu0 %v5147
        %v5637 = vpop.f32.mrf.mxu0
        %v5638 = vadd.f32 %v4985, %v5637
        %v5639 = vpop.f32.mrf.mxu0
        %v5640 = vpop.f32.mrf.mxu0
        %v5641 = vadd.f32 %v4985, %v5640
        %v5642 = vpop.f32.mrf.mxu0
        %5643 = vmatprep.mubr.bf16.mxu0 0
        %5644 = vmatmul.mubr.bf16.gmra.mxu0 %v5150
        %v5645 = vpop.f32.mrf.mxu0
        %v5646 = vadd.f32 %v4985, %v5645
        %v5647 = vpop.f32.mrf.mxu0
        %v5648 = vpop.f32.mrf.mxu0
        %v5649 = vadd.f32 %v4985, %v5648
        %v5650 = vpop.f32.mrf.mxu0
        %5651 = vmatprep.mubr.bf16.mxu0 0
        %5652 = vmatmul.mubr.bf16.gmra.mxu0 %v5153
        %v5653 = vpop.f32.mrf.mxu0
        %v5654 = vadd.f32 %v4985, %v5653
        %v5655 = vpop.f32.mrf.mxu0
        %v5656 = vpop.f32.mrf.mxu0
        %v5657 = vadd.f32 %v4985, %v5656
        %v5658 = vpop.f32.mrf.mxu0
        %5659 = vmatprep.mubr.bf16.mxu0 0
        %5660 = vmatmul.mubr.bf16.gmra.mxu0 %v5156
        %v5661 = vpop.f32.mrf.mxu0
        %v5662 = vadd.f32 %v4985, %v5661
        %v5663 = vpop.f32.mrf.mxu0
        %v5664 = vpop.f32.mrf.mxu0
        %v5665 = vadd.f32 %v4985, %v5664
        %v5666 = vpop.f32.mrf.mxu0
        %5667 = vmatprep.mubr.bf16.mxu0 0
        %5668 = vmatmul.mubr.bf16.gmra.mxu0 %v5159
        %v5669 = vpop.f32.mrf.mxu0
        %v5670 = vadd.f32 %v4985, %v5669
        %v5671 = vpop.f32.mrf.mxu0
        %v5672 = vpop.f32.mrf.mxu0
        %v5673 = vadd.f32 %v4985, %v5672
        %v5674 = vpop.f32.mrf.mxu0
        %5675 = vmatprep.mubr.bf16.mxu0 0
        %5676 = vmatmul.mubr.bf16.gmra.mxu0 %v5162
        %v5677 = vpop.f32.mrf.mxu0
        %v5678 = vadd.f32 %v4985, %v5677
        %v5679 = vpop.f32.mrf.mxu0
        %v5680 = vpop.f32.mrf.mxu0
        %v5681 = vadd.f32 %v4985, %v5680
        %v5682 = vpop.f32.mrf.mxu0
        %5683 = vmatprep.mubr.bf16.mxu0 0
        %5684 = vmatmul.mubr.bf16.gmra.mxu0 %v5165
        %v5685 = vpop.f32.mrf.mxu0
        %v5686 = vadd.f32 %v4985, %v5685
        %v5687 = vpop.f32.mrf.mxu0
        %v5688 = vpop.f32.mrf.mxu0
        %v5689 = vadd.f32 %v4985, %v5688
        %v5690 = vpop.f32.mrf.mxu0
        %5691 = vmatprep.mubr.bf16.mxu0 0
        %5692 = vmatmul.mubr.bf16.gmra.mxu0 %v5168
        %v5693 = vpop.f32.mrf.mxu0
        %v5694 = vadd.f32 %v4985, %v5693
        %v5695 = vpop.f32.mrf.mxu0
        %v5696 = vpop.f32.mrf.mxu0
        %v5697 = vadd.f32 %v4985, %v5696
        %v5698 = vpop.f32.mrf.mxu0
        %5699 = vmatprep.mubr.bf16.mxu0 0
        %5700 = vmatmul.mubr.bf16.gmra.mxu0 %v5171
        %v5701 = vpop.f32.mrf.mxu0
        %v5702 = vadd.f32 %v4985, %v5701
        %v5703 = vpop.f32.mrf.mxu0
        %v5704 = vpop.f32.mrf.mxu0
        %v5705 = vadd.f32 %v4985, %v5704
        %v5706 = vpop.f32.mrf.mxu0
        %5707 = vmatprep.mubr.bf16.mxu0 0
        %5708 = vmatmul.mubr.bf16.gmra.mxu0 %v5174
        %v5709 = vpop.f32.mrf.mxu0
        %v5710 = vadd.f32 %v4985, %v5709
        %v5711 = vpop.f32.mrf.mxu0
        %v5712 = vpop.f32.mrf.mxu0
        %v5713 = vadd.f32 %v4985, %v5712
        %v5714 = vpop.f32.mrf.mxu0
        %5715 = vmatprep.mubr.bf16.mxu0 0
        %5716 = vmatmul.mubr.bf16.gmra.mxu0 %v5177
        %v5717 = vpop.f32.mrf.mxu0
        %v5718 = vadd.f32 %v4985, %v5717
        %v5719 = vpop.f32.mrf.mxu0
        %v5720 = vpop.f32.mrf.mxu0
        %v5721 = vadd.f32 %v4985, %v5720
        %v5722 = vpop.f32.mrf.mxu0
        %5723 = vdwg.mxu0
        %v5724 = vmax.f32 %v5214, 0.0
        %v5725 = vmax.f32 %v5217, 0.0
        %v5726 = vmax.f32 %v5222, 0.0
        %v5727 = vmax.f32 %v5225, 0.0
        %v5728 = vmax.f32 %v5230, 0.0
        %v5729 = vmax.f32 %v5233, 0.0
        %v5730 = vmax.f32 %v5238, 0.0
        %v5731 = vmax.f32 %v5241, 0.0
        %v5732 = vmax.f32 %v5246, 0.0
        %v5733 = vmax.f32 %v5249, 0.0
        %v5734 = vmax.f32 %v5254, 0.0
        %v5735 = vmax.f32 %v5257, 0.0
        %v5736 = vmax.f32 %v5262, 0.0
        %v5737 = vmax.f32 %v5265, 0.0
        %v5738 = vmax.f32 %v5270, 0.0
        %v5739 = vmax.f32 %v5273, 0.0
        %v5740 = vmax.f32 %v5278, 0.0
        %v5741 = vmax.f32 %v5281, 0.0
        %v5742 = vmax.f32 %v5286, 0.0
        %v5743 = vmax.f32 %v5289, 0.0
        %v5744 = vmax.f32 %v5294, 0.0
        %v5745 = vmax.f32 %v5297, 0.0
        %v5746 = vmax.f32 %v5302, 0.0
        %v5747 = vmax.f32 %v5305, 0.0
        %v5748 = vmax.f32 %v5310, 0.0
        %v5749 = vmax.f32 %v5313, 0.0
        %v5750 = vmax.f32 %v5318, 0.0
        %v5751 = vmax.f32 %v5321, 0.0
        %v5752 = vmax.f32 %v5326, 0.0
        %v5753 = vmax.f32 %v5329, 0.0
        %v5754 = vmax.f32 %v5334, 0.0
        %v5755 = vmax.f32 %v5337, 0.0
        %v5756 = vmax.f32 %v5342, 0.0
        %v5757 = vmax.f32 %v5345, 0.0
        %v5758 = vmax.f32 %v5350, 0.0
        %v5759 = vmax.f32 %v5353, 0.0
        %v5760 = vmax.f32 %v5358, 0.0
        %v5761 = vmax.f32 %v5361, 0.0
        %v5762 = vmax.f32 %v5366, 0.0
        %v5763 = vmax.f32 %v5369, 0.0
        %v5764 = vmax.f32 %v5374, 0.0
        %v5765 = vmax.f32 %v5377, 0.0
        %v5766 = vmax.f32 %v5382, 0.0
        %v5767 = vmax.f32 %v5385, 0.0
        %v5768 = vmax.f32 %v5390, 0.0
        %v5769 = vmax.f32 %v5393, 0.0
        %v5770 = vmax.f32 %v5398, 0.0
        %v5771 = vmax.f32 %v5401, 0.0
        %v5772 = vmax.f32 %v5406, 0.0
        %v5773 = vmax.f32 %v5409, 0.0
        %v5774 = vmax.f32 %v5414, 0.0
        %v5775 = vmax.f32 %v5417, 0.0
        %v5776 = vmax.f32 %v5422, 0.0
        %v5777 = vmax.f32 %v5425, 0.0
        %v5778 = vmax.f32 %v5430, 0.0
        %v5779 = vmax.f32 %v5433, 0.0
        %v5780 = vmax.f32 %v5438, 0.0
        %v5781 = vmax.f32 %v5441, 0.0
        %v5782 = vmax.f32 %v5446, 0.0
        %v5783 = vmax.f32 %v5449, 0.0
        %v5784 = vmax.f32 %v5454, 0.0
        %v5785 = vmax.f32 %v5457, 0.0
        %v5786 = vmax.f32 %v5462, 0.0
        %v5787 = vmax.f32 %v5465, 0.0
        %v5788 = vmax.f32 %v5470, 0.0
        %v5789 = vmax.f32 %v5473, 0.0
        %v5790 = vmax.f32 %v5478, 0.0
        %v5791 = vmax.f32 %v5481, 0.0
        %v5792 = vmax.f32 %v5486, 0.0
        %v5793 = vmax.f32 %v5489, 0.0
        %v5794 = vmax.f32 %v5494, 0.0
        %v5795 = vmax.f32 %v5497, 0.0
        %v5796 = vmax.f32 %v5502, 0.0
        %v5797 = vmax.f32 %v5505, 0.0
        %v5798 = vmax.f32 %v5510, 0.0
        %v5799 = vmax.f32 %v5513, 0.0
        %v5800 = vmax.f32 %v5518, 0.0
        %v5801 = vmax.f32 %v5521, 0.0
        %v5802 = vmax.f32 %v5526, 0.0
        %v5803 = vmax.f32 %v5529, 0.0
        %v5804 = vmax.f32 %v5534, 0.0
        %v5805 = vmax.f32 %v5537, 0.0
        %v5806 = vmax.f32 %v5542, 0.0
        %v5807 = vmax.f32 %v5545, 0.0
        %v5808 = vmax.f32 %v5550, 0.0
        %v5809 = vmax.f32 %v5553, 0.0
        %v5810 = vmax.f32 %v5558, 0.0
        %v5811 = vmax.f32 %v5561, 0.0
        %v5812 = vmax.f32 %v5566, 0.0
        %v5813 = vmax.f32 %v5569, 0.0
        %v5814 = vmax.f32 %v5574, 0.0
        %v5815 = vmax.f32 %v5577, 0.0
        %v5816 = vmax.f32 %v5582, 0.0
        %v5817 = vmax.f32 %v5585, 0.0
        %v5818 = vmax.f32 %v5590, 0.0
        %v5819 = vmax.f32 %v5593, 0.0
        %v5820 = vmax.f32 %v5598, 0.0
        %v5821 = vmax.f32 %v5601, 0.0
        %v5822 = vmax.f32 %v5606, 0.0
        %v5823 = vmax.f32 %v5609, 0.0
        %v5824 = vmax.f32 %v5614, 0.0
        %v5825 = vmax.f32 %v5617, 0.0
        %v5826 = vmax.f32 %v5622, 0.0
        %v5827 = vmax.f32 %v5625, 0.0
        %v5828 = vmax.f32 %v5630, 0.0
        %v5829 = vmax.f32 %v5633, 0.0
        %v5830 = vmax.f32 %v5638, 0.0
        %v5831 = vmax.f32 %v5641, 0.0
        %v5832 = vmax.f32 %v5646, 0.0
        %v5833 = vmax.f32 %v5649, 0.0
        %v5834 = vmax.f32 %v5654, 0.0
        %v5835 = vmax.f32 %v5657, 0.0
        %v5836 = vmax.f32 %v5662, 0.0
        %v5837 = vmax.f32 %v5665, 0.0
        %v5838 = vmax.f32 %v5670, 0.0
        %v5839 = vmax.f32 %v5673, 0.0
        %v5840 = vmax.f32 %v5678, 0.0
        %v5841 = vmax.f32 %v5681, 0.0
        %v5842 = vmax.f32 %v5686, 0.0
        %v5843 = vmax.f32 %v5689, 0.0
        %v5844 = vmax.f32 %v5694, 0.0
        %v5845 = vmax.f32 %v5697, 0.0
        %v5846 = vmax.f32 %v5702, 0.0
        %v5847 = vmax.f32 %v5705, 0.0
        %v5848 = vmax.f32 %v5710, 0.0
        %v5849 = vmax.f32 %v5713, 0.0
        %v5850 = vmax.f32 %v5718, 0.0
        %v5851 = vmax.f32 %v5721, 0.0
        %v5852 = vld [vmem:[%s606] sm:$0xff]
        %v5853 = vld [vmem:[%s606 + $0x8] sm:$0xff]
        %v5854 = vld [vmem:[%s606 + $0x10] sm:$0xff]
        %v5855 = vld [vmem:[%s606 + $0x18] sm:$0xff]
        %v5856 = vld [vmem:[%s606 + $0x20] sm:$0xff]
        %v5857 = vld [vmem:[%s606 + $0x28] sm:$0xff]
        %v5858 = vld [vmem:[%s606 + $0x30] sm:$0xff]
        %v5859 = vld [vmem:[%s606 + $0x38] sm:$0xff]
        %v5860 = vld [vmem:[%s606 + $0x40] sm:$0xff]
        %v5861 = vld [vmem:[%s606 + $0x48] sm:$0xff]
        %v5862 = vld [vmem:[%s606 + $0x50] sm:$0xff]
        %v5863 = vld [vmem:[%s606 + $0x58] sm:$0xff]
        %v5864 = vld [vmem:[%s606 + $0x60] sm:$0xff]
        %v5865 = vld [vmem:[%s606 + $0x68] sm:$0xff]
        %v5866 = vld [vmem:[%s606 + $0x70] sm:$0xff]
        %v5867 = vld [vmem:[%s606 + $0x78] sm:$0xff]
        %v5868 = vld [vmem:[%s606 + $0x80] sm:$0xff]
        %v5869 = vld [vmem:[%s606 + $0x88] sm:$0xff]
        %v5870 = vld [vmem:[%s606 + $0x90] sm:$0xff]
        %v5871 = vld [vmem:[%s606 + $0x98] sm:$0xff]
        %v5872 = vld [vmem:[%s606 + $0xa0] sm:$0xff]
        %v5873 = vld [vmem:[%s606 + $0xa8] sm:$0xff]
        %v5874 = vld [vmem:[%s606 + $0xb0] sm:$0xff]
        %v5875 = vld [vmem:[%s606 + $0xb8] sm:$0xff]
        %v5876 = vld [vmem:[%s606 + $0xc0] sm:$0xff]
        %v5877 = vld [vmem:[%s606 + $0xc8] sm:$0xff]
        %v5878 = vld [vmem:[%s606 + $0xd0] sm:$0xff]
        %v5879 = vld [vmem:[%s606 + $0xd8] sm:$0xff]
        %v5880 = vld [vmem:[%s606 + $0xe0] sm:$0xff]
        %v5881 = vld [vmem:[%s606 + $0xe8] sm:$0xff]
        %v5882 = vld [vmem:[%s606 + $0xf0] sm:$0xff]
        %v5883 = vld [vmem:[%s606 + $0xf8] sm:$0xff]
        %v5884 = vld [vmem:[%s606 + $0x100] sm:$0xff]
        %v5885 = vld [vmem:[%s606 + $0x108] sm:$0xff]
        %v5886 = vld [vmem:[%s606 + $0x110] sm:$0xff]
        %v5887 = vld [vmem:[%s606 + $0x118] sm:$0xff]
        %v5888 = vld [vmem:[%s606 + $0x120] sm:$0xff]
        %v5889 = vld [vmem:[%s606 + $0x128] sm:$0xff]
        %v5890 = vld [vmem:[%s606 + $0x130] sm:$0xff]
        %v5891 = vld [vmem:[%s606 + $0x138] sm:$0xff]
        %v5892 = vld [vmem:[%s606 + $0x140] sm:$0xff]
        %v5893 = vld [vmem:[%s606 + $0x148] sm:$0xff]
        %v5894 = vld [vmem:[%s606 + $0x150] sm:$0xff]
        %v5895 = vld [vmem:[%s606 + $0x158] sm:$0xff]
        %v5896 = vld [vmem:[%s606 + $0x160] sm:$0xff]
        %v5897 = vld [vmem:[%s606 + $0x168] sm:$0xff]
        %v5898 = vld [vmem:[%s606 + $0x170] sm:$0xff]
        %v5899 = vld [vmem:[%s606 + $0x178] sm:$0xff]
        %v5900 = vld [vmem:[%s606 + $0x180] sm:$0xff]
        %v5901 = vld [vmem:[%s606 + $0x188] sm:$0xff]
        %v5902 = vld [vmem:[%s606 + $0x190] sm:$0xff]
        %v5903 = vld [vmem:[%s606 + $0x198] sm:$0xff]
        %v5904 = vld [vmem:[%s606 + $0x1a0] sm:$0xff]
        %v5905 = vld [vmem:[%s606 + $0x1a8] sm:$0xff]
        %v5906 = vld [vmem:[%s606 + $0x1b0] sm:$0xff]
        %v5907 = vld [vmem:[%s606 + $0x1b8] sm:$0xff]
        %v5908 = vld [vmem:[%s606 + $0x1c0] sm:$0xff]
        %v5909 = vld [vmem:[%s606 + $0x1c8] sm:$0xff]
        %v5910 = vld [vmem:[%s606 + $0x1d0] sm:$0xff]
        %v5911 = vld [vmem:[%s606 + $0x1d8] sm:$0xff]
        %v5912 = vld [vmem:[%s606 + $0x1e0] sm:$0xff]
        %v5913 = vld [vmem:[%s606 + $0x1e8] sm:$0xff]
        %v5914 = vld [vmem:[%s606 + $0x1f0] sm:$0xff]
        %v5915 = vld [vmem:[%s606 + $0x1f8] sm:$0xff]
        %v5916 = vld [vmem:[%s606 + $0x200] sm:$0xff]
        %v5917 = vld [vmem:[%s606 + $0x208] sm:$0xff]
        %v5918 = vld [vmem:[%s606 + $0x210] sm:$0xff]
        %v5919 = vld [vmem:[%s606 + $0x218] sm:$0xff]
        %v5920 = vld [vmem:[%s606 + $0x220] sm:$0xff]
        %v5921 = vld [vmem:[%s606 + $0x228] sm:$0xff]
        %v5922 = vld [vmem:[%s606 + $0x230] sm:$0xff]
        %v5923 = vld [vmem:[%s606 + $0x238] sm:$0xff]
        %v5924 = vld [vmem:[%s606 + $0x240] sm:$0xff]
        %v5925 = vld [vmem:[%s606 + $0x248] sm:$0xff]
        %v5926 = vld [vmem:[%s606 + $0x250] sm:$0xff]
        %v5927 = vld [vmem:[%s606 + $0x258] sm:$0xff]
        %v5928 = vld [vmem:[%s606 + $0x260] sm:$0xff]
        %v5929 = vld [vmem:[%s606 + $0x268] sm:$0xff]
        %v5930 = vld [vmem:[%s606 + $0x270] sm:$0xff]
        %v5931 = vld [vmem:[%s606 + $0x278] sm:$0xff]
        %v5932 = vld [vmem:[%s606 + $0x280] sm:$0xff]
        %v5933 = vld [vmem:[%s606 + $0x288] sm:$0xff]
        %v5934 = vld [vmem:[%s606 + $0x290] sm:$0xff]
        %v5935 = vld [vmem:[%s606 + $0x298] sm:$0xff]
        %v5936 = vld [vmem:[%s606 + $0x2a0] sm:$0xff]
        %v5937 = vld [vmem:[%s606 + $0x2a8] sm:$0xff]
        %v5938 = vld [vmem:[%s606 + $0x2b0] sm:$0xff]
        %v5939 = vld [vmem:[%s606 + $0x2b8] sm:$0xff]
        %v5940 = vld [vmem:[%s606 + $0x2c0] sm:$0xff]
        %v5941 = vld [vmem:[%s606 + $0x2c8] sm:$0xff]
        %v5942 = vld [vmem:[%s606 + $0x2d0] sm:$0xff]
        %v5943 = vld [vmem:[%s606 + $0x2d8] sm:$0xff]
        %v5944 = vld [vmem:[%s606 + $0x2e0] sm:$0xff]
        %v5945 = vld [vmem:[%s606 + $0x2e8] sm:$0xff]
        %v5946 = vld [vmem:[%s606 + $0x2f0] sm:$0xff]
        %v5947 = vld [vmem:[%s606 + $0x2f8] sm:$0xff]
        %v5948 = vld [vmem:[%s606 + $0x300] sm:$0xff]
        %v5949 = vld [vmem:[%s606 + $0x308] sm:$0xff]
        %v5950 = vld [vmem:[%s606 + $0x310] sm:$0xff]
        %v5951 = vld [vmem:[%s606 + $0x318] sm:$0xff]
        %v5952 = vld [vmem:[%s606 + $0x320] sm:$0xff]
        %v5953 = vld [vmem:[%s606 + $0x328] sm:$0xff]
        %v5954 = vld [vmem:[%s606 + $0x330] sm:$0xff]
        %v5955 = vld [vmem:[%s606 + $0x338] sm:$0xff]
        %v5956 = vld [vmem:[%s606 + $0x340] sm:$0xff]
        %v5957 = vld [vmem:[%s606 + $0x348] sm:$0xff]
        %v5958 = vld [vmem:[%s606 + $0x350] sm:$0xff]
        %v5959 = vld [vmem:[%s606 + $0x358] sm:$0xff]
        %v5960 = vld [vmem:[%s606 + $0x360] sm:$0xff]
        %v5961 = vld [vmem:[%s606 + $0x368] sm:$0xff]
        %v5962 = vld [vmem:[%s606 + $0x370] sm:$0xff]
        %v5963 = vld [vmem:[%s606 + $0x378] sm:$0xff]
        %v5964 = vld [vmem:[%s606 + $0x380] sm:$0xff]
        %v5965 = vld [vmem:[%s606 + $0x388] sm:$0xff]
        %v5966 = vld [vmem:[%s606 + $0x390] sm:$0xff]
        %v5967 = vld [vmem:[%s606 + $0x398] sm:$0xff]
        %v5968 = vld [vmem:[%s606 + $0x3a0] sm:$0xff]
        %v5969 = vld [vmem:[%s606 + $0x3a8] sm:$0xff]
        %v5970 = vld [vmem:[%s606 + $0x3b0] sm:$0xff]
        %v5971 = vld [vmem:[%s606 + $0x3b8] sm:$0xff]
        %v5972 = vld [vmem:[%s606 + $0x3c0] sm:$0xff]
        %v5973 = vld [vmem:[%s606 + $0x3c8] sm:$0xff]
        %v5974 = vld [vmem:[%s606 + $0x3d0] sm:$0xff]
        %v5975 = vld [vmem:[%s606 + $0x3d8] sm:$0xff]
        %v5976 = vld [vmem:[%s606 + $0x3e0] sm:$0xff]
        %v5977 = vld [vmem:[%s606 + $0x3e8] sm:$0xff]
        %v5978 = vld [vmem:[%s606 + $0x3f0] sm:$0xff]
        %v5979 = vld [vmem:[%s606 + $0x3f8] sm:$0xff]
        %5981 = vset.pattern.permute.xlu0 0
        %5982 = vperm.xlu0 %5981, %v5852
        %v5983 = vpop.permute.xlu0 %5982
        %5986 = vset.pattern.permute.xlu0 0
        %5987 = vperm.xlu0 %5986, %v5853
        %v5988 = vpop.permute.xlu0 %5987
        %5991 = vset.pattern.permute.xlu0 0
        %5992 = vperm.xlu0 %5991, %v5854
        %v5993 = vpop.permute.xlu0 %5992
        %5996 = vset.pattern.permute.xlu0 0
        %5997 = vperm.xlu0 %5996, %v5855
        %v5998 = vpop.permute.xlu0 %5997
        %6001 = vset.pattern.permute.xlu0 0
        %6002 = vperm.xlu0 %6001, %v5856
        %v6003 = vpop.permute.xlu0 %6002
        %6006 = vset.pattern.permute.xlu0 0
        %6007 = vperm.xlu0 %6006, %v5857
        %v6008 = vpop.permute.xlu0 %6007
        %6011 = vset.pattern.permute.xlu0 0
        %6012 = vperm.xlu0 %6011, %v5858
        %v6013 = vpop.permute.xlu0 %6012
        %6016 = vset.pattern.permute.xlu0 0
        %6017 = vperm.xlu0 %6016, %v5859
        %v6018 = vpop.permute.xlu0 %6017
        %6021 = vset.pattern.permute.xlu0 0
        %6022 = vperm.xlu0 %6021, %v5860
        %v6023 = vpop.permute.xlu0 %6022
        %6026 = vset.pattern.permute.xlu0 0
        %6027 = vperm.xlu0 %6026, %v5861
        %v6028 = vpop.permute.xlu0 %6027
        %6031 = vset.pattern.permute.xlu0 0
        %6032 = vperm.xlu0 %6031, %v5862
        %v6033 = vpop.permute.xlu0 %6032
        %6036 = vset.pattern.permute.xlu0 0
        %6037 = vperm.xlu0 %6036, %v5863
        %v6038 = vpop.permute.xlu0 %6037
        %6041 = vset.pattern.permute.xlu0 0
        %6042 = vperm.xlu0 %6041, %v5864
        %v6043 = vpop.permute.xlu0 %6042
        %6046 = vset.pattern.permute.xlu0 0
        %6047 = vperm.xlu0 %6046, %v5865
        %v6048 = vpop.permute.xlu0 %6047
        %6051 = vset.pattern.permute.xlu0 0
        %6052 = vperm.xlu0 %6051, %v5866
        %v6053 = vpop.permute.xlu0 %6052
        %6056 = vset.pattern.permute.xlu0 0
        %6057 = vperm.xlu0 %6056, %v5867
        %v6058 = vpop.permute.xlu0 %6057
        %6061 = vset.pattern.permute.xlu0 0
        %6062 = vperm.xlu0 %6061, %v5868
        %v6063 = vpop.permute.xlu0 %6062
        %6066 = vset.pattern.permute.xlu0 0
        %6067 = vperm.xlu0 %6066, %v5869
        %v6068 = vpop.permute.xlu0 %6067
        %6071 = vset.pattern.permute.xlu0 0
        %6072 = vperm.xlu0 %6071, %v5870
        %v6073 = vpop.permute.xlu0 %6072
        %6076 = vset.pattern.permute.xlu0 0
        %6077 = vperm.xlu0 %6076, %v5871
        %v6078 = vpop.permute.xlu0 %6077
        %6081 = vset.pattern.permute.xlu0 0
        %6082 = vperm.xlu0 %6081, %v5872
        %v6083 = vpop.permute.xlu0 %6082
        %6086 = vset.pattern.permute.xlu0 0
        %6087 = vperm.xlu0 %6086, %v5873
        %v6088 = vpop.permute.xlu0 %6087
        %6091 = vset.pattern.permute.xlu0 0
        %6092 = vperm.xlu0 %6091, %v5874
        %v6093 = vpop.permute.xlu0 %6092
        %6096 = vset.pattern.permute.xlu0 0
        %6097 = vperm.xlu0 %6096, %v5875
        %v6098 = vpop.permute.xlu0 %6097
        %6101 = vset.pattern.permute.xlu0 0
        %6102 = vperm.xlu0 %6101, %v5876
        %v6103 = vpop.permute.xlu0 %6102
        %6106 = vset.pattern.permute.xlu0 0
        %6107 = vperm.xlu0 %6106, %v5877
        %v6108 = vpop.permute.xlu0 %6107
        %6111 = vset.pattern.permute.xlu0 0
        %6112 = vperm.xlu0 %6111, %v5878
        %v6113 = vpop.permute.xlu0 %6112
        %6116 = vset.pattern.permute.xlu0 0
        %6117 = vperm.xlu0 %6116, %v5879
        %v6118 = vpop.permute.xlu0 %6117
        %6121 = vset.pattern.permute.xlu0 0
        %6122 = vperm.xlu0 %6121, %v5880
        %v6123 = vpop.permute.xlu0 %6122
        %6126 = vset.pattern.permute.xlu0 0
        %6127 = vperm.xlu0 %6126, %v5881
        %v6128 = vpop.permute.xlu0 %6127
        %6131 = vset.pattern.permute.xlu0 0
        %6132 = vperm.xlu0 %6131, %v5882
        %v6133 = vpop.permute.xlu0 %6132
        %6136 = vset.pattern.permute.xlu0 0
        %6137 = vperm.xlu0 %6136, %v5883
        %v6138 = vpop.permute.xlu0 %6137
        %6141 = vset.pattern.permute.xlu0 0
        %6142 = vperm.xlu0 %6141, %v5884
        %v6143 = vpop.permute.xlu0 %6142
        %6146 = vset.pattern.permute.xlu0 0
        %6147 = vperm.xlu0 %6146, %v5885
        %v6148 = vpop.permute.xlu0 %6147
        %6151 = vset.pattern.permute.xlu0 0
        %6152 = vperm.xlu0 %6151, %v5886
        %v6153 = vpop.permute.xlu0 %6152
        %6156 = vset.pattern.permute.xlu0 0
        %6157 = vperm.xlu0 %6156, %v5887
        %v6158 = vpop.permute.xlu0 %6157
        %6161 = vset.pattern.permute.xlu0 0
        %6162 = vperm.xlu0 %6161, %v5888
        %v6163 = vpop.permute.xlu0 %6162
        %6166 = vset.pattern.permute.xlu0 0
        %6167 = vperm.xlu0 %6166, %v5889
        %v6168 = vpop.permute.xlu0 %6167
        %6171 = vset.pattern.permute.xlu0 0
        %6172 = vperm.xlu0 %6171, %v5890
        %v6173 = vpop.permute.xlu0 %6172
        %6176 = vset.pattern.permute.xlu0 0
        %6177 = vperm.xlu0 %6176, %v5891
        %v6178 = vpop.permute.xlu0 %6177
        %6181 = vset.pattern.permute.xlu0 0
        %6182 = vperm.xlu0 %6181, %v5892
        %v6183 = vpop.permute.xlu0 %6182
        %6186 = vset.pattern.permute.xlu0 0
        %6187 = vperm.xlu0 %6186, %v5893
        %v6188 = vpop.permute.xlu0 %6187
        %6191 = vset.pattern.permute.xlu0 0
        %6192 = vperm.xlu0 %6191, %v5894
        %v6193 = vpop.permute.xlu0 %6192
        %6196 = vset.pattern.permute.xlu0 0
        %6197 = vperm.xlu0 %6196, %v5895
        %v6198 = vpop.permute.xlu0 %6197
        %6201 = vset.pattern.permute.xlu0 0
        %6202 = vperm.xlu0 %6201, %v5896
        %v6203 = vpop.permute.xlu0 %6202
        %6206 = vset.pattern.permute.xlu0 0
        %6207 = vperm.xlu0 %6206, %v5897
        %v6208 = vpop.permute.xlu0 %6207
        %6211 = vset.pattern.permute.xlu0 0
        %6212 = vperm.xlu0 %6211, %v5898
        %v6213 = vpop.permute.xlu0 %6212
        %6216 = vset.pattern.permute.xlu0 0
        %6217 = vperm.xlu0 %6216, %v5899
        %v6218 = vpop.permute.xlu0 %6217
        %6221 = vset.pattern.permute.xlu0 0
        %6222 = vperm.xlu0 %6221, %v5900
        %v6223 = vpop.permute.xlu0 %6222
        %6226 = vset.pattern.permute.xlu0 0
        %6227 = vperm.xlu0 %6226, %v5901
        %v6228 = vpop.permute.xlu0 %6227
        %6231 = vset.pattern.permute.xlu0 0
        %6232 = vperm.xlu0 %6231, %v5902
        %v6233 = vpop.permute.xlu0 %6232
        %6236 = vset.pattern.permute.xlu0 0
        %6237 = vperm.xlu0 %6236, %v5903
        %v6238 = vpop.permute.xlu0 %6237
        %6241 = vset.pattern.permute.xlu0 0
        %6242 = vperm.xlu0 %6241, %v5904
        %v6243 = vpop.permute.xlu0 %6242
        %6246 = vset.pattern.permute.xlu0 0
        %6247 = vperm.xlu0 %6246, %v5905
        %v6248 = vpop.permute.xlu0 %6247
        %6251 = vset.pattern.permute.xlu0 0
        %6252 = vperm.xlu0 %6251, %v5906
        %v6253 = vpop.permute.xlu0 %6252
        %6256 = vset.pattern.permute.xlu0 0
        %6257 = vperm.xlu0 %6256, %v5907
        %v6258 = vpop.permute.xlu0 %6257
        %6261 = vset.pattern.permute.xlu0 0
        %6262 = vperm.xlu0 %6261, %v5908
        %v6263 = vpop.permute.xlu0 %6262
        %6266 = vset.pattern.permute.xlu0 0
        %6267 = vperm.xlu0 %6266, %v5909
        %v6268 = vpop.permute.xlu0 %6267
        %6271 = vset.pattern.permute.xlu0 0
        %6272 = vperm.xlu0 %6271, %v5910
        %v6273 = vpop.permute.xlu0 %6272
        %6276 = vset.pattern.permute.xlu0 0
        %6277 = vperm.xlu0 %6276, %v5911
        %v6278 = vpop.permute.xlu0 %6277
        %6281 = vset.pattern.permute.xlu0 0
        %6282 = vperm.xlu0 %6281, %v5912
        %v6283 = vpop.permute.xlu0 %6282
        %6286 = vset.pattern.permute.xlu0 0
        %6287 = vperm.xlu0 %6286, %v5913
        %v6288 = vpop.permute.xlu0 %6287
        %6291 = vset.pattern.permute.xlu0 0
        %6292 = vperm.xlu0 %6291, %v5914
        %v6293 = vpop.permute.xlu0 %6292
        %6296 = vset.pattern.permute.xlu0 0
        %6297 = vperm.xlu0 %6296, %v5915
        %v6298 = vpop.permute.xlu0 %6297
        %6301 = vset.pattern.permute.xlu0 0
        %6302 = vperm.xlu0 %6301, %v5916
        %v6303 = vpop.permute.xlu0 %6302
        %6306 = vset.pattern.permute.xlu0 0
        %6307 = vperm.xlu0 %6306, %v5917
        %v6308 = vpop.permute.xlu0 %6307
        %6311 = vset.pattern.permute.xlu0 0
        %6312 = vperm.xlu0 %6311, %v5918
        %v6313 = vpop.permute.xlu0 %6312
        %6316 = vset.pattern.permute.xlu0 0
        %6317 = vperm.xlu0 %6316, %v5919
        %v6318 = vpop.permute.xlu0 %6317
        %6321 = vset.pattern.permute.xlu0 0
        %6322 = vperm.xlu0 %6321, %v5920
        %v6323 = vpop.permute.xlu0 %6322
        %6326 = vset.pattern.permute.xlu0 0
        %6327 = vperm.xlu0 %6326, %v5921
        %v6328 = vpop.permute.xlu0 %6327
        %6331 = vset.pattern.permute.xlu0 0
        %6332 = vperm.xlu0 %6331, %v5922
        %v6333 = vpop.permute.xlu0 %6332
        %6336 = vset.pattern.permute.xlu0 0
        %6337 = vperm.xlu0 %6336, %v5923
        %v6338 = vpop.permute.xlu0 %6337
        %6341 = vset.pattern.permute.xlu0 0
        %6342 = vperm.xlu0 %6341, %v5924
        %v6343 = vpop.permute.xlu0 %6342
        %6346 = vset.pattern.permute.xlu0 0
        %6347 = vperm.xlu0 %6346, %v5925
        %v6348 = vpop.permute.xlu0 %6347
        %6351 = vset.pattern.permute.xlu0 0
        %6352 = vperm.xlu0 %6351, %v5926
        %v6353 = vpop.permute.xlu0 %6352
        %6356 = vset.pattern.permute.xlu0 0
        %6357 = vperm.xlu0 %6356, %v5927
        %v6358 = vpop.permute.xlu0 %6357
        %6361 = vset.pattern.permute.xlu0 0
        %6362 = vperm.xlu0 %6361, %v5928
        %v6363 = vpop.permute.xlu0 %6362
        %6366 = vset.pattern.permute.xlu0 0
        %6367 = vperm.xlu0 %6366, %v5929
        %v6368 = vpop.permute.xlu0 %6367
        %6371 = vset.pattern.permute.xlu0 0
        %6372 = vperm.xlu0 %6371, %v5930
        %v6373 = vpop.permute.xlu0 %6372
        %6376 = vset.pattern.permute.xlu0 0
        %6377 = vperm.xlu0 %6376, %v5931
        %v6378 = vpop.permute.xlu0 %6377
        %6381 = vset.pattern.permute.xlu0 0
        %6382 = vperm.xlu0 %6381, %v5932
        %v6383 = vpop.permute.xlu0 %6382
        %6386 = vset.pattern.permute.xlu0 0
        %6387 = vperm.xlu0 %6386, %v5933
        %v6388 = vpop.permute.xlu0 %6387
        %6391 = vset.pattern.permute.xlu0 0
        %6392 = vperm.xlu0 %6391, %v5934
        %v6393 = vpop.permute.xlu0 %6392
        %6396 = vset.pattern.permute.xlu0 0
        %6397 = vperm.xlu0 %6396, %v5935
        %v6398 = vpop.permute.xlu0 %6397
        %6401 = vset.pattern.permute.xlu0 0
        %6402 = vperm.xlu0 %6401, %v5936
        %v6403 = vpop.permute.xlu0 %6402
        %6406 = vset.pattern.permute.xlu0 0
        %6407 = vperm.xlu0 %6406, %v5937
        %v6408 = vpop.permute.xlu0 %6407
        %6411 = vset.pattern.permute.xlu0 0
        %6412 = vperm.xlu0 %6411, %v5938
        %v6413 = vpop.permute.xlu0 %6412
        %6416 = vset.pattern.permute.xlu0 0
        %6417 = vperm.xlu0 %6416, %v5939
        %v6418 = vpop.permute.xlu0 %6417
        %6421 = vset.pattern.permute.xlu0 0
        %6422 = vperm.xlu0 %6421, %v5940
        %v6423 = vpop.permute.xlu0 %6422
        %6426 = vset.pattern.permute.xlu0 0
        %6427 = vperm.xlu0 %6426, %v5941
        %v6428 = vpop.permute.xlu0 %6427
        %6431 = vset.pattern.permute.xlu0 0
        %6432 = vperm.xlu0 %6431, %v5942
        %v6433 = vpop.permute.xlu0 %6432
        %6436 = vset.pattern.permute.xlu0 0
        %6437 = vperm.xlu0 %6436, %v5943
        %v6438 = vpop.permute.xlu0 %6437
        %6441 = vset.pattern.permute.xlu0 0
        %6442 = vperm.xlu0 %6441, %v5944
        %v6443 = vpop.permute.xlu0 %6442
        %6446 = vset.pattern.permute.xlu0 0
        %6447 = vperm.xlu0 %6446, %v5945
        %v6448 = vpop.permute.xlu0 %6447
        %6451 = vset.pattern.permute.xlu0 0
        %6452 = vperm.xlu0 %6451, %v5946
        %v6453 = vpop.permute.xlu0 %6452
        %6456 = vset.pattern.permute.xlu0 0
        %6457 = vperm.xlu0 %6456, %v5947
        %v6458 = vpop.permute.xlu0 %6457
        %6461 = vset.pattern.permute.xlu0 0
        %6462 = vperm.xlu0 %6461, %v5948
        %v6463 = vpop.permute.xlu0 %6462
        %6466 = vset.pattern.permute.xlu0 0
        %6467 = vperm.xlu0 %6466, %v5949
        %v6468 = vpop.permute.xlu0 %6467
        %6471 = vset.pattern.permute.xlu0 0
        %6472 = vperm.xlu0 %6471, %v5950
        %v6473 = vpop.permute.xlu0 %6472
        %6476 = vset.pattern.permute.xlu0 0
        %6477 = vperm.xlu0 %6476, %v5951
        %v6478 = vpop.permute.xlu0 %6477
        %6481 = vset.pattern.permute.xlu0 0
        %6482 = vperm.xlu0 %6481, %v5952
        %v6483 = vpop.permute.xlu0 %6482
        %6486 = vset.pattern.permute.xlu0 0
        %6487 = vperm.xlu0 %6486, %v5953
        %v6488 = vpop.permute.xlu0 %6487
        %6491 = vset.pattern.permute.xlu0 0
        %6492 = vperm.xlu0 %6491, %v5954
        %v6493 = vpop.permute.xlu0 %6492
        %6496 = vset.pattern.permute.xlu0 0
        %6497 = vperm.xlu0 %6496, %v5955
        %v6498 = vpop.permute.xlu0 %6497
        %6501 = vset.pattern.permute.xlu0 0
        %6502 = vperm.xlu0 %6501, %v5956
        %v6503 = vpop.permute.xlu0 %6502
        %6506 = vset.pattern.permute.xlu0 0
        %6507 = vperm.xlu0 %6506, %v5957
        %v6508 = vpop.permute.xlu0 %6507
        %6511 = vset.pattern.permute.xlu0 0
        %6512 = vperm.xlu0 %6511, %v5958
        %v6513 = vpop.permute.xlu0 %6512
        %6516 = vset.pattern.permute.xlu0 0
        %6517 = vperm.xlu0 %6516, %v5959
        %v6518 = vpop.permute.xlu0 %6517
        %6521 = vset.pattern.permute.xlu0 0
        %6522 = vperm.xlu0 %6521, %v5960
        %v6523 = vpop.permute.xlu0 %6522
        %6526 = vset.pattern.permute.xlu0 0
        %6527 = vperm.xlu0 %6526, %v5961
        %v6528 = vpop.permute.xlu0 %6527
        %6531 = vset.pattern.permute.xlu0 0
        %6532 = vperm.xlu0 %6531, %v5962
        %v6533 = vpop.permute.xlu0 %6532
        %6536 = vset.pattern.permute.xlu0 0
        %6537 = vperm.xlu0 %6536, %v5963
        %v6538 = vpop.permute.xlu0 %6537
        %6541 = vset.pattern.permute.xlu0 0
        %6542 = vperm.xlu0 %6541, %v5964
        %v6543 = vpop.permute.xlu0 %6542
        %6546 = vset.pattern.permute.xlu0 0
        %6547 = vperm.xlu0 %6546, %v5965
        %v6548 = vpop.permute.xlu0 %6547
        %6551 = vset.pattern.permute.xlu0 0
        %6552 = vperm.xlu0 %6551, %v5966
        %v6553 = vpop.permute.xlu0 %6552
        %6556 = vset.pattern.permute.xlu0 0
        %6557 = vperm.xlu0 %6556, %v5967
        %v6558 = vpop.permute.xlu0 %6557
        %6561 = vset.pattern.permute.xlu0 0
        %6562 = vperm.xlu0 %6561, %v5968
        %v6563 = vpop.permute.xlu0 %6562
        %6566 = vset.pattern.permute.xlu0 0
        %6567 = vperm.xlu0 %6566, %v5969
        %v6568 = vpop.permute.xlu0 %6567
        %6571 = vset.pattern.permute.xlu0 0
        %6572 = vperm.xlu0 %6571, %v5970
        %v6573 = vpop.permute.xlu0 %6572
        %6576 = vset.pattern.permute.xlu0 0
        %6577 = vperm.xlu0 %6576, %v5971
        %v6578 = vpop.permute.xlu0 %6577
        %6581 = vset.pattern.permute.xlu0 0
        %6582 = vperm.xlu0 %6581, %v5972
        %v6583 = vpop.permute.xlu0 %6582
        %6586 = vset.pattern.permute.xlu0 0
        %6587 = vperm.xlu0 %6586, %v5973
        %v6588 = vpop.permute.xlu0 %6587
        %6591 = vset.pattern.permute.xlu0 0
        %6592 = vperm.xlu0 %6591, %v5974
        %v6593 = vpop.permute.xlu0 %6592
        %6596 = vset.pattern.permute.xlu0 0
        %6597 = vperm.xlu0 %6596, %v5975
        %v6598 = vpop.permute.xlu0 %6597
        %6601 = vset.pattern.permute.xlu0 0
        %6602 = vperm.xlu0 %6601, %v5976
        %v6603 = vpop.permute.xlu0 %6602
        %6606 = vset.pattern.permute.xlu0 0
        %6607 = vperm.xlu0 %6606, %v5977
        %v6608 = vpop.permute.xlu0 %6607
        %6611 = vset.pattern.permute.xlu0 0
        %6612 = vperm.xlu0 %6611, %v5978
        %v6613 = vpop.permute.xlu0 %6612
        %6616 = vset.pattern.permute.xlu0 0
        %6617 = vperm.xlu0 %6616, %v5979
        %v6618 = vpop.permute.xlu0 %6617
        %v6620 = vadd.f32 %v5724, %v5983
        %v6621 = vadd.f32 %v5725, %v5988
        %v6622 = vadd.f32 %v5726, %v5993
        %v6623 = vadd.f32 %v5727, %v5998
        %v6624 = vadd.f32 %v5728, %v6003
        %v6625 = vadd.f32 %v5729, %v6008
        %v6626 = vadd.f32 %v5730, %v6013
        %v6627 = vadd.f32 %v5731, %v6018
        %v6628 = vadd.f32 %v5732, %v6023
        %v6629 = vadd.f32 %v5733, %v6028
        %v6630 = vadd.f32 %v5734, %v6033
        %v6631 = vadd.f32 %v5735, %v6038
        %v6632 = vadd.f32 %v5736, %v6043
        %v6633 = vadd.f32 %v5737, %v6048
        %v6634 = vadd.f32 %v5738, %v6053
        %v6635 = vadd.f32 %v5739, %v6058
        %v6636 = vadd.f32 %v5740, %v6063
        %v6637 = vadd.f32 %v5741, %v6068
        %v6638 = vadd.f32 %v5742, %v6073
        %v6639 = vadd.f32 %v5743, %v6078
        %v6640 = vadd.f32 %v5744, %v6083
        %v6641 = vadd.f32 %v5745, %v6088
        %v6642 = vadd.f32 %v5746, %v6093
        %v6643 = vadd.f32 %v5747, %v6098
        %v6644 = vadd.f32 %v5748, %v6103
        %v6645 = vadd.f32 %v5749, %v6108
        %v6646 = vadd.f32 %v5750, %v6113
        %v6647 = vadd.f32 %v5751, %v6118
        %v6648 = vadd.f32 %v5752, %v6123
        %v6649 = vadd.f32 %v5753, %v6128
        %v6650 = vadd.f32 %v5754, %v6133
        %v6651 = vadd.f32 %v5755, %v6138
        %v6652 = vadd.f32 %v5756, %v6143
        %v6653 = vadd.f32 %v5757, %v6148
        %v6654 = vadd.f32 %v5758, %v6153
        %v6655 = vadd.f32 %v5759, %v6158
        %v6656 = vadd.f32 %v5760, %v6163
        %v6657 = vadd.f32 %v5761, %v6168
        %v6658 = vadd.f32 %v5762, %v6173
        %v6659 = vadd.f32 %v5763, %v6178
        %v6660 = vadd.f32 %v5764, %v6183
        %v6661 = vadd.f32 %v5765, %v6188
        %v6662 = vadd.f32 %v5766, %v6193
        %v6663 = vadd.f32 %v5767, %v6198
        %v6664 = vadd.f32 %v5768, %v6203
        %v6665 = vadd.f32 %v5769, %v6208
        %v6666 = vadd.f32 %v5770, %v6213
        %v6667 = vadd.f32 %v5771, %v6218
        %v6668 = vadd.f32 %v5772, %v6223
        %v6669 = vadd.f32 %v5773, %v6228
        %v6670 = vadd.f32 %v5774, %v6233
        %v6671 = vadd.f32 %v5775, %v6238
        %v6672 = vadd.f32 %v5776, %v6243
        %v6673 = vadd.f32 %v5777, %v6248
        %v6674 = vadd.f32 %v5778, %v6253
        %v6675 = vadd.f32 %v5779, %v6258
        %v6676 = vadd.f32 %v5780, %v6263
        %v6677 = vadd.f32 %v5781, %v6268
        %v6678 = vadd.f32 %v5782, %v6273
        %v6679 = vadd.f32 %v5783, %v6278
        %v6680 = vadd.f32 %v5784, %v6283
        %v6681 = vadd.f32 %v5785, %v6288
        %v6682 = vadd.f32 %v5786, %v6293
        %v6683 = vadd.f32 %v5787, %v6298
        %v6684 = vadd.f32 %v5788, %v6303
        %v6685 = vadd.f32 %v5789, %v6308
        %v6686 = vadd.f32 %v5790, %v6313
        %v6687 = vadd.f32 %v5791, %v6318
        %v6688 = vadd.f32 %v5792, %v6323
        %v6689 = vadd.f32 %v5793, %v6328
        %v6690 = vadd.f32 %v5794, %v6333
        %v6691 = vadd.f32 %v5795, %v6338
        %v6692 = vadd.f32 %v5796, %v6343
        %v6693 = vadd.f32 %v5797, %v6348
        %v6694 = vadd.f32 %v5798, %v6353
        %v6695 = vadd.f32 %v5799, %v6358
        %v6696 = vadd.f32 %v5800, %v6363
        %v6697 = vadd.f32 %v5801, %v6368
        %v6698 = vadd.f32 %v5802, %v6373
        %v6699 = vadd.f32 %v5803, %v6378
        %v6700 = vadd.f32 %v5804, %v6383
        %v6701 = vadd.f32 %v5805, %v6388
        %v6702 = vadd.f32 %v5806, %v6393
        %v6703 = vadd.f32 %v5807, %v6398
        %v6704 = vadd.f32 %v5808, %v6403
        %v6705 = vadd.f32 %v5809, %v6408
        %v6706 = vadd.f32 %v5810, %v6413
        %v6707 = vadd.f32 %v5811, %v6418
        %v6708 = vadd.f32 %v5812, %v6423
        %v6709 = vadd.f32 %v5813, %v6428
        %v6710 = vadd.f32 %v5814, %v6433
        %v6711 = vadd.f32 %v5815, %v6438
        %v6712 = vadd.f32 %v5816, %v6443
        %v6713 = vadd.f32 %v5817, %v6448
        %v6714 = vadd.f32 %v5818, %v6453
        %v6715 = vadd.f32 %v5819, %v6458
        %v6716 = vadd.f32 %v5820, %v6463
        %v6717 = vadd.f32 %v5821, %v6468
        %v6718 = vadd.f32 %v5822, %v6473
        %v6719 = vadd.f32 %v5823, %v6478
        %v6720 = vadd.f32 %v5824, %v6483
        %v6721 = vadd.f32 %v5825, %v6488
        %v6722 = vadd.f32 %v5826, %v6493
        %v6723 = vadd.f32 %v5827, %v6498
        %v6724 = vadd.f32 %v5828, %v6503
        %v6725 = vadd.f32 %v5829, %v6508
        %v6726 = vadd.f32 %v5830, %v6513
        %v6727 = vadd.f32 %v5831, %v6518
        %v6728 = vadd.f32 %v5832, %v6523
        %v6729 = vadd.f32 %v5833, %v6528
        %v6730 = vadd.f32 %v5834, %v6533
        %v6731 = vadd.f32 %v5835, %v6538
        %v6732 = vadd.f32 %v5836, %v6543
        %v6733 = vadd.f32 %v5837, %v6548
        %v6734 = vadd.f32 %v5838, %v6553
        %v6735 = vadd.f32 %v5839, %v6558
        %v6736 = vadd.f32 %v5840, %v6563
        %v6737 = vadd.f32 %v5841, %v6568
        %v6738 = vadd.f32 %v5842, %v6573
        %v6739 = vadd.f32 %v5843, %v6578
        %v6740 = vadd.f32 %v5844, %v6583
        %v6741 = vadd.f32 %v5845, %v6588
        %v6742 = vadd.f32 %v5846, %v6593
        %v6743 = vadd.f32 %v5847, %v6598
        %v6744 = vadd.f32 %v5848, %v6603
        %v6745 = vadd.f32 %v5849, %v6608
        %v6746 = vadd.f32 %v5850, %v6613
        %v6747 = vadd.f32 %v5851, %v6618
        %v6748 = vsel %vm4038, %v6620, -inf
        %v6749 = vsel %vm4038, %v6621, -inf
        %v6750 = vmax.f32 %v6748, %v6749
        %v6751 = vsel %vm4038, %v6622, -inf
        %v6752 = vmax.f32 %v6750, %v6751
        %v6753 = vsel %vm4038, %v6623, -inf
        %v6754 = vmax.f32 %v6752, %v6753
        %v6755 = vrot.slane %v6754, 4
        %v6756 = vmax.f32 %v6754, %v6755
        %v6757 = vrot.slane %v6756, 2
        %v6758 = vmax.f32 %v6756, %v6757
        %v6759 = vrot.slane %v6758, 1
        %v6760 = vmax.f32 %v6758, %v6759
        %v6761 = vsel %vm4038, %v6624, -inf
        %v6762 = vsel %vm4038, %v6625, -inf
        %v6763 = vmax.f32 %v6761, %v6762
        %v6764 = vsel %vm4038, %v6626, -inf
        %v6765 = vmax.f32 %v6763, %v6764
        %v6766 = vsel %vm4038, %v6627, -inf
        %v6767 = vmax.f32 %v6765, %v6766
        %v6768 = vrot.slane %v6767, 4
        %v6769 = vmax.f32 %v6767, %v6768
        %v6770 = vrot.slane %v6769, 2
        %v6771 = vmax.f32 %v6769, %v6770
        %v6772 = vrot.slane %v6771, 1
        %v6773 = vmax.f32 %v6771, %v6772
        %v6774 = vsel %vm4038, %v6628, -inf
        %v6775 = vsel %vm4038, %v6629, -inf
        %v6776 = vmax.f32 %v6774, %v6775
        %v6777 = vsel %vm4038, %v6630, -inf
        %v6778 = vmax.f32 %v6776, %v6777
        %v6779 = vsel %vm4038, %v6631, -inf
        %v6780 = vmax.f32 %v6778, %v6779
        %v6781 = vrot.slane %v6780, 4
        %v6782 = vmax.f32 %v6780, %v6781
        %v6783 = vrot.slane %v6782, 2
        %v6784 = vmax.f32 %v6782, %v6783
        %v6785 = vrot.slane %v6784, 1
        %v6786 = vmax.f32 %v6784, %v6785
        %v6787 = vsel %vm4038, %v6632, -inf
        %v6788 = vsel %vm4038, %v6633, -inf
        %v6789 = vmax.f32 %v6787, %v6788
        %v6790 = vsel %vm4038, %v6634, -inf
        %v6791 = vmax.f32 %v6789, %v6790
        %v6792 = vsel %vm4038, %v6635, -inf
        %v6793 = vmax.f32 %v6791, %v6792
        %v6794 = vrot.slane %v6793, 4
        %v6795 = vmax.f32 %v6793, %v6794
        %v6796 = vrot.slane %v6795, 2
        %v6797 = vmax.f32 %v6795, %v6796
        %v6798 = vrot.slane %v6797, 1
        %v6799 = vmax.f32 %v6797, %v6798
        %v6800 = vsel %vm4038, %v6636, -inf
        %v6801 = vsel %vm4038, %v6637, -inf
        %v6802 = vmax.f32 %v6800, %v6801
        %v6803 = vsel %vm4038, %v6638, -inf
        %v6804 = vmax.f32 %v6802, %v6803
        %v6805 = vsel %vm4038, %v6639, -inf
        %v6806 = vmax.f32 %v6804, %v6805
        %v6807 = vrot.slane %v6806, 4
        %v6808 = vmax.f32 %v6806, %v6807
        %v6809 = vrot.slane %v6808, 2
        %v6810 = vmax.f32 %v6808, %v6809
        %v6811 = vrot.slane %v6810, 1
        %v6812 = vmax.f32 %v6810, %v6811
        %v6813 = vsel %vm4038, %v6640, -inf
        %v6814 = vsel %vm4038, %v6641, -inf
        %v6815 = vmax.f32 %v6813, %v6814
        %v6816 = vsel %vm4038, %v6642, -inf
        %v6817 = vmax.f32 %v6815, %v6816
        %v6818 = vsel %vm4038, %v6643, -inf
        %v6819 = vmax.f32 %v6817, %v6818
        %v6820 = vrot.slane %v6819, 4
        %v6821 = vmax.f32 %v6819, %v6820
        %v6822 = vrot.slane %v6821, 2
        %v6823 = vmax.f32 %v6821, %v6822
        %v6824 = vrot.slane %v6823, 1
        %v6825 = vmax.f32 %v6823, %v6824
        %v6826 = vsel %vm4038, %v6644, -inf
        %v6827 = vsel %vm4038, %v6645, -inf
        %v6828 = vmax.f32 %v6826, %v6827
        %v6829 = vsel %vm4038, %v6646, -inf
        %v6830 = vmax.f32 %v6828, %v6829
        %v6831 = vsel %vm4038, %v6647, -inf
        %v6832 = vmax.f32 %v6830, %v6831
        %v6833 = vrot.slane %v6832, 4
        %v6834 = vmax.f32 %v6832, %v6833
        %v6835 = vrot.slane %v6834, 2
        %v6836 = vmax.f32 %v6834, %v6835
        %v6837 = vrot.slane %v6836, 1
        %v6838 = vmax.f32 %v6836, %v6837
        %v6839 = vsel %vm4038, %v6648, -inf
        %v6840 = vsel %vm4038, %v6649, -inf
        %v6841 = vmax.f32 %v6839, %v6840
        %v6842 = vsel %vm4038, %v6650, -inf
        %v6843 = vmax.f32 %v6841, %v6842
        %v6844 = vsel %vm4038, %v6651, -inf
        %v6845 = vmax.f32 %v6843, %v6844
        %v6846 = vrot.slane %v6845, 4
        %v6847 = vmax.f32 %v6845, %v6846
        %v6848 = vrot.slane %v6847, 2
        %v6849 = vmax.f32 %v6847, %v6848
        %v6850 = vrot.slane %v6849, 1
        %v6851 = vmax.f32 %v6849, %v6850
        %v6852 = vsel %vm4038, %v6652, -inf
        %v6853 = vsel %vm4038, %v6653, -inf
        %v6854 = vmax.f32 %v6852, %v6853
        %v6855 = vsel %vm4038, %v6654, -inf
        %v6856 = vmax.f32 %v6854, %v6855
        %v6857 = vsel %vm4038, %v6655, -inf
        %v6858 = vmax.f32 %v6856, %v6857
        %v6859 = vrot.slane %v6858, 4
        %v6860 = vmax.f32 %v6858, %v6859
        %v6861 = vrot.slane %v6860, 2
        %v6862 = vmax.f32 %v6860, %v6861
        %v6863 = vrot.slane %v6862, 1
        %v6864 = vmax.f32 %v6862, %v6863
        %v6865 = vsel %vm4038, %v6656, -inf
        %v6866 = vsel %vm4038, %v6657, -inf
        %v6867 = vmax.f32 %v6865, %v6866
        %v6868 = vsel %vm4038, %v6658, -inf
        %v6869 = vmax.f32 %v6867, %v6868
        %v6870 = vsel %vm4038, %v6659, -inf
        %v6871 = vmax.f32 %v6869, %v6870
        %v6872 = vrot.slane %v6871, 4
        %v6873 = vmax.f32 %v6871, %v6872
        %v6874 = vrot.slane %v6873, 2
        %v6875 = vmax.f32 %v6873, %v6874
        %v6876 = vrot.slane %v6875, 1
        %v6877 = vmax.f32 %v6875, %v6876
        %v6878 = vsel %vm4038, %v6660, -inf
        %v6879 = vsel %vm4038, %v6661, -inf
        %v6880 = vmax.f32 %v6878, %v6879
        %v6881 = vsel %vm4038, %v6662, -inf
        %v6882 = vmax.f32 %v6880, %v6881
        %v6883 = vsel %vm4038, %v6663, -inf
        %v6884 = vmax.f32 %v6882, %v6883
        %v6885 = vrot.slane %v6884, 4
        %v6886 = vmax.f32 %v6884, %v6885
        %v6887 = vrot.slane %v6886, 2
        %v6888 = vmax.f32 %v6886, %v6887
        %v6889 = vrot.slane %v6888, 1
        %v6890 = vmax.f32 %v6888, %v6889
        %v6891 = vsel %vm4038, %v6664, -inf
        %v6892 = vsel %vm4038, %v6665, -inf
        %v6893 = vmax.f32 %v6891, %v6892
        %v6894 = vsel %vm4038, %v6666, -inf
        %v6895 = vmax.f32 %v6893, %v6894
        %v6896 = vsel %vm4038, %v6667, -inf
        %v6897 = vmax.f32 %v6895, %v6896
        %v6898 = vrot.slane %v6897, 4
        %v6899 = vmax.f32 %v6897, %v6898
        %v6900 = vrot.slane %v6899, 2
        %v6901 = vmax.f32 %v6899, %v6900
        %v6902 = vrot.slane %v6901, 1
        %v6903 = vmax.f32 %v6901, %v6902
        %v6904 = vsel %vm4038, %v6668, -inf
        %v6905 = vsel %vm4038, %v6669, -inf
        %v6906 = vmax.f32 %v6904, %v6905
        %v6907 = vsel %vm4038, %v6670, -inf
        %v6908 = vmax.f32 %v6906, %v6907
        %v6909 = vsel %vm4038, %v6671, -inf
        %v6910 = vmax.f32 %v6908, %v6909
        %v6911 = vrot.slane %v6910, 4
        %v6912 = vmax.f32 %v6910, %v6911
        %v6913 = vrot.slane %v6912, 2
        %v6914 = vmax.f32 %v6912, %v6913
        %v6915 = vrot.slane %v6914, 1
        %v6916 = vmax.f32 %v6914, %v6915
        %v6917 = vsel %vm4038, %v6672, -inf
        %v6918 = vsel %vm4038, %v6673, -inf
        %v6919 = vmax.f32 %v6917, %v6918
        %v6920 = vsel %vm4038, %v6674, -inf
        %v6921 = vmax.f32 %v6919, %v6920
        %v6922 = vsel %vm4038, %v6675, -inf
        %v6923 = vmax.f32 %v6921, %v6922
        %v6924 = vrot.slane %v6923, 4
        %v6925 = vmax.f32 %v6923, %v6924
        %v6926 = vrot.slane %v6925, 2
        %v6927 = vmax.f32 %v6925, %v6926
        %v6928 = vrot.slane %v6927, 1
        %v6929 = vmax.f32 %v6927, %v6928
        %v6930 = vsel %vm4038, %v6676, -inf
        %v6931 = vsel %vm4038, %v6677, -inf
        %v6932 = vmax.f32 %v6930, %v6931
        %v6933 = vsel %vm4038, %v6678, -inf
        %v6934 = vmax.f32 %v6932, %v6933
        %v6935 = vsel %vm4038, %v6679, -inf
        %v6936 = vmax.f32 %v6934, %v6935
        %v6937 = vrot.slane %v6936, 4
        %v6938 = vmax.f32 %v6936, %v6937
        %v6939 = vrot.slane %v6938, 2
        %v6940 = vmax.f32 %v6938, %v6939
        %v6941 = vrot.slane %v6940, 1
        %v6942 = vmax.f32 %v6940, %v6941
        %v6943 = vsel %vm4038, %v6680, -inf
        %v6944 = vsel %vm4038, %v6681, -inf
        %v6945 = vmax.f32 %v6943, %v6944
        %v6946 = vsel %vm4038, %v6682, -inf
        %v6947 = vmax.f32 %v6945, %v6946
        %v6948 = vsel %vm4038, %v6683, -inf
        %v6949 = vmax.f32 %v6947, %v6948
        %v6950 = vrot.slane %v6949, 4
        %v6951 = vmax.f32 %v6949, %v6950
        %v6952 = vrot.slane %v6951, 2
        %v6953 = vmax.f32 %v6951, %v6952
        %v6954 = vrot.slane %v6953, 1
        %v6955 = vmax.f32 %v6953, %v6954
        %v6956 = vsel %vm4038, %v6684, -inf
        %v6957 = vsel %vm4038, %v6685, -inf
        %v6958 = vmax.f32 %v6956, %v6957
        %v6959 = vsel %vm4038, %v6686, -inf
        %v6960 = vmax.f32 %v6958, %v6959
        %v6961 = vsel %vm4038, %v6687, -inf
        %v6962 = vmax.f32 %v6960, %v6961
        %v6963 = vrot.slane %v6962, 4
        %v6964 = vmax.f32 %v6962, %v6963
        %v6965 = vrot.slane %v6964, 2
        %v6966 = vmax.f32 %v6964, %v6965
        %v6967 = vrot.slane %v6966, 1
        %v6968 = vmax.f32 %v6966, %v6967
        %v6969 = vsel %vm4038, %v6688, -inf
        %v6970 = vsel %vm4038, %v6689, -inf
        %v6971 = vmax.f32 %v6969, %v6970
        %v6972 = vsel %vm4038, %v6690, -inf
        %v6973 = vmax.f32 %v6971, %v6972
        %v6974 = vsel %vm4038, %v6691, -inf
        %v6975 = vmax.f32 %v6973, %v6974
        %v6976 = vrot.slane %v6975, 4
        %v6977 = vmax.f32 %v6975, %v6976
        %v6978 = vrot.slane %v6977, 2
        %v6979 = vmax.f32 %v6977, %v6978
        %v6980 = vrot.slane %v6979, 1
        %v6981 = vmax.f32 %v6979, %v6980
        %v6982 = vsel %vm4038, %v6692, -inf
        %v6983 = vsel %vm4038, %v6693, -inf
        %v6984 = vmax.f32 %v6982, %v6983
        %v6985 = vsel %vm4038, %v6694, -inf
        %v6986 = vmax.f32 %v6984, %v6985
        %v6987 = vsel %vm4038, %v6695, -inf
        %v6988 = vmax.f32 %v6986, %v6987
        %v6989 = vrot.slane %v6988, 4
        %v6990 = vmax.f32 %v6988, %v6989
        %v6991 = vrot.slane %v6990, 2
        %v6992 = vmax.f32 %v6990, %v6991
        %v6993 = vrot.slane %v6992, 1
        %v6994 = vmax.f32 %v6992, %v6993
        %v6995 = vsel %vm4038, %v6696, -inf
        %v6996 = vsel %vm4038, %v6697, -inf
        %v6997 = vmax.f32 %v6995, %v6996
        %v6998 = vsel %vm4038, %v6698, -inf
        %v6999 = vmax.f32 %v6997, %v6998
        %v7000 = vsel %vm4038, %v6699, -inf
        %v7001 = vmax.f32 %v6999, %v7000
        %v7002 = vrot.slane %v7001, 4
        %v7003 = vmax.f32 %v7001, %v7002
        %v7004 = vrot.slane %v7003, 2
        %v7005 = vmax.f32 %v7003, %v7004
        %v7006 = vrot.slane %v7005, 1
        %v7007 = vmax.f32 %v7005, %v7006
        %v7008 = vsel %vm4038, %v6700, -inf
        %v7009 = vsel %vm4038, %v6701, -inf
        %v7010 = vmax.f32 %v7008, %v7009
        %v7011 = vsel %vm4038, %v6702, -inf
        %v7012 = vmax.f32 %v7010, %v7011
        %v7013 = vsel %vm4038, %v6703, -inf
        %v7014 = vmax.f32 %v7012, %v7013
        %v7015 = vrot.slane %v7014, 4
        %v7016 = vmax.f32 %v7014, %v7015
        %v7017 = vrot.slane %v7016, 2
        %v7018 = vmax.f32 %v7016, %v7017
        %v7019 = vrot.slane %v7018, 1
        %v7020 = vmax.f32 %v7018, %v7019
        %v7021 = vsel %vm4038, %v6704, -inf
        %v7022 = vsel %vm4038, %v6705, -inf
        %v7023 = vmax.f32 %v7021, %v7022
        %v7024 = vsel %vm4038, %v6706, -inf
        %v7025 = vmax.f32 %v7023, %v7024
        %v7026 = vsel %vm4038, %v6707, -inf
        %v7027 = vmax.f32 %v7025, %v7026
        %v7028 = vrot.slane %v7027, 4
        %v7029 = vmax.f32 %v7027, %v7028
        %v7030 = vrot.slane %v7029, 2
        %v7031 = vmax.f32 %v7029, %v7030
        %v7032 = vrot.slane %v7031, 1
        %v7033 = vmax.f32 %v7031, %v7032
        %v7034 = vsel %vm4038, %v6708, -inf
        %v7035 = vsel %vm4038, %v6709, -inf
        %v7036 = vmax.f32 %v7034, %v7035
        %v7037 = vsel %vm4038, %v6710, -inf
        %v7038 = vmax.f32 %v7036, %v7037
        %v7039 = vsel %vm4038, %v6711, -inf
        %v7040 = vmax.f32 %v7038, %v7039
        %v7041 = vrot.slane %v7040, 4
        %v7042 = vmax.f32 %v7040, %v7041
        %v7043 = vrot.slane %v7042, 2
        %v7044 = vmax.f32 %v7042, %v7043
        %v7045 = vrot.slane %v7044, 1
        %v7046 = vmax.f32 %v7044, %v7045
        %v7047 = vsel %vm4038, %v6712, -inf
        %v7048 = vsel %vm4038, %v6713, -inf
        %v7049 = vmax.f32 %v7047, %v7048
        %v7050 = vsel %vm4038, %v6714, -inf
        %v7051 = vmax.f32 %v7049, %v7050
        %v7052 = vsel %vm4038, %v6715, -inf
        %v7053 = vmax.f32 %v7051, %v7052
        %v7054 = vrot.slane %v7053, 4
        %v7055 = vmax.f32 %v7053, %v7054
        %v7056 = vrot.slane %v7055, 2
        %v7057 = vmax.f32 %v7055, %v7056
        %v7058 = vrot.slane %v7057, 1
        %v7059 = vmax.f32 %v7057, %v7058
        %v7060 = vsel %vm4038, %v6716, -inf
        %v7061 = vsel %vm4038, %v6717, -inf
        %v7062 = vmax.f32 %v7060, %v7061
        %v7063 = vsel %vm4038, %v6718, -inf
        %v7064 = vmax.f32 %v7062, %v7063
        %v7065 = vsel %vm4038, %v6719, -inf
        %v7066 = vmax.f32 %v7064, %v7065
        %v7067 = vrot.slane %v7066, 4
        %v7068 = vmax.f32 %v7066, %v7067
        %v7069 = vrot.slane %v7068, 2
        %v7070 = vmax.f32 %v7068, %v7069
        %v7071 = vrot.slane %v7070, 1
        %v7072 = vmax.f32 %v7070, %v7071
        %v7073 = vsel %vm4038, %v6720, -inf
        %v7074 = vsel %vm4038, %v6721, -inf
        %v7075 = vmax.f32 %v7073, %v7074
        %v7076 = vsel %vm4038, %v6722, -inf
        %v7077 = vmax.f32 %v7075, %v7076
        %v7078 = vsel %vm4038, %v6723, -inf
        %v7079 = vmax.f32 %v7077, %v7078
        %v7080 = vrot.slane %v7079, 4
        %v7081 = vmax.f32 %v7079, %v7080
        %v7082 = vrot.slane %v7081, 2
        %v7083 = vmax.f32 %v7081, %v7082
        %v7084 = vrot.slane %v7083, 1
        %v7085 = vmax.f32 %v7083, %v7084
        %v7086 = vsel %vm4038, %v6724, -inf
        %v7087 = vsel %vm4038, %v6725, -inf
        %v7088 = vmax.f32 %v7086, %v7087
        %v7089 = vsel %vm4038, %v6726, -inf
        %v7090 = vmax.f32 %v7088, %v7089
        %v7091 = vsel %vm4038, %v6727, -inf
        %v7092 = vmax.f32 %v7090, %v7091
        %v7093 = vrot.slane %v7092, 4
        %v7094 = vmax.f32 %v7092, %v7093
        %v7095 = vrot.slane %v7094, 2
        %v7096 = vmax.f32 %v7094, %v7095
        %v7097 = vrot.slane %v7096, 1
        %v7098 = vmax.f32 %v7096, %v7097
        %v7099 = vsel %vm4038, %v6728, -inf
        %v7100 = vsel %vm4038, %v6729, -inf
        %v7101 = vmax.f32 %v7099, %v7100
        %v7102 = vsel %vm4038, %v6730, -inf
        %v7103 = vmax.f32 %v7101, %v7102
        %v7104 = vsel %vm4038, %v6731, -inf
        %v7105 = vmax.f32 %v7103, %v7104
        %v7106 = vrot.slane %v7105, 4
        %v7107 = vmax.f32 %v7105, %v7106
        %v7108 = vrot.slane %v7107, 2
        %v7109 = vmax.f32 %v7107, %v7108
        %v7110 = vrot.slane %v7109, 1
        %v7111 = vmax.f32 %v7109, %v7110
        %v7112 = vsel %vm4038, %v6732, -inf
        %v7113 = vsel %vm4038, %v6733, -inf
        %v7114 = vmax.f32 %v7112, %v7113
        %v7115 = vsel %vm4038, %v6734, -inf
        %v7116 = vmax.f32 %v7114, %v7115
        %v7117 = vsel %vm4038, %v6735, -inf
        %v7118 = vmax.f32 %v7116, %v7117
        %v7119 = vrot.slane %v7118, 4
        %v7120 = vmax.f32 %v7118, %v7119
        %v7121 = vrot.slane %v7120, 2
        %v7122 = vmax.f32 %v7120, %v7121
        %v7123 = vrot.slane %v7122, 1
        %v7124 = vmax.f32 %v7122, %v7123
        %v7125 = vsel %vm4038, %v6736, -inf
        %v7126 = vsel %vm4038, %v6737, -inf
        %v7127 = vmax.f32 %v7125, %v7126
        %v7128 = vsel %vm4038, %v6738, -inf
        %v7129 = vmax.f32 %v7127, %v7128
        %v7130 = vsel %vm4038, %v6739, -inf
        %v7131 = vmax.f32 %v7129, %v7130
        %v7132 = vrot.slane %v7131, 4
        %v7133 = vmax.f32 %v7131, %v7132
        %v7134 = vrot.slane %v7133, 2
        %v7135 = vmax.f32 %v7133, %v7134
        %v7136 = vrot.slane %v7135, 1
        %v7137 = vmax.f32 %v7135, %v7136
        %v7138 = vsel %vm4038, %v6740, -inf
        %v7139 = vsel %vm4038, %v6741, -inf
        %v7140 = vmax.f32 %v7138, %v7139
        %v7141 = vsel %vm4038, %v6742, -inf
        %v7142 = vmax.f32 %v7140, %v7141
        %v7143 = vsel %vm4038, %v6743, -inf
        %v7144 = vmax.f32 %v7142, %v7143
        %v7145 = vrot.slane %v7144, 4
        %v7146 = vmax.f32 %v7144, %v7145
        %v7147 = vrot.slane %v7146, 2
        %v7148 = vmax.f32 %v7146, %v7147
        %v7149 = vrot.slane %v7148, 1
        %v7150 = vmax.f32 %v7148, %v7149
        %v7151 = vsel %vm4038, %v6744, -inf
        %v7152 = vsel %vm4038, %v6745, -inf
        %v7153 = vmax.f32 %v7151, %v7152
        %v7154 = vsel %vm4038, %v6746, -inf
        %v7155 = vmax.f32 %v7153, %v7154
        %v7156 = vsel %vm4038, %v6747, -inf
        %v7157 = vmax.f32 %v7155, %v7156
        %v7158 = vrot.slane %v7157, 4
        %v7159 = vmax.f32 %v7157, %v7158
        %v7160 = vrot.slane %v7159, 2
        %v7161 = vmax.f32 %v7159, %v7160
        %v7162 = vrot.slane %v7161, 1
        %v7163 = vmax.f32 %v7161, %v7162
        %v7164 = vsub.f32 %v6620, %v6760
        %v7165 = vsub.f32 %v6621, %v6760
        %v7166 = vsub.f32 %v6622, %v6760
        %v7167 = vsub.f32 %v6623, %v6760
        %v7168 = vsub.f32 %v6624, %v6773
        %v7169 = vsub.f32 %v6625, %v6773
        %v7170 = vsub.f32 %v6626, %v6773
        %v7171 = vsub.f32 %v6627, %v6773
        %v7172 = vsub.f32 %v6628, %v6786
        %v7173 = vsub.f32 %v6629, %v6786
        %v7174 = vsub.f32 %v6630, %v6786
        %v7175 = vsub.f32 %v6631, %v6786
        %v7176 = vsub.f32 %v6632, %v6799
        %v7177 = vsub.f32 %v6633, %v6799
        %v7178 = vsub.f32 %v6634, %v6799
        %v7179 = vsub.f32 %v6635, %v6799
        %v7180 = vsub.f32 %v6636, %v6812
        %v7181 = vsub.f32 %v6637, %v6812
        %v7182 = vsub.f32 %v6638, %v6812
        %v7183 = vsub.f32 %v6639, %v6812
        %v7184 = vsub.f32 %v6640, %v6825
        %v7185 = vsub.f32 %v6641, %v6825
        %v7186 = vsub.f32 %v6642, %v6825
        %v7187 = vsub.f32 %v6643, %v6825
        %v7188 = vsub.f32 %v6644, %v6838
        %v7189 = vsub.f32 %v6645, %v6838
        %v7190 = vsub.f32 %v6646, %v6838
        %v7191 = vsub.f32 %v6647, %v6838
        %v7192 = vsub.f32 %v6648, %v6851
        %v7193 = vsub.f32 %v6649, %v6851
        %v7194 = vsub.f32 %v6650, %v6851
        %v7195 = vsub.f32 %v6651, %v6851
        %v7196 = vsub.f32 %v6652, %v6864
        %v7197 = vsub.f32 %v6653, %v6864
        %v7198 = vsub.f32 %v6654, %v6864
        %v7199 = vsub.f32 %v6655, %v6864
        %v7200 = vsub.f32 %v6656, %v6877
        %v7201 = vsub.f32 %v6657, %v6877
        %v7202 = vsub.f32 %v6658, %v6877
        %v7203 = vsub.f32 %v6659, %v6877
        %v7204 = vsub.f32 %v6660, %v6890
        %v7205 = vsub.f32 %v6661, %v6890
        %v7206 = vsub.f32 %v6662, %v6890
        %v7207 = vsub.f32 %v6663, %v6890
        %v7208 = vsub.f32 %v6664, %v6903
        %v7209 = vsub.f32 %v6665, %v6903
        %v7210 = vsub.f32 %v6666, %v6903
        %v7211 = vsub.f32 %v6667, %v6903
        %v7212 = vsub.f32 %v6668, %v6916
        %v7213 = vsub.f32 %v6669, %v6916
        %v7214 = vsub.f32 %v6670, %v6916
        %v7215 = vsub.f32 %v6671, %v6916
        %v7216 = vsub.f32 %v6672, %v6929
        %v7217 = vsub.f32 %v6673, %v6929
        %v7218 = vsub.f32 %v6674, %v6929
        %v7219 = vsub.f32 %v6675, %v6929
        %v7220 = vsub.f32 %v6676, %v6942
        %v7221 = vsub.f32 %v6677, %v6942
        %v7222 = vsub.f32 %v6678, %v6942
        %v7223 = vsub.f32 %v6679, %v6942
        %v7224 = vsub.f32 %v6680, %v6955
        %v7225 = vsub.f32 %v6681, %v6955
        %v7226 = vsub.f32 %v6682, %v6955
        %v7227 = vsub.f32 %v6683, %v6955
        %v7228 = vsub.f32 %v6684, %v6968
        %v7229 = vsub.f32 %v6685, %v6968
        %v7230 = vsub.f32 %v6686, %v6968
        %v7231 = vsub.f32 %v6687, %v6968
        %v7232 = vsub.f32 %v6688, %v6981
        %v7233 = vsub.f32 %v6689, %v6981
        %v7234 = vsub.f32 %v6690, %v6981
        %v7235 = vsub.f32 %v6691, %v6981
        %v7236 = vsub.f32 %v6692, %v6994
        %v7237 = vsub.f32 %v6693, %v6994
        %v7238 = vsub.f32 %v6694, %v6994
        %v7239 = vsub.f32 %v6695, %v6994
        %v7240 = vsub.f32 %v6696, %v7007
        %v7241 = vsub.f32 %v6697, %v7007
        %v7242 = vsub.f32 %v6698, %v7007
        %v7243 = vsub.f32 %v6699, %v7007
        %v7244 = vsub.f32 %v6700, %v7020
        %v7245 = vsub.f32 %v6701, %v7020
        %v7246 = vsub.f32 %v6702, %v7020
        %v7247 = vsub.f32 %v6703, %v7020
        %v7248 = vsub.f32 %v6704, %v7033
        %v7249 = vsub.f32 %v6705, %v7033
        %v7250 = vsub.f32 %v6706, %v7033
        %v7251 = vsub.f32 %v6707, %v7033
        %v7252 = vsub.f32 %v6708, %v7046
        %v7253 = vsub.f32 %v6709, %v7046
        %v7254 = vsub.f32 %v6710, %v7046
        %v7255 = vsub.f32 %v6711, %v7046
        %v7256 = vsub.f32 %v6712, %v7059
        %v7257 = vsub.f32 %v6713, %v7059
        %v7258 = vsub.f32 %v6714, %v7059
        %v7259 = vsub.f32 %v6715, %v7059
        %v7260 = vsub.f32 %v6716, %v7072
        %v7261 = vsub.f32 %v6717, %v7072
        %v7262 = vsub.f32 %v6718, %v7072
        %v7263 = vsub.f32 %v6719, %v7072
        %v7264 = vsub.f32 %v6720, %v7085
        %v7265 = vsub.f32 %v6721, %v7085
        %v7266 = vsub.f32 %v6722, %v7085
        %v7267 = vsub.f32 %v6723, %v7085
        %v7268 = vsub.f32 %v6724, %v7098
        %v7269 = vsub.f32 %v6725, %v7098
        %v7270 = vsub.f32 %v6726, %v7098
        %v7271 = vsub.f32 %v6727, %v7098
        %v7272 = vsub.f32 %v6728, %v7111
        %v7273 = vsub.f32 %v6729, %v7111
        %v7274 = vsub.f32 %v6730, %v7111
        %v7275 = vsub.f32 %v6731, %v7111
        %v7276 = vsub.f32 %v6732, %v7124
        %v7277 = vsub.f32 %v6733, %v7124
        %v7278 = vsub.f32 %v6734, %v7124
        %v7279 = vsub.f32 %v6735, %v7124
        %v7280 = vsub.f32 %v6736, %v7137
        %v7281 = vsub.f32 %v6737, %v7137
        %v7282 = vsub.f32 %v6738, %v7137
        %v7283 = vsub.f32 %v6739, %v7137
        %v7284 = vsub.f32 %v6740, %v7150
        %v7285 = vsub.f32 %v6741, %v7150
        %v7286 = vsub.f32 %v6742, %v7150
        %v7287 = vsub.f32 %v6743, %v7150
        %v7288 = vsub.f32 %v6744, %v7163
        %v7289 = vsub.f32 %v6745, %v7163
        %v7290 = vsub.f32 %v6746, %v7163
        %v7291 = vsub.f32 %v6747, %v7163
        %v7292 = vmul.f32 %v7164, 1.442695
        %v7293 = vpow.pop %v7292
        %v7294 = vmul.f32 %v7165, 1.442695
        %v7295 = vpow.pop %v7294
        %v7296 = vmul.f32 %v7166, 1.442695
        %v7297 = vpow.pop %v7296
        %v7298 = vmul.f32 %v7167, 1.442695
        %v7299 = vpow.pop %v7298
        %v7300 = vmul.f32 %v7168, 1.442695
        %v7301 = vpow.pop %v7300
        %v7302 = vmul.f32 %v7169, 1.442695
        %v7303 = vpow.pop %v7302
        %v7304 = vmul.f32 %v7170, 1.442695
        %v7305 = vpow.pop %v7304
        %v7306 = vmul.f32 %v7171, 1.442695
        %v7307 = vpow.pop %v7306
        %v7308 = vmul.f32 %v7172, 1.442695
        %v7309 = vpow.pop %v7308
        %v7310 = vmul.f32 %v7173, 1.442695
        %v7311 = vpow.pop %v7310
        %v7312 = vmul.f32 %v7174, 1.442695
        %v7313 = vpow.pop %v7312
        %v7314 = vmul.f32 %v7175, 1.442695
        %v7315 = vpow.pop %v7314
        %v7316 = vmul.f32 %v7176, 1.442695
        %v7317 = vpow.pop %v7316
        %v7318 = vmul.f32 %v7177, 1.442695
        %v7319 = vpow.pop %v7318
        %v7320 = vmul.f32 %v7178, 1.442695
        %v7321 = vpow.pop %v7320
        %v7322 = vmul.f32 %v7179, 1.442695
        %v7323 = vpow.pop %v7322
        %v7324 = vmul.f32 %v7180, 1.442695
        %v7325 = vpow.pop %v7324
        %v7326 = vmul.f32 %v7181, 1.442695
        %v7327 = vpow.pop %v7326
        %v7328 = vmul.f32 %v7182, 1.442695
        %v7329 = vpow.pop %v7328
        %v7330 = vmul.f32 %v7183, 1.442695
        %v7331 = vpow.pop %v7330
        %v7332 = vmul.f32 %v7184, 1.442695
        %v7333 = vpow.pop %v7332
        %v7334 = vmul.f32 %v7185, 1.442695
        %v7335 = vpow.pop %v7334
        %v7336 = vmul.f32 %v7186, 1.442695
        %v7337 = vpow.pop %v7336
        %v7338 = vmul.f32 %v7187, 1.442695
        %v7339 = vpow.pop %v7338
        %v7340 = vmul.f32 %v7188, 1.442695
        %v7341 = vpow.pop %v7340
        %v7342 = vmul.f32 %v7189, 1.442695
        %v7343 = vpow.pop %v7342
        %v7344 = vmul.f32 %v7190, 1.442695
        %v7345 = vpow.pop %v7344
        %v7346 = vmul.f32 %v7191, 1.442695
        %v7347 = vpow.pop %v7346
        %v7348 = vmul.f32 %v7192, 1.442695
        %v7349 = vpow.pop %v7348
        %v7350 = vmul.f32 %v7193, 1.442695
        %v7351 = vpow.pop %v7350
        %v7352 = vmul.f32 %v7194, 1.442695
        %v7353 = vpow.pop %v7352
        %v7354 = vmul.f32 %v7195, 1.442695
        %v7355 = vpow.pop %v7354
        %v7356 = vmul.f32 %v7196, 1.442695
        %v7357 = vpow.pop %v7356
        %v7358 = vmul.f32 %v7197, 1.442695
        %v7359 = vpow.pop %v7358
        %v7360 = vmul.f32 %v7198, 1.442695
        %v7361 = vpow.pop %v7360
        %v7362 = vmul.f32 %v7199, 1.442695
        %v7363 = vpow.pop %v7362
        %v7364 = vmul.f32 %v7200, 1.442695
        %v7365 = vpow.pop %v7364
        %v7366 = vmul.f32 %v7201, 1.442695
        %v7367 = vpow.pop %v7366
        %v7368 = vmul.f32 %v7202, 1.442695
        %v7369 = vpow.pop %v7368
        %v7370 = vmul.f32 %v7203, 1.442695
        %v7371 = vpow.pop %v7370
        %v7372 = vmul.f32 %v7204, 1.442695
        %v7373 = vpow.pop %v7372
        %v7374 = vmul.f32 %v7205, 1.442695
        %v7375 = vpow.pop %v7374
        %v7376 = vmul.f32 %v7206, 1.442695
        %v7377 = vpow.pop %v7376
        %v7378 = vmul.f32 %v7207, 1.442695
        %v7379 = vpow.pop %v7378
        %v7380 = vmul.f32 %v7208, 1.442695
        %v7381 = vpow.pop %v7380
        %v7382 = vmul.f32 %v7209, 1.442695
        %v7383 = vpow.pop %v7382
        %v7384 = vmul.f32 %v7210, 1.442695
        %v7385 = vpow.pop %v7384
        %v7386 = vmul.f32 %v7211, 1.442695
        %v7387 = vpow.pop %v7386
        %v7388 = vmul.f32 %v7212, 1.442695
        %v7389 = vpow.pop %v7388
        %v7390 = vmul.f32 %v7213, 1.442695
        %v7391 = vpow.pop %v7390
        %v7392 = vmul.f32 %v7214, 1.442695
        %v7393 = vpow.pop %v7392
        %v7394 = vmul.f32 %v7215, 1.442695
        %v7395 = vpow.pop %v7394
        %v7396 = vmul.f32 %v7216, 1.442695
        %v7397 = vpow.pop %v7396
        %v7398 = vmul.f32 %v7217, 1.442695
        %v7399 = vpow.pop %v7398
        %v7400 = vmul.f32 %v7218, 1.442695
        %v7401 = vpow.pop %v7400
        %v7402 = vmul.f32 %v7219, 1.442695
        %v7403 = vpow.pop %v7402
        %v7404 = vmul.f32 %v7220, 1.442695
        %v7405 = vpow.pop %v7404
        %v7406 = vmul.f32 %v7221, 1.442695
        %v7407 = vpow.pop %v7406
        %v7408 = vmul.f32 %v7222, 1.442695
        %v7409 = vpow.pop %v7408
        %v7410 = vmul.f32 %v7223, 1.442695
        %v7411 = vpow.pop %v7410
        %v7412 = vmul.f32 %v7224, 1.442695
        %v7413 = vpow.pop %v7412
        %v7414 = vmul.f32 %v7225, 1.442695
        %v7415 = vpow.pop %v7414
        %v7416 = vmul.f32 %v7226, 1.442695
        %v7417 = vpow.pop %v7416
        %v7418 = vmul.f32 %v7227, 1.442695
        %v7419 = vpow.pop %v7418
        %v7420 = vmul.f32 %v7228, 1.442695
        %v7421 = vpow.pop %v7420
        %v7422 = vmul.f32 %v7229, 1.442695
        %v7423 = vpow.pop %v7422
        %v7424 = vmul.f32 %v7230, 1.442695
        %v7425 = vpow.pop %v7424
        %v7426 = vmul.f32 %v7231, 1.442695
        %v7427 = vpow.pop %v7426
        %v7428 = vmul.f32 %v7232, 1.442695
        %v7429 = vpow.pop %v7428
        %v7430 = vmul.f32 %v7233, 1.442695
        %v7431 = vpow.pop %v7430
        %v7432 = vmul.f32 %v7234, 1.442695
        %v7433 = vpow.pop %v7432
        %v7434 = vmul.f32 %v7235, 1.442695
        %v7435 = vpow.pop %v7434
        %v7436 = vmul.f32 %v7236, 1.442695
        %v7437 = vpow.pop %v7436
        %v7438 = vmul.f32 %v7237, 1.442695
        %v7439 = vpow.pop %v7438
        %v7440 = vmul.f32 %v7238, 1.442695
        %v7441 = vpow.pop %v7440
        %v7442 = vmul.f32 %v7239, 1.442695
        %v7443 = vpow.pop %v7442
        %v7444 = vmul.f32 %v7240, 1.442695
        %v7445 = vpow.pop %v7444
        %v7446 = vmul.f32 %v7241, 1.442695
        %v7447 = vpow.pop %v7446
        %v7448 = vmul.f32 %v7242, 1.442695
        %v7449 = vpow.pop %v7448
        %v7450 = vmul.f32 %v7243, 1.442695
        %v7451 = vpow.pop %v7450
        %v7452 = vmul.f32 %v7244, 1.442695
        %v7453 = vpow.pop %v7452
        %v7454 = vmul.f32 %v7245, 1.442695
        %v7455 = vpow.pop %v7454
        %v7456 = vmul.f32 %v7246, 1.442695
        %v7457 = vpow.pop %v7456
        %v7458 = vmul.f32 %v7247, 1.442695
        %v7459 = vpow.pop %v7458
        %v7460 = vmul.f32 %v7248, 1.442695
        %v7461 = vpow.pop %v7460
        %v7462 = vmul.f32 %v7249, 1.442695
        %v7463 = vpow.pop %v7462
        %v7464 = vmul.f32 %v7250, 1.442695
        %v7465 = vpow.pop %v7464
        %v7466 = vmul.f32 %v7251, 1.442695
        %v7467 = vpow.pop %v7466
        %v7468 = vmul.f32 %v7252, 1.442695
        %v7469 = vpow.pop %v7468
        %v7470 = vmul.f32 %v7253, 1.442695
        %v7471 = vpow.pop %v7470
        %v7472 = vmul.f32 %v7254, 1.442695
        %v7473 = vpow.pop %v7472
        %v7474 = vmul.f32 %v7255, 1.442695
        %v7475 = vpow.pop %v7474
        %v7476 = vmul.f32 %v7256, 1.442695
        %v7477 = vpow.pop %v7476
        %v7478 = vmul.f32 %v7257, 1.442695
        %v7479 = vpow.pop %v7478
        %v7480 = vmul.f32 %v7258, 1.442695
        %v7481 = vpow.pop %v7480
        %v7482 = vmul.f32 %v7259, 1.442695
        %v7483 = vpow.pop %v7482
        %v7484 = vmul.f32 %v7260, 1.442695
        %v7485 = vpow.pop %v7484
        %v7486 = vmul.f32 %v7261, 1.442695
        %v7487 = vpow.pop %v7486
        %v7488 = vmul.f32 %v7262, 1.442695
        %v7489 = vpow.pop %v7488
        %v7490 = vmul.f32 %v7263, 1.442695
        %v7491 = vpow.pop %v7490
        %v7492 = vmul.f32 %v7264, 1.442695
        %v7493 = vpow.pop %v7492
        %v7494 = vmul.f32 %v7265, 1.442695
        %v7495 = vpow.pop %v7494
        %v7496 = vmul.f32 %v7266, 1.442695
        %v7497 = vpow.pop %v7496
        %v7498 = vmul.f32 %v7267, 1.442695
        %v7499 = vpow.pop %v7498
        %v7500 = vmul.f32 %v7268, 1.442695
        %v7501 = vpow.pop %v7500
        %v7502 = vmul.f32 %v7269, 1.442695
        %v7503 = vpow.pop %v7502
        %v7504 = vmul.f32 %v7270, 1.442695
        %v7505 = vpow.pop %v7504
        %v7506 = vmul.f32 %v7271, 1.442695
        %v7507 = vpow.pop %v7506
        %v7508 = vmul.f32 %v7272, 1.442695
        %v7509 = vpow.pop %v7508
        %v7510 = vmul.f32 %v7273, 1.442695
        %v7511 = vpow.pop %v7510
        %v7512 = vmul.f32 %v7274, 1.442695
        %v7513 = vpow.pop %v7512
        %v7514 = vmul.f32 %v7275, 1.442695
        %v7515 = vpow.pop %v7514
        %v7516 = vmul.f32 %v7276, 1.442695
        %v7517 = vpow.pop %v7516
        %v7518 = vmul.f32 %v7277, 1.442695
        %v7519 = vpow.pop %v7518
        %v7520 = vmul.f32 %v7278, 1.442695
        %v7521 = vpow.pop %v7520
        %v7522 = vmul.f32 %v7279, 1.442695
        %v7523 = vpow.pop %v7522
        %v7524 = vmul.f32 %v7280, 1.442695
        %v7525 = vpow.pop %v7524
        %v7526 = vmul.f32 %v7281, 1.442695
        %v7527 = vpow.pop %v7526
        %v7528 = vmul.f32 %v7282, 1.442695
        %v7529 = vpow.pop %v7528
        %v7530 = vmul.f32 %v7283, 1.442695
        %v7531 = vpow.pop %v7530
        %v7532 = vmul.f32 %v7284, 1.442695
        %v7533 = vpow.pop %v7532
        %v7534 = vmul.f32 %v7285, 1.442695
        %v7535 = vpow.pop %v7534
        %v7536 = vmul.f32 %v7286, 1.442695
        %v7537 = vpow.pop %v7536
        %v7538 = vmul.f32 %v7287, 1.442695
        %v7539 = vpow.pop %v7538
        %v7540 = vmul.f32 %v7288, 1.442695
        %v7541 = vpow.pop %v7540
        %v7542 = vmul.f32 %v7289, 1.442695
        %v7543 = vpow.pop %v7542
        %v7544 = vmul.f32 %v7290, 1.442695
        %v7545 = vpow.pop %v7544
        %v7546 = vmul.f32 %v7291, 1.442695
        %v7547 = vpow.pop %v7546
        %v7548 = vadd.f32 %v804, %v2501
        %v7549 = vadd.f32 %v809, %v2502
        %v7550 = vadd.f32 %v814, %v2503
        %v7551 = vadd.f32 %v819, %v2504
        %v7552 = vadd.f32 %v804, %v2505
        %v7553 = vadd.f32 %v809, %v2506
        %v7554 = vadd.f32 %v814, %v2507
        %v7555 = vadd.f32 %v819, %v2508
        %v7556 = vadd.f32 %v804, %v2509
        %v7557 = vadd.f32 %v809, %v2510
        %v7558 = vadd.f32 %v814, %v2511
        %v7559 = vadd.f32 %v819, %v2512
        %v7560 = vadd.f32 %v804, %v2513
        %v7561 = vadd.f32 %v809, %v2514
        %v7562 = vadd.f32 %v814, %v2515
        %v7563 = vadd.f32 %v819, %v2516
        %v7564 = vadd.f32 %v804, %v2517
        %v7565 = vadd.f32 %v809, %v2518
        %v7566 = vadd.f32 %v814, %v2519
        %v7567 = vadd.f32 %v819, %v2520
        %v7568 = vadd.f32 %v804, %v2521
        %v7569 = vadd.f32 %v809, %v2522
        %v7570 = vadd.f32 %v814, %v2523
        %v7571 = vadd.f32 %v819, %v2524
        %v7572 = vadd.f32 %v804, %v2525
        %v7573 = vadd.f32 %v809, %v2526
        %v7574 = vadd.f32 %v814, %v2527
        %v7575 = vadd.f32 %v819, %v2528
        %v7576 = vadd.f32 %v804, %v2529
        %v7577 = vadd.f32 %v809, %v2530
        %v7578 = vadd.f32 %v814, %v2531
        %v7579 = vadd.f32 %v819, %v2532
        %v7580 = vadd.f32 %v804, %v2533
        %v7581 = vadd.f32 %v809, %v2534
        %v7582 = vadd.f32 %v814, %v2535
        %v7583 = vadd.f32 %v819, %v2536
        %v7584 = vadd.f32 %v804, %v2537
        %v7585 = vadd.f32 %v809, %v2538
        %v7586 = vadd.f32 %v814, %v2539
        %v7587 = vadd.f32 %v819, %v2540
        %v7588 = vadd.f32 %v804, %v2541
        %v7589 = vadd.f32 %v809, %v2542
        %v7590 = vadd.f32 %v814, %v2543
        %v7591 = vadd.f32 %v819, %v2544
        %v7592 = vadd.f32 %v804, %v2545
        %v7593 = vadd.f32 %v809, %v2546
        %v7594 = vadd.f32 %v814, %v2547
        %v7595 = vadd.f32 %v819, %v2548
        %v7596 = vadd.f32 %v804, %v2549
        %v7597 = vadd.f32 %v809, %v2550
        %v7598 = vadd.f32 %v814, %v2551
        %v7599 = vadd.f32 %v819, %v2552
        %v7600 = vadd.f32 %v804, %v2553
        %v7601 = vadd.f32 %v809, %v2554
        %v7602 = vadd.f32 %v814, %v2555
        %v7603 = vadd.f32 %v819, %v2556
        %v7604 = vadd.f32 %v804, %v2557
        %v7605 = vadd.f32 %v809, %v2558
        %v7606 = vadd.f32 %v814, %v2559
        %v7607 = vadd.f32 %v819, %v2560
        %v7608 = vadd.f32 %v804, %v2561
        %v7609 = vadd.f32 %v809, %v2562
        %v7610 = vadd.f32 %v814, %v2563
        %v7611 = vadd.f32 %v819, %v2564
        %v7612 = vadd.f32 %v804, %v2565
        %v7613 = vadd.f32 %v809, %v2566
        %v7614 = vadd.f32 %v814, %v2567
        %v7615 = vadd.f32 %v819, %v2568
        %v7616 = vadd.f32 %v804, %v2569
        %v7617 = vadd.f32 %v809, %v2570
        %v7618 = vadd.f32 %v814, %v2571
        %v7619 = vadd.f32 %v819, %v2572
        %v7620 = vadd.f32 %v804, %v2573
        %v7621 = vadd.f32 %v809, %v2574
        %v7622 = vadd.f32 %v814, %v2575
        %v7623 = vadd.f32 %v819, %v2576
        %v7624 = vadd.f32 %v804, %v2577
        %v7625 = vadd.f32 %v809, %v2578
        %v7626 = vadd.f32 %v814, %v2579
        %v7627 = vadd.f32 %v819, %v2580
        %v7628 = vadd.f32 %v804, %v2581
        %v7629 = vadd.f32 %v809, %v2582
        %v7630 = vadd.f32 %v814, %v2583
        %v7631 = vadd.f32 %v819, %v2584
        %v7632 = vadd.f32 %v804, %v2585
        %v7633 = vadd.f32 %v809, %v2586
        %v7634 = vadd.f32 %v814, %v2587
        %v7635 = vadd.f32 %v819, %v2588
        %v7636 = vadd.f32 %v804, %v2589
        %v7637 = vadd.f32 %v809, %v2590
        %v7638 = vadd.f32 %v814, %v2591
        %v7639 = vadd.f32 %v819, %v2592
        %v7640 = vadd.f32 %v804, %v2593
        %v7641 = vadd.f32 %v809, %v2594
        %v7642 = vadd.f32 %v814, %v2595
        %v7643 = vadd.f32 %v819, %v2596
        %v7644 = vadd.f32 %v804, %v2597
        %v7645 = vadd.f32 %v809, %v2598
        %v7646 = vadd.f32 %v814, %v2599
        %v7647 = vadd.f32 %v819, %v2600
        %v7648 = vadd.f32 %v804, %v2601
        %v7649 = vadd.f32 %v809, %v2602
        %v7650 = vadd.f32 %v814, %v2603
        %v7651 = vadd.f32 %v819, %v2604
        %v7652 = vadd.f32 %v804, %v2605
        %v7653 = vadd.f32 %v809, %v2606
        %v7654 = vadd.f32 %v814, %v2607
        %v7655 = vadd.f32 %v819, %v2608
        %v7656 = vadd.f32 %v804, %v2609
        %v7657 = vadd.f32 %v809, %v2610
        %v7658 = vadd.f32 %v814, %v2611
        %v7659 = vadd.f32 %v819, %v2612
        %v7660 = vadd.f32 %v804, %v2613
        %v7661 = vadd.f32 %v809, %v2614
        %v7662 = vadd.f32 %v814, %v2615
        %v7663 = vadd.f32 %v819, %v2616
        %v7664 = vadd.f32 %v804, %v2617
        %v7665 = vadd.f32 %v809, %v2618
        %v7666 = vadd.f32 %v814, %v2619
        %v7667 = vadd.f32 %v819, %v2620
        %v7668 = vadd.f32 %v804, %v2621
        %v7669 = vadd.f32 %v809, %v2622
        %v7670 = vadd.f32 %v814, %v2623
        %v7671 = vadd.f32 %v819, %v2624
        %v7672 = vadd.f32 %v804, %v2625
        %v7673 = vadd.f32 %v809, %v2626
        %v7674 = vadd.f32 %v814, %v2627
        %v7675 = vadd.f32 %v819, %v2628
        %v7676 = vmul.f32 %v7293, %v7548
        %v7677 = vmul.f32 %v7295, %v7549
        %v7678 = vmul.f32 %v7297, %v7550
        %v7679 = vmul.f32 %v7299, %v7551
        %v7680 = vmul.f32 %v7301, %v7552
        %v7681 = vmul.f32 %v7303, %v7553
        %v7682 = vmul.f32 %v7305, %v7554
        %v7683 = vmul.f32 %v7307, %v7555
        %v7684 = vmul.f32 %v7309, %v7556
        %v7685 = vmul.f32 %v7311, %v7557
        %v7686 = vmul.f32 %v7313, %v7558
        %v7687 = vmul.f32 %v7315, %v7559
        %v7688 = vmul.f32 %v7317, %v7560
        %v7689 = vmul.f32 %v7319, %v7561
        %v7690 = vmul.f32 %v7321, %v7562
        %v7691 = vmul.f32 %v7323, %v7563
        %v7692 = vmul.f32 %v7325, %v7564
        %v7693 = vmul.f32 %v7327, %v7565
        %v7694 = vmul.f32 %v7329, %v7566
        %v7695 = vmul.f32 %v7331, %v7567
        %v7696 = vmul.f32 %v7333, %v7568
        %v7697 = vmul.f32 %v7335, %v7569
        %v7698 = vmul.f32 %v7337, %v7570
        %v7699 = vmul.f32 %v7339, %v7571
        %v7700 = vmul.f32 %v7341, %v7572
        %v7701 = vmul.f32 %v7343, %v7573
        %v7702 = vmul.f32 %v7345, %v7574
        %v7703 = vmul.f32 %v7347, %v7575
        %v7704 = vmul.f32 %v7349, %v7576
        %v7705 = vmul.f32 %v7351, %v7577
        %v7706 = vmul.f32 %v7353, %v7578
        %v7707 = vmul.f32 %v7355, %v7579
        %v7708 = vmul.f32 %v7357, %v7580
        %v7709 = vmul.f32 %v7359, %v7581
        %v7710 = vmul.f32 %v7361, %v7582
        %v7711 = vmul.f32 %v7363, %v7583
        %v7712 = vmul.f32 %v7365, %v7584
        %v7713 = vmul.f32 %v7367, %v7585
        %v7714 = vmul.f32 %v7369, %v7586
        %v7715 = vmul.f32 %v7371, %v7587
        %v7716 = vmul.f32 %v7373, %v7588
        %v7717 = vmul.f32 %v7375, %v7589
        %v7718 = vmul.f32 %v7377, %v7590
        %v7719 = vmul.f32 %v7379, %v7591
        %v7720 = vmul.f32 %v7381, %v7592
        %v7721 = vmul.f32 %v7383, %v7593
        %v7722 = vmul.f32 %v7385, %v7594
        %v7723 = vmul.f32 %v7387, %v7595
        %v7724 = vmul.f32 %v7389, %v7596
        %v7725 = vmul.f32 %v7391, %v7597
        %v7726 = vmul.f32 %v7393, %v7598
        %v7727 = vmul.f32 %v7395, %v7599
        %v7728 = vmul.f32 %v7397, %v7600
        %v7729 = vmul.f32 %v7399, %v7601
        %v7730 = vmul.f32 %v7401, %v7602
        %v7731 = vmul.f32 %v7403, %v7603
        %v7732 = vmul.f32 %v7405, %v7604
        %v7733 = vmul.f32 %v7407, %v7605
        %v7734 = vmul.f32 %v7409, %v7606
        %v7735 = vmul.f32 %v7411, %v7607
        %v7736 = vmul.f32 %v7413, %v7608
        %v7737 = vmul.f32 %v7415, %v7609
        %v7738 = vmul.f32 %v7417, %v7610
        %v7739 = vmul.f32 %v7419, %v7611
        %v7740 = vmul.f32 %v7421, %v7612
        %v7741 = vmul.f32 %v7423, %v7613
        %v7742 = vmul.f32 %v7425, %v7614
        %v7743 = vmul.f32 %v7427, %v7615
        %v7744 = vmul.f32 %v7429, %v7616
        %v7745 = vmul.f32 %v7431, %v7617
        %v7746 = vmul.f32 %v7433, %v7618
        %v7747 = vmul.f32 %v7435, %v7619
        %v7748 = vmul.f32 %v7437, %v7620
        %v7749 = vmul.f32 %v7439, %v7621
        %v7750 = vmul.f32 %v7441, %v7622
        %v7751 = vmul.f32 %v7443, %v7623
        %v7752 = vmul.f32 %v7445, %v7624
        %v7753 = vmul.f32 %v7447, %v7625
        %v7754 = vmul.f32 %v7449, %v7626
        %v7755 = vmul.f32 %v7451, %v7627
        %v7756 = vmul.f32 %v7453, %v7628
        %v7757 = vmul.f32 %v7455, %v7629
        %v7758 = vmul.f32 %v7457, %v7630
        %v7759 = vmul.f32 %v7459, %v7631
        %v7760 = vmul.f32 %v7461, %v7632
        %v7761 = vmul.f32 %v7463, %v7633
        %v7762 = vmul.f32 %v7465, %v7634
        %v7763 = vmul.f32 %v7467, %v7635
        %v7764 = vmul.f32 %v7469, %v7636
        %v7765 = vmul.f32 %v7471, %v7637
        %v7766 = vmul.f32 %v7473, %v7638
        %v7767 = vmul.f32 %v7475, %v7639
        %v7768 = vmul.f32 %v7477, %v7640
        %v7769 = vmul.f32 %v7479, %v7641
        %v7770 = vmul.f32 %v7481, %v7642
        %v7771 = vmul.f32 %v7483, %v7643
        %v7772 = vmul.f32 %v7485, %v7644
        %v7773 = vmul.f32 %v7487, %v7645
        %v7774 = vmul.f32 %v7489, %v7646
        %v7775 = vmul.f32 %v7491, %v7647
        %v7776 = vmul.f32 %v7493, %v7648
        %v7777 = vmul.f32 %v7495, %v7649
        %v7778 = vmul.f32 %v7497, %v7650
        %v7779 = vmul.f32 %v7499, %v7651
        %v7780 = vmul.f32 %v7501, %v7652
        %v7781 = vmul.f32 %v7503, %v7653
        %v7782 = vmul.f32 %v7505, %v7654
        %v7783 = vmul.f32 %v7507, %v7655
        %v7784 = vmul.f32 %v7509, %v7656
        %v7785 = vmul.f32 %v7511, %v7657
        %v7786 = vmul.f32 %v7513, %v7658
        %v7787 = vmul.f32 %v7515, %v7659
        %v7788 = vmul.f32 %v7517, %v7660
        %v7789 = vmul.f32 %v7519, %v7661
        %v7790 = vmul.f32 %v7521, %v7662
        %v7791 = vmul.f32 %v7523, %v7663
        %v7792 = vmul.f32 %v7525, %v7664
        %v7793 = vmul.f32 %v7527, %v7665
        %v7794 = vmul.f32 %v7529, %v7666
        %v7795 = vmul.f32 %v7531, %v7667
        %v7796 = vmul.f32 %v7533, %v7668
        %v7797 = vmul.f32 %v7535, %v7669
        %v7798 = vmul.f32 %v7537, %v7670
        %v7799 = vmul.f32 %v7539, %v7671
        %v7800 = vmul.f32 %v7541, %v7672
        %v7801 = vmul.f32 %v7543, %v7673
        %v7802 = vmul.f32 %v7545, %v7674
        %v7803 = vmul.f32 %v7547, %v7675
        %7932 = vrot.lane.b32.xlu0 %v7676, 32
        %v7933 = vpop.permute.xlu0 %7932
        %7934 = vrot.lane.b32.xlu0 %v7677, 32
        %v7935 = vpop.permute.xlu0 %7934
        %7936 = vrot.lane.b32.xlu0 %v7678, 32
        %v7937 = vpop.permute.xlu0 %7936
        %7938 = vrot.lane.b32.xlu0 %v7679, 32
        %v7939 = vpop.permute.xlu0 %7938
        %7940 = vrot.lane.b32.xlu0 %v7680, 32
        %v7941 = vpop.permute.xlu0 %7940
        %7942 = vrot.lane.b32.xlu0 %v7681, 32
        %v7943 = vpop.permute.xlu0 %7942
        %7944 = vrot.lane.b32.xlu0 %v7682, 32
        %v7945 = vpop.permute.xlu0 %7944
        %7946 = vrot.lane.b32.xlu0 %v7683, 32
        %v7947 = vpop.permute.xlu0 %7946
        %7948 = vrot.lane.b32.xlu0 %v7684, 32
        %v7949 = vpop.permute.xlu0 %7948
        %7950 = vrot.lane.b32.xlu0 %v7685, 32
        %v7951 = vpop.permute.xlu0 %7950
        %7952 = vrot.lane.b32.xlu0 %v7686, 32
        %v7953 = vpop.permute.xlu0 %7952
        %7954 = vrot.lane.b32.xlu0 %v7687, 32
        %v7955 = vpop.permute.xlu0 %7954
        %7956 = vrot.lane.b32.xlu0 %v7688, 32
        %v7957 = vpop.permute.xlu0 %7956
        %7958 = vrot.lane.b32.xlu0 %v7689, 32
        %v7959 = vpop.permute.xlu0 %7958
        %7960 = vrot.lane.b32.xlu0 %v7690, 32
        %v7961 = vpop.permute.xlu0 %7960
        %7962 = vrot.lane.b32.xlu0 %v7691, 32
        %v7963 = vpop.permute.xlu0 %7962
        %7964 = vrot.lane.b32.xlu0 %v7692, 32
        %v7965 = vpop.permute.xlu0 %7964
        %7966 = vrot.lane.b32.xlu0 %v7693, 32
        %v7967 = vpop.permute.xlu0 %7966
        %7968 = vrot.lane.b32.xlu0 %v7694, 32
        %v7969 = vpop.permute.xlu0 %7968
        %7970 = vrot.lane.b32.xlu0 %v7695, 32
        %v7971 = vpop.permute.xlu0 %7970
        %7972 = vrot.lane.b32.xlu0 %v7696, 32
        %v7973 = vpop.permute.xlu0 %7972
        %7974 = vrot.lane.b32.xlu0 %v7697, 32
        %v7975 = vpop.permute.xlu0 %7974
        %7976 = vrot.lane.b32.xlu0 %v7698, 32
        %v7977 = vpop.permute.xlu0 %7976
        %7978 = vrot.lane.b32.xlu0 %v7699, 32
        %v7979 = vpop.permute.xlu0 %7978
        %7980 = vrot.lane.b32.xlu0 %v7700, 32
        %v7981 = vpop.permute.xlu0 %7980
        %7982 = vrot.lane.b32.xlu0 %v7701, 32
        %v7983 = vpop.permute.xlu0 %7982
        %7984 = vrot.lane.b32.xlu0 %v7702, 32
        %v7985 = vpop.permute.xlu0 %7984
        %7986 = vrot.lane.b32.xlu0 %v7703, 32
        %v7987 = vpop.permute.xlu0 %7986
        %7988 = vrot.lane.b32.xlu0 %v7704, 32
        %v7989 = vpop.permute.xlu0 %7988
        %7990 = vrot.lane.b32.xlu0 %v7705, 32
        %v7991 = vpop.permute.xlu0 %7990
        %7992 = vrot.lane.b32.xlu0 %v7706, 32
        %v7993 = vpop.permute.xlu0 %7992
        %7994 = vrot.lane.b32.xlu0 %v7707, 32
        %v7995 = vpop.permute.xlu0 %7994
        %7996 = vrot.lane.b32.xlu0 %v7708, 32
        %v7997 = vpop.permute.xlu0 %7996
        %7998 = vrot.lane.b32.xlu0 %v7709, 32
        %v7999 = vpop.permute.xlu0 %7998
        %8000 = vrot.lane.b32.xlu0 %v7710, 32
        %v8001 = vpop.permute.xlu0 %8000
        %8002 = vrot.lane.b32.xlu0 %v7711, 32
        %v8003 = vpop.permute.xlu0 %8002
        %8004 = vrot.lane.b32.xlu0 %v7712, 32
        %v8005 = vpop.permute.xlu0 %8004
        %8006 = vrot.lane.b32.xlu0 %v7713, 32
        %v8007 = vpop.permute.xlu0 %8006
        %8008 = vrot.lane.b32.xlu0 %v7714, 32
        %v8009 = vpop.permute.xlu0 %8008
        %8010 = vrot.lane.b32.xlu0 %v7715, 32
        %v8011 = vpop.permute.xlu0 %8010
        %8012 = vrot.lane.b32.xlu0 %v7716, 32
        %v8013 = vpop.permute.xlu0 %8012
        %8014 = vrot.lane.b32.xlu0 %v7717, 32
        %v8015 = vpop.permute.xlu0 %8014
        %8016 = vrot.lane.b32.xlu0 %v7718, 32
        %v8017 = vpop.permute.xlu0 %8016
        %8018 = vrot.lane.b32.xlu0 %v7719, 32
        %v8019 = vpop.permute.xlu0 %8018
        %8020 = vrot.lane.b32.xlu0 %v7720, 32
        %v8021 = vpop.permute.xlu0 %8020
        %8022 = vrot.lane.b32.xlu0 %v7721, 32
        %v8023 = vpop.permute.xlu0 %8022
        %8024 = vrot.lane.b32.xlu0 %v7722, 32
        %v8025 = vpop.permute.xlu0 %8024
        %8026 = vrot.lane.b32.xlu0 %v7723, 32
        %v8027 = vpop.permute.xlu0 %8026
        %8028 = vrot.lane.b32.xlu0 %v7724, 32
        %v8029 = vpop.permute.xlu0 %8028
        %8030 = vrot.lane.b32.xlu0 %v7725, 32
        %v8031 = vpop.permute.xlu0 %8030
        %8032 = vrot.lane.b32.xlu0 %v7726, 32
        %v8033 = vpop.permute.xlu0 %8032
        %8034 = vrot.lane.b32.xlu0 %v7727, 32
        %v8035 = vpop.permute.xlu0 %8034
        %8036 = vrot.lane.b32.xlu0 %v7728, 32
        %v8037 = vpop.permute.xlu0 %8036
        %8038 = vrot.lane.b32.xlu0 %v7729, 32
        %v8039 = vpop.permute.xlu0 %8038
        %8040 = vrot.lane.b32.xlu0 %v7730, 32
        %v8041 = vpop.permute.xlu0 %8040
        %8042 = vrot.lane.b32.xlu0 %v7731, 32
        %v8043 = vpop.permute.xlu0 %8042
        %8044 = vrot.lane.b32.xlu0 %v7732, 32
        %v8045 = vpop.permute.xlu0 %8044
        %8046 = vrot.lane.b32.xlu0 %v7733, 32
        %v8047 = vpop.permute.xlu0 %8046
        %8048 = vrot.lane.b32.xlu0 %v7734, 32
        %v8049 = vpop.permute.xlu0 %8048
        %8050 = vrot.lane.b32.xlu0 %v7735, 32
        %v8051 = vpop.permute.xlu0 %8050
        %8052 = vrot.lane.b32.xlu0 %v7736, 32
        %v8053 = vpop.permute.xlu0 %8052
        %8054 = vrot.lane.b32.xlu0 %v7737, 32
        %v8055 = vpop.permute.xlu0 %8054
        %8056 = vrot.lane.b32.xlu0 %v7738, 32
        %v8057 = vpop.permute.xlu0 %8056
        %8058 = vrot.lane.b32.xlu0 %v7739, 32
        %v8059 = vpop.permute.xlu0 %8058
        %8060 = vrot.lane.b32.xlu0 %v7740, 32
        %v8061 = vpop.permute.xlu0 %8060
        %8062 = vrot.lane.b32.xlu0 %v7741, 32
        %v8063 = vpop.permute.xlu0 %8062
        %8064 = vrot.lane.b32.xlu0 %v7742, 32
        %v8065 = vpop.permute.xlu0 %8064
        %8066 = vrot.lane.b32.xlu0 %v7743, 32
        %v8067 = vpop.permute.xlu0 %8066
        %8068 = vrot.lane.b32.xlu0 %v7744, 32
        %v8069 = vpop.permute.xlu0 %8068
        %8070 = vrot.lane.b32.xlu0 %v7745, 32
        %v8071 = vpop.permute.xlu0 %8070
        %8072 = vrot.lane.b32.xlu0 %v7746, 32
        %v8073 = vpop.permute.xlu0 %8072
        %8074 = vrot.lane.b32.xlu0 %v7747, 32
        %v8075 = vpop.permute.xlu0 %8074
        %8076 = vrot.lane.b32.xlu0 %v7748, 32
        %v8077 = vpop.permute.xlu0 %8076
        %8078 = vrot.lane.b32.xlu0 %v7749, 32
        %v8079 = vpop.permute.xlu0 %8078
        %8080 = vrot.lane.b32.xlu0 %v7750, 32
        %v8081 = vpop.permute.xlu0 %8080
        %8082 = vrot.lane.b32.xlu0 %v7751, 32
        %v8083 = vpop.permute.xlu0 %8082
        %8084 = vrot.lane.b32.xlu0 %v7752, 32
        %v8085 = vpop.permute.xlu0 %8084
        %8086 = vrot.lane.b32.xlu0 %v7753, 32
        %v8087 = vpop.permute.xlu0 %8086
        %8088 = vrot.lane.b32.xlu0 %v7754, 32
        %v8089 = vpop.permute.xlu0 %8088
        %8090 = vrot.lane.b32.xlu0 %v7755, 32
        %v8091 = vpop.permute.xlu0 %8090
        %8092 = vrot.lane.b32.xlu0 %v7756, 32
        %v8093 = vpop.permute.xlu0 %8092
        %8094 = vrot.lane.b32.xlu0 %v7757, 32
        %v8095 = vpop.permute.xlu0 %8094
        %8096 = vrot.lane.b32.xlu0 %v7758, 32
        %v8097 = vpop.permute.xlu0 %8096
        %8098 = vrot.lane.b32.xlu0 %v7759, 32
        %v8099 = vpop.permute.xlu0 %8098
        %8100 = vrot.lane.b32.xlu0 %v7760, 32
        %v8101 = vpop.permute.xlu0 %8100
        %8102 = vrot.lane.b32.xlu0 %v7761, 32
        %v8103 = vpop.permute.xlu0 %8102
        %8104 = vrot.lane.b32.xlu0 %v7762, 32
        %v8105 = vpop.permute.xlu0 %8104
        %8106 = vrot.lane.b32.xlu0 %v7763, 32
        %v8107 = vpop.permute.xlu0 %8106
        %8108 = vrot.lane.b32.xlu0 %v7764, 32
        %v8109 = vpop.permute.xlu0 %8108
        %8110 = vrot.lane.b32.xlu0 %v7765, 32
        %v8111 = vpop.permute.xlu0 %8110
        %8112 = vrot.lane.b32.xlu0 %v7766, 32
        %v8113 = vpop.permute.xlu0 %8112
        %8114 = vrot.lane.b32.xlu0 %v7767, 32
        %v8115 = vpop.permute.xlu0 %8114
        %8116 = vrot.lane.b32.xlu0 %v7768, 32
        %v8117 = vpop.permute.xlu0 %8116
        %8118 = vrot.lane.b32.xlu0 %v7769, 32
        %v8119 = vpop.permute.xlu0 %8118
        %8120 = vrot.lane.b32.xlu0 %v7770, 32
        %v8121 = vpop.permute.xlu0 %8120
        %8122 = vrot.lane.b32.xlu0 %v7771, 32
        %v8123 = vpop.permute.xlu0 %8122
        %8124 = vrot.lane.b32.xlu0 %v7772, 32
        %v8125 = vpop.permute.xlu0 %8124
        %8126 = vrot.lane.b32.xlu0 %v7773, 32
        %v8127 = vpop.permute.xlu0 %8126
        %8128 = vrot.lane.b32.xlu0 %v7774, 32
        %v8129 = vpop.permute.xlu0 %8128
        %8130 = vrot.lane.b32.xlu0 %v7775, 32
        %v8131 = vpop.permute.xlu0 %8130
        %8132 = vrot.lane.b32.xlu0 %v7776, 32
        %v8133 = vpop.permute.xlu0 %8132
        %8134 = vrot.lane.b32.xlu0 %v7777, 32
        %v8135 = vpop.permute.xlu0 %8134
        %8136 = vrot.lane.b32.xlu0 %v7778, 32
        %v8137 = vpop.permute.xlu0 %8136
        %8138 = vrot.lane.b32.xlu0 %v7779, 32
        %v8139 = vpop.permute.xlu0 %8138
        %8140 = vrot.lane.b32.xlu0 %v7780, 32
        %v8141 = vpop.permute.xlu0 %8140
        %8142 = vrot.lane.b32.xlu0 %v7781, 32
        %v8143 = vpop.permute.xlu0 %8142
        %8144 = vrot.lane.b32.xlu0 %v7782, 32
        %v8145 = vpop.permute.xlu0 %8144
        %8146 = vrot.lane.b32.xlu0 %v7783, 32
        %v8147 = vpop.permute.xlu0 %8146
        %8148 = vrot.lane.b32.xlu0 %v7784, 32
        %v8149 = vpop.permute.xlu0 %8148
        %8150 = vrot.lane.b32.xlu0 %v7785, 32
        %v8151 = vpop.permute.xlu0 %8150
        %8152 = vrot.lane.b32.xlu0 %v7786, 32
        %v8153 = vpop.permute.xlu0 %8152
        %8154 = vrot.lane.b32.xlu0 %v7787, 32
        %v8155 = vpop.permute.xlu0 %8154
        %8156 = vrot.lane.b32.xlu0 %v7788, 32
        %v8157 = vpop.permute.xlu0 %8156
        %8158 = vrot.lane.b32.xlu0 %v7789, 32
        %v8159 = vpop.permute.xlu0 %8158
        %8160 = vrot.lane.b32.xlu0 %v7790, 32
        %v8161 = vpop.permute.xlu0 %8160
        %8162 = vrot.lane.b32.xlu0 %v7791, 32
        %v8163 = vpop.permute.xlu0 %8162
        %8164 = vrot.lane.b32.xlu0 %v7792, 32
        %v8165 = vpop.permute.xlu0 %8164
        %8166 = vrot.lane.b32.xlu0 %v7793, 32
        %v8167 = vpop.permute.xlu0 %8166
        %8168 = vrot.lane.b32.xlu0 %v7794, 32
        %v8169 = vpop.permute.xlu0 %8168
        %8170 = vrot.lane.b32.xlu0 %v7795, 32
        %v8171 = vpop.permute.xlu0 %8170
        %8172 = vrot.lane.b32.xlu0 %v7796, 32
        %v8173 = vpop.permute.xlu0 %8172
        %8174 = vrot.lane.b32.xlu0 %v7797, 32
        %v8175 = vpop.permute.xlu0 %8174
        %8176 = vrot.lane.b32.xlu0 %v7798, 32
        %v8177 = vpop.permute.xlu0 %8176
        %8178 = vrot.lane.b32.xlu0 %v7799, 32
        %v8179 = vpop.permute.xlu0 %8178
        %8180 = vrot.lane.b32.xlu0 %v7800, 32
        %v8181 = vpop.permute.xlu0 %8180
        %8182 = vrot.lane.b32.xlu0 %v7801, 32
        %v8183 = vpop.permute.xlu0 %8182
        %8184 = vrot.lane.b32.xlu0 %v7802, 32
        %v8185 = vpop.permute.xlu0 %8184
        %8186 = vrot.lane.b32.xlu0 %v7803, 32
        %v8187 = vpop.permute.xlu0 %8186
        %v8316 = vsel %vm4038, %v7293, %v7933
        %v8317 = vsel %vm4038, %v7295, %v7935
        %v8318 = vsel %vm4038, %v7297, %v7937
        %v8319 = vsel %vm4038, %v7299, %v7939
        %v8320 = vsel %vm4038, %v7301, %v7941
        %v8321 = vsel %vm4038, %v7303, %v7943
        %v8322 = vsel %vm4038, %v7305, %v7945
        %v8323 = vsel %vm4038, %v7307, %v7947
        %v8324 = vsel %vm4038, %v7309, %v7949
        %v8325 = vsel %vm4038, %v7311, %v7951
        %v8326 = vsel %vm4038, %v7313, %v7953
        %v8327 = vsel %vm4038, %v7315, %v7955
        %v8328 = vsel %vm4038, %v7317, %v7957
        %v8329 = vsel %vm4038, %v7319, %v7959
        %v8330 = vsel %vm4038, %v7321, %v7961
        %v8331 = vsel %vm4038, %v7323, %v7963
        %v8332 = vsel %vm4038, %v7325, %v7965
        %v8333 = vsel %vm4038, %v7327, %v7967
        %v8334 = vsel %vm4038, %v7329, %v7969
        %v8335 = vsel %vm4038, %v7331, %v7971
        %v8336 = vsel %vm4038, %v7333, %v7973
        %v8337 = vsel %vm4038, %v7335, %v7975
        %v8338 = vsel %vm4038, %v7337, %v7977
        %v8339 = vsel %vm4038, %v7339, %v7979
        %v8340 = vsel %vm4038, %v7341, %v7981
        %v8341 = vsel %vm4038, %v7343, %v7983
        %v8342 = vsel %vm4038, %v7345, %v7985
        %v8343 = vsel %vm4038, %v7347, %v7987
        %v8344 = vsel %vm4038, %v7349, %v7989
        %v8345 = vsel %vm4038, %v7351, %v7991
        %v8346 = vsel %vm4038, %v7353, %v7993
        %v8347 = vsel %vm4038, %v7355, %v7995
        %v8348 = vsel %vm4038, %v7357, %v7997
        %v8349 = vsel %vm4038, %v7359, %v7999
        %v8350 = vsel %vm4038, %v7361, %v8001
        %v8351 = vsel %vm4038, %v7363, %v8003
        %v8352 = vsel %vm4038, %v7365, %v8005
        %v8353 = vsel %vm4038, %v7367, %v8007
        %v8354 = vsel %vm4038, %v7369, %v8009
        %v8355 = vsel %vm4038, %v7371, %v8011
        %v8356 = vsel %vm4038, %v7373, %v8013
        %v8357 = vsel %vm4038, %v7375, %v8015
        %v8358 = vsel %vm4038, %v7377, %v8017
        %v8359 = vsel %vm4038, %v7379, %v8019
        %v8360 = vsel %vm4038, %v7381, %v8021
        %v8361 = vsel %vm4038, %v7383, %v8023
        %v8362 = vsel %vm4038, %v7385, %v8025
        %v8363 = vsel %vm4038, %v7387, %v8027
        %v8364 = vsel %vm4038, %v7389, %v8029
        %v8365 = vsel %vm4038, %v7391, %v8031
        %v8366 = vsel %vm4038, %v7393, %v8033
        %v8367 = vsel %vm4038, %v7395, %v8035
        %v8368 = vsel %vm4038, %v7397, %v8037
        %v8369 = vsel %vm4038, %v7399, %v8039
        %v8370 = vsel %vm4038, %v7401, %v8041
        %v8371 = vsel %vm4038, %v7403, %v8043
        %v8372 = vsel %vm4038, %v7405, %v8045
        %v8373 = vsel %vm4038, %v7407, %v8047
        %v8374 = vsel %vm4038, %v7409, %v8049
        %v8375 = vsel %vm4038, %v7411, %v8051
        %v8376 = vsel %vm4038, %v7413, %v8053
        %v8377 = vsel %vm4038, %v7415, %v8055
        %v8378 = vsel %vm4038, %v7417, %v8057
        %v8379 = vsel %vm4038, %v7419, %v8059
        %v8380 = vsel %vm4038, %v7421, %v8061
        %v8381 = vsel %vm4038, %v7423, %v8063
        %v8382 = vsel %vm4038, %v7425, %v8065
        %v8383 = vsel %vm4038, %v7427, %v8067
        %v8384 = vsel %vm4038, %v7429, %v8069
        %v8385 = vsel %vm4038, %v7431, %v8071
        %v8386 = vsel %vm4038, %v7433, %v8073
        %v8387 = vsel %vm4038, %v7435, %v8075
        %v8388 = vsel %vm4038, %v7437, %v8077
        %v8389 = vsel %vm4038, %v7439, %v8079
        %v8390 = vsel %vm4038, %v7441, %v8081
        %v8391 = vsel %vm4038, %v7443, %v8083
        %v8392 = vsel %vm4038, %v7445, %v8085
        %v8393 = vsel %vm4038, %v7447, %v8087
        %v8394 = vsel %vm4038, %v7449, %v8089
        %v8395 = vsel %vm4038, %v7451, %v8091
        %v8396 = vsel %vm4038, %v7453, %v8093
        %v8397 = vsel %vm4038, %v7455, %v8095
        %v8398 = vsel %vm4038, %v7457, %v8097
        %v8399 = vsel %vm4038, %v7459, %v8099
        %v8400 = vsel %vm4038, %v7461, %v8101
        %v8401 = vsel %vm4038, %v7463, %v8103
        %v8402 = vsel %vm4038, %v7465, %v8105
        %v8403 = vsel %vm4038, %v7467, %v8107
        %v8404 = vsel %vm4038, %v7469, %v8109
        %v8405 = vsel %vm4038, %v7471, %v8111
        %v8406 = vsel %vm4038, %v7473, %v8113
        %v8407 = vsel %vm4038, %v7475, %v8115
        %v8408 = vsel %vm4038, %v7477, %v8117
        %v8409 = vsel %vm4038, %v7479, %v8119
        %v8410 = vsel %vm4038, %v7481, %v8121
        %v8411 = vsel %vm4038, %v7483, %v8123
        %v8412 = vsel %vm4038, %v7485, %v8125
        %v8413 = vsel %vm4038, %v7487, %v8127
        %v8414 = vsel %vm4038, %v7489, %v8129
        %v8415 = vsel %vm4038, %v7491, %v8131
        %v8416 = vsel %vm4038, %v7493, %v8133
        %v8417 = vsel %vm4038, %v7495, %v8135
        %v8418 = vsel %vm4038, %v7497, %v8137
        %v8419 = vsel %vm4038, %v7499, %v8139
        %v8420 = vsel %vm4038, %v7501, %v8141
        %v8421 = vsel %vm4038, %v7503, %v8143
        %v8422 = vsel %vm4038, %v7505, %v8145
        %v8423 = vsel %vm4038, %v7507, %v8147
        %v8424 = vsel %vm4038, %v7509, %v8149
        %v8425 = vsel %vm4038, %v7511, %v8151
        %v8426 = vsel %vm4038, %v7513, %v8153
        %v8427 = vsel %vm4038, %v7515, %v8155
        %v8428 = vsel %vm4038, %v7517, %v8157
        %v8429 = vsel %vm4038, %v7519, %v8159
        %v8430 = vsel %vm4038, %v7521, %v8161
        %v8431 = vsel %vm4038, %v7523, %v8163
        %v8432 = vsel %vm4038, %v7525, %v8165
        %v8433 = vsel %vm4038, %v7527, %v8167
        %v8434 = vsel %vm4038, %v7529, %v8169
        %v8435 = vsel %vm4038, %v7531, %v8171
        %v8436 = vsel %vm4038, %v7533, %v8173
        %v8437 = vsel %vm4038, %v7535, %v8175
        %v8438 = vsel %vm4038, %v7537, %v8177
        %v8439 = vsel %vm4038, %v7539, %v8179
        %v8440 = vsel %vm4038, %v7541, %v8181
        %v8441 = vsel %vm4038, %v7543, %v8183
        %v8442 = vsel %vm4038, %v7545, %v8185
        %v8443 = vsel %vm4038, %v7547, %v8187
        %v8444 = vld [vmem:[%s601] sm:$0xff]
        %v8445 = vld [vmem:[%s601 + $0x8] sm:$0xff]
        %v8446 = vld [vmem:[%s601 + $0x10] sm:$0xff]
        %v8447 = vld [vmem:[%s601 + $0x18] sm:$0xff]
        %v8448 = vld [vmem:[%s601 + $0x20] sm:$0xff]
        %v8449 = vld [vmem:[%s601 + $0x28] sm:$0xff]
        %v8450 = vld [vmem:[%s601 + $0x30] sm:$0xff]
        %v8451 = vld [vmem:[%s601 + $0x38] sm:$0xff]
        %v8452 = vld [vmem:[%s601 + $0x40] sm:$0xff]
        %v8453 = vld [vmem:[%s601 + $0x48] sm:$0xff]
        %v8454 = vld [vmem:[%s601 + $0x50] sm:$0xff]
        %v8455 = vld [vmem:[%s601 + $0x58] sm:$0xff]
        %v8456 = vld [vmem:[%s601 + $0x60] sm:$0xff]
        %v8457 = vld [vmem:[%s601 + $0x68] sm:$0xff]
        %v8458 = vld [vmem:[%s601 + $0x70] sm:$0xff]
        %v8459 = vld [vmem:[%s601 + $0x78] sm:$0xff]
        %v8460 = vld [vmem:[%s601 + $0x80] sm:$0xff]
        %v8461 = vld [vmem:[%s601 + $0x88] sm:$0xff]
        %v8462 = vld [vmem:[%s601 + $0x90] sm:$0xff]
        %v8463 = vld [vmem:[%s601 + $0x98] sm:$0xff]
        %v8464 = vld [vmem:[%s601 + $0xa0] sm:$0xff]
        %v8465 = vld [vmem:[%s601 + $0xa8] sm:$0xff]
        %v8466 = vld [vmem:[%s601 + $0xb0] sm:$0xff]
        %v8467 = vld [vmem:[%s601 + $0xb8] sm:$0xff]
        %v8468 = vld [vmem:[%s601 + $0xc0] sm:$0xff]
        %v8469 = vld [vmem:[%s601 + $0xc8] sm:$0xff]
        %v8470 = vld [vmem:[%s601 + $0xd0] sm:$0xff]
        %v8471 = vld [vmem:[%s601 + $0xd8] sm:$0xff]
        %v8472 = vld [vmem:[%s601 + $0xe0] sm:$0xff]
        %v8473 = vld [vmem:[%s601 + $0xe8] sm:$0xff]
        %v8474 = vld [vmem:[%s601 + $0xf0] sm:$0xff]
        %v8475 = vld [vmem:[%s601 + $0xf8] sm:$0xff]
        %v8476 = vpack.c.bf16 %v8452, %v8444
        %v8477 = vpack.c.bf16 %v8453, %v8445
        %v8478 = vpack.c.bf16 %v8454, %v8446
        %v8479 = vpack.c.bf16 %v8455, %v8447
        %v8480 = vpack.c.bf16 %v8456, %v8448
        %v8481 = vpack.c.bf16 %v8457, %v8449
        %v8482 = vpack.c.bf16 %v8458, %v8450
        %v8483 = vpack.c.bf16 %v8459, %v8451
        %v8484 = vpack.c.bf16 %v8468, %v8460
        %v8485 = vpack.c.bf16 %v8469, %v8461
        %v8486 = vpack.c.bf16 %v8470, %v8462
        %v8487 = vpack.c.bf16 %v8471, %v8463
        %v8488 = vpack.c.bf16 %v8472, %v8464
        %v8489 = vpack.c.bf16 %v8473, %v8465
        %v8490 = vpack.c.bf16 %v8474, %v8466
        %v8491 = vpack.c.bf16 %v8475, %v8467
        %v8492 = vpack.c.bf16 %v8317, %v8316
        %v8493 = vpack.c.bf16 %v8319, %v8318
        %v8494 = vpack.c.bf16 %v8321, %v8320
        %v8495 = vpack.c.bf16 %v8323, %v8322
        %v8496 = vpack.c.bf16 %v8325, %v8324
        %v8497 = vpack.c.bf16 %v8327, %v8326
        %v8498 = vpack.c.bf16 %v8329, %v8328
        %v8499 = vpack.c.bf16 %v8331, %v8330
        %v8500 = vpack.c.bf16 %v8333, %v8332
        %v8501 = vpack.c.bf16 %v8335, %v8334
        %v8502 = vpack.c.bf16 %v8337, %v8336
        %v8503 = vpack.c.bf16 %v8339, %v8338
        %v8504 = vpack.c.bf16 %v8341, %v8340
        %v8505 = vpack.c.bf16 %v8343, %v8342
        %v8506 = vpack.c.bf16 %v8345, %v8344
        %v8507 = vpack.c.bf16 %v8347, %v8346
        %v8508 = vpack.c.bf16 %v8349, %v8348
        %v8509 = vpack.c.bf16 %v8351, %v8350
        %v8510 = vpack.c.bf16 %v8353, %v8352
        %v8511 = vpack.c.bf16 %v8355, %v8354
        %v8512 = vpack.c.bf16 %v8357, %v8356
        %v8513 = vpack.c.bf16 %v8359, %v8358
        %v8514 = vpack.c.bf16 %v8361, %v8360
        %v8515 = vpack.c.bf16 %v8363, %v8362
        %v8516 = vpack.c.bf16 %v8365, %v8364
        %v8517 = vpack.c.bf16 %v8367, %v8366
        %v8518 = vpack.c.bf16 %v8369, %v8368
        %v8519 = vpack.c.bf16 %v8371, %v8370
        %v8520 = vpack.c.bf16 %v8373, %v8372
        %v8521 = vpack.c.bf16 %v8375, %v8374
        %v8522 = vpack.c.bf16 %v8377, %v8376
        %v8523 = vpack.c.bf16 %v8379, %v8378
        %v8524 = vpack.c.bf16 %v8381, %v8380
        %v8525 = vpack.c.bf16 %v8383, %v8382
        %v8526 = vpack.c.bf16 %v8385, %v8384
        %v8527 = vpack.c.bf16 %v8387, %v8386
        %v8528 = vpack.c.bf16 %v8389, %v8388
        %v8529 = vpack.c.bf16 %v8391, %v8390
        %v8530 = vpack.c.bf16 %v8393, %v8392
        %v8531 = vpack.c.bf16 %v8395, %v8394
        %v8532 = vpack.c.bf16 %v8397, %v8396
        %v8533 = vpack.c.bf16 %v8399, %v8398
        %v8534 = vpack.c.bf16 %v8401, %v8400
        %v8535 = vpack.c.bf16 %v8403, %v8402
        %v8536 = vpack.c.bf16 %v8405, %v8404
        %v8537 = vpack.c.bf16 %v8407, %v8406
        %v8538 = vpack.c.bf16 %v8409, %v8408
        %v8539 = vpack.c.bf16 %v8411, %v8410
        %v8540 = vpack.c.bf16 %v8413, %v8412
        %v8541 = vpack.c.bf16 %v8415, %v8414
        %v8542 = vpack.c.bf16 %v8417, %v8416
        %v8543 = vpack.c.bf16 %v8419, %v8418
        %v8544 = vpack.c.bf16 %v8421, %v8420
        %v8545 = vpack.c.bf16 %v8423, %v8422
        %v8546 = vpack.c.bf16 %v8425, %v8424
        %v8547 = vpack.c.bf16 %v8427, %v8426
        %v8548 = vpack.c.bf16 %v8429, %v8428
        %v8549 = vpack.c.bf16 %v8431, %v8430
        %v8550 = vpack.c.bf16 %v8433, %v8432
        %v8551 = vpack.c.bf16 %v8435, %v8434
        %v8552 = vpack.c.bf16 %v8437, %v8436
        %v8553 = vpack.c.bf16 %v8439, %v8438
        %v8554 = vpack.c.bf16 %v8441, %v8440
        %v8555 = vpack.c.bf16 %v8443, %v8442
        %8556 = vmatprep.subr.bf16.mxu0 0
        %8557 = vmatpush1.bf16.msra.mxu0 %v8499
        %8558 = vmatprep.subr.bf16.mxu0 0
        %8559 = vmatpush1.bf16.msra.mxu0 %v8498
        %8560 = vmatprep.subr.bf16.mxu0 0
        %8561 = vmatpush1.bf16.msra.mxu0 %v8497
        %8562 = vmatprep.subr.bf16.mxu0 0
        %8563 = vmatpush1.bf16.msra.mxu0 %v8496
        %8564 = vmatprep.subr.bf16.mxu0 0
        %8565 = vmatpush1.bf16.msra.mxu0 %v8495
        %8566 = vmatprep.subr.bf16.mxu0 0
        %8567 = vmatpush1.bf16.msra.mxu0 %v8494
        %8568 = vmatprep.subr.bf16.mxu0 0
        %8569 = vmatpush1.bf16.msra.mxu0 %v8493
        %8570 = vmatprep.subr.bf16.mxu0 0
        %8571 = vmatpush1.bf16.msra.mxu0 %v8492
        %8572 = vmatprep.subr.bf16.mxu0 0
        %8573 = vmatpush2.bf16.msra.mxu0 %v8507
        %8574 = vmatprep.subr.bf16.mxu0 0
        %8575 = vmatpush2.bf16.msra.mxu0 %v8506
        %8576 = vmatprep.subr.bf16.mxu0 0
        %8577 = vmatpush2.bf16.msra.mxu0 %v8505
        %8578 = vmatprep.subr.bf16.mxu0 0
        %8579 = vmatpush2.bf16.msra.mxu0 %v8504
        %8580 = vmatprep.subr.bf16.mxu0 0
        %8581 = vmatpush2.bf16.msra.mxu0 %v8503
        %8582 = vmatprep.subr.bf16.mxu0 0
        %8583 = vmatpush2.bf16.msra.mxu0 %v8502
        %8584 = vmatprep.subr.bf16.mxu0 0
        %8585 = vmatpush2.bf16.msra.mxu0 %v8501
        %8586 = vmatprep.subr.bf16.mxu0 0
        %8587 = vmatpush2.bf16.msra.mxu0 %v8500
        %8588 = vmatprep.mubr.bf16.mxu0 %v8477
        %8589 = vmatmul.mubr.bf16.gmra.mxu0 %v8476
        %v8590 = vpop.f32.mrf.mxu0
        %v8591 = vadd.f32 0.0, %v8590
        %v8592 = vpop.f32.mrf.mxu0
        %v8593 = vpop.f32.mrf.mxu0
        %v8594 = vadd.f32 0.0, %v8593
        %v8595 = vpop.f32.mrf.mxu0
        %8596 = vmatprep.mubr.bf16.mxu0 %v8485
        %8597 = vmatmul.mubr.bf16.gmra.mxu0 %v8484
        %v8598 = vpop.f32.mrf.mxu0
        %v8599 = vadd.f32 0.0, %v8598
        %v8600 = vpop.f32.mrf.mxu0
        %v8601 = vpop.f32.mrf.mxu0
        %v8602 = vadd.f32 0.0, %v8601
        %v8603 = vpop.f32.mrf.mxu0
        %8604 = vdwg.mxu0
        %8605 = vmatprep.subr.bf16.mxu0 0
        %8606 = vmatpush1.bf16.msra.mxu0 %v8515
        %8607 = vmatprep.subr.bf16.mxu0 0
        %8608 = vmatpush1.bf16.msra.mxu0 %v8514
        %8609 = vmatprep.subr.bf16.mxu0 0
        %8610 = vmatpush1.bf16.msra.mxu0 %v8513
        %8611 = vmatprep.subr.bf16.mxu0 0
        %8612 = vmatpush1.bf16.msra.mxu0 %v8512
        %8613 = vmatprep.subr.bf16.mxu0 0
        %8614 = vmatpush1.bf16.msra.mxu0 %v8511
        %8615 = vmatprep.subr.bf16.mxu0 0
        %8616 = vmatpush1.bf16.msra.mxu0 %v8510
        %8617 = vmatprep.subr.bf16.mxu0 0
        %8618 = vmatpush1.bf16.msra.mxu0 %v8509
        %8619 = vmatprep.subr.bf16.mxu0 0
        %8620 = vmatpush1.bf16.msra.mxu0 %v8508
        %8621 = vmatprep.subr.bf16.mxu0 0
        %8622 = vmatpush2.bf16.msra.mxu0 %v8523
        %8623 = vmatprep.subr.bf16.mxu0 0
        %8624 = vmatpush2.bf16.msra.mxu0 %v8522
        %8625 = vmatprep.subr.bf16.mxu0 0
        %8626 = vmatpush2.bf16.msra.mxu0 %v8521
        %8627 = vmatprep.subr.bf16.mxu0 0
        %8628 = vmatpush2.bf16.msra.mxu0 %v8520
        %8629 = vmatprep.subr.bf16.mxu0 0
        %8630 = vmatpush2.bf16.msra.mxu0 %v8519
        %8631 = vmatprep.subr.bf16.mxu0 0
        %8632 = vmatpush2.bf16.msra.mxu0 %v8518
        %8633 = vmatprep.subr.bf16.mxu0 0
        %8634 = vmatpush2.bf16.msra.mxu0 %v8517
        %8635 = vmatprep.subr.bf16.mxu0 0
        %8636 = vmatpush2.bf16.msra.mxu0 %v8516
        %8637 = vmatprep.mubr.bf16.mxu0 %v8479
        %8638 = vmatmul.mubr.bf16.gmra.mxu0 %v8478
        %v8639 = vpop.f32.mrf.mxu0
        %v8640 = vadd.f32 %v8591, %v8639
        %v8641 = vpop.f32.mrf.mxu0
        %v8642 = vpop.f32.mrf.mxu0
        %v8643 = vadd.f32 %v8594, %v8642
        %v8644 = vpop.f32.mrf.mxu0
        %8645 = vmatprep.mubr.bf16.mxu0 %v8487
        %8646 = vmatmul.mubr.bf16.gmra.mxu0 %v8486
        %v8647 = vpop.f32.mrf.mxu0
        %v8648 = vadd.f32 %v8599, %v8647
        %v8649 = vpop.f32.mrf.mxu0
        %v8650 = vpop.f32.mrf.mxu0
        %v8651 = vadd.f32 %v8602, %v8650
        %v8652 = vpop.f32.mrf.mxu0
        %8653 = vdwg.mxu0
        %8654 = vmatprep.subr.bf16.mxu0 0
        %8655 = vmatpush1.bf16.msra.mxu0 %v8531
        %8656 = vmatprep.subr.bf16.mxu0 0
        %8657 = vmatpush1.bf16.msra.mxu0 %v8530
        %8658 = vmatprep.subr.bf16.mxu0 0
        %8659 = vmatpush1.bf16.msra.mxu0 %v8529
        %8660 = vmatprep.subr.bf16.mxu0 0
        %8661 = vmatpush1.bf16.msra.mxu0 %v8528
        %8662 = vmatprep.subr.bf16.mxu0 0
        %8663 = vmatpush1.bf16.msra.mxu0 %v8527
        %8664 = vmatprep.subr.bf16.mxu0 0
        %8665 = vmatpush1.bf16.msra.mxu0 %v8526
        %8666 = vmatprep.subr.bf16.mxu0 0
        %8667 = vmatpush1.bf16.msra.mxu0 %v8525
        %8668 = vmatprep.subr.bf16.mxu0 0
        %8669 = vmatpush1.bf16.msra.mxu0 %v8524
        %8670 = vmatprep.subr.bf16.mxu0 0
        %8671 = vmatpush2.bf16.msra.mxu0 %v8539
        %8672 = vmatprep.subr.bf16.mxu0 0
        %8673 = vmatpush2.bf16.msra.mxu0 %v8538
        %8674 = vmatprep.subr.bf16.mxu0 0
        %8675 = vmatpush2.bf16.msra.mxu0 %v8537
        %8676 = vmatprep.subr.bf16.mxu0 0
        %8677 = vmatpush2.bf16.msra.mxu0 %v8536
        %8678 = vmatprep.subr.bf16.mxu0 0
        %8679 = vmatpush2.bf16.msra.mxu0 %v8535
        %8680 = vmatprep.subr.bf16.mxu0 0
        %8681 = vmatpush2.bf16.msra.mxu0 %v8534
        %8682 = vmatprep.subr.bf16.mxu0 0
        %8683 = vmatpush2.bf16.msra.mxu0 %v8533
        %8684 = vmatprep.subr.bf16.mxu0 0
        %8685 = vmatpush2.bf16.msra.mxu0 %v8532
        %8686 = vmatprep.mubr.bf16.mxu0 %v8481
        %8687 = vmatmul.mubr.bf16.gmra.mxu0 %v8480
        %v8688 = vpop.f32.mrf.mxu0
        %v8689 = vadd.f32 %v8640, %v8688
        %v8690 = vpop.f32.mrf.mxu0
        %v8691 = vpop.f32.mrf.mxu0
        %v8692 = vadd.f32 %v8643, %v8691
        %v8693 = vpop.f32.mrf.mxu0
        %8694 = vmatprep.mubr.bf16.mxu0 %v8489
        %8695 = vmatmul.mubr.bf16.gmra.mxu0 %v8488
        %v8696 = vpop.f32.mrf.mxu0
        %v8697 = vadd.f32 %v8648, %v8696
        %v8698 = vpop.f32.mrf.mxu0
        %v8699 = vpop.f32.mrf.mxu0
        %v8700 = vadd.f32 %v8651, %v8699
        %v8701 = vpop.f32.mrf.mxu0
        %8702 = vdwg.mxu0
        %8703 = vmatprep.subr.bf16.mxu0 0
        %8704 = vmatpush1.bf16.msra.mxu0 %v8547
        %8705 = vmatprep.subr.bf16.mxu0 0
        %8706 = vmatpush1.bf16.msra.mxu0 %v8546
        %8707 = vmatprep.subr.bf16.mxu0 0
        %8708 = vmatpush1.bf16.msra.mxu0 %v8545
        %8709 = vmatprep.subr.bf16.mxu0 0
        %8710 = vmatpush1.bf16.msra.mxu0 %v8544
        %8711 = vmatprep.subr.bf16.mxu0 0
        %8712 = vmatpush1.bf16.msra.mxu0 %v8543
        %8713 = vmatprep.subr.bf16.mxu0 0
        %8714 = vmatpush1.bf16.msra.mxu0 %v8542
        %8715 = vmatprep.subr.bf16.mxu0 0
        %8716 = vmatpush1.bf16.msra.mxu0 %v8541
        %8717 = vmatprep.subr.bf16.mxu0 0
        %8718 = vmatpush1.bf16.msra.mxu0 %v8540
        %8719 = vmatprep.subr.bf16.mxu0 0
        %8720 = vmatpush2.bf16.msra.mxu0 %v8555
        %8721 = vmatprep.subr.bf16.mxu0 0
        %8722 = vmatpush2.bf16.msra.mxu0 %v8554
        %8723 = vmatprep.subr.bf16.mxu0 0
        %8724 = vmatpush2.bf16.msra.mxu0 %v8553
        %8725 = vmatprep.subr.bf16.mxu0 0
        %8726 = vmatpush2.bf16.msra.mxu0 %v8552
        %8727 = vmatprep.subr.bf16.mxu0 0
        %8728 = vmatpush2.bf16.msra.mxu0 %v8551
        %8729 = vmatprep.subr.bf16.mxu0 0
        %8730 = vmatpush2.bf16.msra.mxu0 %v8550
        %8731 = vmatprep.subr.bf16.mxu0 0
        %8732 = vmatpush2.bf16.msra.mxu0 %v8549
        %8733 = vmatprep.subr.bf16.mxu0 0
        %8734 = vmatpush2.bf16.msra.mxu0 %v8548
        %8735 = vmatprep.mubr.bf16.mxu0 %v8483
        %8736 = vmatmul.mubr.bf16.gmra.mxu0 %v8482
        %v8737 = vpop.f32.mrf.mxu0
        %v8738 = vadd.f32 %v8689, %v8737
        %v8739 = vpop.f32.mrf.mxu0
        %v8740 = vpop.f32.mrf.mxu0
        %v8741 = vadd.f32 %v8692, %v8740
        %v8742 = vpop.f32.mrf.mxu0
        %8743 = vmatprep.mubr.bf16.mxu0 %v8491
        %8744 = vmatmul.mubr.bf16.gmra.mxu0 %v8490
        %v8745 = vpop.f32.mrf.mxu0
        %v8746 = vadd.f32 %v8697, %v8745
        %v8747 = vpop.f32.mrf.mxu0
        %v8748 = vpop.f32.mrf.mxu0
        %v8749 = vadd.f32 %v8700, %v8748
        %v8750 = vpop.f32.mrf.mxu0
        %8751 = vdwg.mxu0
        %v8752 = vrcp.pop %v8738
        %v8753 = vrcp.pop %v8741
        %v8754 = vrcp.pop %v8746
        %v8755 = vrcp.pop %v8749
        %8760 = vrot.lane.b32.xlu0 %v8752, 32
        %v8761 = vpop.permute.xlu0 %8760
        %8762 = vrot.lane.b32.xlu0 %v8753, 32
        %v8763 = vpop.permute.xlu0 %8762
        %8764 = vrot.lane.b32.xlu0 %v8754, 32
        %v8765 = vpop.permute.xlu0 %8764
        %8766 = vrot.lane.b32.xlu0 %v8755, 32
        %v8767 = vpop.permute.xlu0 %8766
        %v8772 = vmul.f32 %v8738, %v8761
        %v8773 = vmul.f32 %v8741, %v8763
        %v8774 = vmul.f32 %v8746, %v8765
        %v8775 = vmul.f32 %v8749, %v8767
        %v8776 = vld [vmem:[%s15] sm:$0xff]
        %v8777 = vld [vmem:[%s15 + $0x8] sm:$0xff]
        %v8778 = vld [vmem:[%s15 + $0x10] sm:$0xff]
        %v8779 = vld [vmem:[%s15 + $0x18] sm:$0xff]
        %v8780 = vld [vmem:[%s16] sm:$0x1]
        %v8782 = vlaneseq
        %v8783 = vshrl.u32 %v8782, 7
        %v8784 = vsub.s32 0, %v8783
        %v8785 = vrot.slane %v8780, %v8784
        %8791 = vrot.lane.b32.xlu0 %v8772, 96
        %v8792 = vpop.permute.xlu0 %8791
        %8793 = vrot.lane.b32.xlu0 %v8773, 96
        %v8794 = vpop.permute.xlu0 %8793
        %8795 = vrot.lane.b32.xlu0 %v8774, 96
        %v8796 = vpop.permute.xlu0 %8795
        %8797 = vrot.lane.b32.xlu0 %v8775, 96
        %v8798 = vpop.permute.xlu0 %8797
        %v8799 = vsel %vm4038, %v8792, 0
        %v8801 = vsel %vm4038, %v8794, 0
        %v8803 = vsel %vm4038, %v8796, 0
        %v8805 = vsel %vm4038, %v8798, 0
        %8807 = vmatprep.subr.mxu0 0.0
        %8808 = vmatpush1.msra.mxu0 0.0
        %8809 = vmatprep.subr.mxu0 0.0
        %8810 = vmatpush1.msra.mxu0 0.0
        %8811 = vmatprep.subr.mxu0 0.0
        %8812 = vmatpush1.msra.mxu0 0.0
        %8813 = vmatprep.subr.mxu0 0.0
        %8814 = vmatpush1.msra.mxu0 0.0
        %8815 = vmatprep.subr.mxu0 0.0
        %8816 = vmatpush1.msra.mxu0 0.0
        %8817 = vmatprep.subr.mxu0 0.0
        %8818 = vmatpush1.msra.mxu0 0.0
        %8819 = vmatprep.subr.mxu0 0.0
        %8820 = vmatpush1.msra.mxu0 0.0
        %8821 = vmatprep.subr.mxu0 0.0
        %8822 = vmatpush1.msra.mxu0 0.0
        %8823 = vmatprep.subr.mxu0 0.0
        %8824 = vmatpush1.msra.mxu0 0.0
        %8825 = vmatprep.subr.mxu0 0.0
        %8826 = vmatpush1.msra.mxu0 0.0
        %8827 = vmatprep.subr.mxu0 0.0
        %8828 = vmatpush1.msra.mxu0 0.0
        %8829 = vmatprep.subr.mxu0 0.0
        %8830 = vmatpush1.msra.mxu0 0.0
        %8831 = vmatprep.subr.mxu0 0.0
        %8832 = vmatpush1.msra.mxu0 %v8779
        %8833 = vmatprep.subr.mxu0 0.0
        %8834 = vmatpush1.msra.mxu0 %v8778
        %8835 = vmatprep.subr.mxu0 0.0
        %8836 = vmatpush1.msra.mxu0 %v8777
        %8837 = vmatprep.subr.mxu0 0.0
        %8838 = vmatpush1.msra.mxu0 %v8776
        %8839 = vmatprep.subr.mxu0 0.0
        %8840 = vmatpush2.msra.mxu0 0.0
        %8841 = vmatprep.subr.mxu0 0.0
        %8842 = vmatpush2.msra.mxu0 0.0
        %8843 = vmatprep.subr.mxu0 0.0
        %8844 = vmatpush2.msra.mxu0 0.0
        %8845 = vmatprep.subr.mxu0 0.0
        %8846 = vmatpush2.msra.mxu0 0.0
        %8847 = vmatprep.subr.mxu0 0.0
        %8848 = vmatpush2.msra.mxu0 0.0
        %8849 = vmatprep.subr.mxu0 0.0
        %8850 = vmatpush2.msra.mxu0 0.0
        %8851 = vmatprep.subr.mxu0 0.0
        %8852 = vmatpush2.msra.mxu0 0.0
        %8853 = vmatprep.subr.mxu0 0.0
        %8854 = vmatpush2.msra.mxu0 0.0
        %8855 = vmatprep.subr.mxu0 0.0
        %8856 = vmatpush2.msra.mxu0 0.0
        %8857 = vmatprep.subr.mxu0 0.0
        %8858 = vmatpush2.msra.mxu0 0.0
        %8859 = vmatprep.subr.mxu0 0.0
        %8860 = vmatpush2.msra.mxu0 0.0
        %8861 = vmatprep.subr.mxu0 0.0
        %8862 = vmatpush2.msra.mxu0 0.0
        %8863 = vmatprep.subr.mxu0 0.0
        %8864 = vmatpush2.msra.mxu0 0.0
        %8865 = vmatprep.subr.mxu0 0.0
        %8866 = vmatpush2.msra.mxu0 0.0
        %8867 = vmatprep.subr.mxu0 0.0
        %8868 = vmatpush2.msra.mxu0 0.0
        %8869 = vmatprep.subr.mxu0 0.0
        %8870 = vmatpush2.msra.mxu0 0.0
        %8871 = vmatprep.mubr.f32.mxu0 0.0
        %8872 = vmatmul.mubr.f32.gmra.mxu0 %v8799
        %v8873 = vpop.f32.mrf.mxu0
        %v8874 = vadd.f32 %v8785, %v8873
        %v8875 = vpop.f32.mrf.mxu0
        %8876 = vmatprep.mubr.f32.mxu0 0.0
        %8877 = vmatmul.mubr.f32.gmra.mxu0 %v8801
        %v8878 = vpop.f32.mrf.mxu0
        %v8879 = vadd.f32 %v8785, %v8878
        %v8880 = vpop.f32.mrf.mxu0
        %8881 = vmatprep.mubr.f32.mxu0 0.0
        %8882 = vmatmul.mubr.f32.gmra.mxu0 %v8803
        %v8883 = vpop.f32.mrf.mxu0
        %v8884 = vadd.f32 %v8785, %v8883
        %v8885 = vpop.f32.mrf.mxu0
        %8886 = vmatprep.mubr.f32.mxu0 0.0
        %8887 = vmatmul.mubr.f32.gmra.mxu0 %v8805
        %v8888 = vpop.f32.mrf.mxu0
        %v8889 = vadd.f32 %v8785, %v8888
        %v8890 = vpop.f32.mrf.mxu0
        %8891 = vdwg.mxu0
        %v8892 = vmax.f32 %v8874, 0.0
        %v8893 = vmax.f32 %v8879, 0.0
        %v8894 = vmax.f32 %v8884, 0.0
        %v8895 = vmax.f32 %v8889, 0.0
        %8896 = vst.msk [vmem:[%s586] sm:$0xff] %vm4038, %v8892
        %8897 = vst.msk [vmem:[%s586 + $0x8] sm:$0xff] %vm4038, %v8893
        %8898 = vst.msk [vmem:[%s586 + $0x10] sm:$0xff] %vm4038, %v8894
        %8899 = vst.msk [vmem:[%s586 + $0x18] sm:$0xff] %vm4038, %v8895
        %s8900 = sand.u32 %s416, 1
        %s8901 = scalar_lea.sflag [#allocation3], %s8900
        %s8902 = sand.u32 %s416, 1
        %s8903 = smul.addr %s8902, 32
        %s8904 = scalar_lea.vmem [#allocation2], %s8903
        // Predicated region
        $region89: #{tpu_custom_call.1} parent=87 // pred_check
          %p8905 = pneg %p426
        $region90: #{tpu_custom_call.1} parent=87 // pred_check_branch
          %8907 = sbr.rel (%p8905) target = $region92
        $region91: #{tpu_custom_call.1} parent=87 // pred_region
          %s8909 = ssub.s32 512, 512
          %8910 = vsyncadd %s8901, %s8909
          %s8911 = smul.addr %s31, 4
          %s8912 = smul.addr %s8911, 128
          %s8913 = scalar_lea.hbm %s17, %s8912
          %s8914 = sshll.u32 %s8904, 4
          %s8915 = int_to_ptr.vmem [resolvable:$true] %s8914
          %8920 = dma.vmem_to_hbm [thread:$0]  %s8915, 512, %s8913, %s8901, 128, 128, 8
        $region92: #{tpu_custom_call.1} parent=87 // pred_fallthru
          _
      $region88: #{tpu_custom_call.1} parent=5 // pred_fallthru
        _
      %p8921 = scmp.le.s32.totalorder 2, %s26
      // Predicated region
      $region93: #{tpu_custom_call.1} parent=5 // pred_check
        %p8922 = pneg %p8921
      $region94: #{tpu_custom_call.1} parent=5 // pred_check_branch
        %8924 = sbr.rel (%p8922) target = $region96
      $region95: #{tpu_custom_call.1} parent=5 // pred_region
        %s8925 = ssub.s32 %s26, 2
        // Predicated region
        $region97: #{tpu_custom_call.1} parent=95 // pred_check
          %p8926 = pneg %p432
        $region98: #{tpu_custom_call.1} parent=95 // pred_check_branch
          %8928 = sbr.rel (%p8926) target = $region100
        $region99: #{tpu_custom_call.1} parent=95 // pred_region
          %s8929 = sand.u32 %s417, 1
          %s8930 = scalar_lea.sflag [#allocation3], %s8929
          %s8931 = sand.u32 %s417, 1
          %s8932 = smul.addr %s8931, 32
          %s8933 = scalar_lea.vmem [#allocation2], %s8932
          %8934 = dma.done %s8930, 512
        $region100: #{tpu_custom_call.1} parent=95 // pred_fallthru
          _
      $region96: #{tpu_custom_call.1} parent=5 // pred_fallthru
        _
    $region6: #{tpu_custom_call.1} parent=1 // loop_footer
      %s30 = sadd.s32 1, %s26
    $region7: #{tpu_custom_call.1} parent=1 // loop_footer_branch
      %25 = sbr.rel target = $region3
    $region8: #{tpu_custom_call.1} parent=1 // loop_exit
      _
    %8935 = vsyncpa [#allocation3], 1
    %s8936 = scalar_lea.sflag [#allocation3], 1
    %8937 = vsyncpa %s8936, 1

</llo_original>
